<compile_context>
chip_gen: v6e
topology: v6e:2x2x1
jax: 0.10.0
libtpu: 0.0.40
codegen_flags: <defaults>
</compile_context>

<pallas_src>
import functools
import math

import jax
import jax.numpy as jnp
from jax.experimental import pallas as pl
from jax.experimental.pallas import tpu as pltpu

# -------------------------- configuration (small CLIP) ----------------------
CFG = dict(
    image_size=16, patch=8, channels=3,
    v_dim=32, v_heads=4, v_layers=2, v_mlp=64,
    t_dim=32, t_heads=4, t_layers=2, t_mlp=64,
    vocab=64, max_text=8, proj=16,
)
NUM_PATCHES = (CFG['image_size'] // CFG['patch']) ** 2      # 4
S_VIS = 8                 # 1 + NUM_PATCHES = 5, padded to a full sublane tile
S_TXT = CFG['max_text']   # 8
CPP = CFG['channels'] * CFG['patch'] * CFG['patch']         # 192
CPP_PAD = 256             # patch pixel vector padded to 2 full lane tiles

D_PAD = 128               # hidden dim 32  -> one full lane vector
MLP_PAD = 128             # mlp dim 64     -> padded
PROJ_PAD = 128            # projection 16  -> padded
EPS = 1e-5
NEG = -1e9

LAYER_KEYS = ('ln1_g', 'ln1_b', 'qkv_w', 'qkv_b', 'o_w', 'o_b',
              'ln2_g', 'ln2_b', 'fc1_w', 'fc1_b', 'fc2_w', 'fc2_b')


def _fullspec(shape):
    nd = len(shape)
    return pl.BlockSpec(shape, lambda *_: (0,) * nd)


# ----------------------- in-kernel helpers (values only) ---------------------
def _ln(x, g, b, d_real):
    """LayerNorm over the *real* feature width (centered variance, lane-masked).
    Padded lanes of x/g/b are zero, so padded output lanes stay exactly zero."""
    lane = jax.lax.broadcasted_iota(jnp.int32, (1, x.shape[-1]), 1)
    lmask = (lane < d_real).astype(jnp.float32)
    mu = jnp.sum(x, axis=-1, keepdims=True) * (1.0 / d_real)
    xc = x - mu
    var = jnp.sum(xc * xc * lmask, axis=-1, keepdims=True) * (1.0 / d_real)
    return xc * jax.lax.rsqrt(var + EPS) * g + b


def _dot_tb(a, b):
    """a @ b.T via dot_general (contract last dims), avoids explicit transpose."""
    return jax.lax.dot_general(a, b, (((1,), (1,)), ((), ())),
                               preferred_element_type=jnp.float32)


def _encoder_layer(x, w, attn_bias, *, heads, dh, d_real):
    """Pre-LN transformer block on one (S, D_PAD) batch slab.
    Each head occupies its own full 128-lane block in qkv / o_w."""
    (ln1_g, ln1_b, qkv_w, qkv_b, o_w, o_b,
     ln2_g, ln2_b, fc1_w, fc1_b, fc2_w, fc2_b) = w
    HP = heads * D_PAD
    scale = 1.0 / math.sqrt(dh)

    h1 = _ln(x, ln1_g, ln1_b, d_real)
    qkv = jnp.dot(h1, qkv_w, preferred_element_type=jnp.float32) + qkv_b

    heads_out = []
    for hd in range(heads):                      # 128-lane aligned slices
        q = qkv[:, hd * D_PAD:(hd + 1) * D_PAD]
        k = qkv[:, HP + hd * D_PAD:HP + (hd + 1) * D_PAD]
        v = qkv[:, 2 * HP + hd * D_PAD:2 * HP + (hd + 1) * D_PAD]
        s = _dot_tb(q, k) * scale + attn_bias                   # (S, S)
        s = s - jnp.max(s, axis=-1, keepdims=True)
        p = jnp.exp(s)
        p = p / jnp.sum(p, axis=-1, keepdims=True)
        heads_out.append(jnp.dot(p, v, preferred_element_type=jnp.float32))
    merged = jnp.concatenate(heads_out, axis=-1)                # (S, heads*128)
    attn = jnp.dot(merged, o_w, preferred_element_type=jnp.float32) + o_b
    x = x + attn                                                # residual 1

    h2 = _ln(x, ln2_g, ln2_b, d_real)
    f = jnp.dot(h2, fc1_w, preferred_element_type=jnp.float32) + fc1_b
    f = f * jax.nn.sigmoid(1.702 * f)                           # quick_gelu
    f = jnp.dot(f, fc2_w, preferred_element_type=jnp.float32) + fc2_b
    return x + f                                                # residual 2


# ------------------------------- Pallas kernels ------------------------------
def _vision_tower_kernel(patches_ref, pw_ref, pos_ref, pg_ref, pb_ref, *rest,
                         heads, dh, d_real, S, n_real, n_layers):
    """Fused vision tower: (layer==0) patch embed + pre-LN, then one encoder
    layer per grid step; activations stay resident in VMEM scratch."""
    layer_refs = rest[:12]
    o_ref, xs_ref = rest[12], rest[13]
    l = pl.program_id(1)

    @pl.when(l == 0)
    def _():
        emb = jnp.dot(patches_ref[...], pw_ref[...],
                      preferred_element_type=jnp.float32) + pos_ref[...]
        xs_ref[...] = _ln(emb, pg_ref[...], pb_ref[...], d_real)

    # mask padded key rows (positions >= n_real); query pad rows are unused
    col = jax.lax.broadcasted_iota(jnp.int32, (S, S), 1)
    bias = jnp.where(col >= n_real, NEG, 0.0).astype(jnp.float32)

    w = tuple(r[...] for r in layer_refs)
    y = _encoder_layer(xs_ref[...], w, bias, heads=heads, dh=dh, d_real=d_real)
    xs_ref[...] = y

    @pl.when(l == n_layers - 1)
    def _():
        o_ref[...] = y


def _text_tower_kernel(lens_ref, x_ref, *rest, heads, dh, d_real, S, n_layers):
    """Fused text tower: causal + pad mask built in-kernel from SMEM lengths."""
    layer_refs = rest[:12]
    o_ref, xs_ref = rest[12], rest[13]
    b = pl.program_id(0)
    l = pl.program_id(1)

    @pl.when(l == 0)
    def _():
        xs_ref[...] = x_ref[...]

    seq_len = lens_ref[b]
    row = jax.lax.broadcasted_iota(jnp.int32, (S, S), 0)
    col = jax.lax.broadcasted_iota(jnp.int32, (S, S), 1)
    bias = jnp.where(jnp.logical_or(col > row, col >= seq_len),
                     NEG, 0.0).astype(jnp.float32)

    w = tuple(r[...] for r in layer_refs)
    y = _encoder_layer(xs_ref[...], w, bias, heads=heads, dh=dh, d_real=d_real)
    xs_ref[...] = y

    @pl.when(l == n_layers - 1)
    def _():
        o_ref[...] = y


def _head_kernel(vp_ref, tp_ref, vg_ref, vb_ref, tg_ref, tb_ref,
                 vproj_ref, tproj_ref, ls_ref, ppi_ref, ppt_ref, *, v_d, t_d):
    """Fused pooled heads + contrastive head:
    LN + projection for both towers, L2 normalize, scaled logits, softmaxes."""
    img = _ln(vp_ref[...], vg_ref[...], vb_ref[...], v_d)
    img = jnp.dot(img, vproj_ref[...], preferred_element_type=jnp.float32)
    txt = _ln(tp_ref[...], tg_ref[...], tb_ref[...], t_d)
    txt = jnp.dot(txt, tproj_ref[...], preferred_element_type=jnp.float32)

    img = img * jax.lax.rsqrt(jnp.sum(img * img, axis=-1, keepdims=True))
    txt = txt * jax.lax.rsqrt(jnp.sum(txt * txt, axis=-1, keepdims=True))

    scale = jnp.exp(ls_ref[0, 0])
    logits_pt = _dot_tb(txt, img) * scale      # (Nt, Ni)
    logits_pi = _dot_tb(img, txt) * scale      # (Ni, Nt)

    def _softmax(z):
        z = z - jnp.max(z, axis=-1, keepdims=True)
        e = jnp.exp(z)
        return e / jnp.sum(e, axis=-1, keepdims=True)

    ppi_ref[...] = _softmax(logits_pi)
    ppt_ref[...] = _softmax(logits_pt)


# ------------------------------ pallas_call wrappers --------------------------
def pallas_vision_tower(patches, patch_w, pos_slab, pre_g, pre_b, stack, *,
                        B, heads, d_real, n_real, n_layers):
    S = S_VIS
    dh = d_real // heads
    kernel = functools.partial(_vision_tower_kernel, heads=heads, dh=dh,
                               d_real=d_real, S=S, n_real=n_real,
                               n_layers=n_layers)
    in_specs = [
        pl.BlockSpec((S, CPP_PAD), lambda b, l: (b, 0)),     # per-batch patches
        pl.BlockSpec(patch_w.shape, lambda b, l: (0, 0)),
        pl.BlockSpec((S, D_PAD), lambda b, l: (0, 0)),       # cls+pos slab
        pl.BlockSpec((1, D_PAD), lambda b, l: (0, 0)),
        pl.BlockSpec((1, D_PAD), lambda b, l: (0, 0)),
    ] + [pl.BlockSpec((None,) + stack[k].shape[1:], lambda b, l: (l, 0, 0))
         for k in LAYER_KEYS]
    grid_spec = pltpu.PrefetchScalarGridSpec(
        num_scalar_prefetch=0, grid=(B, n_layers),
        in_specs=in_specs,
        out_specs=pl.BlockSpec((S, D_PAD), lambda b, l: (b, 0)),
        scratch_shapes=[pltpu.VMEM((S, D_PAD), jnp.float32)])
    return pl.pallas_call(
        kernel,
        grid_spec=grid_spec,
        out_shape=jax.ShapeDtypeStruct((B * S, D_PAD), jnp.float32),
        compiler_params=pltpu.CompilerParams(
            dimension_semantics=("parallel", "arbitrary")),
    )(patches, patch_w, pos_slab, pre_g, pre_b,
      *[stack[k] for k in LAYER_KEYS])


def pallas_text_tower(lens, x2d, stack, *, B, heads, d_real, n_layers):
    S = S_TXT
    dh = d_real // heads
    kernel = functools.partial(_text_tower_kernel, heads=heads, dh=dh,
                               d_real=d_real, S=S, n_layers=n_layers)
    in_specs = [
        pl.BlockSpec((S, D_PAD), lambda b, l, lens_ref: (b, 0)),
    ] + [pl.BlockSpec((None,) + stack[k].shape[1:],
                      lambda b, l, lens_ref: (l, 0, 0))
         for k in LAYER_KEYS]
    grid_spec = pltpu.PrefetchScalarGridSpec(
        num_scalar_prefetch=1, grid=(B, n_layers),
        in_specs=in_specs,
        out_specs=pl.BlockSpec((S, D_PAD), lambda b, l, lens_ref: (b, 0)),
        scratch_shapes=[pltpu.VMEM((S, D_PAD), jnp.float32)])
    return pl.pallas_call(
        kernel,
        grid_spec=grid_spec,
        out_shape=jax.ShapeDtypeStruct((B * S, D_PAD), jnp.float32),
        compiler_params=pltpu.CompilerParams(
            dimension_semantics=("parallel", "arbitrary")),
    )(lens, x2d, *[stack[k] for k in LAYER_KEYS])


def pallas_clip_head(v_pooled, t_pooled, params):
    Ni, Nt = v_pooled.shape[0], t_pooled.shape[0]
    kernel = functools.partial(_head_kernel, v_d=CFG['v_dim'], t_d=CFG['t_dim'])
    ls = params['logit_scale'].reshape(1, 1).astype(jnp.float32)
    args = (v_pooled, t_pooled, params['v_post_ln_g'], params['v_post_ln_b'],
            params['t_final_ln_g'], params['t_final_ln_b'],
            params['visual_projection'], params['text_projection'], ls)
    return pl.pallas_call(
        kernel,
        out_shape=(jax.ShapeDtypeStruct((Ni, Nt), jnp.float32),
                   jax.ShapeDtypeStruct((Nt, Ni), jnp.float32)),
        in_specs=[_fullspec(a.shape) for a in args],
        out_specs=(_fullspec((Ni, Nt)), _fullspec((Nt, Ni))),
    )(*args)


# ------------------------------- model glue ----------------------------------
def encode_image(pixel_values, params):
    c = CFG
    B, C, H, W = pixel_values.shape
    p = c['patch']
    Hp, Wp = H // p, W // p
    n_patches = Hp * Wp
    # patch extraction for the stride==kernel conv (one-time layout plumbing)
    patches = pixel_values.reshape(B, C, Hp, p, Wp, p).transpose(0, 2, 4, 1, 3, 5)
    patches = patches.reshape(B, n_patches, C * p * p).astype(jnp.float32)
    # slab rows per batch: [CLS slot (zeros), patches, padding rows]
    slab = jnp.zeros((B, S_VIS, CPP_PAD), jnp.float32)
    slab = slab.at[:, 1:n_patches + 1, :C * p * p].set(patches)
    slab = slab.reshape(B * S_VIS, CPP_PAD)

    x = pallas_vision_tower(slab, params['patch_w'], params['v_pos_cls_slab'],
                            params['v_pre_ln_g'], params['v_pre_ln_b'],
                            params['v_stack'],
                            B=B, heads=c['v_heads'], d_real=c['v_dim'],
                            n_real=n_patches + 1, n_layers=c['v_layers'])
    return x.reshape(B, S_VIS, D_PAD)[:, 0, :]                 # CLS token


def encode_text(input_ids, attention_mask, params):
    c = CFG
    B, S = input_ids.shape
    tok = params['token_embedding'][input_ids]                 # gather (XLA)
    x = (tok + params['t_pos_embedding'][None, :S]).reshape(B * S, D_PAD)
    # TODO(synk): pad mask assumed contiguous (ones then zeros), as produced
    #             by the HF tokenizer; arbitrary masks would need the full map.
    lens = jnp.sum(attention_mask.astype(jnp.int32), axis=-1)  # (B,) SMEM
    x = pallas_text_tower(lens, x, params['t_stack'], B=B, heads=c['t_heads'],
                          d_real=c['t_dim'], n_layers=c['t_layers'])
    eot = jnp.argmax(input_ids, axis=-1)                       # CLIP EOS pooling
    # final LN is per-position, so pooling before LN is equivalent
    return x.reshape(B, S, D_PAD)[jnp.arange(B), eot]          # (B, D_PAD)


def clip_forward(input_ids, attention_mask, pixel_values, params):
    v_pooled = encode_image(pixel_values, params)              # (n_img, D_PAD)
    t_pooled = encode_text(input_ids, attention_mask, params)  # (n_txt, D_PAD)
    probs_per_image, probs_per_text = pallas_clip_head(v_pooled, t_pooled, params)
    return probs_per_image, probs_per_text


# ------------------------------ parameter init --------------------------------
def _pad2(w, shape):
    out = jnp.zeros(shape, jnp.float32)
    return out.at[:w.shape[0], :w.shape[1]].set(w.astype(jnp.float32))


def _pad_gb(d):
    g = jnp.zeros((1, D_PAD), jnp.float32).at[0, :d].set(1.0)
    b = jnp.zeros((1, D_PAD), jnp.float32)
    return g, b


def _layout_qkv_w(q_w, k_w, v_w, heads, dh, d):
    """Each head's Q/K/V gets its own full 128-lane output block."""
    W = jnp.zeros((D_PAD, 3 * heads * D_PAD), jnp.float32)
    for si, m in enumerate((q_w, k_w, v_w)):
        for h in range(heads):
            c0 = (si * heads + h) * D_PAD
            W = W.at[:d, c0:c0 + dh].set(m[:, h * dh:(h + 1) * dh])
    return W


def _layout_o_w(o_w, heads, dh, d):
    W = jnp.zeros((heads * D_PAD, D_PAD), jnp.float32)
    for h in range(heads):
        W = W.at[h * D_PAD:h * D_PAD + dh, :d].set(o_w[h * dh:(h + 1) * dh, :])
    return W


def _init_layer(key, d, mlp, heads):
    dh = d // heads
    ks = jax.random.split(key, 6)
    n = lambda k, s: (0.02 * jax.random.normal(k, s)).astype(jnp.float32)
    q_w, k_w, v_w, o_w = (n(ks[0], (d, d)), n(ks[1], (d, d)),
                          n(ks[2], (d, d)), n(ks[3], (d, d)))
    fc1_w, fc2_w = n(ks[4], (d, mlp)), n(ks[5], (mlp, d))
    ln1_g, ln1_b = _pad_gb(d)
    ln2_g, ln2_b = _pad_gb(d)
    return dict(
        ln1_g=ln1_g, ln1_b=ln1_b,
        qkv_w=_layout_qkv_w(q_w, k_w, v_w, heads, dh, d),
        qkv_b=jnp.zeros((1, 3 * heads * D_PAD), jnp.float32),
        o_w=_layout_o_w(o_w, heads, dh, d),
        o_b=jnp.zeros((1, D_PAD), jnp.float32),
        ln2_g=ln2_g, ln2_b=ln2_b,
        fc1_w=_pad2(fc1_w, (D_PAD, MLP_PAD)),
        fc1_b=jnp.zeros((1, MLP_PAD), jnp.float32),
        fc2_w=_pad2(fc2_w, (MLP_PAD, D_PAD)),
        fc2_b=jnp.zeros((1, D_PAD), jnp.float32),
    )


def _stack_layers(layers):
    return {k: jnp.stack([lp[k] for lp in layers], axis=0) for k in LAYER_KEYS}


def init_params(key):
    c = CFG
    keys = jax.random.split(key, 7 + c['v_layers'] + c['t_layers'])
    ki = iter(keys)
    n = lambda k, s: (0.02 * jax.random.normal(k, s)).astype(jnp.float32)
    d, td, pr = c['v_dim'], c['t_dim'], c['proj']

    patch_w_real = n(next(ki), (d, c['channels'], c['patch'], c['patch']))
    patch_w = _pad2(patch_w_real.reshape(d, CPP).T, (CPP_PAD, D_PAD))
    class_embedding = _pad2(n(next(ki), (1, d)), (1, D_PAD))
    v_pos = _pad2(n(next(ki), (NUM_PATCHES + 1, d)), (NUM_PATCHES + 1, D_PAD))
    v_pre_g, v_pre_b = _pad_gb(d)
    v_post_g, v_post_b = _pad_gb(d)
    visual_projection = _pad2(n(next(ki), (d, pr)), (D_PAD, PROJ_PAD))
    token_embedding = _pad2(n(next(ki), (c['vocab'], td)), (c['vocab'], D_PAD))
    t_pos = _pad2(n(next(ki), (c['max_text'], td)), (c['max_text'], D_PAD))
    t_fin_g, t_fin_b = _pad_gb(td)
    text_projection = _pad2(n(next(ki), (td, pr)), (D_PAD, PROJ_PAD))

    # per-batch-invariant vision slab: row0 = cls + pos[0]; rows 1..Np = pos;
    # rows Np+1..S_VIS-1 = 0 (padding positions, masked as attention keys)
    pos_slab = jnp.zeros((S_VIS, D_PAD), jnp.float32)
    pos_slab = pos_slab.at[0].set(class_embedding[0] + v_pos[0])
    pos_slab = pos_slab.at[1:NUM_PATCHES + 1].set(v_pos[1:])

    return dict(
        patch_w=patch_w, v_pos_cls_slab=pos_slab,
        v_pre_ln_g=v_pre_g, v_pre_ln_b=v_pre_b,
        v_post_ln_g=v_post_g, v_post_ln_b=v_post_b,
        visual_projection=visual_projection,
        token_embedding=token_embedding, t_pos_embedding=t_pos,
        t_final_ln_g=t_fin_g, t_final_ln_b=t_fin_b,
        text_projection=text_projection,
        logit_scale=jnp.asarray(math.log(1.0 / 0.07), jnp.float32),
        v_stack=_stack_layers([_init_layer(next(ki), d, c['v_mlp'], c['v_heads'])
                               for _ in range(c['v_layers'])]),
        t_stack=_stack_layers([_init_layer(next(ki), td, c['t_mlp'], c['t_heads'])
                               for _ in range(c['t_layers'])]),
    )


# ----------------------------------- main -------------------------------------
if __name__ == "__main__":
    key = jax.random.PRNGKey(0)
    k_param, k_img, k_txt = jax.random.split(key, 3)
    params = init_params(k_param)

    B = 2
    pixel_values = jax.random.normal(
        k_img, (B, CFG['channels'], CFG['image_size'], CFG['image_size']),
        dtype=jnp.float32)
    input_ids = jax.random.randint(k_txt, (B, CFG['max_text']), 1, CFG['vocab'],
                                   dtype=jnp.int32)
    attention_mask = jnp.ones((B, CFG['max_text']), jnp.int32)

    fwd = jax.jit(clip_forward)
    probs_per_image, probs_per_text = fwd(input_ids, attention_mask,
                                          pixel_values, params)
    jax.block_until_ready((probs_per_image, probs_per_text))

    assert probs_per_image.shape == (B, B) and probs_per_text.shape == (B, B)
    assert jnp.allclose(jnp.sum(probs_per_image, axis=1), 1.0, atol=1e-5)
    assert jnp.allclose(jnp.sum(probs_per_text, axis=1), 1.0, atol=1e-5)
    print("KERNEL_OK")
</pallas_src>

<mosaic_0001>
module attributes {stable_mosaic.version = 11 : i64} {
  func.func @_vision_tower_kernel(%arg0: i32, %arg1: i32, %arg2: memref<8x256xf32, #tpu.memory_space<vmem>>, %arg3: memref<256x128xf32, #tpu.memory_space<vmem>>, %arg4: memref<8x128xf32, #tpu.memory_space<vmem>>, %arg5: memref<1x128xf32, #tpu.memory_space<vmem>>, %arg6: memref<1x128xf32, #tpu.memory_space<vmem>>, %arg7: memref<1x1x128xf32, #tpu.memory_space<vmem>>, %arg8: memref<1x1x128xf32, #tpu.memory_space<vmem>>, %arg9: memref<1x128x1536xf32, #tpu.memory_space<vmem>>, %arg10: memref<1x1x1536xf32, #tpu.memory_space<vmem>>, %arg11: memref<1x512x128xf32, #tpu.memory_space<vmem>>, %arg12: memref<1x1x128xf32, #tpu.memory_space<vmem>>, %arg13: memref<1x1x128xf32, #tpu.memory_space<vmem>>, %arg14: memref<1x1x128xf32, #tpu.memory_space<vmem>>, %arg15: memref<1x128x128xf32, #tpu.memory_space<vmem>>, %arg16: memref<1x1x128xf32, #tpu.memory_space<vmem>>, %arg17: memref<1x128x128xf32, #tpu.memory_space<vmem>>, %arg18: memref<1x1x128xf32, #tpu.memory_space<vmem>>, %arg19: memref<8x128xf32, #tpu.memory_space<vmem>>, %arg20: memref<8x128xf32, #tpu.memory_space<vmem>>) attributes {dimension_semantics = [#tpu.dimension_semantics<parallel>, #tpu.dimension_semantics<arbitrary>], iteration_bounds = array<i64: 2, 2>, scalar_prefetch = 0 : i64, scratch_operands = 1 : i64, tpu.core_type = #tpu.core_type<tc>, window_params = [{transform_indices = @transform_0, window_bounds = array<i64: 8, 256>}, {pipeline_mode = #tpu.pipeline_mode<synchronous>, transform_indices = @transform_1, window_bounds = array<i64: 256, 128>}, {pipeline_mode = #tpu.pipeline_mode<synchronous>, transform_indices = @transform_2, window_bounds = array<i64: 8, 128>}, {pipeline_mode = #tpu.pipeline_mode<synchronous>, transform_indices = @transform_3, window_bounds = array<i64: 1, 128>}, {pipeline_mode = #tpu.pipeline_mode<synchronous>, transform_indices = @transform_4, window_bounds = array<i64: 1, 128>}, {transform_indices = @transform_5, window_bounds = array<i64: 1, 1, 128>}, {transform_indices = @transform_6, window_bounds = array<i64: 1, 1, 128>}, {transform_indices = @transform_7, window_bounds = array<i64: 1, 128, 1536>}, {transform_indices = @transform_8, window_bounds = array<i64: 1, 1, 1536>}, {transform_indices = @transform_9, window_bounds = array<i64: 1, 512, 128>}, {transform_indices = @transform_10, window_bounds = array<i64: 1, 1, 128>}, {transform_indices = @transform_11, window_bounds = array<i64: 1, 1, 128>}, {transform_indices = @transform_12, window_bounds = array<i64: 1, 1, 128>}, {transform_indices = @transform_13, window_bounds = array<i64: 1, 128, 128>}, {transform_indices = @transform_14, window_bounds = array<i64: 1, 1, 128>}, {transform_indices = @transform_15, window_bounds = array<i64: 1, 128, 128>}, {transform_indices = @transform_16, window_bounds = array<i64: 1, 1, 128>}, {transform_indices = @transform_17, window_bounds = array<i64: 8, 128>}]} {
    %c0_i32 = arith.constant 0 : i32
    %0 = arith.cmpi eq, %arg1, %c0_i32 : i32
    %1 = arith.extui %0 : i1 to i32
    %c0_i32_0 = arith.constant 0 : i32
    %2 = arith.cmpi ne, %1, %c0_i32_0 : i32
    scf.if %2 {
      %c0_79 = arith.constant 0 : index
      %c0_80 = arith.constant 0 : index
      %183 = vector.load %arg2[%c0_79, %c0_80] : memref<8x256xf32, #tpu.memory_space<vmem>>, vector<8x256xf32>
      %c0_81 = arith.constant 0 : index
      %c0_82 = arith.constant 0 : index
      %184 = vector.load %arg3[%c0_81, %c0_82] : memref<256x128xf32, #tpu.memory_space<vmem>>, vector<256x128xf32>
      %cst_83 = arith.constant dense<0.000000e+00> : vector<8x128xf32>
      %185 = tpu.matmul %183, %184, %cst_83 {dimension_numbers = #tpu.dot_dimension_numbers<[1], [0], [0], [1], [0, 0, 1, 1], [], []>} : vector<8x256xf32>, vector<256x128xf32>, vector<8x128xf32> -> vector<8x128xf32>
      %c0_84 = arith.constant 0 : index
      %c0_85 = arith.constant 0 : index
      %186 = vector.load %arg4[%c0_84, %c0_85] : memref<8x128xf32, #tpu.memory_space<vmem>>, vector<8x128xf32>
      %187 = arith.addf %185, %186 : vector<8x128xf32>
      %c0_86 = arith.constant 0 : index
      %c0_87 = arith.constant 0 : index
      %188 = vector.load %arg5[%c0_86, %c0_87] : memref<1x128xf32, #tpu.memory_space<vmem>>, vector<1x128xf32>
      %c0_88 = arith.constant 0 : index
      %c0_89 = arith.constant 0 : index
      %189 = vector.load %arg6[%c0_88, %c0_89] : memref<1x128xf32, #tpu.memory_space<vmem>>, vector<1x128xf32>
      %190 = tpu.iota {dimensions = array<i32: 1>} : vector<1x128xi32>
      %c32_i32_90 = arith.constant 32 : i32
      %191 = vector.broadcast %c32_i32_90 : i32 to vector<1x128xi32>
      %192 = arith.cmpi slt, %190, %191 : vector<1x128xi32>
      %193 = arith.extui %192 : vector<1x128xi1> to vector<1x128xi32>
      %194 = arith.sitofp %193 : vector<1x128xi32> to vector<1x128xf32>
      %cst_91 = arith.constant dense<0.000000e+00> : vector<8xf32>
      %195 = vector.multi_reduction <add>, %187, %cst_91 [1] : vector<8x128xf32> to vector<8xf32>
      %196 = vector.shape_cast %195 : vector<8xf32> to vector<8x1xf32>
      %cst_92 = arith.constant 3.125000e-02 : f32
      %197 = vector.broadcast %cst_92 : f32 to vector<8x1xf32>
      %198 = arith.mulf %196, %197 : vector<8x1xf32>
      %199 = vector.broadcast %198 : vector<8x1xf32> to vector<8x128xf32>
      %200 = arith.subf %187, %199 : vector<8x128xf32>
      %201 = arith.mulf %200, %200 : vector<8x128xf32>
      %202 = vector.broadcast %194 : vector<1x128xf32> to vector<8x128xf32>
      %203 = arith.mulf %201, %202 : vector<8x128xf32>
      %cst_93 = arith.constant dense<0.000000e+00> : vector<8xf32>
      %204 = vector.multi_reduction <add>, %203, %cst_93 [1] : vector<8x128xf32> to vector<8xf32>
      %205 = vector.shape_cast %204 : vector<8xf32> to vector<8x1xf32>
      %cst_94 = arith.constant 3.125000e-02 : f32
      %206 = vector.broadcast %cst_94 : f32 to vector<8x1xf32>
      %207 = arith.mulf %205, %206 : vector<8x1xf32>
      %cst_95 = arith.constant 9.99999974E-6 : f32
      %208 = vector.broadcast %cst_95 : f32 to vector<8x1xf32>
      %209 = arith.addf %207, %208 : vector<8x1xf32>
      %210 = math.rsqrt %209 : vector<8x1xf32>
      %211 = vector.broadcast %210 : vector<8x1xf32> to vector<8x128xf32>
      %212 = arith.mulf %200, %211 : vector<8x128xf32>
      %213 = vector.broadcast %188 : vector<1x128xf32> to vector<8x128xf32>
      %214 = arith.mulf %212, %213 : vector<8x128xf32>
      %215 = vector.broadcast %189 : vector<1x128xf32> to vector<8x128xf32>
      %216 = arith.addf %214, %215 : vector<8x128xf32>
      %c0_96 = arith.constant 0 : index
      %c0_97 = arith.constant 0 : index
      %217 = vector.load %arg20[%c0_96, %c0_97] : memref<8x128xf32, #tpu.memory_space<vmem>>, vector<8x128xf32>
      tpu.vector_store %arg20[%c0_96, %c0_97], %216 {strides = array<i32>} : memref<8x128xf32, #tpu.memory_space<vmem>>, vector<8x128xf32>,
    } else {
    }
    %3 = tpu.iota {dimensions = array<i32: 1>} : vector<8x8xi32>
    %c5_i32 = arith.constant 5 : i32
    %4 = vector.broadcast %c5_i32 : i32 to vector<8x8xi32>
    %5 = arith.cmpi sge, %3, %4 : vector<8x8xi32>
    %cst = arith.constant -1.000000e+09 : f32
    %cst_1 = arith.constant 0.000000e+00 : f32
    %6 = vector.broadcast %cst : f32 to vector<8x8xf32>
    %7 = vector.broadcast %cst_1 : f32 to vector<8x8xf32>
    %8 = arith.select %5, %6, %7 : vector<8x8xi1>, vector<8x8xf32>
    %c0 = arith.constant 0 : index
    %c0_2 = arith.constant 0 : index
    %c0_3 = arith.constant 0 : index
    %9 = vector.load %arg7[%c0, %c0_2, %c0_3] : memref<1x1x128xf32, #tpu.memory_space<vmem>>, vector<1x1x128xf32>
    %10 = vector.shape_cast %9 : vector<1x1x128xf32> to vector<1x128xf32>
    %c0_4 = arith.constant 0 : index
    %c0_5 = arith.constant 0 : index
    %c0_6 = arith.constant 0 : index
    %11 = vector.load %arg8[%c0_4, %c0_5, %c0_6] : memref<1x1x128xf32, #tpu.memory_space<vmem>>, vector<1x1x128xf32>
    %12 = vector.shape_cast %11 : vector<1x1x128xf32> to vector<1x128xf32>
    %c0_7 = arith.constant 0 : index
    %c0_8 = arith.constant 0 : index
    %c0_9 = arith.constant 0 : index
    %13 = vector.load %arg9[%c0_7, %c0_8, %c0_9] : memref<1x128x1536xf32, #tpu.memory_space<vmem>>, vector<1x128x1536xf32>
    %14 = vector.shape_cast %13 : vector<1x128x1536xf32> to vector<128x1536xf32>
    %c0_10 = arith.constant 0 : index
    %c0_11 = arith.constant 0 : index
    %c0_12 = arith.constant 0 : index
    %15 = vector.load %arg10[%c0_10, %c0_11, %c0_12] : memref<1x1x1536xf32, #tpu.memory_space<vmem>>, vector<1x1x1536xf32>
    %16 = vector.shape_cast %15 : vector<1x1x1536xf32> to vector<1x1536xf32>
    %c0_13 = arith.constant 0 : index
    %c0_14 = arith.constant 0 : index
    %c0_15 = arith.constant 0 : index
    %17 = vector.load %arg11[%c0_13, %c0_14, %c0_15] : memref<1x512x128xf32, #tpu.memory_space<vmem>>, vector<1x512x128xf32>
    %18 = vector.shape_cast %17 : vector<1x512x128xf32> to vector<512x128xf32>
    %c0_16 = arith.constant 0 : index
    %c0_17 = arith.constant 0 : index
    %c0_18 = arith.constant 0 : index
    %19 = vector.load %arg12[%c0_16, %c0_17, %c0_18] : memref<1x1x128xf32, #tpu.memory_space<vmem>>, vector<1x1x128xf32>
    %20 = vector.shape_cast %19 : vector<1x1x128xf32> to vector<1x128xf32>
    %c0_19 = arith.constant 0 : index
    %c0_20 = arith.constant 0 : index
    %c0_21 = arith.constant 0 : index
    %21 = vector.load %arg13[%c0_19, %c0_20, %c0_21] : memref<1x1x128xf32, #tpu.memory_space<vmem>>, vector<1x1x128xf32>
    %22 = vector.shape_cast %21 : vector<1x1x128xf32> to vector<1x128xf32>
    %c0_22 = arith.constant 0 : index
    %c0_23 = arith.constant 0 : index
    %c0_24 = arith.constant 0 : index
    %23 = vector.load %arg14[%c0_22, %c0_23, %c0_24] : memref<1x1x128xf32, #tpu.memory_space<vmem>>, vector<1x1x128xf32>
    %24 = vector.shape_cast %23 : vector<1x1x128xf32> to vector<1x128xf32>
    %c0_25 = arith.constant 0 : index
    %c0_26 = arith.constant 0 : index
    %c0_27 = arith.constant 0 : index
    %25 = vector.load %arg15[%c0_25, %c0_26, %c0_27] : memref<1x128x128xf32, #tpu.memory_space<vmem>>, vector<1x128x128xf32>
    %26 = vector.shape_cast %25 : vector<1x128x128xf32> to vector<128x128xf32>
    %c0_28 = arith.constant 0 : index
    %c0_29 = arith.constant 0 : index
    %c0_30 = arith.constant 0 : index
    %27 = vector.load %arg16[%c0_28, %c0_29, %c0_30] : memref<1x1x128xf32, #tpu.memory_space<vmem>>, vector<1x1x128xf32>
    %28 = vector.shape_cast %27 : vector<1x1x128xf32> to vector<1x128xf32>
    %c0_31 = arith.constant 0 : index
    %c0_32 = arith.constant 0 : index
    %c0_33 = arith.constant 0 : index
    %29 = vector.load %arg17[%c0_31, %c0_32, %c0_33] : memref<1x128x128xf32, #tpu.memory_space<vmem>>, vector<1x128x128xf32>
    %30 = vector.shape_cast %29 : vector<1x128x128xf32> to vector<128x128xf32>
    %c0_34 = arith.constant 0 : index
    %c0_35 = arith.constant 0 : index
    %c0_36 = arith.constant 0 : index
    %31 = vector.load %arg18[%c0_34, %c0_35, %c0_36] : memref<1x1x128xf32, #tpu.memory_space<vmem>>, vector<1x1x128xf32>
    %32 = vector.shape_cast %31 : vector<1x1x128xf32> to vector<1x128xf32>
    %c0_37 = arith.constant 0 : index
    %c0_38 = arith.constant 0 : index
    %33 = vector.load %arg20[%c0_37, %c0_38] : memref<8x128xf32, #tpu.memory_space<vmem>>, vector<8x128xf32>
    %34 = tpu.iota {dimensions = array<i32: 1>} : vector<1x128xi32>
    %c32_i32 = arith.constant 32 : i32
    %35 = vector.broadcast %c32_i32 : i32 to vector<1x128xi32>
    %36 = arith.cmpi slt, %34, %35 : vector<1x128xi32>
    %37 = arith.extui %36 : vector<1x128xi1> to vector<1x128xi32>
    %38 = arith.sitofp %37 : vector<1x128xi32> to vector<1x128xf32>
    %cst_39 = arith.constant dense<0.000000e+00> : vector<8xf32>
    %39 = vector.multi_reduction <add>, %33, %cst_39 [1] : vector<8x128xf32> to vector<8xf32>
    %40 = vector.shape_cast %39 : vector<8xf32> to vector<8x1xf32>
    %cst_40 = arith.constant 3.125000e-02 : f32
    %41 = vector.broadcast %cst_40 : f32 to vector<8x1xf32>
    %42 = arith.mulf %40, %41 : vector<8x1xf32>
    %43 = vector.broadcast %42 : vector<8x1xf32> to vector<8x128xf32>
    %44 = arith.subf %33, %43 : vector<8x128xf32>
    %45 = arith.mulf %44, %44 : vector<8x128xf32>
    %46 = vector.broadcast %38 : vector<1x128xf32> to vector<8x128xf32>
    %47 = arith.mulf %45, %46 : vector<8x128xf32>
    %cst_41 = arith.constant dense<0.000000e+00> : vector<8xf32>
    %48 = vector.multi_reduction <add>, %47, %cst_41 [1] : vector<8x128xf32> to vector<8xf32>
    %49 = vector.shape_cast %48 : vector<8xf32> to vector<8x1xf32>
    %cst_42 = arith.constant 3.125000e-02 : f32
    %50 = vector.broadcast %cst_42 : f32 to vector<8x1xf32>
    %51 = arith.mulf %49, %50 : vector<8x1xf32>
    %cst_43 = arith.constant 9.99999974E-6 : f32
    %52 = vector.broadcast %cst_43 : f32 to vector<8x1xf32>
    %53 = arith.addf %51, %52 : vector<8x1xf32>
    %54 = math.rsqrt %53 : vector<8x1xf32>
    %55 = vector.broadcast %54 : vector<8x1xf32> to vector<8x128xf32>
    %56 = arith.mulf %44, %55 : vector<8x128xf32>
    %57 = vector.broadcast %10 : vector<1x128xf32> to vector<8x128xf32>
    %58 = arith.mulf %56, %57 : vector<8x128xf32>
    %59 = vector.broadcast %12 : vector<1x128xf32> to vector<8x128xf32>
    %60 = arith.addf %58, %59 : vector<8x128xf32>
    %cst_44 = arith.constant dense<0.000000e+00> : vector<8x1536xf32>
    %61 = tpu.matmul %60, %14, %cst_44 {dimension_numbers = #tpu.dot_dimension_numbers<[1], [0], [0], [1], [0, 0, 1, 1], [], []>} : vector<8x128xf32>, vector<128x1536xf32>, vector<8x1536xf32> -> vector<8x1536xf32>
    %62 = vector.broadcast %16 : vector<1x1536xf32> to vector<8x1536xf32>
    %63 = arith.addf %61, %62 : vector<8x1536xf32>
    %64 = vector.extract_strided_slice %63 {offsets = [0, 0], sizes = [8, 128], strides = [1, 1]} : vector<8x1536xf32> to vector<8x128xf32>
    %65 = vector.extract_strided_slice %63 {offsets = [0, 512], sizes = [8, 128], strides = [1, 1]} : vector<8x1536xf32> to vector<8x128xf32>
    %66 = vector.extract_strided_slice %63 {offsets = [0, 1024], sizes = [8, 128], strides = [1, 1]} : vector<8x1536xf32> to vector<8x128xf32>
    %cst_45 = arith.constant dense<0.000000e+00> : vector<8x8xf32>
    %67 = tpu.matmul %64, %65, %cst_45 {dimension_numbers = #tpu.dot_dimension_numbers<[1], [1], [0], [0], [0, 0, 1, 0], [], []>} : vector<8x128xf32>, vector<8x128xf32>, vector<8x8xf32> -> vector<8x8xf32>
    %cst_46 = arith.constant 0.353553385 : f32
    %68 = vector.broadcast %cst_46 : f32 to vector<8x8xf32>
    %69 = arith.mulf %67, %68 : vector<8x8xf32>
    %70 = arith.addf %69, %8 : vector<8x8xf32>
    %cst_47 = arith.constant dense<0xFF800000> : vector<8xf32>
    %71 = vector.multi_reduction <maximumf>, %70, %cst_47 [1] : vector<8x8xf32> to vector<8xf32>
    %72 = vector.shape_cast %71 : vector<8xf32> to vector<8x1xf32>
    %73 = vector.broadcast %72 : vector<8x1xf32> to vector<8x8xf32>
    %74 = arith.subf %70, %73 : vector<8x8xf32>
    %75 = math.exp %74 : vector<8x8xf32>
    %cst_48 = arith.constant dense<0.000000e+00> : vector<8xf32>
    %76 = vector.multi_reduction <add>, %75, %cst_48 [1] : vector<8x8xf32> to vector<8xf32>
    %77 = vector.shape_cast %76 : vector<8xf32> to vector<8x1xf32>
    %78 = vector.broadcast %77 : vector<8x1xf32> to vector<8x8xf32>
    %79 = arith.divf %75, %78 : vector<8x8xf32>
    %cst_49 = arith.constant dense<0.000000e+00> : vector<8x128xf32>
    %80 = tpu.matmul %79, %66, %cst_49 {dimension_numbers = #tpu.dot_dimension_numbers<[1], [0], [0], [1], [0, 0, 1, 1], [], []>} : vector<8x8xf32>, vector<8x128xf32>, vector<8x128xf32> -> vector<8x128xf32>
    %81 = vector.extract_strided_slice %63 {offsets = [0, 128], sizes = [8, 128], strides = [1, 1]} : vector<8x1536xf32> to vector<8x128xf32>
    %82 = vector.extract_strided_slice %63 {offsets = [0, 640], sizes = [8, 128], strides = [1, 1]} : vector<8x1536xf32> to vector<8x128xf32>
    %83 = vector.extract_strided_slice %63 {offsets = [0, 1152], sizes = [8, 128], strides = [1, 1]} : vector<8x1536xf32> to vector<8x128xf32>
    %cst_50 = arith.constant dense<0.000000e+00> : vector<8x8xf32>
    %84 = tpu.matmul %81, %82, %cst_50 {dimension_numbers = #tpu.dot_dimension_numbers<[1], [1], [0], [0], [0, 0, 1, 0], [], []>} : vector<8x128xf32>, vector<8x128xf32>, vector<8x8xf32> -> vector<8x8xf32>
    %cst_51 = arith.constant 0.353553385 : f32
    %85 = vector.broadcast %cst_51 : f32 to vector<8x8xf32>
    %86 = arith.mulf %84, %85 : vector<8x8xf32>
    %87 = arith.addf %86, %8 : vector<8x8xf32>
    %cst_52 = arith.constant dense<0xFF800000> : vector<8xf32>
    %88 = vector.multi_reduction <maximumf>, %87, %cst_52 [1] : vector<8x8xf32> to vector<8xf32>
    %89 = vector.shape_cast %88 : vector<8xf32> to vector<8x1xf32>
    %90 = vector.broadcast %89 : vector<8x1xf32> to vector<8x8xf32>
    %91 = arith.subf %87, %90 : vector<8x8xf32>
    %92 = math.exp %91 : vector<8x8xf32>
    %cst_53 = arith.constant dense<0.000000e+00> : vector<8xf32>
    %93 = vector.multi_reduction <add>, %92, %cst_53 [1] : vector<8x8xf32> to vector<8xf32>
    %94 = vector.shape_cast %93 : vector<8xf32> to vector<8x1xf32>
    %95 = vector.broadcast %94 : vector<8x1xf32> to vector<8x8xf32>
    %96 = arith.divf %92, %95 : vector<8x8xf32>
    %cst_54 = arith.constant dense<0.000000e+00> : vector<8x128xf32>
    %97 = tpu.matmul %96, %83, %cst_54 {dimension_numbers = #tpu.dot_dimension_numbers<[1], [0], [0], [1], [0, 0, 1, 1], [], []>} : vector<8x8xf32>, vector<8x128xf32>, vector<8x128xf32> -> vector<8x128xf32>
    %98 = vector.extract_strided_slice %63 {offsets = [0, 256], sizes = [8, 128], strides = [1, 1]} : vector<8x1536xf32> to vector<8x128xf32>
    %99 = vector.extract_strided_slice %63 {offsets = [0, 768], sizes = [8, 128], strides = [1, 1]} : vector<8x1536xf32> to vector<8x128xf32>
    %100 = vector.extract_strided_slice %63 {offsets = [0, 1280], sizes = [8, 128], strides = [1, 1]} : vector<8x1536xf32> to vector<8x128xf32>
    %cst_55 = arith.constant dense<0.000000e+00> : vector<8x8xf32>
    %101 = tpu.matmul %98, %99, %cst_55 {dimension_numbers = #tpu.dot_dimension_numbers<[1], [1], [0], [0], [0, 0, 1, 0], [], []>} : vector<8x128xf32>, vector<8x128xf32>, vector<8x8xf32> -> vector<8x8xf32>
    %cst_56 = arith.constant 0.353553385 : f32
    %102 = vector.broadcast %cst_56 : f32 to vector<8x8xf32>
    %103 = arith.mulf %101, %102 : vector<8x8xf32>
    %104 = arith.addf %103, %8 : vector<8x8xf32>
    %cst_57 = arith.constant dense<0xFF800000> : vector<8xf32>
    %105 = vector.multi_reduction <maximumf>, %104, %cst_57 [1] : vector<8x8xf32> to vector<8xf32>
    %106 = vector.shape_cast %105 : vector<8xf32> to vector<8x1xf32>
    %107 = vector.broadcast %106 : vector<8x1xf32> to vector<8x8xf32>
    %108 = arith.subf %104, %107 : vector<8x8xf32>
    %109 = math.exp %108 : vector<8x8xf32>
    %cst_58 = arith.constant dense<0.000000e+00> : vector<8xf32>
    %110 = vector.multi_reduction <add>, %109, %cst_58 [1] : vector<8x8xf32> to vector<8xf32>
    %111 = vector.shape_cast %110 : vector<8xf32> to vector<8x1xf32>
    %112 = vector.broadcast %111 : vector<8x1xf32> to vector<8x8xf32>
    %113 = arith.divf %109, %112 : vector<8x8xf32>
    %cst_59 = arith.constant dense<0.000000e+00> : vector<8x128xf32>
    %114 = tpu.matmul %113, %100, %cst_59 {dimension_numbers = #tpu.dot_dimension_numbers<[1], [0], [0], [1], [0, 0, 1, 1], [], []>} : vector<8x8xf32>, vector<8x128xf32>, vector<8x128xf32> -> vector<8x128xf32>
    %115 = vector.extract_strided_slice %63 {offsets = [0, 384], sizes = [8, 128], strides = [1, 1]} : vector<8x1536xf32> to vector<8x128xf32>
    %116 = vector.extract_strided_slice %63 {offsets = [0, 896], sizes = [8, 128], strides = [1, 1]} : vector<8x1536xf32> to vector<8x128xf32>
    %117 = vector.extract_strided_slice %63 {offsets = [0, 1408], sizes = [8, 128], strides = [1, 1]} : vector<8x1536xf32> to vector<8x128xf32>
    %cst_60 = arith.constant dense<0.000000e+00> : vector<8x8xf32>
    %118 = tpu.matmul %115, %116, %cst_60 {dimension_numbers = #tpu.dot_dimension_numbers<[1], [1], [0], [0], [0, 0, 1, 0], [], []>} : vector<8x128xf32>, vector<8x128xf32>, vector<8x8xf32> -> vector<8x8xf32>
    %cst_61 = arith.constant 0.353553385 : f32
    %119 = vector.broadcast %cst_61 : f32 to vector<8x8xf32>
    %120 = arith.mulf %118, %119 : vector<8x8xf32>
    %121 = arith.addf %120, %8 : vector<8x8xf32>
    %cst_62 = arith.constant dense<0xFF800000> : vector<8xf32>
    %122 = vector.multi_reduction <maximumf>, %121, %cst_62 [1] : vector<8x8xf32> to vector<8xf32>
    %123 = vector.shape_cast %122 : vector<8xf32> to vector<8x1xf32>
    %124 = vector.broadcast %123 : vector<8x1xf32> to vector<8x8xf32>
    %125 = arith.subf %121, %124 : vector<8x8xf32>
    %126 = math.exp %125 : vector<8x8xf32>
    %cst_63 = arith.constant dense<0.000000e+00> : vector<8xf32>
    %127 = vector.multi_reduction <add>, %126, %cst_63 [1] : vector<8x8xf32> to vector<8xf32>
    %128 = vector.shape_cast %127 : vector<8xf32> to vector<8x1xf32>
    %129 = vector.broadcast %128 : vector<8x1xf32> to vector<8x8xf32>
    %130 = arith.divf %126, %129 : vector<8x8xf32>
    %cst_64 = arith.constant dense<0.000000e+00> : vector<8x128xf32>
    %131 = tpu.matmul %130, %117, %cst_64 {dimension_numbers = #tpu.dot_dimension_numbers<[1], [0], [0], [1], [0, 0, 1, 1], [], []>} : vector<8x8xf32>, vector<8x128xf32>, vector<8x128xf32> -> vector<8x128xf32>
    %132 = tpu.concatenate %80, %97, %114, %131 in 1 : vector<8x128xf32>, vector<8x128xf32>, vector<8x128xf32>, vector<8x128xf32> -> vector<8x512xf32>
    %cst_65 = arith.constant dense<0.000000e+00> : vector<8x128xf32>
    %133 = tpu.matmul %132, %18, %cst_65 {dimension_numbers = #tpu.dot_dimension_numbers<[1], [0], [0], [1], [0, 0, 1, 1], [], []>} : vector<8x512xf32>, vector<512x128xf32>, vector<8x128xf32> -> vector<8x128xf32>
    %134 = vector.broadcast %20 : vector<1x128xf32> to vector<8x128xf32>
    %135 = arith.addf %133, %134 : vector<8x128xf32>
    %136 = arith.addf %33, %135 : vector<8x128xf32>
    %137 = tpu.iota {dimensions = array<i32: 1>} : vector<1x128xi32>
    %c32_i32_66 = arith.constant 32 : i32
    %138 = vector.broadcast %c32_i32_66 : i32 to vector<1x128xi32>
    %139 = arith.cmpi slt, %137, %138 : vector<1x128xi32>
    %140 = arith.extui %139 : vector<1x128xi1> to vector<1x128xi32>
    %141 = arith.sitofp %140 : vector<1x128xi32> to vector<1x128xf32>
    %cst_67 = arith.constant dense<0.000000e+00> : vector<8xf32>
    %142 = vector.multi_reduction <add>, %136, %cst_67 [1] : vector<8x128xf32> to vector<8xf32>
    %143 = vector.shape_cast %142 : vector<8xf32> to vector<8x1xf32>
    %cst_68 = arith.constant 3.125000e-02 : f32
    %144 = vector.broadcast %cst_68 : f32 to vector<8x1xf32>
    %145 = arith.mulf %143, %144 : vector<8x1xf32>
    %146 = vector.broadcast %145 : vector<8x1xf32> to vector<8x128xf32>
    %147 = arith.subf %136, %146 : vector<8x128xf32>
    %148 = arith.mulf %147, %147 : vector<8x128xf32>
    %149 = vector.broadcast %141 : vector<1x128xf32> to vector<8x128xf32>
    %150 = arith.mulf %148, %149 : vector<8x128xf32>
    %cst_69 = arith.constant dense<0.000000e+00> : vector<8xf32>
    %151 = vector.multi_reduction <add>, %150, %cst_69 [1] : vector<8x128xf32> to vector<8xf32>
    %152 = vector.shape_cast %151 : vector<8xf32> to vector<8x1xf32>
    %cst_70 = arith.constant 3.125000e-02 : f32
    %153 = vector.broadcast %cst_70 : f32 to vector<8x1xf32>
    %154 = arith.mulf %152, %153 : vector<8x1xf32>
    %cst_71 = arith.constant 9.99999974E-6 : f32
    %155 = vector.broadcast %cst_71 : f32 to vector<8x1xf32>
    %156 = arith.addf %154, %155 : vector<8x1xf32>
    %157 = math.rsqrt %156 : vector<8x1xf32>
    %158 = vector.broadcast %157 : vector<8x1xf32> to vector<8x128xf32>
    %159 = arith.mulf %147, %158 : vector<8x128xf32>
    %160 = vector.broadcast %22 : vector<1x128xf32> to vector<8x128xf32>
    %161 = arith.mulf %159, %160 : vector<8x128xf32>
    %162 = vector.broadcast %24 : vector<1x128xf32> to vector<8x128xf32>
    %163 = arith.addf %161, %162 : vector<8x128xf32>
    %cst_72 = arith.constant dense<0.000000e+00> : vector<8x128xf32>
    %164 = tpu.matmul %163, %26, %cst_72 {dimension_numbers = #tpu.dot_dimension_numbers<[1], [0], [0], [1], [0, 0, 1, 1], [], []>} : vector<8x128xf32>, vector<128x128xf32>, vector<8x128xf32> -> vector<8x128xf32>
    %165 = vector.broadcast %28 : vector<1x128xf32> to vector<8x128xf32>
    %166 = arith.addf %164, %165 : vector<8x128xf32>
    %cst_73 = arith.constant 1.702000e+00 : f32
    %167 = vector.broadcast %cst_73 : f32 to vector<8x128xf32>
    %168 = arith.mulf %167, %166 : vector<8x128xf32>
    %169 = arith.negf %168 : vector<8x128xf32>
    %170 = math.exp %169 : vector<8x128xf32>
    %cst_74 = arith.constant 1.000000e+00 : f32
    %171 = vector.broadcast %cst_74 : f32 to vector<8x128xf32>
    %172 = arith.addf %171, %170 : vector<8x128xf32>
    %173 = arith.divf %171, %172 : vector<8x128xf32>
    %174 = arith.mulf %166, %173 : vector<8x128xf32>
    %cst_75 = arith.constant dense<0.000000e+00> : vector<8x128xf32>
    %175 = tpu.matmul %174, %30, %cst_75 {dimension_numbers = #tpu.dot_dimension_numbers<[1], [0], [0], [1], [0, 0, 1, 1], [], []>} : vector<8x128xf32>, vector<128x128xf32>, vector<8x128xf32> -> vector<8x128xf32>
    %176 = vector.broadcast %32 : vector<1x128xf32> to vector<8x128xf32>
    %177 = arith.addf %175, %176 : vector<8x128xf32>
    %178 = arith.addf %136, %177 : vector<8x128xf32>
    %c0_76 = arith.constant 0 : index
    %c0_77 = arith.constant 0 : index
    %179 = vector.load %arg20[%c0_76, %c0_77] : memref<8x128xf32, #tpu.memory_space<vmem>>, vector<8x128xf32>
    tpu.vector_store %arg20[%c0_76, %c0_77], %178 {strides = array<i32>} : memref<8x128xf32, #tpu.memory_space<vmem>>, vector<8x128xf32>,
    %c1_i32 = arith.constant 1 : i32
    %180 = arith.cmpi eq, %arg1, %c1_i32 : i32
    %181 = arith.extui %180 : i1 to i32
    %c0_i32_78 = arith.constant 0 : i32
    %182 = arith.cmpi ne, %181, %c0_i32_78 : i32
    scf.if %182 {
      %c0_79 = arith.constant 0 : index
      %c0_80 = arith.constant 0 : index
      %183 = vector.load %arg19[%c0_79, %c0_80] : memref<8x128xf32, #tpu.memory_space<vmem>>, vector<8x128xf32>
      tpu.vector_store %arg19[%c0_79, %c0_80], %178 {strides = array<i32>} : memref<8x128xf32, #tpu.memory_space<vmem>>, vector<8x128xf32>,
    } else {
    }
    return
  }
  func.func @transform_0(%arg0: i32, %arg1: i32) -> (i32, i32) {
    %c0_i32 = arith.constant 0 : i32
    %c0_i32_0 = arith.constant 0 : i32
    return %arg0, %c0_i32 : i32, i32
  }
  func.func @transform_1(%arg0: i32, %arg1: i32) -> (i32, i32) {
    %c0_i32 = arith.constant 0 : i32
    %c0_i32_0 = arith.constant 0 : i32
    %c0_i32_1 = arith.constant 0 : i32
    return %c0_i32, %c0_i32_0 : i32, i32
  }
  func.func @transform_2(%arg0: i32, %arg1: i32) -> (i32, i32) {
    %c0_i32 = arith.constant 0 : i32
    %c0_i32_0 = arith.constant 0 : i32
    %c0_i32_1 = arith.constant 0 : i32
    return %c0_i32, %c0_i32_0 : i32, i32
  }
  func.func @transform_3(%arg0: i32, %arg1: i32) -> (i32, i32) {
    %c0_i32 = arith.constant 0 : i32
    %c0_i32_0 = arith.constant 0 : i32
    %c0_i32_1 = arith.constant 0 : i32
    return %c0_i32, %c0_i32_0 : i32, i32
  }
  func.func @transform_4(%arg0: i32, %arg1: i32) -> (i32, i32) {
    %c0_i32 = arith.constant 0 : i32
    %c0_i32_0 = arith.constant 0 : i32
    %c0_i32_1 = arith.constant 0 : i32
    return %c0_i32, %c0_i32_0 : i32, i32
  }
  func.func @transform_5(%arg0: i32, %arg1: i32) -> (i32, i32, i32) {
    %c0_i32 = arith.constant 0 : i32
    %c0_i32_0 = arith.constant 0 : i32
    %c0_i32_1 = arith.constant 0 : i32
    return %arg1, %c0_i32, %c0_i32_0 : i32, i32, i32
  }
  func.func @transform_6(%arg0: i32, %arg1: i32) -> (i32, i32, i32) {
    %c0_i32 = arith.constant 0 : i32
    %c0_i32_0 = arith.constant 0 : i32
    %c0_i32_1 = arith.constant 0 : i32
    return %arg1, %c0_i32, %c0_i32_0 : i32, i32, i32
  }
  func.func @transform_7(%arg0: i32, %arg1: i32) -> (i32, i32, i32) {
    %c0_i32 = arith.constant 0 : i32
    %c0_i32_0 = arith.constant 0 : i32
    %c0_i32_1 = arith.constant 0 : i32
    return %arg1, %c0_i32, %c0_i32_0 : i32, i32, i32
  }
  func.func @transform_8(%arg0: i32, %arg1: i32) -> (i32, i32, i32) {
    %c0_i32 = arith.constant 0 : i32
    %c0_i32_0 = arith.constant 0 : i32
    %c0_i32_1 = arith.constant 0 : i32
    return %arg1, %c0_i32, %c0_i32_0 : i32, i32, i32
  }
  func.func @transform_9(%arg0: i32, %arg1: i32) -> (i32, i32, i32) {
    %c0_i32 = arith.constant 0 : i32
    %c0_i32_0 = arith.constant 0 : i32
    %c0_i32_1 = arith.constant 0 : i32
    return %arg1, %c0_i32, %c0_i32_0 : i32, i32, i32
  }
  func.func @transform_10(%arg0: i32, %arg1: i32) -> (i32, i32, i32) {
    %c0_i32 = arith.constant 0 : i32
    %c0_i32_0 = arith.constant 0 : i32
    %c0_i32_1 = arith.constant 0 : i32
    return %arg1, %c0_i32, %c0_i32_0 : i32, i32, i32
  }
  func.func @transform_11(%arg0: i32, %arg1: i32) -> (i32, i32, i32) {
    %c0_i32 = arith.constant 0 : i32
    %c0_i32_0 = arith.constant 0 : i32
    %c0_i32_1 = arith.constant 0 : i32
    return %arg1, %c0_i32, %c0_i32_0 : i32, i32, i32
  }
  func.func @transform_12(%arg0: i32, %arg1: i32) -> (i32, i32, i32) {
    %c0_i32 = arith.constant 0 : i32
    %c0_i32_0 = arith.constant 0 : i32
    %c0_i32_1 = arith.constant 0 : i32
    return %arg1, %c0_i32, %c0_i32_0 : i32, i32, i32
  }
  func.func @transform_13(%arg0: i32, %arg1: i32) -> (i32, i32, i32) {
    %c0_i32 = arith.constant 0 : i32
    %c0_i32_0 = arith.constant 0 : i32
    %c0_i32_1 = arith.constant 0 : i32
    return %arg1, %c0_i32, %c0_i32_0 : i32, i32, i32
  }
  func.func @transform_14(%arg0: i32, %arg1: i32) -> (i32, i32, i32) {
    %c0_i32 = arith.constant 0 : i32
    %c0_i32_0 = arith.constant 0 : i32
    %c0_i32_1 = arith.constant 0 : i32
    return %arg1, %c0_i32, %c0_i32_0 : i32, i32, i32
  }
  func.func @transform_15(%arg0: i32, %arg1: i32) -> (i32, i32, i32) {
    %c0_i32 = arith.constant 0 : i32
    %c0_i32_0 = arith.constant 0 : i32
    %c0_i32_1 = arith.constant 0 : i32
    return %arg1, %c0_i32, %c0_i32_0 : i32, i32, i32
  }
  func.func @transform_16(%arg0: i32, %arg1: i32) -> (i32, i32, i32) {
    %c0_i32 = arith.constant 0 : i32
    %c0_i32_0 = arith.constant 0 : i32
    %c0_i32_1 = arith.constant 0 : i32
    return %arg1, %c0_i32, %c0_i32_0 : i32, i32, i32
  }
  func.func @transform_17(%arg0: i32, %arg1: i32) -> (i32, i32) {
    %c0_i32 = arith.constant 0 : i32
    %c0_i32_0 = arith.constant 0 : i32
    return %arg0, %c0_i32 : i32, i32
  }
}

module attributes {stable_mosaic.version = 11 : i64} {
  func.func @_text_tower_kernel(%arg0: i32, %arg1: i32, %arg2: memref<2xi32, #tpu.memory_space<smem>>, %arg3: memref<8x128xf32, #tpu.memory_space<vmem>>, %arg4: memref<1x1x128xf32, #tpu.memory_space<vmem>>, %arg5: memref<1x1x128xf32, #tpu.memory_space<vmem>>, %arg6: memref<1x128x1536xf32, #tpu.memory_space<vmem>>, %arg7: memref<1x1x1536xf32, #tpu.memory_space<vmem>>, %arg8: memref<1x512x128xf32, #tpu.memory_space<vmem>>, %arg9: memref<1x1x128xf32, #tpu.memory_space<vmem>>, %arg10: memref<1x1x128xf32, #tpu.memory_space<vmem>>, %arg11: memref<1x1x128xf32, #tpu.memory_space<vmem>>, %arg12: memref<1x128x128xf32, #tpu.memory_space<vmem>>, %arg13: memref<1x1x128xf32, #tpu.memory_space<vmem>>, %arg14: memref<1x128x128xf32, #tpu.memory_space<vmem>>, %arg15: memref<1x1x128xf32, #tpu.memory_space<vmem>>, %arg16: memref<8x128xf32, #tpu.memory_space<vmem>>, %arg17: memref<8x128xf32, #tpu.memory_space<vmem>>) attributes {dimension_semantics = [#tpu.dimension_semantics<parallel>, #tpu.dimension_semantics<arbitrary>], iteration_bounds = array<i64: 2, 2>, scalar_prefetch = 1 : i64, scratch_operands = 1 : i64, tpu.core_type = #tpu.core_type<tc>, window_params = [{transform_indices = @transform_0, window_bounds = array<i64: 8, 128>}, {transform_indices = @transform_1, window_bounds = array<i64: 1, 1, 128>}, {transform_indices = @transform_2, window_bounds = array<i64: 1, 1, 128>}, {transform_indices = @transform_3, window_bounds = array<i64: 1, 128, 1536>}, {transform_indices = @transform_4, window_bounds = array<i64: 1, 1, 1536>}, {transform_indices = @transform_5, window_bounds = array<i64: 1, 512, 128>}, {transform_indices = @transform_6, window_bounds = array<i64: 1, 1, 128>}, {transform_indices = @transform_7, window_bounds = array<i64: 1, 1, 128>}, {transform_indices = @transform_8, window_bounds = array<i64: 1, 1, 128>}, {transform_indices = @transform_9, window_bounds = array<i64: 1, 128, 128>}, {transform_indices = @transform_10, window_bounds = array<i64: 1, 1, 128>}, {transform_indices = @transform_11, window_bounds = array<i64: 1, 128, 128>}, {transform_indices = @transform_12, window_bounds = array<i64: 1, 1, 128>}, {transform_indices = @transform_13, window_bounds = array<i64: 8, 128>}]} {
    %c0_i32 = arith.constant 0 : i32
    %0 = arith.cmpi eq, %arg1, %c0_i32 : i32
    %1 = arith.extui %0 : i1 to i32
    %c0_i32_0 = arith.constant 0 : i32
    %2 = arith.cmpi ne, %1, %c0_i32_0 : i32
    scf.if %2 {
      %c0_79 = arith.constant 0 : index
      %c0_80 = arith.constant 0 : index
      %188 = vector.load %arg3[%c0_79, %c0_80] : memref<8x128xf32, #tpu.memory_space<vmem>>, vector<8x128xf32>
      %c0_81 = arith.constant 0 : index
      %c0_82 = arith.constant 0 : index
      %189 = vector.load %arg17[%c0_81, %c0_82] : memref<8x128xf32, #tpu.memory_space<vmem>>, vector<8x128xf32>
      tpu.vector_store %arg17[%c0_81, %c0_82], %188 {strides = array<i32>} : memref<8x128xf32, #tpu.memory_space<vmem>>, vector<8x128xf32>,
    } else {
    }
    %3 = arith.index_cast %arg0 : i32 to index
    %4 = memref.load %arg2[%3] : memref<2xi32, #tpu.memory_space<smem>>
    %5 = tpu.iota {dimensions = array<i32: 0>} : vector<8x8xi32>
    %6 = tpu.iota {dimensions = array<i32: 1>} : vector<8x8xi32>
    %7 = arith.cmpi sgt, %6, %5 : vector<8x8xi32>
    %8 = vector.broadcast %4 : i32 to vector<8x8xi32>
    %9 = arith.cmpi sge, %6, %8 : vector<8x8xi32>
    %10 = arith.ori %7, %9 : vector<8x8xi1>
    %cst = arith.constant -1.000000e+09 : f32
    %cst_1 = arith.constant 0.000000e+00 : f32
    %11 = vector.broadcast %cst : f32 to vector<8x8xf32>
    %12 = vector.broadcast %cst_1 : f32 to vector<8x8xf32>
    %13 = arith.select %10, %11, %12 : vector<8x8xi1>, vector<8x8xf32>
    %c0 = arith.constant 0 : index
    %c0_2 = arith.constant 0 : index
    %c0_3 = arith.constant 0 : index
    %14 = vector.load %arg4[%c0, %c0_2, %c0_3] : memref<1x1x128xf32, #tpu.memory_space<vmem>>, vector<1x1x128xf32>
    %15 = vector.shape_cast %14 : vector<1x1x128xf32> to vector<1x128xf32>
    %c0_4 = arith.constant 0 : index
    %c0_5 = arith.constant 0 : index
    %c0_6 = arith.constant 0 : index
    %16 = vector.load %arg5[%c0_4, %c0_5, %c0_6] : memref<1x1x128xf32, #tpu.memory_space<vmem>>, vector<1x1x128xf32>
    %17 = vector.shape_cast %16 : vector<1x1x128xf32> to vector<1x128xf32>
    %c0_7 = arith.constant 0 : index
    %c0_8 = arith.constant 0 : index
    %c0_9 = arith.constant 0 : index
    %18 = vector.load %arg6[%c0_7, %c0_8, %c0_9] : memref<1x128x1536xf32, #tpu.memory_space<vmem>>, vector<1x128x1536xf32>
    %19 = vector.shape_cast %18 : vector<1x128x1536xf32> to vector<128x1536xf32>
    %c0_10 = arith.constant 0 : index
    %c0_11 = arith.constant 0 : index
    %c0_12 = arith.constant 0 : index
    %20 = vector.load %arg7[%c0_10, %c0_11, %c0_12] : memref<1x1x1536xf32, #tpu.memory_space<vmem>>, vector<1x1x1536xf32>
    %21 = vector.shape_cast %20 : vector<1x1x1536xf32> to vector<1x1536xf32>
    %c0_13 = arith.constant 0 : index
    %c0_14 = arith.constant 0 : index
    %c0_15 = arith.constant 0 : index
    %22 = vector.load %arg8[%c0_13, %c0_14, %c0_15] : memref<1x512x128xf32, #tpu.memory_space<vmem>>, vector<1x512x128xf32>
    %23 = vector.shape_cast %22 : vector<1x512x128xf32> to vector<512x128xf32>
    %c0_16 = arith.constant 0 : index
    %c0_17 = arith.constant 0 : index
    %c0_18 = arith.constant 0 : index
    %24 = vector.load %arg9[%c0_16, %c0_17, %c0_18] : memref<1x1x128xf32, #tpu.memory_space<vmem>>, vector<1x1x128xf32>
    %25 = vector.shape_cast %24 : vector<1x1x128xf32> to vector<1x128xf32>
    %c0_19 = arith.constant 0 : index
    %c0_20 = arith.constant 0 : index
    %c0_21 = arith.constant 0 : index
    %26 = vector.load %arg10[%c0_19, %c0_20, %c0_21] : memref<1x1x128xf32, #tpu.memory_space<vmem>>, vector<1x1x128xf32>
    %27 = vector.shape_cast %26 : vector<1x1x128xf32> to vector<1x128xf32>
    %c0_22 = arith.constant 0 : index
    %c0_23 = arith.constant 0 : index
    %c0_24 = arith.constant 0 : index
    %28 = vector.load %arg11[%c0_22, %c0_23, %c0_24] : memref<1x1x128xf32, #tpu.memory_space<vmem>>, vector<1x1x128xf32>
    %29 = vector.shape_cast %28 : vector<1x1x128xf32> to vector<1x128xf32>
    %c0_25 = arith.constant 0 : index
    %c0_26 = arith.constant 0 : index
    %c0_27 = arith.constant 0 : index
    %30 = vector.load %arg12[%c0_25, %c0_26, %c0_27] : memref<1x128x128xf32, #tpu.memory_space<vmem>>, vector<1x128x128xf32>
    %31 = vector.shape_cast %30 : vector<1x128x128xf32> to vector<128x128xf32>
    %c0_28 = arith.constant 0 : index
    %c0_29 = arith.constant 0 : index
    %c0_30 = arith.constant 0 : index
    %32 = vector.load %arg13[%c0_28, %c0_29, %c0_30] : memref<1x1x128xf32, #tpu.memory_space<vmem>>, vector<1x1x128xf32>
    %33 = vector.shape_cast %32 : vector<1x1x128xf32> to vector<1x128xf32>
    %c0_31 = arith.constant 0 : index
    %c0_32 = arith.constant 0 : index
    %c0_33 = arith.constant 0 : index
    %34 = vector.load %arg14[%c0_31, %c0_32, %c0_33] : memref<1x128x128xf32, #tpu.memory_space<vmem>>, vector<1x128x128xf32>
    %35 = vector.shape_cast %34 : vector<1x128x128xf32> to vector<128x128xf32>
    %c0_34 = arith.constant 0 : index
    %c0_35 = arith.constant 0 : index
    %c0_36 = arith.constant 0 : index
    %36 = vector.load %arg15[%c0_34, %c0_35, %c0_36] : memref<1x1x128xf32, #tpu.memory_space<vmem>>, vector<1x1x128xf32>
    %37 = vector.shape_cast %36 : vector<1x1x128xf32> to vector<1x128xf32>
    %c0_37 = arith.constant 0 : index
    %c0_38 = arith.constant 0 : index
    %38 = vector.load %arg17[%c0_37, %c0_38] : memref<8x128xf32, #tpu.memory_space<vmem>>, vector<8x128xf32>
    %39 = tpu.iota {dimensions = array<i32: 1>} : vector<1x128xi32>
    %c32_i32 = arith.constant 32 : i32
    %40 = vector.broadcast %c32_i32 : i32 to vector<1x128xi32>
    %41 = arith.cmpi slt, %39, %40 : vector<1x128xi32>
    %42 = arith.extui %41 : vector<1x128xi1> to vector<1x128xi32>
    %43 = arith.sitofp %42 : vector<1x128xi32> to vector<1x128xf32>
    %cst_39 = arith.constant dense<0.000000e+00> : vector<8xf32>
    %44 = vector.multi_reduction <add>, %38, %cst_39 [1] : vector<8x128xf32> to vector<8xf32>
    %45 = vector.shape_cast %44 : vector<8xf32> to vector<8x1xf32>
    %cst_40 = arith.constant 3.125000e-02 : f32
    %46 = vector.broadcast %cst_40 : f32 to vector<8x1xf32>
    %47 = arith.mulf %45, %46 : vector<8x1xf32>
    %48 = vector.broadcast %47 : vector<8x1xf32> to vector<8x128xf32>
    %49 = arith.subf %38, %48 : vector<8x128xf32>
    %50 = arith.mulf %49, %49 : vector<8x128xf32>
    %51 = vector.broadcast %43 : vector<1x128xf32> to vector<8x128xf32>
    %52 = arith.mulf %50, %51 : vector<8x128xf32>
    %cst_41 = arith.constant dense<0.000000e+00> : vector<8xf32>
    %53 = vector.multi_reduction <add>, %52, %cst_41 [1] : vector<8x128xf32> to vector<8xf32>
    %54 = vector.shape_cast %53 : vector<8xf32> to vector<8x1xf32>
    %cst_42 = arith.constant 3.125000e-02 : f32
    %55 = vector.broadcast %cst_42 : f32 to vector<8x1xf32>
    %56 = arith.mulf %54, %55 : vector<8x1xf32>
    %cst_43 = arith.constant 9.99999974E-6 : f32
    %57 = vector.broadcast %cst_43 : f32 to vector<8x1xf32>
    %58 = arith.addf %56, %57 : vector<8x1xf32>
    %59 = math.rsqrt %58 : vector<8x1xf32>
    %60 = vector.broadcast %59 : vector<8x1xf32> to vector<8x128xf32>
    %61 = arith.mulf %49, %60 : vector<8x128xf32>
    %62 = vector.broadcast %15 : vector<1x128xf32> to vector<8x128xf32>
    %63 = arith.mulf %61, %62 : vector<8x128xf32>
    %64 = vector.broadcast %17 : vector<1x128xf32> to vector<8x128xf32>
    %65 = arith.addf %63, %64 : vector<8x128xf32>
    %cst_44 = arith.constant dense<0.000000e+00> : vector<8x1536xf32>
    %66 = tpu.matmul %65, %19, %cst_44 {dimension_numbers = #tpu.dot_dimension_numbers<[1], [0], [0], [1], [0, 0, 1, 1], [], []>} : vector<8x128xf32>, vector<128x1536xf32>, vector<8x1536xf32> -> vector<8x1536xf32>
    %67 = vector.broadcast %21 : vector<1x1536xf32> to vector<8x1536xf32>
    %68 = arith.addf %66, %67 : vector<8x1536xf32>
    %69 = vector.extract_strided_slice %68 {offsets = [0, 0], sizes = [8, 128], strides = [1, 1]} : vector<8x1536xf32> to vector<8x128xf32>
    %70 = vector.extract_strided_slice %68 {offsets = [0, 512], sizes = [8, 128], strides = [1, 1]} : vector<8x1536xf32> to vector<8x128xf32>
    %71 = vector.extract_strided_slice %68 {offsets = [0, 1024], sizes = [8, 128], strides = [1, 1]} : vector<8x1536xf32> to vector<8x128xf32>
    %cst_45 = arith.constant dense<0.000000e+00> : vector<8x8xf32>
    %72 = tpu.matmul %69, %70, %cst_45 {dimension_numbers = #tpu.dot_dimension_numbers<[1], [1], [0], [0], [0, 0, 1, 0], [], []>} : vector<8x128xf32>, vector<8x128xf32>, vector<8x8xf32> -> vector<8x8xf32>
    %cst_46 = arith.constant 0.353553385 : f32
    %73 = vector.broadcast %cst_46 : f32 to vector<8x8xf32>
    %74 = arith.mulf %72, %73 : vector<8x8xf32>
    %75 = arith.addf %74, %13 : vector<8x8xf32>
    %cst_47 = arith.constant dense<0xFF800000> : vector<8xf32>
    %76 = vector.multi_reduction <maximumf>, %75, %cst_47 [1] : vector<8x8xf32> to vector<8xf32>
    %77 = vector.shape_cast %76 : vector<8xf32> to vector<8x1xf32>
    %78 = vector.broadcast %77 : vector<8x1xf32> to vector<8x8xf32>
    %79 = arith.subf %75, %78 : vector<8x8xf32>
    %80 = math.exp %79 : vector<8x8xf32>
    %cst_48 = arith.constant dense<0.000000e+00> : vector<8xf32>
    %81 = vector.multi_reduction <add>, %80, %cst_48 [1] : vector<8x8xf32> to vector<8xf32>
    %82 = vector.shape_cast %81 : vector<8xf32> to vector<8x1xf32>
    %83 = vector.broadcast %82 : vector<8x1xf32> to vector<8x8xf32>
    %84 = arith.divf %80, %83 : vector<8x8xf32>
    %cst_49 = arith.constant dense<0.000000e+00> : vector<8x128xf32>
    %85 = tpu.matmul %84, %71, %cst_49 {dimension_numbers = #tpu.dot_dimension_numbers<[1], [0], [0], [1], [0, 0, 1, 1], [], []>} : vector<8x8xf32>, vector<8x128xf32>, vector<8x128xf32> -> vector<8x128xf32>
    %86 = vector.extract_strided_slice %68 {offsets = [0, 128], sizes = [8, 128], strides = [1, 1]} : vector<8x1536xf32> to vector<8x128xf32>
    %87 = vector.extract_strided_slice %68 {offsets = [0, 640], sizes = [8, 128], strides = [1, 1]} : vector<8x1536xf32> to vector<8x128xf32>
    %88 = vector.extract_strided_slice %68 {offsets = [0, 1152], sizes = [8, 128], strides = [1, 1]} : vector<8x1536xf32> to vector<8x128xf32>
    %cst_50 = arith.constant dense<0.000000e+00> : vector<8x8xf32>
    %89 = tpu.matmul %86, %87, %cst_50 {dimension_numbers = #tpu.dot_dimension_numbers<[1], [1], [0], [0], [0, 0, 1, 0], [], []>} : vector<8x128xf32>, vector<8x128xf32>, vector<8x8xf32> -> vector<8x8xf32>
    %cst_51 = arith.constant 0.353553385 : f32
    %90 = vector.broadcast %cst_51 : f32 to vector<8x8xf32>
    %91 = arith.mulf %89, %90 : vector<8x8xf32>
    %92 = arith.addf %91, %13 : vector<8x8xf32>
    %cst_52 = arith.constant dense<0xFF800000> : vector<8xf32>
    %93 = vector.multi_reduction <maximumf>, %92, %cst_52 [1] : vector<8x8xf32> to vector<8xf32>
    %94 = vector.shape_cast %93 : vector<8xf32> to vector<8x1xf32>
    %95 = vector.broadcast %94 : vector<8x1xf32> to vector<8x8xf32>
    %96 = arith.subf %92, %95 : vector<8x8xf32>
    %97 = math.exp %96 : vector<8x8xf32>
    %cst_53 = arith.constant dense<0.000000e+00> : vector<8xf32>
    %98 = vector.multi_reduction <add>, %97, %cst_53 [1] : vector<8x8xf32> to vector<8xf32>
    %99 = vector.shape_cast %98 : vector<8xf32> to vector<8x1xf32>
    %100 = vector.broadcast %99 : vector<8x1xf32> to vector<8x8xf32>
    %101 = arith.divf %97, %100 : vector<8x8xf32>
    %cst_54 = arith.constant dense<0.000000e+00> : vector<8x128xf32>
    %102 = tpu.matmul %101, %88, %cst_54 {dimension_numbers = #tpu.dot_dimension_numbers<[1], [0], [0], [1], [0, 0, 1, 1], [], []>} : vector<8x8xf32>, vector<8x128xf32>, vector<8x128xf32> -> vector<8x128xf32>
    %103 = vector.extract_strided_slice %68 {offsets = [0, 256], sizes = [8, 128], strides = [1, 1]} : vector<8x1536xf32> to vector<8x128xf32>
    %104 = vector.extract_strided_slice %68 {offsets = [0, 768], sizes = [8, 128], strides = [1, 1]} : vector<8x1536xf32> to vector<8x128xf32>
    %105 = vector.extract_strided_slice %68 {offsets = [0, 1280], sizes = [8, 128], strides = [1, 1]} : vector<8x1536xf32> to vector<8x128xf32>
    %cst_55 = arith.constant dense<0.000000e+00> : vector<8x8xf32>
    %106 = tpu.matmul %103, %104, %cst_55 {dimension_numbers = #tpu.dot_dimension_numbers<[1], [1], [0], [0], [0, 0, 1, 0], [], []>} : vector<8x128xf32>, vector<8x128xf32>, vector<8x8xf32> -> vector<8x8xf32>
    %cst_56 = arith.constant 0.353553385 : f32
    %107 = vector.broadcast %cst_56 : f32 to vector<8x8xf32>
    %108 = arith.mulf %106, %107 : vector<8x8xf32>
    %109 = arith.addf %108, %13 : vector<8x8xf32>
    %cst_57 = arith.constant dense<0xFF800000> : vector<8xf32>
    %110 = vector.multi_reduction <maximumf>, %109, %cst_57 [1] : vector<8x8xf32> to vector<8xf32>
    %111 = vector.shape_cast %110 : vector<8xf32> to vector<8x1xf32>
    %112 = vector.broadcast %111 : vector<8x1xf32> to vector<8x8xf32>
    %113 = arith.subf %109, %112 : vector<8x8xf32>
    %114 = math.exp %113 : vector<8x8xf32>
    %cst_58 = arith.constant dense<0.000000e+00> : vector<8xf32>
    %115 = vector.multi_reduction <add>, %114, %cst_58 [1] : vector<8x8xf32> to vector<8xf32>
    %116 = vector.shape_cast %115 : vector<8xf32> to vector<8x1xf32>
    %117 = vector.broadcast %116 : vector<8x1xf32> to vector<8x8xf32>
    %118 = arith.divf %114, %117 : vector<8x8xf32>
    %cst_59 = arith.constant dense<0.000000e+00> : vector<8x128xf32>
    %119 = tpu.matmul %118, %105, %cst_59 {dimension_numbers = #tpu.dot_dimension_numbers<[1], [0], [0], [1], [0, 0, 1, 1], [], []>} : vector<8x8xf32>, vector<8x128xf32>, vector<8x128xf32> -> vector<8x128xf32>
    %120 = vector.extract_strided_slice %68 {offsets = [0, 384], sizes = [8, 128], strides = [1, 1]} : vector<8x1536xf32> to vector<8x128xf32>
    %121 = vector.extract_strided_slice %68 {offsets = [0, 896], sizes = [8, 128], strides = [1, 1]} : vector<8x1536xf32> to vector<8x128xf32>
    %122 = vector.extract_strided_slice %68 {offsets = [0, 1408], sizes = [8, 128], strides = [1, 1]} : vector<8x1536xf32> to vector<8x128xf32>
    %cst_60 = arith.constant dense<0.000000e+00> : vector<8x8xf32>
    %123 = tpu.matmul %120, %121, %cst_60 {dimension_numbers = #tpu.dot_dimension_numbers<[1], [1], [0], [0], [0, 0, 1, 0], [], []>} : vector<8x128xf32>, vector<8x128xf32>, vector<8x8xf32> -> vector<8x8xf32>
    %cst_61 = arith.constant 0.353553385 : f32
    %124 = vector.broadcast %cst_61 : f32 to vector<8x8xf32>
    %125 = arith.mulf %123, %124 : vector<8x8xf32>
    %126 = arith.addf %125, %13 : vector<8x8xf32>
    %cst_62 = arith.constant dense<0xFF800000> : vector<8xf32>
    %127 = vector.multi_reduction <maximumf>, %126, %cst_62 [1] : vector<8x8xf32> to vector<8xf32>
    %128 = vector.shape_cast %127 : vector<8xf32> to vector<8x1xf32>
    %129 = vector.broadcast %128 : vector<8x1xf32> to vector<8x8xf32>
    %130 = arith.subf %126, %129 : vector<8x8xf32>
    %131 = math.exp %130 : vector<8x8xf32>
    %cst_63 = arith.constant dense<0.000000e+00> : vector<8xf32>
    %132 = vector.multi_reduction <add>, %131, %cst_63 [1] : vector<8x8xf32> to vector<8xf32>
    %133 = vector.shape_cast %132 : vector<8xf32> to vector<8x1xf32>
    %134 = vector.broadcast %133 : vector<8x1xf32> to vector<8x8xf32>
    %135 = arith.divf %131, %134 : vector<8x8xf32>
    %cst_64 = arith.constant dense<0.000000e+00> : vector<8x128xf32>
    %136 = tpu.matmul %135, %122, %cst_64 {dimension_numbers = #tpu.dot_dimension_numbers<[1], [0], [0], [1], [0, 0, 1, 1], [], []>} : vector<8x8xf32>, vector<8x128xf32>, vector<8x128xf32> -> vector<8x128xf32>
    %137 = tpu.concatenate %85, %102, %119, %136 in 1 : vector<8x128xf32>, vector<8x128xf32>, vector<8x128xf32>, vector<8x128xf32> -> vector<8x512xf32>
    %cst_65 = arith.constant dense<0.000000e+00> : vector<8x128xf32>
    %138 = tpu.matmul %137, %23, %cst_65 {dimension_numbers = #tpu.dot_dimension_numbers<[1], [0], [0], [1], [0, 0, 1, 1], [], []>} : vector<8x512xf32>, vector<512x128xf32>, vector<8x128xf32> -> vector<8x128xf32>
    %139 = vector.broadcast %25 : vector<1x128xf32> to vector<8x128xf32>
    %140 = arith.addf %138, %139 : vector<8x128xf32>
    %141 = arith.addf %38, %140 : vector<8x128xf32>
    %142 = tpu.iota {dimensions = array<i32: 1>} : vector<1x128xi32>
    %c32_i32_66 = arith.constant 32 : i32
    %143 = vector.broadcast %c32_i32_66 : i32 to vector<1x128xi32>
    %144 = arith.cmpi slt, %142, %143 : vector<1x128xi32>
    %145 = arith.extui %144 : vector<1x128xi1> to vector<1x128xi32>
    %146 = arith.sitofp %145 : vector<1x128xi32> to vector<1x128xf32>
    %cst_67 = arith.constant dense<0.000000e+00> : vector<8xf32>
    %147 = vector.multi_reduction <add>, %141, %cst_67 [1] : vector<8x128xf32> to vector<8xf32>
    %148 = vector.shape_cast %147 : vector<8xf32> to vector<8x1xf32>
    %cst_68 = arith.constant 3.125000e-02 : f32
    %149 = vector.broadcast %cst_68 : f32 to vector<8x1xf32>
    %150 = arith.mulf %148, %149 : vector<8x1xf32>
    %151 = vector.broadcast %150 : vector<8x1xf32> to vector<8x128xf32>
    %152 = arith.subf %141, %151 : vector<8x128xf32>
    %153 = arith.mulf %152, %152 : vector<8x128xf32>
    %154 = vector.broadcast %146 : vector<1x128xf32> to vector<8x128xf32>
    %155 = arith.mulf %153, %154 : vector<8x128xf32>
    %cst_69 = arith.constant dense<0.000000e+00> : vector<8xf32>
    %156 = vector.multi_reduction <add>, %155, %cst_69 [1] : vector<8x128xf32> to vector<8xf32>
    %157 = vector.shape_cast %156 : vector<8xf32> to vector<8x1xf32>
    %cst_70 = arith.constant 3.125000e-02 : f32
    %158 = vector.broadcast %cst_70 : f32 to vector<8x1xf32>
    %159 = arith.mulf %157, %158 : vector<8x1xf32>
    %cst_71 = arith.constant 9.99999974E-6 : f32
    %160 = vector.broadcast %cst_71 : f32 to vector<8x1xf32>
    %161 = arith.addf %159, %160 : vector<8x1xf32>
    %162 = math.rsqrt %161 : vector<8x1xf32>
    %163 = vector.broadcast %162 : vector<8x1xf32> to vector<8x128xf32>
    %164 = arith.mulf %152, %163 : vector<8x128xf32>
    %165 = vector.broadcast %27 : vector<1x128xf32> to vector<8x128xf32>
    %166 = arith.mulf %164, %165 : vector<8x128xf32>
    %167 = vector.broadcast %29 : vector<1x128xf32> to vector<8x128xf32>
    %168 = arith.addf %166, %167 : vector<8x128xf32>
    %cst_72 = arith.constant dense<0.000000e+00> : vector<8x128xf32>
    %169 = tpu.matmul %168, %31, %cst_72 {dimension_numbers = #tpu.dot_dimension_numbers<[1], [0], [0], [1], [0, 0, 1, 1], [], []>} : vector<8x128xf32>, vector<128x128xf32>, vector<8x128xf32> -> vector<8x128xf32>
    %170 = vector.broadcast %33 : vector<1x128xf32> to vector<8x128xf32>
    %171 = arith.addf %169, %170 : vector<8x128xf32>
    %cst_73 = arith.constant 1.702000e+00 : f32
    %172 = vector.broadcast %cst_73 : f32 to vector<8x128xf32>
    %173 = arith.mulf %172, %171 : vector<8x128xf32>
    %174 = arith.negf %173 : vector<8x128xf32>
    %175 = math.exp %174 : vector<8x128xf32>
    %cst_74 = arith.constant 1.000000e+00 : f32
    %176 = vector.broadcast %cst_74 : f32 to vector<8x128xf32>
    %177 = arith.addf %176, %175 : vector<8x128xf32>
    %178 = arith.divf %176, %177 : vector<8x128xf32>
    %179 = arith.mulf %171, %178 : vector<8x128xf32>
    %cst_75 = arith.constant dense<0.000000e+00> : vector<8x128xf32>
    %180 = tpu.matmul %179, %35, %cst_75 {dimension_numbers = #tpu.dot_dimension_numbers<[1], [0], [0], [1], [0, 0, 1, 1], [], []>} : vector<8x128xf32>, vector<128x128xf32>, vector<8x128xf32> -> vector<8x128xf32>
    %181 = vector.broadcast %37 : vector<1x128xf32> to vector<8x128xf32>
    %182 = arith.addf %180, %181 : vector<8x128xf32>
    %183 = arith.addf %141, %182 : vector<8x128xf32>
    %c0_76 = arith.constant 0 : index
    %c0_77 = arith.constant 0 : index
    %184 = vector.load %arg17[%c0_76, %c0_77] : memref<8x128xf32, #tpu.memory_space<vmem>>, vector<8x128xf32>
    tpu.vector_store %arg17[%c0_76, %c0_77], %183 {strides = array<i32>} : memref<8x128xf32, #tpu.memory_space<vmem>>, vector<8x128xf32>,
    %c1_i32 = arith.constant 1 : i32
    %185 = arith.cmpi eq, %arg1, %c1_i32 : i32
    %186 = arith.extui %185 : i1 to i32
    %c0_i32_78 = arith.constant 0 : i32
    %187 = arith.cmpi ne, %186, %c0_i32_78 : i32
    scf.if %187 {
      %c0_79 = arith.constant 0 : index
      %c0_80 = arith.constant 0 : index
      %188 = vector.load %arg16[%c0_79, %c0_80] : memref<8x128xf32, #tpu.memory_space<vmem>>, vector<8x128xf32>
      tpu.vector_store %arg16[%c0_79, %c0_80], %183 {strides = array<i32>} : memref<8x128xf32, #tpu.memory_space<vmem>>, vector<8x128xf32>,
    } else {
    }
    return
  }
  func.func @transform_0(%arg0: i32, %arg1: i32, %arg2: memref<2xi32, #tpu.memory_space<smem>>) -> (i32, i32) {
    %c0_i32 = arith.constant 0 : i32
    %c0_i32_0 = arith.constant 0 : i32
    return %arg0, %c0_i32 : i32, i32
  }
  func.func @transform_1(%arg0: i32, %arg1: i32, %arg2: memref<2xi32, #tpu.memory_space<smem>>) -> (i32, i32, i32) {
    %c0_i32 = arith.constant 0 : i32
    %c0_i32_0 = arith.constant 0 : i32
    %c0_i32_1 = arith.constant 0 : i32
    return %arg1, %c0_i32, %c0_i32_0 : i32, i32, i32
  }
  func.func @transform_2(%arg0: i32, %arg1: i32, %arg2: memref<2xi32, #tpu.memory_space<smem>>) -> (i32, i32, i32) {
    %c0_i32 = arith.constant 0 : i32
    %c0_i32_0 = arith.constant 0 : i32
    %c0_i32_1 = arith.constant 0 : i32
    return %arg1, %c0_i32, %c0_i32_0 : i32, i32, i32
  }
  func.func @transform_3(%arg0: i32, %arg1: i32, %arg2: memref<2xi32, #tpu.memory_space<smem>>) -> (i32, i32, i32) {
    %c0_i32 = arith.constant 0 : i32
    %c0_i32_0 = arith.constant 0 : i32
    %c0_i32_1 = arith.constant 0 : i32
    return %arg1, %c0_i32, %c0_i32_0 : i32, i32, i32
  }
  func.func @transform_4(%arg0: i32, %arg1: i32, %arg2: memref<2xi32, #tpu.memory_space<smem>>) -> (i32, i32, i32) {
    %c0_i32 = arith.constant 0 : i32
    %c0_i32_0 = arith.constant 0 : i32
    %c0_i32_1 = arith.constant 0 : i32
    return %arg1, %c0_i32, %c0_i32_0 : i32, i32, i32
  }
  func.func @transform_5(%arg0: i32, %arg1: i32, %arg2: memref<2xi32, #tpu.memory_space<smem>>) -> (i32, i32, i32) {
    %c0_i32 = arith.constant 0 : i32
    %c0_i32_0 = arith.constant 0 : i32
    %c0_i32_1 = arith.constant 0 : i32
    return %arg1, %c0_i32, %c0_i32_0 : i32, i32, i32
  }
  func.func @transform_6(%arg0: i32, %arg1: i32, %arg2: memref<2xi32, #tpu.memory_space<smem>>) -> (i32, i32, i32) {
    %c0_i32 = arith.constant 0 : i32
    %c0_i32_0 = arith.constant 0 : i32
    %c0_i32_1 = arith.constant 0 : i32
    return %arg1, %c0_i32, %c0_i32_0 : i32, i32, i32
  }
  func.func @transform_7(%arg0: i32, %arg1: i32, %arg2: memref<2xi32, #tpu.memory_space<smem>>) -> (i32, i32, i32) {
    %c0_i32 = arith.constant 0 : i32
    %c0_i32_0 = arith.constant 0 : i32
    %c0_i32_1 = arith.constant 0 : i32
    return %arg1, %c0_i32, %c0_i32_0 : i32, i32, i32
  }
  func.func @transform_8(%arg0: i32, %arg1: i32, %arg2: memref<2xi32, #tpu.memory_space<smem>>) -> (i32, i32, i32) {
    %c0_i32 = arith.constant 0 : i32
    %c0_i32_0 = arith.constant 0 : i32
    %c0_i32_1 = arith.constant 0 : i32
    return %arg1, %c0_i32, %c0_i32_0 : i32, i32, i32
  }
  func.func @transform_9(%arg0: i32, %arg1: i32, %arg2: memref<2xi32, #tpu.memory_space<smem>>) -> (i32, i32, i32) {
    %c0_i32 = arith.constant 0 : i32
    %c0_i32_0 = arith.constant 0 : i32
    %c0_i32_1 = arith.constant 0 : i32
    return %arg1, %c0_i32, %c0_i32_0 : i32, i32, i32
  }
  func.func @transform_10(%arg0: i32, %arg1: i32, %arg2: memref<2xi32, #tpu.memory_space<smem>>) -> (i32, i32, i32) {
    %c0_i32 = arith.constant 0 : i32
    %c0_i32_0 = arith.constant 0 : i32
    %c0_i32_1 = arith.constant 0 : i32
    return %arg1, %c0_i32, %c0_i32_0 : i32, i32, i32
  }
  func.func @transform_11(%arg0: i32, %arg1: i32, %arg2: memref<2xi32, #tpu.memory_space<smem>>) -> (i32, i32, i32) {
    %c0_i32 = arith.constant 0 : i32
    %c0_i32_0 = arith.constant 0 : i32
    %c0_i32_1 = arith.constant 0 : i32
    return %arg1, %c0_i32, %c0_i32_0 : i32, i32, i32
  }
  func.func @transform_12(%arg0: i32, %arg1: i32, %arg2: memref<2xi32, #tpu.memory_space<smem>>) -> (i32, i32, i32) {
    %c0_i32 = arith.constant 0 : i32
    %c0_i32_0 = arith.constant 0 : i32
    %c0_i32_1 = arith.constant 0 : i32
    return %arg1, %c0_i32, %c0_i32_0 : i32, i32, i32
  }
  func.func @transform_13(%arg0: i32, %arg1: i32, %arg2: memref<2xi32, #tpu.memory_space<smem>>) -> (i32, i32) {
    %c0_i32 = arith.constant 0 : i32
    %c0_i32_0 = arith.constant 0 : i32
    return %arg0, %c0_i32 : i32, i32
  }
}

module attributes {stable_mosaic.version = 11 : i64} {
  func.func @_head_kernel(%arg0: memref<2x128xf32, #tpu.memory_space<vmem>>, %arg1: memref<2x128xf32, #tpu.memory_space<vmem>>, %arg2: memref<1x128xf32, #tpu.memory_space<vmem>>, %arg3: memref<1x128xf32, #tpu.memory_space<vmem>>, %arg4: memref<1x128xf32, #tpu.memory_space<vmem>>, %arg5: memref<1x128xf32, #tpu.memory_space<vmem>>, %arg6: memref<128x128xf32, #tpu.memory_space<vmem>>, %arg7: memref<128x128xf32, #tpu.memory_space<vmem>>, %arg8: memref<1x1xf32, #tpu.memory_space<vmem>>, %arg9: memref<2x2xf32, #tpu.memory_space<vmem>>, %arg10: memref<2x2xf32, #tpu.memory_space<vmem>>) attributes {dimension_semantics = [], scalar_prefetch = 0 : i64, scratch_operands = 0 : i64, tpu.core_type = #tpu.core_type<tc>} {
    %c0 = arith.constant 0 : index
    %c0_0 = arith.constant 0 : index
    %0 = vector.load %arg0[%c0, %c0_0] : memref<2x128xf32, #tpu.memory_space<vmem>>, vector<2x128xf32>
    %c0_1 = arith.constant 0 : index
    %c0_2 = arith.constant 0 : index
    %1 = vector.load %arg2[%c0_1, %c0_2] : memref<1x128xf32, #tpu.memory_space<vmem>>, vector<1x128xf32>
    %c0_3 = arith.constant 0 : index
    %c0_4 = arith.constant 0 : index
    %2 = vector.load %arg3[%c0_3, %c0_4] : memref<1x128xf32, #tpu.memory_space<vmem>>, vector<1x128xf32>
    %3 = tpu.iota {dimensions = array<i32: 1>} : vector<1x128xi32>
    %c32_i32 = arith.constant 32 : i32
    %4 = vector.broadcast %c32_i32 : i32 to vector<1x128xi32>
    %5 = arith.cmpi slt, %3, %4 : vector<1x128xi32>
    %6 = arith.extui %5 : vector<1x128xi1> to vector<1x128xi32>
    %7 = arith.sitofp %6 : vector<1x128xi32> to vector<1x128xf32>
    %cst = arith.constant dense<0.000000e+00> : vector<2xf32>
    %8 = vector.multi_reduction <add>, %0, %cst [1] : vector<2x128xf32> to vector<2xf32>
    %9 = vector.shape_cast %8 : vector<2xf32> to vector<2x1xf32>
    %cst_5 = arith.constant 3.125000e-02 : f32
    %10 = vector.broadcast %cst_5 : f32 to vector<2x1xf32>
    %11 = arith.mulf %9, %10 : vector<2x1xf32>
    %12 = vector.broadcast %11 : vector<2x1xf32> to vector<2x128xf32>
    %13 = arith.subf %0, %12 : vector<2x128xf32>
    %14 = arith.mulf %13, %13 : vector<2x128xf32>
    %15 = vector.broadcast %7 : vector<1x128xf32> to vector<2x128xf32>
    %16 = arith.mulf %14, %15 : vector<2x128xf32>
    %cst_6 = arith.constant dense<0.000000e+00> : vector<2xf32>
    %17 = vector.multi_reduction <add>, %16, %cst_6 [1] : vector<2x128xf32> to vector<2xf32>
    %18 = vector.shape_cast %17 : vector<2xf32> to vector<2x1xf32>
    %cst_7 = arith.constant 3.125000e-02 : f32
    %19 = vector.broadcast %cst_7 : f32 to vector<2x1xf32>
    %20 = arith.mulf %18, %19 : vector<2x1xf32>
    %cst_8 = arith.constant 9.99999974E-6 : f32
    %21 = vector.broadcast %cst_8 : f32 to vector<2x1xf32>
    %22 = arith.addf %20, %21 : vector<2x1xf32>
    %23 = math.rsqrt %22 : vector<2x1xf32>
    %24 = vector.broadcast %23 : vector<2x1xf32> to vector<2x128xf32>
    %25 = arith.mulf %13, %24 : vector<2x128xf32>
    %26 = vector.broadcast %1 : vector<1x128xf32> to vector<2x128xf32>
    %27 = arith.mulf %25, %26 : vector<2x128xf32>
    %28 = vector.broadcast %2 : vector<1x128xf32> to vector<2x128xf32>
    %29 = arith.addf %27, %28 : vector<2x128xf32>
    %c0_9 = arith.constant 0 : index
    %c0_10 = arith.constant 0 : index
    %30 = vector.load %arg6[%c0_9, %c0_10] : memref<128x128xf32, #tpu.memory_space<vmem>>, vector<128x128xf32>
    %cst_11 = arith.constant dense<0.000000e+00> : vector<2x128xf32>
    %31 = tpu.matmul %29, %30, %cst_11 {dimension_numbers = #tpu.dot_dimension_numbers<[1], [0], [0], [1], [0, 0, 1, 1], [], []>} : vector<2x128xf32>, vector<128x128xf32>, vector<2x128xf32> -> vector<2x128xf32>
    %c0_12 = arith.constant 0 : index
    %c0_13 = arith.constant 0 : index
    %32 = vector.load %arg1[%c0_12, %c0_13] : memref<2x128xf32, #tpu.memory_space<vmem>>, vector<2x128xf32>
    %c0_14 = arith.constant 0 : index
    %c0_15 = arith.constant 0 : index
    %33 = vector.load %arg4[%c0_14, %c0_15] : memref<1x128xf32, #tpu.memory_space<vmem>>, vector<1x128xf32>
    %c0_16 = arith.constant 0 : index
    %c0_17 = arith.constant 0 : index
    %34 = vector.load %arg5[%c0_16, %c0_17] : memref<1x128xf32, #tpu.memory_space<vmem>>, vector<1x128xf32>
    %35 = tpu.iota {dimensions = array<i32: 1>} : vector<1x128xi32>
    %c32_i32_18 = arith.constant 32 : i32
    %36 = vector.broadcast %c32_i32_18 : i32 to vector<1x128xi32>
    %37 = arith.cmpi slt, %35, %36 : vector<1x128xi32>
    %38 = arith.extui %37 : vector<1x128xi1> to vector<1x128xi32>
    %39 = arith.sitofp %38 : vector<1x128xi32> to vector<1x128xf32>
    %cst_19 = arith.constant dense<0.000000e+00> : vector<2xf32>
    %40 = vector.multi_reduction <add>, %32, %cst_19 [1] : vector<2x128xf32> to vector<2xf32>
    %41 = vector.shape_cast %40 : vector<2xf32> to vector<2x1xf32>
    %cst_20 = arith.constant 3.125000e-02 : f32
    %42 = vector.broadcast %cst_20 : f32 to vector<2x1xf32>
    %43 = arith.mulf %41, %42 : vector<2x1xf32>
    %44 = vector.broadcast %43 : vector<2x1xf32> to vector<2x128xf32>
    %45 = arith.subf %32, %44 : vector<2x128xf32>
    %46 = arith.mulf %45, %45 : vector<2x128xf32>
    %47 = vector.broadcast %39 : vector<1x128xf32> to vector<2x128xf32>
    %48 = arith.mulf %46, %47 : vector<2x128xf32>
    %cst_21 = arith.constant dense<0.000000e+00> : vector<2xf32>
    %49 = vector.multi_reduction <add>, %48, %cst_21 [1] : vector<2x128xf32> to vector<2xf32>
    %50 = vector.shape_cast %49 : vector<2xf32> to vector<2x1xf32>
    %cst_22 = arith.constant 3.125000e-02 : f32
    %51 = vector.broadcast %cst_22 : f32 to vector<2x1xf32>
    %52 = arith.mulf %50, %51 : vector<2x1xf32>
    %cst_23 = arith.constant 9.99999974E-6 : f32
    %53 = vector.broadcast %cst_23 : f32 to vector<2x1xf32>
    %54 = arith.addf %52, %53 : vector<2x1xf32>
    %55 = math.rsqrt %54 : vector<2x1xf32>
    %56 = vector.broadcast %55 : vector<2x1xf32> to vector<2x128xf32>
    %57 = arith.mulf %45, %56 : vector<2x128xf32>
    %58 = vector.broadcast %33 : vector<1x128xf32> to vector<2x128xf32>
    %59 = arith.mulf %57, %58 : vector<2x128xf32>
    %60 = vector.broadcast %34 : vector<1x128xf32> to vector<2x128xf32>
    %61 = arith.addf %59, %60 : vector<2x128xf32>
    %c0_24 = arith.constant 0 : index
    %c0_25 = arith.constant 0 : index
    %62 = vector.load %arg7[%c0_24, %c0_25] : memref<128x128xf32, #tpu.memory_space<vmem>>, vector<128x128xf32>
    %cst_26 = arith.constant dense<0.000000e+00> : vector<2x128xf32>
    %63 = tpu.matmul %61, %62, %cst_26 {dimension_numbers = #tpu.dot_dimension_numbers<[1], [0], [0], [1], [0, 0, 1, 1], [], []>} : vector<2x128xf32>, vector<128x128xf32>, vector<2x128xf32> -> vector<2x128xf32>
    %64 = arith.mulf %31, %31 : vector<2x128xf32>
    %cst_27 = arith.constant dense<0.000000e+00> : vector<2xf32>
    %65 = vector.multi_reduction <add>, %64, %cst_27 [1] : vector<2x128xf32> to vector<2xf32>
    %66 = vector.shape_cast %65 : vector<2xf32> to vector<2x1xf32>
    %67 = math.rsqrt %66 : vector<2x1xf32>
    %68 = vector.broadcast %67 : vector<2x1xf32> to vector<2x128xf32>
    %69 = arith.mulf %31, %68 : vector<2x128xf32>
    %70 = arith.mulf %63, %63 : vector<2x128xf32>
    %cst_28 = arith.constant dense<0.000000e+00> : vector<2xf32>
    %71 = vector.multi_reduction <add>, %70, %cst_28 [1] : vector<2x128xf32> to vector<2xf32>
    %72 = vector.shape_cast %71 : vector<2xf32> to vector<2x1xf32>
    %73 = math.rsqrt %72 : vector<2x1xf32>
    %74 = vector.broadcast %73 : vector<2x1xf32> to vector<2x128xf32>
    %75 = arith.mulf %63, %74 : vector<2x128xf32>
    %c0_29 = arith.constant 0 : index
    %c0_30 = arith.constant 0 : index
    %76 = vector.load %arg8[%c0_29, %c0_30] : memref<1x1xf32, #tpu.memory_space<vmem>>, vector<1x1xf32>
    %77 = vector.extract %76[0, 0] : f32 from vector<1x1xf32>
    %78 = math.exp %77 : f32
    %cst_31 = arith.constant dense<0.000000e+00> : vector<2x2xf32>
    %79 = tpu.matmul %75, %69, %cst_31 {dimension_numbers = #tpu.dot_dimension_numbers<[1], [1], [0], [0], [0, 0, 1, 0], [], []>} : vector<2x128xf32>, vector<2x128xf32>, vector<2x2xf32> -> vector<2x2xf32>
    %80 = vector.broadcast %78 : f32 to vector<2x2xf32>
    %81 = arith.mulf %79, %80 : vector<2x2xf32>
    %cst_32 = arith.constant dense<0.000000e+00> : vector<2x2xf32>
    %82 = tpu.matmul %69, %75, %cst_32 {dimension_numbers = #tpu.dot_dimension_numbers<[1], [1], [0], [0], [0, 0, 1, 0], [], []>} : vector<2x128xf32>, vector<2x128xf32>, vector<2x2xf32> -> vector<2x2xf32>
    %83 = vector.broadcast %78 : f32 to vector<2x2xf32>
    %84 = arith.mulf %82, %83 : vector<2x2xf32>
    %cst_33 = arith.constant dense<0xFF800000> : vector<2xf32>
    %85 = vector.multi_reduction <maximumf>, %84, %cst_33 [1] : vector<2x2xf32> to vector<2xf32>
    %86 = vector.shape_cast %85 : vector<2xf32> to vector<2x1xf32>
    %87 = vector.broadcast %86 : vector<2x1xf32> to vector<2x2xf32>
    %88 = arith.subf %84, %87 : vector<2x2xf32>
    %89 = math.exp %88 : vector<2x2xf32>
    %cst_34 = arith.constant dense<0.000000e+00> : vector<2xf32>
    %90 = vector.multi_reduction <add>, %89, %cst_34 [1] : vector<2x2xf32> to vector<2xf32>
    %91 = vector.shape_cast %90 : vector<2xf32> to vector<2x1xf32>
    %92 = vector.broadcast %91 : vector<2x1xf32> to vector<2x2xf32>
    %93 = arith.divf %89, %92 : vector<2x2xf32>
    %c0_35 = arith.constant 0 : index
    %c0_36 = arith.constant 0 : index
    %94 = vector.load %arg9[%c0_35, %c0_36] : memref<2x2xf32, #tpu.memory_space<vmem>>, vector<2x2xf32>
    tpu.vector_store %arg9[%c0_35, %c0_36], %93 {strides = array<i32>} : memref<2x2xf32, #tpu.memory_space<vmem>>, vector<2x2xf32>,
    %cst_37 = arith.constant dense<0xFF800000> : vector<2xf32>
    %95 = vector.multi_reduction <maximumf>, %81, %cst_37 [1] : vector<2x2xf32> to vector<2xf32>
    %96 = vector.shape_cast %95 : vector<2xf32> to vector<2x1xf32>
    %97 = vector.broadcast %96 : vector<2x1xf32> to vector<2x2xf32>
    %98 = arith.subf %81, %97 : vector<2x2xf32>
    %99 = math.exp %98 : vector<2x2xf32>
    %cst_38 = arith.constant dense<0.000000e+00> : vector<2xf32>
    %100 = vector.multi_reduction <add>, %99, %cst_38 [1] : vector<2x2xf32> to vector<2xf32>
    %101 = vector.shape_cast %100 : vector<2xf32> to vector<2x1xf32>
    %102 = vector.broadcast %101 : vector<2x1xf32> to vector<2x2xf32>
    %103 = arith.divf %99, %102 : vector<2x2xf32>
    %c0_39 = arith.constant 0 : index
    %c0_40 = arith.constant 0 : index
    %104 = vector.load %arg10[%c0_39, %c0_40] : memref<2x2xf32, #tpu.memory_space<vmem>>, vector<2x2xf32>
    tpu.vector_store %arg10[%c0_39, %c0_40], %103 {strides = array<i32>} : memref<2x2xf32, #tpu.memory_space<vmem>>, vector<2x2xf32>,
    return
  }
}

</mosaic_0001>

<llo_original>
// kernel: clip_forward.5
$region0: #{clip_forward.5}
  #allocation0 [shape = 'u32[]', space=smem, size = 0x4, offset = 0x4, fixed_abs, tag = 'smem constant byte address 0x4 - core index']
  #allocation1 [shape = 'u32[144,128]{1,0:T(1,128)}', space=vmem, size = 0x12000, scoped, tag = 'internal scratch']
  #allocation2 [shape = 'f32[1,1]{1,0:T(1,128)S(1)}', space=vmem, size = 0x200, scoped, tag = 'scoped memory for clip_forward.5']
  %s0 = inlined_call_operand.vmem [shape: f32[2,128], index: 0, kind: input, shape index: {}]
  %s1 = inlined_call_operand.vmem [shape: f32[2,128], index: 1, kind: input, shape index: {}]
  %s2 = inlined_call_operand.vmem [shape: f32[1,128], index: 2, kind: input, shape index: {}]
  %s3 = inlined_call_operand.vmem [shape: f32[1,128], index: 3, kind: input, shape index: {}]
  %s4 = inlined_call_operand.vmem [shape: f32[1,128], index: 4, kind: input, shape index: {}]
  %s5 = inlined_call_operand.vmem [shape: f32[1,128], index: 5, kind: input, shape index: {}]
  %s6 = inlined_call_operand.vmem [shape: f32[128,128], index: 6, kind: input, shape index: {}]
  %s7 = inlined_call_operand.vmem [shape: f32[128,128], index: 7, kind: input, shape index: {}]
  %s8 = inlined_call_operand.<no memory space> [shape: f32[1,1], index: 8, kind: input, shape index: {}]
  %s9 = inlined_call_operand.hbm [shape: f32[2,2], index: 9, kind: output, shape index: {0}]
  %s10 = inlined_call_operand.hbm [shape: f32[2,2], index: 10, kind: output, shape index: {1}]
  %11 = xla_tuple %s9, %s10
  %s12 = sld [smem:[#allocation0]]
  $region54: #{clip_forward.5} parent=0
    _
  %s14 = ssub.s32 1, %s12
  %s15 = scalar_select 0, %s14, %s12
  %v16 = vstv %s8
  %17 = vst [vmem:[#allocation2] sm:$0x1] %v16
  $region1: #{clip_forward.5} parent=0
    #allocation3 [shape = 'u8[1024]{0}', space=vmem, size = 0x400, scoped, tag = 'output window, operand 0, single buffered']
    #allocation4 [shape = 's32[1]{0}', space=sflag, size = 0x4, scoped, tag = 'scoped memory for clip_forward.5']
    #allocation5 [shape = 'u8[1024]{0}', space=vmem, size = 0x400, scoped, tag = 'output window, operand 1, single buffered']
    #allocation6 [shape = 's32[1]{0}', space=sflag, size = 0x4, scoped, tag = 'scoped memory for clip_forward.5']
    %18 = vsyncpa [#allocation4], 0
    %19 = vsyncpa [#allocation6], 0
    // Predicated region
    $region2: #{clip_forward.5} parent=1 // pred_check
      _
    $region3: #{clip_forward.5} parent=1 // pred_check_branch
      %21 = sbr.rel (0) target = $region5
    $region4: #{clip_forward.5} parent=1 // pred_region
      _
    $region5: #{clip_forward.5} parent=1 // pred_fallthru
      _
    // Predicated region
    $region6: #{clip_forward.5} parent=1 // pred_check
      _
    $region7: #{clip_forward.5} parent=1 // pred_check_branch
      %23 = sbr.rel (0) target = $region9
    $region8: #{clip_forward.5} parent=1 // pred_region
      _
    $region9: #{clip_forward.5} parent=1 // pred_fallthru
      _
    // Predicated region
    $region10: #{clip_forward.5} parent=1 // pred_check
      _
    $region11: #{clip_forward.5} parent=1 // pred_check_branch
      %25 = sbr.rel (0) target = $region13
    $region12: #{clip_forward.5} parent=1 // pred_region
      _
    $region13: #{clip_forward.5} parent=1 // pred_fallthru
      _
    // Predicated region
    $region14: #{clip_forward.5} parent=1 // pred_check
      _
    $region15: #{clip_forward.5} parent=1 // pred_check_branch
      %27 = sbr.rel (0) target = $region17
    $region16: #{clip_forward.5} parent=1 // pred_region
      _
    $region17: #{clip_forward.5} parent=1 // pred_fallthru
      _
    // Predicated region
    $region18: #{clip_forward.5} parent=1 // pred_check
      _
    $region19: #{clip_forward.5} parent=1 // pred_check_branch
      %29 = sbr.rel (0) target = $region21
    $region20: #{clip_forward.5} parent=1 // pred_region
      _
    $region21: #{clip_forward.5} parent=1 // pred_fallthru
      _
    // Predicated region
    $region22: #{clip_forward.5} parent=1 // pred_check
      _
    $region23: #{clip_forward.5} parent=1 // pred_check_branch
      %31 = sbr.rel (0) target = $region25
    $region24: #{clip_forward.5} parent=1 // pred_region
      _
    $region25: #{clip_forward.5} parent=1 // pred_fallthru
      _
    // Predicated region
    $region26: #{clip_forward.5} parent=1 // pred_check
      _
    $region27: #{clip_forward.5} parent=1 // pred_check_branch
      %33 = sbr.rel (0) target = $region29
    $region28: #{clip_forward.5} parent=1 // pred_region
      _
    $region29: #{clip_forward.5} parent=1 // pred_fallthru
      _
    // Predicated region
    $region30: #{clip_forward.5} parent=1 // pred_check
      _
    $region31: #{clip_forward.5} parent=1 // pred_check_branch
      %35 = sbr.rel (0) target = $region33
    $region32: #{clip_forward.5} parent=1 // pred_region
      _
    $region33: #{clip_forward.5} parent=1 // pred_fallthru
      _
    // Predicated region
    $region34: #{clip_forward.5} parent=1 // pred_check
      _
    $region35: #{clip_forward.5} parent=1 // pred_check_branch
      %37 = sbr.rel (0) target = $region37
    $region36: #{clip_forward.5} parent=1 // pred_region
      _
    $region37: #{clip_forward.5} parent=1 // pred_fallthru
      _
    %v38 = vld [vmem:[%s0] sm:$0x3]
    %v39 = vld [vmem:[%s2] sm:$0x1]
    %v40 = vld [vmem:[%s3] sm:$0x1]
    %v41 = vlaneseq
    %v42 = vand.u32 %v41, 127
    %vm43 = vcmp.lt.s32.totalorder %v42, 32
    %v44 = vsel %vm43, 1, 0
    %v45 = vcvt.s32.f32 %v44
    %vm46 = vcmask 1041408
    %v47 = vsel %vm46, %v38, 0.0
    %48 = vadd.xlane.f32.xlu0 %v47
    %v49 = vpop.xlane.xlu0 %48
    %v50 = vmul.f32 %v49, 0.03125
    %v51 = vsub.f32 %v38, %v50
    %v52 = vmul.f32 %v51, %v51
    %v53 = vmul.f32 %v52, %v45
    %v54 = vsel %vm46, %v53, 0.0
    %55 = vadd.xlane.f32.xlu0 %v54
    %v56 = vpop.xlane.xlu0 %55
    %v57 = vmul.f32 %v56, 0.03125
    %v58 = vadd.f32 %v57, 1e-05
    %v59 = vrsqrt.pop %v58
    %v60 = vmul.f32 %v51, %v59
    %v62 = vlaneseq
    %v63 = vshrl.u32 %v62, 7
    %v64 = vsub.s32 0, %v63
    %v65 = vrot.slane %v39, %v64
    %v67 = vmul.f32 %v60, %v65
    %v69 = vlaneseq
    %v70 = vshrl.u32 %v69, 7
    %v71 = vsub.s32 0, %v70
    %v72 = vrot.slane %v40, %v71
    %v74 = vadd.f32 %v67, %v72
    %v75 = vld [vmem:[%s6] sm:$0xff]
    %v76 = vld [vmem:[%s6 + $0x8] sm:$0xff]
    %v77 = vld [vmem:[%s6 + $0x10] sm:$0xff]
    %v78 = vld [vmem:[%s6 + $0x18] sm:$0xff]
    %v79 = vld [vmem:[%s6 + $0x20] sm:$0xff]
    %v80 = vld [vmem:[%s6 + $0x28] sm:$0xff]
    %v81 = vld [vmem:[%s6 + $0x30] sm:$0xff]
    %v82 = vld [vmem:[%s6 + $0x38] sm:$0xff]
    %v83 = vld [vmem:[%s6 + $0x40] sm:$0xff]
    %v84 = vld [vmem:[%s6 + $0x48] sm:$0xff]
    %v85 = vld [vmem:[%s6 + $0x50] sm:$0xff]
    %v86 = vld [vmem:[%s6 + $0x58] sm:$0xff]
    %v87 = vld [vmem:[%s6 + $0x60] sm:$0xff]
    %v88 = vld [vmem:[%s6 + $0x68] sm:$0xff]
    %v89 = vld [vmem:[%s6 + $0x70] sm:$0xff]
    %v90 = vld [vmem:[%s6 + $0x78] sm:$0xff]
    %91 = vmatprep.subr.mxu0 0.0
    %92 = vmatpush1.msra.mxu0 %v90
    %93 = vmatprep.subr.mxu0 0.0
    %94 = vmatpush1.msra.mxu0 %v89
    %95 = vmatprep.subr.mxu0 0.0
    %96 = vmatpush1.msra.mxu0 %v88
    %97 = vmatprep.subr.mxu0 0.0
    %98 = vmatpush1.msra.mxu0 %v87
    %99 = vmatprep.subr.mxu0 0.0
    %100 = vmatpush1.msra.mxu0 %v86
    %101 = vmatprep.subr.mxu0 0.0
    %102 = vmatpush1.msra.mxu0 %v85
    %103 = vmatprep.subr.mxu0 0.0
    %104 = vmatpush1.msra.mxu0 %v84
    %105 = vmatprep.subr.mxu0 0.0
    %106 = vmatpush1.msra.mxu0 %v83
    %107 = vmatprep.subr.mxu0 0.0
    %108 = vmatpush1.msra.mxu0 %v82
    %109 = vmatprep.subr.mxu0 0.0
    %110 = vmatpush1.msra.mxu0 %v81
    %111 = vmatprep.subr.mxu0 0.0
    %112 = vmatpush1.msra.mxu0 %v80
    %113 = vmatprep.subr.mxu0 0.0
    %114 = vmatpush1.msra.mxu0 %v79
    %115 = vmatprep.subr.mxu0 0.0
    %116 = vmatpush1.msra.mxu0 %v78
    %117 = vmatprep.subr.mxu0 0.0
    %118 = vmatpush1.msra.mxu0 %v77
    %119 = vmatprep.subr.mxu0 0.0
    %120 = vmatpush1.msra.mxu0 %v76
    %121 = vmatprep.subr.mxu0 0.0
    %122 = vmatpush1.msra.mxu0 %v75
    %123 = vmatprep.subr.mxu0 0.0
    %124 = vmatpush2.msra.mxu0 0.0
    %125 = vmatprep.subr.mxu0 0.0
    %126 = vmatpush2.msra.mxu0 0.0
    %127 = vmatprep.subr.mxu0 0.0
    %128 = vmatpush2.msra.mxu0 0.0
    %129 = vmatprep.subr.mxu0 0.0
    %130 = vmatpush2.msra.mxu0 0.0
    %131 = vmatprep.subr.mxu0 0.0
    %132 = vmatpush2.msra.mxu0 0.0
    %133 = vmatprep.subr.mxu0 0.0
    %134 = vmatpush2.msra.mxu0 0.0
    %135 = vmatprep.subr.mxu0 0.0
    %136 = vmatpush2.msra.mxu0 0.0
    %137 = vmatprep.subr.mxu0 0.0
    %138 = vmatpush2.msra.mxu0 0.0
    %139 = vmatprep.subr.mxu0 0.0
    %140 = vmatpush2.msra.mxu0 0.0
    %141 = vmatprep.subr.mxu0 0.0
    %142 = vmatpush2.msra.mxu0 0.0
    %143 = vmatprep.subr.mxu0 0.0
    %144 = vmatpush2.msra.mxu0 0.0
    %145 = vmatprep.subr.mxu0 0.0
    %146 = vmatpush2.msra.mxu0 0.0
    %147 = vmatprep.subr.mxu0 0.0
    %148 = vmatpush2.msra.mxu0 0.0
    %149 = vmatprep.subr.mxu0 0.0
    %150 = vmatpush2.msra.mxu0 0.0
    %151 = vmatprep.subr.mxu0 0.0
    %152 = vmatpush2.msra.mxu0 0.0
    %153 = vmatprep.subr.mxu0 0.0
    %154 = vmatpush2.msra.mxu0 0.0
    %155 = vmatprep.mubr.f32.mxu0 0.0
    %156 = vmatmul.mubr.f32.gmra.mxu0 %v74
    %v157 = vpop.f32.mrf.mxu0
    %v158 = vadd.f32 0.0, %v157
    %v159 = vpop.f32.mrf.mxu0
    %160 = vdwg.mxu0
    %v161 = vld [vmem:[%s1] sm:$0x3]
    %v162 = vld [vmem:[%s4] sm:$0x1]
    %v163 = vld [vmem:[%s5] sm:$0x1]
    %v164 = vsel %vm46, %v161, 0.0
    %165 = vadd.xlane.f32.xlu0 %v164
    %v166 = vpop.xlane.xlu0 %165
    %v167 = vmul.f32 %v166, 0.03125
    %v168 = vsub.f32 %v161, %v167
    %v169 = vmul.f32 %v168, %v168
    %v170 = vmul.f32 %v169, %v45
    %v171 = vsel %vm46, %v170, 0.0
    %172 = vadd.xlane.f32.xlu0 %v171
    %v173 = vpop.xlane.xlu0 %172
    %v174 = vmul.f32 %v173, 0.03125
    %v175 = vadd.f32 %v174, 1e-05
    %v176 = vrsqrt.pop %v175
    %v177 = vmul.f32 %v168, %v176
    %v179 = vlaneseq
    %v180 = vshrl.u32 %v179, 7
    %v181 = vsub.s32 0, %v180
    %v182 = vrot.slane %v162, %v181
    %v184 = vmul.f32 %v177, %v182
    %v186 = vlaneseq
    %v187 = vshrl.u32 %v186, 7
    %v188 = vsub.s32 0, %v187
    %v189 = vrot.slane %v163, %v188
    %v191 = vadd.f32 %v184, %v189
    %v192 = vld [vmem:[%s7] sm:$0xff]
    %v193 = vld [vmem:[%s7 + $0x8] sm:$0xff]
    %v194 = vld [vmem:[%s7 + $0x10] sm:$0xff]
    %v195 = vld [vmem:[%s7 + $0x18] sm:$0xff]
    %v196 = vld [vmem:[%s7 + $0x20] sm:$0xff]
    %v197 = vld [vmem:[%s7 + $0x28] sm:$0xff]
    %v198 = vld [vmem:[%s7 + $0x30] sm:$0xff]
    %v199 = vld [vmem:[%s7 + $0x38] sm:$0xff]
    %v200 = vld [vmem:[%s7 + $0x40] sm:$0xff]
    %v201 = vld [vmem:[%s7 + $0x48] sm:$0xff]
    %v202 = vld [vmem:[%s7 + $0x50] sm:$0xff]
    %v203 = vld [vmem:[%s7 + $0x58] sm:$0xff]
    %v204 = vld [vmem:[%s7 + $0x60] sm:$0xff]
    %v205 = vld [vmem:[%s7 + $0x68] sm:$0xff]
    %v206 = vld [vmem:[%s7 + $0x70] sm:$0xff]
    %v207 = vld [vmem:[%s7 + $0x78] sm:$0xff]
    %208 = vmatprep.subr.mxu0 0.0
    %209 = vmatpush1.msra.mxu0 %v207
    %210 = vmatprep.subr.mxu0 0.0
    %211 = vmatpush1.msra.mxu0 %v206
    %212 = vmatprep.subr.mxu0 0.0
    %213 = vmatpush1.msra.mxu0 %v205
    %214 = vmatprep.subr.mxu0 0.0
    %215 = vmatpush1.msra.mxu0 %v204
    %216 = vmatprep.subr.mxu0 0.0
    %217 = vmatpush1.msra.mxu0 %v203
    %218 = vmatprep.subr.mxu0 0.0
    %219 = vmatpush1.msra.mxu0 %v202
    %220 = vmatprep.subr.mxu0 0.0
    %221 = vmatpush1.msra.mxu0 %v201
    %222 = vmatprep.subr.mxu0 0.0
    %223 = vmatpush1.msra.mxu0 %v200
    %224 = vmatprep.subr.mxu0 0.0
    %225 = vmatpush1.msra.mxu0 %v199
    %226 = vmatprep.subr.mxu0 0.0
    %227 = vmatpush1.msra.mxu0 %v198
    %228 = vmatprep.subr.mxu0 0.0
    %229 = vmatpush1.msra.mxu0 %v197
    %230 = vmatprep.subr.mxu0 0.0
    %231 = vmatpush1.msra.mxu0 %v196
    %232 = vmatprep.subr.mxu0 0.0
    %233 = vmatpush1.msra.mxu0 %v195
    %234 = vmatprep.subr.mxu0 0.0
    %235 = vmatpush1.msra.mxu0 %v194
    %236 = vmatprep.subr.mxu0 0.0
    %237 = vmatpush1.msra.mxu0 %v193
    %238 = vmatprep.subr.mxu0 0.0
    %239 = vmatpush1.msra.mxu0 %v192
    %240 = vmatprep.subr.mxu0 0.0
    %241 = vmatpush2.msra.mxu0 0.0
    %242 = vmatprep.subr.mxu0 0.0
    %243 = vmatpush2.msra.mxu0 0.0
    %244 = vmatprep.subr.mxu0 0.0
    %245 = vmatpush2.msra.mxu0 0.0
    %246 = vmatprep.subr.mxu0 0.0
    %247 = vmatpush2.msra.mxu0 0.0
    %248 = vmatprep.subr.mxu0 0.0
    %249 = vmatpush2.msra.mxu0 0.0
    %250 = vmatprep.subr.mxu0 0.0
    %251 = vmatpush2.msra.mxu0 0.0
    %252 = vmatprep.subr.mxu0 0.0
    %253 = vmatpush2.msra.mxu0 0.0
    %254 = vmatprep.subr.mxu0 0.0
    %255 = vmatpush2.msra.mxu0 0.0
    %256 = vmatprep.subr.mxu0 0.0
    %257 = vmatpush2.msra.mxu0 0.0
    %258 = vmatprep.subr.mxu0 0.0
    %259 = vmatpush2.msra.mxu0 0.0
    %260 = vmatprep.subr.mxu0 0.0
    %261 = vmatpush2.msra.mxu0 0.0
    %262 = vmatprep.subr.mxu0 0.0
    %263 = vmatpush2.msra.mxu0 0.0
    %264 = vmatprep.subr.mxu0 0.0
    %265 = vmatpush2.msra.mxu0 0.0
    %266 = vmatprep.subr.mxu0 0.0
    %267 = vmatpush2.msra.mxu0 0.0
    %268 = vmatprep.subr.mxu0 0.0
    %269 = vmatpush2.msra.mxu0 0.0
    %270 = vmatprep.subr.mxu0 0.0
    %271 = vmatpush2.msra.mxu0 0.0
    %272 = vmatprep.mubr.f32.mxu0 0.0
    %273 = vmatmul.mubr.f32.gmra.mxu0 %v191
    %v274 = vpop.f32.mrf.mxu0
    %v275 = vadd.f32 0.0, %v274
    %v276 = vpop.f32.mrf.mxu0
    %277 = vdwg.mxu0
    %v278 = vmul.f32 %v158, %v158
    %v279 = vsel %vm46, %v278, 0.0
    %280 = vadd.xlane.f32.xlu0 %v279
    %v281 = vpop.xlane.xlu0 %280
    %v282 = vrsqrt.pop %v281
    %v283 = vmul.f32 %v158, %v282
    %v284 = vmul.f32 %v275, %v275
    %v285 = vsel %vm46, %v284, 0.0
    %286 = vadd.xlane.f32.xlu0 %v285
    %v287 = vpop.xlane.xlu0 %286
    %v288 = vrsqrt.pop %v287
    %v289 = vmul.f32 %v275, %v288
    %v290 = vld [vmem:[#allocation2] sm:$0x1]
    %s291 = vtos %v290
    %v292 = vstv %s291
    %v293 = vmul.f32 %v292, 1.442695
    %v294 = vpow.pop %v293
    %s295 = vtos %v294
    %296 = vmatprep.subr.mxu0 0.0
    %297 = vmatpush1.xpose.msra.mxu0 0.0
    %298 = vmatprep.subr.mxu0 0.0
    %299 = vmatpush1.xpose.msra.mxu0 0.0
    %300 = vmatprep.subr.mxu0 0.0
    %301 = vmatpush1.xpose.msra.mxu0 0.0
    %302 = vmatprep.subr.mxu0 0.0
    %303 = vmatpush1.xpose.msra.mxu0 0.0
    %304 = vmatprep.subr.mxu0 0.0
    %305 = vmatpush1.xpose.msra.mxu0 0.0
    %306 = vmatprep.subr.mxu0 0.0
    %307 = vmatpush1.xpose.msra.mxu0 0.0
    %308 = vmatprep.subr.mxu0 0.0
    %309 = vmatpush1.xpose.msra.mxu0 0.0
    %310 = vmatprep.subr.mxu0 0.0
    %311 = vmatpush1.xpose.msra.mxu0 0.0
    %312 = vmatprep.subr.mxu0 0.0
    %313 = vmatpush1.xpose.msra.mxu0 0.0
    %314 = vmatprep.subr.mxu0 0.0
    %315 = vmatpush1.xpose.msra.mxu0 0.0
    %316 = vmatprep.subr.mxu0 0.0
    %317 = vmatpush1.xpose.msra.mxu0 0.0
    %318 = vmatprep.subr.mxu0 0.0
    %319 = vmatpush1.xpose.msra.mxu0 0.0
    %320 = vmatprep.subr.mxu0 0.0
    %321 = vmatpush1.xpose.msra.mxu0 0.0
    %322 = vmatprep.subr.mxu0 0.0
    %323 = vmatpush1.xpose.msra.mxu0 0.0
    %324 = vmatprep.subr.mxu0 0.0
    %325 = vmatpush1.xpose.msra.mxu0 0.0
    %326 = vmatprep.subr.mxu0 0.0
    %327 = vmatpush1.xpose.msra.mxu0 %v283
    %328 = vmatprep.subr.mxu0 0.0
    %329 = vmatpush2.xpose.msra.mxu0 0.0
    %330 = vmatprep.subr.mxu0 0.0
    %331 = vmatpush2.xpose.msra.mxu0 0.0
    %332 = vmatprep.subr.mxu0 0.0
    %333 = vmatpush2.xpose.msra.mxu0 0.0
    %334 = vmatprep.subr.mxu0 0.0
    %335 = vmatpush2.xpose.msra.mxu0 0.0
    %336 = vmatprep.subr.mxu0 0.0
    %337 = vmatpush2.xpose.msra.mxu0 0.0
    %338 = vmatprep.subr.mxu0 0.0
    %339 = vmatpush2.xpose.msra.mxu0 0.0
    %340 = vmatprep.subr.mxu0 0.0
    %341 = vmatpush2.xpose.msra.mxu0 0.0
    %342 = vmatprep.subr.mxu0 0.0
    %343 = vmatpush2.xpose.msra.mxu0 0.0
    %344 = vmatprep.subr.mxu0 0.0
    %345 = vmatpush2.xpose.msra.mxu0 0.0
    %346 = vmatprep.subr.mxu0 0.0
    %347 = vmatpush2.xpose.msra.mxu0 0.0
    %348 = vmatprep.subr.mxu0 0.0
    %349 = vmatpush2.xpose.msra.mxu0 0.0
    %350 = vmatprep.subr.mxu0 0.0
    %351 = vmatpush2.xpose.msra.mxu0 0.0
    %352 = vmatprep.subr.mxu0 0.0
    %353 = vmatpush2.xpose.msra.mxu0 0.0
    %354 = vmatprep.subr.mxu0 0.0
    %355 = vmatpush2.xpose.msra.mxu0 0.0
    %356 = vmatprep.subr.mxu0 0.0
    %357 = vmatpush2.xpose.msra.mxu0 0.0
    %358 = vmatprep.subr.mxu0 0.0
    %359 = vmatpush2.xpose.msra.mxu0 0.0
    %360 = vmatprep.mubr.f32.mxu0 0.0
    %361 = vmatmul.mubr.f32.gmra.mxu0 %v289
    %v362 = vpop.f32.mrf.mxu0
    %v363 = vadd.f32 0.0, %v362
    %v364 = vpop.f32.mrf.mxu0
    %365 = vdwg.mxu0
    %v366 = vstv %s295
    %v367 = vmul.f32 %v363, %v366
    %368 = vmatprep.subr.mxu0 0.0
    %369 = vmatpush1.xpose.msra.mxu0 0.0
    %370 = vmatprep.subr.mxu0 0.0
    %371 = vmatpush1.xpose.msra.mxu0 0.0
    %372 = vmatprep.subr.mxu0 0.0
    %373 = vmatpush1.xpose.msra.mxu0 0.0
    %374 = vmatprep.subr.mxu0 0.0
    %375 = vmatpush1.xpose.msra.mxu0 0.0
    %376 = vmatprep.subr.mxu0 0.0
    %377 = vmatpush1.xpose.msra.mxu0 0.0
    %378 = vmatprep.subr.mxu0 0.0
    %379 = vmatpush1.xpose.msra.mxu0 0.0
    %380 = vmatprep.subr.mxu0 0.0
    %381 = vmatpush1.xpose.msra.mxu0 0.0
    %382 = vmatprep.subr.mxu0 0.0
    %383 = vmatpush1.xpose.msra.mxu0 0.0
    %384 = vmatprep.subr.mxu0 0.0
    %385 = vmatpush1.xpose.msra.mxu0 0.0
    %386 = vmatprep.subr.mxu0 0.0
    %387 = vmatpush1.xpose.msra.mxu0 0.0
    %388 = vmatprep.subr.mxu0 0.0
    %389 = vmatpush1.xpose.msra.mxu0 0.0
    %390 = vmatprep.subr.mxu0 0.0
    %391 = vmatpush1.xpose.msra.mxu0 0.0
    %392 = vmatprep.subr.mxu0 0.0
    %393 = vmatpush1.xpose.msra.mxu0 0.0
    %394 = vmatprep.subr.mxu0 0.0
    %395 = vmatpush1.xpose.msra.mxu0 0.0
    %396 = vmatprep.subr.mxu0 0.0
    %397 = vmatpush1.xpose.msra.mxu0 0.0
    %398 = vmatprep.subr.mxu0 0.0
    %399 = vmatpush1.xpose.msra.mxu0 %v289
    %400 = vmatprep.subr.mxu0 0.0
    %401 = vmatpush2.xpose.msra.mxu0 0.0
    %402 = vmatprep.subr.mxu0 0.0
    %403 = vmatpush2.xpose.msra.mxu0 0.0
    %404 = vmatprep.subr.mxu0 0.0
    %405 = vmatpush2.xpose.msra.mxu0 0.0
    %406 = vmatprep.subr.mxu0 0.0
    %407 = vmatpush2.xpose.msra.mxu0 0.0
    %408 = vmatprep.subr.mxu0 0.0
    %409 = vmatpush2.xpose.msra.mxu0 0.0
    %410 = vmatprep.subr.mxu0 0.0
    %411 = vmatpush2.xpose.msra.mxu0 0.0
    %412 = vmatprep.subr.mxu0 0.0
    %413 = vmatpush2.xpose.msra.mxu0 0.0
    %414 = vmatprep.subr.mxu0 0.0
    %415 = vmatpush2.xpose.msra.mxu0 0.0
    %416 = vmatprep.subr.mxu0 0.0
    %417 = vmatpush2.xpose.msra.mxu0 0.0
    %418 = vmatprep.subr.mxu0 0.0
    %419 = vmatpush2.xpose.msra.mxu0 0.0
    %420 = vmatprep.subr.mxu0 0.0
    %421 = vmatpush2.xpose.msra.mxu0 0.0
    %422 = vmatprep.subr.mxu0 0.0
    %423 = vmatpush2.xpose.msra.mxu0 0.0
    %424 = vmatprep.subr.mxu0 0.0
    %425 = vmatpush2.xpose.msra.mxu0 0.0
    %426 = vmatprep.subr.mxu0 0.0
    %427 = vmatpush2.xpose.msra.mxu0 0.0
    %428 = vmatprep.subr.mxu0 0.0
    %429 = vmatpush2.xpose.msra.mxu0 0.0
    %430 = vmatprep.subr.mxu0 0.0
    %431 = vmatpush2.xpose.msra.mxu0 0.0
    %432 = vmatprep.mubr.f32.mxu0 0.0
    %433 = vmatmul.mubr.f32.gmra.mxu0 %v283
    %v434 = vpop.f32.mrf.mxu0
    %v435 = vadd.f32 0.0, %v434
    %v436 = vpop.f32.mrf.mxu0
    %437 = vdwg.mxu0
    %v438 = vmul.f32 %v435, %v366
    %vm439 = vcmask 9216
    %v440 = vsel %vm439, %v438, -inf
    %441 = vmax.xlane.f32.xlu0 %v440
    %v442 = vpop.xlane.xlu0 %441
    %v443 = vsub.f32 %v438, %v442
    %v444 = vmul.f32 %v443, 1.442695
    %v445 = vpow.pop %v444
    %v446 = vsel %vm439, %v445, 0.0
    %447 = vadd.xlane.f32.xlu0 %v446
    %v448 = vpop.xlane.xlu0 %447
    %v449 = vrcp.pop %v448
    %v450 = vmul.f32 %v445, %v449
    %451 = vst.msk [vmem:[#allocation3] sm:$0x3] %vm439, %v450
    %v452 = vsel %vm439, %v367, -inf
    %453 = vmax.xlane.f32.xlu0 %v452
    %v454 = vpop.xlane.xlu0 %453
    %v455 = vsub.f32 %v367, %v454
    %v456 = vmul.f32 %v455, 1.442695
    %v457 = vpow.pop %v456
    %v458 = vsel %vm439, %v457, 0.0
    %459 = vadd.xlane.f32.xlu0 %v458
    %v460 = vpop.xlane.xlu0 %459
    %v461 = vrcp.pop %v460
    %v462 = vmul.f32 %v457, %v461
    %463 = vst.msk [vmem:[#allocation5] sm:$0x3] %vm439, %v462
    // Predicated region
    $region38: #{clip_forward.5} parent=1 // pred_check
      _
    $region39: #{clip_forward.5} parent=1 // pred_check_branch
      %465 = sbr.rel (0) target = $region41
    $region40: #{clip_forward.5} parent=1 // pred_region
      %s467 = ssub.s32 32, 32
      %468 = vsyncadd [#allocation4], %s467
      %s470 = sshll.u32 [#allocation3], 4
      %s471 = int_to_ptr.vmem [resolvable:$true] %s470
      %473 = dma.vmem_to_hbm [thread:$0]  %s471, 32, %s9, [#allocation4]
    $region41: #{clip_forward.5} parent=1 // pred_fallthru
      _
    // Predicated region
    $region42: #{clip_forward.5} parent=1 // pred_check
      _
    $region43: #{clip_forward.5} parent=1 // pred_check_branch
      %475 = sbr.rel (0) target = $region45
    $region44: #{clip_forward.5} parent=1 // pred_region
      %s477 = ssub.s32 32, 32
      %478 = vsyncadd [#allocation6], %s477
      %s480 = sshll.u32 [#allocation5], 4
      %s481 = int_to_ptr.vmem [resolvable:$true] %s480
      %483 = dma.vmem_to_hbm [thread:$0]  %s481, 32, %s10, [#allocation6]
    $region45: #{clip_forward.5} parent=1 // pred_fallthru
      _
    // Predicated region
    $region46: #{clip_forward.5} parent=1 // pred_check
      _
    $region47: #{clip_forward.5} parent=1 // pred_check_branch
      %485 = sbr.rel (0) target = $region49
    $region48: #{clip_forward.5} parent=1 // pred_region
      %486 = dma.done [#allocation4], 32
    $region49: #{clip_forward.5} parent=1 // pred_fallthru
      _
    // Predicated region
    $region50: #{clip_forward.5} parent=1 // pred_check
      _
    $region51: #{clip_forward.5} parent=1 // pred_check_branch
      %488 = sbr.rel (0) target = $region53
    $region52: #{clip_forward.5} parent=1 // pred_region
      %489 = dma.done [#allocation6], 32
    $region53: #{clip_forward.5} parent=1 // pred_fallthru
      _
    %490 = vsyncpa [#allocation4], 1
    %491 = vsyncpa [#allocation6], 1

// kernel: clip_forward.4
$region0: #{clip_forward.4}
  #allocation0 [shape = 'u32[]', space=smem, size = 0x4, offset = 0x4, fixed_abs, tag = 'smem constant byte address 0x4 - core index']
  #allocation1 [shape = 'u32[144,128]{1,0:T(1,128)}', space=vmem, size = 0x12000, scoped, tag = 'internal scratch']
  #allocation2 [shape = 'f32[8,128]{1,0:T(8,128)}', space=vmem, size = 0x1000, scoped, tag = 'scratch operand']
  #allocation3 [shape = 's32[1]{0}', space=sflag, size = 0x4, scoped, tag = 'scoped memory for clip_forward.4']
  #allocation4 [shape = 'u8[512]{0}', space=smem, size = 0x200, scoped, tag = 'prefetched SMEM operand 0']
  %s0 = inlined_call_operand.vmem [shape: s32[2], index: 0, kind: input, shape index: {}]
  %s1 = inlined_call_operand.vmem [shape: f32[16,128], index: 1, kind: input, shape index: {}]
  %s2 = inlined_call_operand.vmem [shape: f32[2,1,128], index: 2, kind: input, shape index: {}]
  %s3 = inlined_call_operand.vmem [shape: f32[2,1,128], index: 3, kind: input, shape index: {}]
  %s4 = inlined_call_operand.vmem [shape: f32[2,128,1536], index: 4, kind: input, shape index: {}]
  %s5 = inlined_call_operand.vmem [shape: f32[2,1,1536], index: 5, kind: input, shape index: {}]
  %s6 = inlined_call_operand.vmem [shape: f32[2,512,128], index: 6, kind: input, shape index: {}]
  %s7 = inlined_call_operand.vmem [shape: f32[2,1,128], index: 7, kind: input, shape index: {}]
  %s8 = inlined_call_operand.vmem [shape: f32[2,1,128], index: 8, kind: input, shape index: {}]
  %s9 = inlined_call_operand.vmem [shape: f32[2,1,128], index: 9, kind: input, shape index: {}]
  %s10 = inlined_call_operand.vmem [shape: f32[2,128,128], index: 10, kind: input, shape index: {}]
  %s11 = inlined_call_operand.vmem [shape: f32[2,1,128], index: 11, kind: input, shape index: {}]
  %s12 = inlined_call_operand.vmem [shape: f32[2,128,128], index: 12, kind: input, shape index: {}]
  %s13 = inlined_call_operand.vmem [shape: f32[2,1,128], index: 13, kind: input, shape index: {}]
  %s14 = inlined_call_operand.vmem [shape: f32[16,128], index: 14, kind: output, shape index: {}]
  %s15 = sld [smem:[#allocation0]]
  $region93: #{clip_forward.4} parent=0
    _
  %s17 = ssub.s32 1, %s15
  %s18 = scalar_select 0, %s17, %s15
  %s19 = sshll.u32 %s0, 4
  %s20 = int_to_ptr.vmem [resolvable:$true] %s19
  %22 = dma.vmem_to_smem %s20, 16, [#allocation4], [#allocation3]
  %23 = dma.done [#allocation3], 16
  %24 = sfence
  loop: start=0, step=1, limit=6
  $region2: #{clip_forward.4} parent=0 // loop_pre_header
    _
  $region3: #{clip_forward.4} parent=0 // loop_header
    %s26 = sphi 0, %s30
    %p27 = scmp.ge.s32.totalorder %s26, 6
    %s33 = sphi 0, %s45
    %s34 = sphi 0, %s41
    %s35 = sphi 0, %s33
    %s36 = sphi 0, %s34
    %s37 = sphi 0, %s35
    %s38 = sphi 0, %s36
    %s48 = sphi 0, %s50
    %s51 = sphi 0, %s48
    %s52 = sphi 0, %s51
    %s68 = sphi 0, %s52
    %s74 = sphi 0, %s76
    %s77 = sphi 0, %s74
    %s78 = sphi 0, %s77
    %s94 = sphi 0, %s78
    %s100 = sphi 0, %s102
    %s103 = sphi 0, %s100
    %s104 = sphi 0, %s103
    %s120 = sphi 0, %s104
    %s126 = sphi 0, %s128
    %s129 = sphi 0, %s126
    %s130 = sphi 0, %s129
    %s146 = sphi 0, %s130
    %s152 = sphi 0, %s154
    %s155 = sphi 0, %s152
    %s156 = sphi 0, %s155
    %s172 = sphi 0, %s156
    %s178 = sphi 0, %s180
    %s181 = sphi 0, %s178
    %s182 = sphi 0, %s181
    %s198 = sphi 0, %s182
    %s204 = sphi 0, %s206
    %s207 = sphi 0, %s204
    %s208 = sphi 0, %s207
    %s224 = sphi 0, %s208
    %s230 = sphi 0, %s232
    %s233 = sphi 0, %s230
    %s234 = sphi 0, %s233
    %s250 = sphi 0, %s234
    %s256 = sphi 0, %s258
    %s259 = sphi 0, %s256
    %s260 = sphi 0, %s259
    %s276 = sphi 0, %s260
    %s282 = sphi 0, %s284
    %s285 = sphi 0, %s282
    %s286 = sphi 0, %s285
    %s302 = sphi 0, %s286
    %s308 = sphi 0, %s310
    %s311 = sphi 0, %s308
    %s312 = sphi 0, %s311
    %s328 = sphi 0, %s312
    %s334 = sphi 0, %s336
    %s337 = sphi 0, %s334
    %s338 = sphi 0, %s337
    %s354 = sphi 0, %s338
    %s360 = sphi 0, %s362
    %s363 = sphi 0, %s360
    %s364 = sphi 0, %s363
    %s380 = sphi 0, %s364
    %s386 = sphi 0, %s388
    %s389 = sphi 0, %s386
    %s390 = sphi 0, %s389
    %s406 = sphi 0, %s390
  $region4: #{clip_forward.4} parent=0 // loop_header_branch
    %29 = sbr.rel (%p27) target = $region8
  $region5: #{clip_forward.4} parent=0 // loop_body
    %s31 = ssub.s32 %s26, 1
    %s32 = ssub.s32 %s26, 2
    %s39 = sadd.s32 1, %s34
    %p40 = scmp.ge.s32.totalorder %s39, 2
    %s41 = scalar_select %p40, 0, %s39
    %s42 = sadd.s32 1, %s33
    %s43 = scalar_select %p40, %s42, %s33
    %p44 = scmp.ge.s32.totalorder %s43, 2
    %s45 = scalar_select %p44, 0, %s43
    %s46 = ssub.s32 %s33, %s45
    %p47 = scmp.eq.s32.totalorder %s46, 0
    %s49 = sadd.s32 %s48, 1
    %s50 = scalar_select %p47, %s48, %s49
    %p53 = pneg %p47
    %p54 = scmp.eq.s32.totalorder %s26, 3
    %p55 = por %p53, %p54
    %p56 = scmp.ne.s32.totalorder %s48, %s51
    %p57 = scmp.eq.s32.totalorder %s26, 0
    %p58 = por %p56, %p57
    %p59 = scmp.ne.s32.totalorder %s48, %s51
    %p60 = scmp.eq.s32.totalorder %s31, 3
    %p61 = por %p59, %p60
    %p62 = scmp.ne.s32.totalorder %s51, %s52
    %p63 = scmp.eq.s32.totalorder %s31, 0
    %p64 = por %p62, %p63
    %p65 = scmp.ne.s32.totalorder %s51, %s52
    %p66 = scmp.eq.s32.totalorder %s32, 3
    %p67 = por %p65, %p66
    %p69 = scmp.ne.s32.totalorder %s52, %s68
    %p70 = scmp.eq.s32.totalorder %s32, 0
    %p71 = por %p69, %p70
    %s72 = ssub.s32 %s34, %s41
    %p73 = scmp.eq.s32.totalorder %s72, 0
    %s75 = sadd.s32 %s74, 1
    %s76 = scalar_select %p73, %s74, %s75
    %p79 = pneg %p73
    %p80 = scmp.eq.s32.totalorder %s26, 3
    %p81 = por %p79, %p80
    %p82 = scmp.ne.s32.totalorder %s74, %s77
    %p83 = scmp.eq.s32.totalorder %s26, 0
    %p84 = por %p82, %p83
    %p85 = scmp.ne.s32.totalorder %s74, %s77
    %p86 = scmp.eq.s32.totalorder %s31, 3
    %p87 = por %p85, %p86
    %p88 = scmp.ne.s32.totalorder %s77, %s78
    %p89 = scmp.eq.s32.totalorder %s31, 0
    %p90 = por %p88, %p89
    %p91 = scmp.ne.s32.totalorder %s77, %s78
    %p92 = scmp.eq.s32.totalorder %s32, 3
    %p93 = por %p91, %p92
    %p95 = scmp.ne.s32.totalorder %s78, %s94
    %p96 = scmp.eq.s32.totalorder %s32, 0
    %p97 = por %p95, %p96
    %s98 = ssub.s32 %s34, %s41
    %p99 = scmp.eq.s32.totalorder %s98, 0
    %s101 = sadd.s32 %s100, 1
    %s102 = scalar_select %p99, %s100, %s101
    %p105 = pneg %p99
    %p106 = scmp.eq.s32.totalorder %s26, 3
    %p107 = por %p105, %p106
    %p108 = scmp.ne.s32.totalorder %s100, %s103
    %p109 = scmp.eq.s32.totalorder %s26, 0
    %p110 = por %p108, %p109
    %p111 = scmp.ne.s32.totalorder %s100, %s103
    %p112 = scmp.eq.s32.totalorder %s31, 3
    %p113 = por %p111, %p112
    %p114 = scmp.ne.s32.totalorder %s103, %s104
    %p115 = scmp.eq.s32.totalorder %s31, 0
    %p116 = por %p114, %p115
    %p117 = scmp.ne.s32.totalorder %s103, %s104
    %p118 = scmp.eq.s32.totalorder %s32, 3
    %p119 = por %p117, %p118
    %p121 = scmp.ne.s32.totalorder %s104, %s120
    %p122 = scmp.eq.s32.totalorder %s32, 0
    %p123 = por %p121, %p122
    %s124 = ssub.s32 %s34, %s41
    %p125 = scmp.eq.s32.totalorder %s124, 0
    %s127 = sadd.s32 %s126, 1
    %s128 = scalar_select %p125, %s126, %s127
    %p131 = pneg %p125
    %p132 = scmp.eq.s32.totalorder %s26, 3
    %p133 = por %p131, %p132
    %p134 = scmp.ne.s32.totalorder %s126, %s129
    %p135 = scmp.eq.s32.totalorder %s26, 0
    %p136 = por %p134, %p135
    %p137 = scmp.ne.s32.totalorder %s126, %s129
    %p138 = scmp.eq.s32.totalorder %s31, 3
    %p139 = por %p137, %p138
    %p140 = scmp.ne.s32.totalorder %s129, %s130
    %p141 = scmp.eq.s32.totalorder %s31, 0
    %p142 = por %p140, %p141
    %p143 = scmp.ne.s32.totalorder %s129, %s130
    %p144 = scmp.eq.s32.totalorder %s32, 3
    %p145 = por %p143, %p144
    %p147 = scmp.ne.s32.totalorder %s130, %s146
    %p148 = scmp.eq.s32.totalorder %s32, 0
    %p149 = por %p147, %p148
    %s150 = ssub.s32 %s34, %s41
    %p151 = scmp.eq.s32.totalorder %s150, 0
    %s153 = sadd.s32 %s152, 1
    %s154 = scalar_select %p151, %s152, %s153
    %p157 = pneg %p151
    %p158 = scmp.eq.s32.totalorder %s26, 3
    %p159 = por %p157, %p158
    %p160 = scmp.ne.s32.totalorder %s152, %s155
    %p161 = scmp.eq.s32.totalorder %s26, 0
    %p162 = por %p160, %p161
    %p163 = scmp.ne.s32.totalorder %s152, %s155
    %p164 = scmp.eq.s32.totalorder %s31, 3
    %p165 = por %p163, %p164
    %p166 = scmp.ne.s32.totalorder %s155, %s156
    %p167 = scmp.eq.s32.totalorder %s31, 0
    %p168 = por %p166, %p167
    %p169 = scmp.ne.s32.totalorder %s155, %s156
    %p170 = scmp.eq.s32.totalorder %s32, 3
    %p171 = por %p169, %p170
    %p173 = scmp.ne.s32.totalorder %s156, %s172
    %p174 = scmp.eq.s32.totalorder %s32, 0
    %p175 = por %p173, %p174
    %s176 = ssub.s32 %s34, %s41
    %p177 = scmp.eq.s32.totalorder %s176, 0
    %s179 = sadd.s32 %s178, 1
    %s180 = scalar_select %p177, %s178, %s179
    %p183 = pneg %p177
    %p184 = scmp.eq.s32.totalorder %s26, 3
    %p185 = por %p183, %p184
    %p186 = scmp.ne.s32.totalorder %s178, %s181
    %p187 = scmp.eq.s32.totalorder %s26, 0
    %p188 = por %p186, %p187
    %p189 = scmp.ne.s32.totalorder %s178, %s181
    %p190 = scmp.eq.s32.totalorder %s31, 3
    %p191 = por %p189, %p190
    %p192 = scmp.ne.s32.totalorder %s181, %s182
    %p193 = scmp.eq.s32.totalorder %s31, 0
    %p194 = por %p192, %p193
    %p195 = scmp.ne.s32.totalorder %s181, %s182
    %p196 = scmp.eq.s32.totalorder %s32, 3
    %p197 = por %p195, %p196
    %p199 = scmp.ne.s32.totalorder %s182, %s198
    %p200 = scmp.eq.s32.totalorder %s32, 0
    %p201 = por %p199, %p200
    %s202 = ssub.s32 %s34, %s41
    %p203 = scmp.eq.s32.totalorder %s202, 0
    %s205 = sadd.s32 %s204, 1
    %s206 = scalar_select %p203, %s204, %s205
    %p209 = pneg %p203
    %p210 = scmp.eq.s32.totalorder %s26, 3
    %p211 = por %p209, %p210
    %p212 = scmp.ne.s32.totalorder %s204, %s207
    %p213 = scmp.eq.s32.totalorder %s26, 0
    %p214 = por %p212, %p213
    %p215 = scmp.ne.s32.totalorder %s204, %s207
    %p216 = scmp.eq.s32.totalorder %s31, 3
    %p217 = por %p215, %p216
    %p218 = scmp.ne.s32.totalorder %s207, %s208
    %p219 = scmp.eq.s32.totalorder %s31, 0
    %p220 = por %p218, %p219
    %p221 = scmp.ne.s32.totalorder %s207, %s208
    %p222 = scmp.eq.s32.totalorder %s32, 3
    %p223 = por %p221, %p222
    %p225 = scmp.ne.s32.totalorder %s208, %s224
    %p226 = scmp.eq.s32.totalorder %s32, 0
    %p227 = por %p225, %p226
    %s228 = ssub.s32 %s34, %s41
    %p229 = scmp.eq.s32.totalorder %s228, 0
    %s231 = sadd.s32 %s230, 1
    %s232 = scalar_select %p229, %s230, %s231
    %p235 = pneg %p229
    %p236 = scmp.eq.s32.totalorder %s26, 3
    %p237 = por %p235, %p236
    %p238 = scmp.ne.s32.totalorder %s230, %s233
    %p239 = scmp.eq.s32.totalorder %s26, 0
    %p240 = por %p238, %p239
    %p241 = scmp.ne.s32.totalorder %s230, %s233
    %p242 = scmp.eq.s32.totalorder %s31, 3
    %p243 = por %p241, %p242
    %p244 = scmp.ne.s32.totalorder %s233, %s234
    %p245 = scmp.eq.s32.totalorder %s31, 0
    %p246 = por %p244, %p245
    %p247 = scmp.ne.s32.totalorder %s233, %s234
    %p248 = scmp.eq.s32.totalorder %s32, 3
    %p249 = por %p247, %p248
    %p251 = scmp.ne.s32.totalorder %s234, %s250
    %p252 = scmp.eq.s32.totalorder %s32, 0
    %p253 = por %p251, %p252
    %s254 = ssub.s32 %s34, %s41
    %p255 = scmp.eq.s32.totalorder %s254, 0
    %s257 = sadd.s32 %s256, 1
    %s258 = scalar_select %p255, %s256, %s257
    %p261 = pneg %p255
    %p262 = scmp.eq.s32.totalorder %s26, 3
    %p263 = por %p261, %p262
    %p264 = scmp.ne.s32.totalorder %s256, %s259
    %p265 = scmp.eq.s32.totalorder %s26, 0
    %p266 = por %p264, %p265
    %p267 = scmp.ne.s32.totalorder %s256, %s259
    %p268 = scmp.eq.s32.totalorder %s31, 3
    %p269 = por %p267, %p268
    %p270 = scmp.ne.s32.totalorder %s259, %s260
    %p271 = scmp.eq.s32.totalorder %s31, 0
    %p272 = por %p270, %p271
    %p273 = scmp.ne.s32.totalorder %s259, %s260
    %p274 = scmp.eq.s32.totalorder %s32, 3
    %p275 = por %p273, %p274
    %p277 = scmp.ne.s32.totalorder %s260, %s276
    %p278 = scmp.eq.s32.totalorder %s32, 0
    %p279 = por %p277, %p278
    %s280 = ssub.s32 %s34, %s41
    %p281 = scmp.eq.s32.totalorder %s280, 0
    %s283 = sadd.s32 %s282, 1
    %s284 = scalar_select %p281, %s282, %s283
    %p287 = pneg %p281
    %p288 = scmp.eq.s32.totalorder %s26, 3
    %p289 = por %p287, %p288
    %p290 = scmp.ne.s32.totalorder %s282, %s285
    %p291 = scmp.eq.s32.totalorder %s26, 0
    %p292 = por %p290, %p291
    %p293 = scmp.ne.s32.totalorder %s282, %s285
    %p294 = scmp.eq.s32.totalorder %s31, 3
    %p295 = por %p293, %p294
    %p296 = scmp.ne.s32.totalorder %s285, %s286
    %p297 = scmp.eq.s32.totalorder %s31, 0
    %p298 = por %p296, %p297
    %p299 = scmp.ne.s32.totalorder %s285, %s286
    %p300 = scmp.eq.s32.totalorder %s32, 3
    %p301 = por %p299, %p300
    %p303 = scmp.ne.s32.totalorder %s286, %s302
    %p304 = scmp.eq.s32.totalorder %s32, 0
    %p305 = por %p303, %p304
    %s306 = ssub.s32 %s34, %s41
    %p307 = scmp.eq.s32.totalorder %s306, 0
    %s309 = sadd.s32 %s308, 1
    %s310 = scalar_select %p307, %s308, %s309
    %p313 = pneg %p307
    %p314 = scmp.eq.s32.totalorder %s26, 3
    %p315 = por %p313, %p314
    %p316 = scmp.ne.s32.totalorder %s308, %s311
    %p317 = scmp.eq.s32.totalorder %s26, 0
    %p318 = por %p316, %p317
    %p319 = scmp.ne.s32.totalorder %s308, %s311
    %p320 = scmp.eq.s32.totalorder %s31, 3
    %p321 = por %p319, %p320
    %p322 = scmp.ne.s32.totalorder %s311, %s312
    %p323 = scmp.eq.s32.totalorder %s31, 0
    %p324 = por %p322, %p323
    %p325 = scmp.ne.s32.totalorder %s311, %s312
    %p326 = scmp.eq.s32.totalorder %s32, 3
    %p327 = por %p325, %p326
    %p329 = scmp.ne.s32.totalorder %s312, %s328
    %p330 = scmp.eq.s32.totalorder %s32, 0
    %p331 = por %p329, %p330
    %s332 = ssub.s32 %s34, %s41
    %p333 = scmp.eq.s32.totalorder %s332, 0
    %s335 = sadd.s32 %s334, 1
    %s336 = scalar_select %p333, %s334, %s335
    %p339 = pneg %p333
    %p340 = scmp.eq.s32.totalorder %s26, 3
    %p341 = por %p339, %p340
    %p342 = scmp.ne.s32.totalorder %s334, %s337
    %p343 = scmp.eq.s32.totalorder %s26, 0
    %p344 = por %p342, %p343
    %p345 = scmp.ne.s32.totalorder %s334, %s337
    %p346 = scmp.eq.s32.totalorder %s31, 3
    %p347 = por %p345, %p346
    %p348 = scmp.ne.s32.totalorder %s337, %s338
    %p349 = scmp.eq.s32.totalorder %s31, 0
    %p350 = por %p348, %p349
    %p351 = scmp.ne.s32.totalorder %s337, %s338
    %p352 = scmp.eq.s32.totalorder %s32, 3
    %p353 = por %p351, %p352
    %p355 = scmp.ne.s32.totalorder %s338, %s354
    %p356 = scmp.eq.s32.totalorder %s32, 0
    %p357 = por %p355, %p356
    %s358 = ssub.s32 %s34, %s41
    %p359 = scmp.eq.s32.totalorder %s358, 0
    %s361 = sadd.s32 %s360, 1
    %s362 = scalar_select %p359, %s360, %s361
    %p365 = pneg %p359
    %p366 = scmp.eq.s32.totalorder %s26, 3
    %p367 = por %p365, %p366
    %p368 = scmp.ne.s32.totalorder %s360, %s363
    %p369 = scmp.eq.s32.totalorder %s26, 0
    %p370 = por %p368, %p369
    %p371 = scmp.ne.s32.totalorder %s360, %s363
    %p372 = scmp.eq.s32.totalorder %s31, 3
    %p373 = por %p371, %p372
    %p374 = scmp.ne.s32.totalorder %s363, %s364
    %p375 = scmp.eq.s32.totalorder %s31, 0
    %p376 = por %p374, %p375
    %p377 = scmp.ne.s32.totalorder %s363, %s364
    %p378 = scmp.eq.s32.totalorder %s32, 3
    %p379 = por %p377, %p378
    %p381 = scmp.ne.s32.totalorder %s364, %s380
    %p382 = scmp.eq.s32.totalorder %s32, 0
    %p383 = por %p381, %p382
    %s384 = ssub.s32 %s33, %s45
    %p385 = scmp.eq.s32.totalorder %s384, 0
    %s387 = sadd.s32 %s386, 1
    %s388 = scalar_select %p385, %s386, %s387
    %p391 = pneg %p385
    %p392 = scmp.eq.s32.totalorder %s26, 3
    %p393 = por %p391, %p392
    %p394 = scmp.ne.s32.totalorder %s386, %s389
    %p395 = scmp.eq.s32.totalorder %s26, 0
    %p396 = por %p394, %p395
    %p397 = scmp.ne.s32.totalorder %s386, %s389
    %p398 = scmp.eq.s32.totalorder %s31, 3
    %p399 = por %p397, %p398
    %p400 = scmp.ne.s32.totalorder %s389, %s390
    %p401 = scmp.eq.s32.totalorder %s31, 0
    %p402 = por %p400, %p401
    %p403 = scmp.ne.s32.totalorder %s389, %s390
    %p404 = scmp.eq.s32.totalorder %s32, 3
    %p405 = por %p403, %p404
    %p407 = scmp.ne.s32.totalorder %s390, %s406
    %p408 = scmp.eq.s32.totalorder %s32, 0
    %p409 = por %p407, %p408
    %p410 = scmp.le.s32.totalorder 1, %s26
    %p411 = scmp.lt.s32.totalorder %s26, 5
    %p412 = pnand %p410, %p411
    %p413 = pneg %p412
    // Predicated region
    $region9: #{clip_forward.4} parent=5 // pred_check
      _
    $region10: #{clip_forward.4} parent=5 // pred_check_branch
      %415 = sbr.rel (%p412) target = $region12
    $region11: #{clip_forward.4} parent=5 // pred_region
      %s416 = ssub.s32 %s26, 1
    $region12: #{clip_forward.4} parent=5 // pred_fallthru
      _
    %p417 = scmp.lt.s32.totalorder %s26, 4
    // Predicated region
    $region13: #{clip_forward.4} parent=5 // pred_check
      %p418 = pneg %p417
    $region14: #{clip_forward.4} parent=5 // pred_check_branch
      %420 = sbr.rel (%p418) target = $region16
    $region15: #{clip_forward.4} parent=5 // pred_region
      // Predicated region
      $region17: #{clip_forward.4} parent=15 // pred_check
        %p421 = pneg %p58
      $region18: #{clip_forward.4} parent=15 // pred_check_branch
        %423 = sbr.rel (%p421) target = $region20
      $region19: #{clip_forward.4} parent=15 // pred_region
        %p424 = scmp.lt.s32.totalorder %s33, 1
        %s425 = scalar_select %p424, %s33, 1
        %s426 = smul.addr %s425, 8
        %s427 = scalar_lea.vmem %s1, %s426
      $region20: #{clip_forward.4} parent=15 // pred_fallthru
        _
      // Predicated region
      $region21: #{clip_forward.4} parent=15 // pred_check
        %p428 = pneg %p84
      $region22: #{clip_forward.4} parent=15 // pred_check_branch
        %430 = sbr.rel (%p428) target = $region24
      $region23: #{clip_forward.4} parent=15 // pred_region
        %p431 = scmp.lt.s32.totalorder %s34, 1
        %s432 = scalar_select %p431, %s34, 1
        %s433 = scalar_lea.vmem %s2, %s432
      $region24: #{clip_forward.4} parent=15 // pred_fallthru
        _
      // Predicated region
      $region25: #{clip_forward.4} parent=15 // pred_check
        %p434 = pneg %p110
      $region26: #{clip_forward.4} parent=15 // pred_check_branch
        %436 = sbr.rel (%p434) target = $region28
      $region27: #{clip_forward.4} parent=15 // pred_region
        %p437 = scmp.lt.s32.totalorder %s34, 1
        %s438 = scalar_select %p437, %s34, 1
        %s439 = scalar_lea.vmem %s3, %s438
      $region28: #{clip_forward.4} parent=15 // pred_fallthru
        _
      // Predicated region
      $region29: #{clip_forward.4} parent=15 // pred_check
        %p440 = pneg %p136
      $region30: #{clip_forward.4} parent=15 // pred_check_branch
        %442 = sbr.rel (%p440) target = $region32
      $region31: #{clip_forward.4} parent=15 // pred_region
        %p443 = scmp.lt.s32.totalorder %s34, 1
        %s444 = scalar_select %p443, %s34, 1
        %s445 = smul.addr %s444, 192
        %s446 = smul.addr %s445, 8
        %s447 = scalar_lea.vmem %s4, %s446
      $region32: #{clip_forward.4} parent=15 // pred_fallthru
        _
      // Predicated region
      $region33: #{clip_forward.4} parent=15 // pred_check
        %p448 = pneg %p162
      $region34: #{clip_forward.4} parent=15 // pred_check_branch
        %450 = sbr.rel (%p448) target = $region36
      $region35: #{clip_forward.4} parent=15 // pred_region
        %p451 = scmp.lt.s32.totalorder %s34, 1
        %s452 = scalar_select %p451, %s34, 1
        %s453 = smul.addr %s452, 12
        %s454 = scalar_lea.vmem %s5, %s453
      $region36: #{clip_forward.4} parent=15 // pred_fallthru
        _
      // Predicated region
      $region37: #{clip_forward.4} parent=15 // pred_check
        %p455 = pneg %p188
      $region38: #{clip_forward.4} parent=15 // pred_check_branch
        %457 = sbr.rel (%p455) target = $region40
      $region39: #{clip_forward.4} parent=15 // pred_region
        %p458 = scmp.lt.s32.totalorder %s34, 1
        %s459 = scalar_select %p458, %s34, 1
        %s460 = smul.addr %s459, 64
        %s461 = smul.addr %s460, 8
        %s462 = scalar_lea.vmem %s6, %s461
      $region40: #{clip_forward.4} parent=15 // pred_fallthru
        _
      // Predicated region
      $region41: #{clip_forward.4} parent=15 // pred_check
        %p463 = pneg %p214
      $region42: #{clip_forward.4} parent=15 // pred_check_branch
        %465 = sbr.rel (%p463) target = $region44
      $region43: #{clip_forward.4} parent=15 // pred_region
        %p466 = scmp.lt.s32.totalorder %s34, 1
        %s467 = scalar_select %p466, %s34, 1
        %s468 = scalar_lea.vmem %s7, %s467
      $region44: #{clip_forward.4} parent=15 // pred_fallthru
        _
      // Predicated region
      $region45: #{clip_forward.4} parent=15 // pred_check
        %p469 = pneg %p240
      $region46: #{clip_forward.4} parent=15 // pred_check_branch
        %471 = sbr.rel (%p469) target = $region48
      $region47: #{clip_forward.4} parent=15 // pred_region
        %p472 = scmp.lt.s32.totalorder %s34, 1
        %s473 = scalar_select %p472, %s34, 1
        %s474 = scalar_lea.vmem %s8, %s473
      $region48: #{clip_forward.4} parent=15 // pred_fallthru
        _
      // Predicated region
      $region49: #{clip_forward.4} parent=15 // pred_check
        %p475 = pneg %p266
      $region50: #{clip_forward.4} parent=15 // pred_check_branch
        %477 = sbr.rel (%p475) target = $region52
      $region51: #{clip_forward.4} parent=15 // pred_region
        %p478 = scmp.lt.s32.totalorder %s34, 1
        %s479 = scalar_select %p478, %s34, 1
        %s480 = scalar_lea.vmem %s9, %s479
      $region52: #{clip_forward.4} parent=15 // pred_fallthru
        _
      // Predicated region
      $region53: #{clip_forward.4} parent=15 // pred_check
        %p481 = pneg %p292
      $region54: #{clip_forward.4} parent=15 // pred_check_branch
        %483 = sbr.rel (%p481) target = $region56
      $region55: #{clip_forward.4} parent=15 // pred_region
        %p484 = scmp.lt.s32.totalorder %s34, 1
        %s485 = scalar_select %p484, %s34, 1
        %s486 = smul.addr %s485, 16
        %s487 = smul.addr %s486, 8
        %s488 = scalar_lea.vmem %s10, %s487
      $region56: #{clip_forward.4} parent=15 // pred_fallthru
        _
      // Predicated region
      $region57: #{clip_forward.4} parent=15 // pred_check
        %p489 = pneg %p318
      $region58: #{clip_forward.4} parent=15 // pred_check_branch
        %491 = sbr.rel (%p489) target = $region60
      $region59: #{clip_forward.4} parent=15 // pred_region
        %p492 = scmp.lt.s32.totalorder %s34, 1
        %s493 = scalar_select %p492, %s34, 1
        %s494 = scalar_lea.vmem %s11, %s493
      $region60: #{clip_forward.4} parent=15 // pred_fallthru
        _
      // Predicated region
      $region61: #{clip_forward.4} parent=15 // pred_check
        %p495 = pneg %p344
      $region62: #{clip_forward.4} parent=15 // pred_check_branch
        %497 = sbr.rel (%p495) target = $region64
      $region63: #{clip_forward.4} parent=15 // pred_region
        %p498 = scmp.lt.s32.totalorder %s34, 1
        %s499 = scalar_select %p498, %s34, 1
        %s500 = smul.addr %s499, 16
        %s501 = smul.addr %s500, 8
        %s502 = scalar_lea.vmem %s12, %s501
      $region64: #{clip_forward.4} parent=15 // pred_fallthru
        _
      // Predicated region
      $region65: #{clip_forward.4} parent=15 // pred_check
        %p503 = pneg %p370
      $region66: #{clip_forward.4} parent=15 // pred_check_branch
        %505 = sbr.rel (%p503) target = $region68
      $region67: #{clip_forward.4} parent=15 // pred_region
        %p506 = scmp.lt.s32.totalorder %s34, 1
        %s507 = scalar_select %p506, %s34, 1
        %s508 = scalar_lea.vmem %s13, %s507
      $region68: #{clip_forward.4} parent=15 // pred_fallthru
        _
    $region16: #{clip_forward.4} parent=5 // pred_fallthru
      _
    %p509 = scmp.le.s32.totalorder 1, %s26
    %p510 = scmp.lt.s32.totalorder %s26, 5
    %p511 = pnand %p509, %p510
    %p512 = pneg %p511
    // Predicated region
    $region69: #{clip_forward.4} parent=5 // pred_check
      _
    $region70: #{clip_forward.4} parent=5 // pred_check_branch
      %514 = sbr.rel (%p511) target = $region72
    $region71: #{clip_forward.4} parent=5 // pred_region
      %s515 = ssub.s32 %s26, 1
      %p516 = scmp.lt.s32.totalorder %s35, 1
      %s517 = scalar_select %p516, %s35, 1
      %s518 = smul.addr %s517, 8
      %s519 = scalar_lea.vmem %s1, %s518
      %p520 = pneg %p64
      %p521 = pneg %p61
      %p522 = scmp.lt.s32.totalorder %s36, 1
      %s523 = scalar_select %p522, %s36, 1
      %s524 = scalar_lea.vmem %s2, %s523
      %p525 = pneg %p90
      %p526 = pneg %p87
      %p527 = scmp.lt.s32.totalorder %s36, 1
      %s528 = scalar_select %p527, %s36, 1
      %s529 = scalar_lea.vmem %s3, %s528
      %p530 = pneg %p116
      %p531 = pneg %p113
      %p532 = scmp.lt.s32.totalorder %s36, 1
      %s533 = scalar_select %p532, %s36, 1
      %s534 = smul.addr %s533, 192
      %s535 = smul.addr %s534, 8
      %s536 = scalar_lea.vmem %s4, %s535
      %p537 = pneg %p142
      %p538 = pneg %p139
      %p539 = scmp.lt.s32.totalorder %s36, 1
      %s540 = scalar_select %p539, %s36, 1
      %s541 = smul.addr %s540, 12
      %s542 = scalar_lea.vmem %s5, %s541
      %p543 = pneg %p168
      %p544 = pneg %p165
      %p545 = scmp.lt.s32.totalorder %s36, 1
      %s546 = scalar_select %p545, %s36, 1
      %s547 = smul.addr %s546, 64
      %s548 = smul.addr %s547, 8
      %s549 = scalar_lea.vmem %s6, %s548
      %p550 = pneg %p194
      %p551 = pneg %p191
      %p552 = scmp.lt.s32.totalorder %s36, 1
      %s553 = scalar_select %p552, %s36, 1
      %s554 = scalar_lea.vmem %s7, %s553
      %p555 = pneg %p220
      %p556 = pneg %p217
      %p557 = scmp.lt.s32.totalorder %s36, 1
      %s558 = scalar_select %p557, %s36, 1
      %s559 = scalar_lea.vmem %s8, %s558
      %p560 = pneg %p246
      %p561 = pneg %p243
      %p562 = scmp.lt.s32.totalorder %s36, 1
      %s563 = scalar_select %p562, %s36, 1
      %s564 = scalar_lea.vmem %s9, %s563
      %p565 = pneg %p272
      %p566 = pneg %p269
      %p567 = scmp.lt.s32.totalorder %s36, 1
      %s568 = scalar_select %p567, %s36, 1
      %s569 = smul.addr %s568, 16
      %s570 = smul.addr %s569, 8
      %s571 = scalar_lea.vmem %s10, %s570
      %p572 = pneg %p298
      %p573 = pneg %p295
      %p574 = scmp.lt.s32.totalorder %s36, 1
      %s575 = scalar_select %p574, %s36, 1
      %s576 = scalar_lea.vmem %s11, %s575
      %p577 = pneg %p324
      %p578 = pneg %p321
      %p579 = scmp.lt.s32.totalorder %s36, 1
      %s580 = scalar_select %p579, %s36, 1
      %s581 = smul.addr %s580, 16
      %s582 = smul.addr %s581, 8
      %s583 = scalar_lea.vmem %s12, %s582
      %p584 = pneg %p350
      %p585 = pneg %p347
      %p586 = scmp.lt.s32.totalorder %s36, 1
      %s587 = scalar_select %p586, %s36, 1
      %s588 = scalar_lea.vmem %s13, %s587
      %p589 = pneg %p376
      %p590 = pneg %p373
      %p591 = pneg %p402
      %p592 = pneg %p399
      %p593 = scmp.lt.s32.totalorder %s35, 1
      %s594 = scalar_select %p593, %s35, 1
      %s595 = smul.addr %s594, 8
      %s596 = scalar_lea.vmem %s14, %s595
      %p597 = scmp.lt.s32.totalorder %s35, 1
      %s598 = scalar_select %p597, %s35, 1
      %s599 = smul.addr %s598, 8
      %s600 = scalar_lea.vmem %s1, %s599
      %p601 = scmp.lt.s32.totalorder %s36, 1
      %s602 = scalar_select %p601, %s36, 1
      %s603 = scalar_lea.vmem %s2, %s602
      %p604 = scmp.lt.s32.totalorder %s36, 1
      %s605 = scalar_select %p604, %s36, 1
      %s606 = scalar_lea.vmem %s3, %s605
      %p607 = scmp.lt.s32.totalorder %s36, 1
      %s608 = scalar_select %p607, %s36, 1
      %s609 = smul.addr %s608, 192
      %s610 = smul.addr %s609, 8
      %s611 = scalar_lea.vmem %s4, %s610
      %p612 = scmp.lt.s32.totalorder %s36, 1
      %s613 = scalar_select %p612, %s36, 1
      %s614 = smul.addr %s613, 12
      %s615 = scalar_lea.vmem %s5, %s614
      %p616 = scmp.lt.s32.totalorder %s36, 1
      %s617 = scalar_select %p616, %s36, 1
      %s618 = smul.addr %s617, 64
      %s619 = smul.addr %s618, 8
      %s620 = scalar_lea.vmem %s6, %s619
      %p621 = scmp.lt.s32.totalorder %s36, 1
      %s622 = scalar_select %p621, %s36, 1
      %s623 = scalar_lea.vmem %s7, %s622
      %p624 = scmp.lt.s32.totalorder %s36, 1
      %s625 = scalar_select %p624, %s36, 1
      %s626 = scalar_lea.vmem %s8, %s625
      %p627 = scmp.lt.s32.totalorder %s36, 1
      %s628 = scalar_select %p627, %s36, 1
      %s629 = scalar_lea.vmem %s9, %s628
      %p630 = scmp.lt.s32.totalorder %s36, 1
      %s631 = scalar_select %p630, %s36, 1
      %s632 = smul.addr %s631, 16
      %s633 = smul.addr %s632, 8
      %s634 = scalar_lea.vmem %s10, %s633
      %p635 = scmp.lt.s32.totalorder %s36, 1
      %s636 = scalar_select %p635, %s36, 1
      %s637 = scalar_lea.vmem %s11, %s636
      %p638 = scmp.lt.s32.totalorder %s36, 1
      %s639 = scalar_select %p638, %s36, 1
      %s640 = smul.addr %s639, 16
      %s641 = smul.addr %s640, 8
      %s642 = scalar_lea.vmem %s12, %s641
      %p643 = scmp.lt.s32.totalorder %s36, 1
      %s644 = scalar_select %p643, %s36, 1
      %s645 = scalar_lea.vmem %s13, %s644
      %p646 = scmp.lt.s32.totalorder %s35, 1
      %s647 = scalar_select %p646, %s35, 1
      %s648 = smul.addr %s647, 8
      %s649 = scalar_lea.vmem %s14, %s648
      %p650 = scmp.eq.s32.totalorder %s36, 0
      // Predicated region
      $region73: #{clip_forward.4} parent=71 // pred_check
        %p651 = pneg %p650
      $region74: #{clip_forward.4} parent=71 // pred_check_branch
        %653 = sbr.rel (%p651) target = $region76
      $region75: #{clip_forward.4} parent=71 // pred_region
        %v654 = vld [vmem:[%s600] sm:$0xff]
        %655 = vst [vmem:[#allocation2] sm:$0xff] %v654
      $region76: #{clip_forward.4} parent=71 // pred_fallthru
        _
      %s656 = sld [smem:[#allocation4 + %s35]]
      %v657 = vlaneseq
      %v658 = vshrl.u32 %v657, 7
      %v659 = vlaneseq
      %v660 = vand.u32 %v659, 127
      %vm661 = vcmp.gt.s32.totalorder %v660, %v658
      %v662 = vstv %s656
      %vm663 = vcmp.ge.s32.totalorder %v660, %v662
      %vm664 = vmor %vm661, %vm663
      %v665 = vsel %vm664, -1e+09, 0.0
      %v666 = vld [vmem:[%s603] sm:$0x1]
      %v667 = vld [vmem:[%s606] sm:$0x1]
      %v668 = vld [vmem:[%s611] sm:$0xff]
      %v669 = vld [vmem:[%s611 + $0x8] sm:$0xff]
      %v670 = vld [vmem:[%s611 + $0x10] sm:$0xff]
      %v671 = vld [vmem:[%s611 + $0x18] sm:$0xff]
      %v672 = vld [vmem:[%s611 + $0x20] sm:$0xff]
      %v673 = vld [vmem:[%s611 + $0x28] sm:$0xff]
      %v674 = vld [vmem:[%s611 + $0x30] sm:$0xff]
      %v675 = vld [vmem:[%s611 + $0x38] sm:$0xff]
      %v676 = vld [vmem:[%s611 + $0x40] sm:$0xff]
      %v677 = vld [vmem:[%s611 + $0x48] sm:$0xff]
      %v678 = vld [vmem:[%s611 + $0x50] sm:$0xff]
      %v679 = vld [vmem:[%s611 + $0x58] sm:$0xff]
      %v680 = vld [vmem:[%s611 + $0x60] sm:$0xff]
      %v681 = vld [vmem:[%s611 + $0x68] sm:$0xff]
      %v682 = vld [vmem:[%s611 + $0x70] sm:$0xff]
      %v683 = vld [vmem:[%s611 + $0x78] sm:$0xff]
      %v684 = vld [vmem:[%s611 + $0x80] sm:$0xff]
      %v685 = vld [vmem:[%s611 + $0x88] sm:$0xff]
      %v686 = vld [vmem:[%s611 + $0x90] sm:$0xff]
      %v687 = vld [vmem:[%s611 + $0x98] sm:$0xff]
      %v688 = vld [vmem:[%s611 + $0xa0] sm:$0xff]
      %v689 = vld [vmem:[%s611 + $0xa8] sm:$0xff]
      %v690 = vld [vmem:[%s611 + $0xb0] sm:$0xff]
      %v691 = vld [vmem:[%s611 + $0xb8] sm:$0xff]
      %v692 = vld [vmem:[%s611 + $0xc0] sm:$0xff]
      %v693 = vld [vmem:[%s611 + $0xc8] sm:$0xff]
      %v694 = vld [vmem:[%s611 + $0xd0] sm:$0xff]
      %v695 = vld [vmem:[%s611 + $0xd8] sm:$0xff]
      %v696 = vld [vmem:[%s611 + $0xe0] sm:$0xff]
      %v697 = vld [vmem:[%s611 + $0xe8] sm:$0xff]
      %v698 = vld [vmem:[%s611 + $0xf0] sm:$0xff]
      %v699 = vld [vmem:[%s611 + $0xf8] sm:$0xff]
      %v700 = vld [vmem:[%s611 + $0x100] sm:$0xff]
      %v701 = vld [vmem:[%s611 + $0x108] sm:$0xff]
      %v702 = vld [vmem:[%s611 + $0x110] sm:$0xff]
      %v703 = vld [vmem:[%s611 + $0x118] sm:$0xff]
      %v704 = vld [vmem:[%s611 + $0x120] sm:$0xff]
      %v705 = vld [vmem:[%s611 + $0x128] sm:$0xff]
      %v706 = vld [vmem:[%s611 + $0x130] sm:$0xff]
      %v707 = vld [vmem:[%s611 + $0x138] sm:$0xff]
      %v708 = vld [vmem:[%s611 + $0x140] sm:$0xff]
      %v709 = vld [vmem:[%s611 + $0x148] sm:$0xff]
      %v710 = vld [vmem:[%s611 + $0x150] sm:$0xff]
      %v711 = vld [vmem:[%s611 + $0x158] sm:$0xff]
      %v712 = vld [vmem:[%s611 + $0x160] sm:$0xff]
      %v713 = vld [vmem:[%s611 + $0x168] sm:$0xff]
      %v714 = vld [vmem:[%s611 + $0x170] sm:$0xff]
      %v715 = vld [vmem:[%s611 + $0x178] sm:$0xff]
      %v716 = vld [vmem:[%s611 + $0x180] sm:$0xff]
      %v717 = vld [vmem:[%s611 + $0x188] sm:$0xff]
      %v718 = vld [vmem:[%s611 + $0x190] sm:$0xff]
      %v719 = vld [vmem:[%s611 + $0x198] sm:$0xff]
      %v720 = vld [vmem:[%s611 + $0x1a0] sm:$0xff]
      %v721 = vld [vmem:[%s611 + $0x1a8] sm:$0xff]
      %v722 = vld [vmem:[%s611 + $0x1b0] sm:$0xff]
      %v723 = vld [vmem:[%s611 + $0x1b8] sm:$0xff]
      %v724 = vld [vmem:[%s611 + $0x1c0] sm:$0xff]
      %v725 = vld [vmem:[%s611 + $0x1c8] sm:$0xff]
      %v726 = vld [vmem:[%s611 + $0x1d0] sm:$0xff]
      %v727 = vld [vmem:[%s611 + $0x1d8] sm:$0xff]
      %v728 = vld [vmem:[%s611 + $0x1e0] sm:$0xff]
      %v729 = vld [vmem:[%s611 + $0x1e8] sm:$0xff]
      %v730 = vld [vmem:[%s611 + $0x1f0] sm:$0xff]
      %v731 = vld [vmem:[%s611 + $0x1f8] sm:$0xff]
      %v732 = vld [vmem:[%s611 + $0x200] sm:$0xff]
      %v733 = vld [vmem:[%s611 + $0x208] sm:$0xff]
      %v734 = vld [vmem:[%s611 + $0x210] sm:$0xff]
      %v735 = vld [vmem:[%s611 + $0x218] sm:$0xff]
      %v736 = vld [vmem:[%s611 + $0x220] sm:$0xff]
      %v737 = vld [vmem:[%s611 + $0x228] sm:$0xff]
      %v738 = vld [vmem:[%s611 + $0x230] sm:$0xff]
      %v739 = vld [vmem:[%s611 + $0x238] sm:$0xff]
      %v740 = vld [vmem:[%s611 + $0x240] sm:$0xff]
      %v741 = vld [vmem:[%s611 + $0x248] sm:$0xff]
      %v742 = vld [vmem:[%s611 + $0x250] sm:$0xff]
      %v743 = vld [vmem:[%s611 + $0x258] sm:$0xff]
      %v744 = vld [vmem:[%s611 + $0x260] sm:$0xff]
      %v745 = vld [vmem:[%s611 + $0x268] sm:$0xff]
      %v746 = vld [vmem:[%s611 + $0x270] sm:$0xff]
      %v747 = vld [vmem:[%s611 + $0x278] sm:$0xff]
      %v748 = vld [vmem:[%s611 + $0x280] sm:$0xff]
      %v749 = vld [vmem:[%s611 + $0x288] sm:$0xff]
      %v750 = vld [vmem:[%s611 + $0x290] sm:$0xff]
      %v751 = vld [vmem:[%s611 + $0x298] sm:$0xff]
      %v752 = vld [vmem:[%s611 + $0x2a0] sm:$0xff]
      %v753 = vld [vmem:[%s611 + $0x2a8] sm:$0xff]
      %v754 = vld [vmem:[%s611 + $0x2b0] sm:$0xff]
      %v755 = vld [vmem:[%s611 + $0x2b8] sm:$0xff]
      %v756 = vld [vmem:[%s611 + $0x2c0] sm:$0xff]
      %v757 = vld [vmem:[%s611 + $0x2c8] sm:$0xff]
      %v758 = vld [vmem:[%s611 + $0x2d0] sm:$0xff]
      %v759 = vld [vmem:[%s611 + $0x2d8] sm:$0xff]
      %v760 = vld [vmem:[%s611 + $0x2e0] sm:$0xff]
      %v761 = vld [vmem:[%s611 + $0x2e8] sm:$0xff]
      %v762 = vld [vmem:[%s611 + $0x2f0] sm:$0xff]
      %v763 = vld [vmem:[%s611 + $0x2f8] sm:$0xff]
      %v764 = vld [vmem:[%s611 + $0x300] sm:$0xff]
      %v765 = vld [vmem:[%s611 + $0x308] sm:$0xff]
      %v766 = vld [vmem:[%s611 + $0x310] sm:$0xff]
      %v767 = vld [vmem:[%s611 + $0x318] sm:$0xff]
      %v768 = vld [vmem:[%s611 + $0x320] sm:$0xff]
      %v769 = vld [vmem:[%s611 + $0x328] sm:$0xff]
      %v770 = vld [vmem:[%s611 + $0x330] sm:$0xff]
      %v771 = vld [vmem:[%s611 + $0x338] sm:$0xff]
      %v772 = vld [vmem:[%s611 + $0x340] sm:$0xff]
      %v773 = vld [vmem:[%s611 + $0x348] sm:$0xff]
      %v774 = vld [vmem:[%s611 + $0x350] sm:$0xff]
      %v775 = vld [vmem:[%s611 + $0x358] sm:$0xff]
      %v776 = vld [vmem:[%s611 + $0x360] sm:$0xff]
      %v777 = vld [vmem:[%s611 + $0x368] sm:$0xff]
      %v778 = vld [vmem:[%s611 + $0x370] sm:$0xff]
      %v779 = vld [vmem:[%s611 + $0x378] sm:$0xff]
      %v780 = vld [vmem:[%s611 + $0x380] sm:$0xff]
      %v781 = vld [vmem:[%s611 + $0x388] sm:$0xff]
      %v782 = vld [vmem:[%s611 + $0x390] sm:$0xff]
      %v783 = vld [vmem:[%s611 + $0x398] sm:$0xff]
      %v784 = vld [vmem:[%s611 + $0x3a0] sm:$0xff]
      %v785 = vld [vmem:[%s611 + $0x3a8] sm:$0xff]
      %v786 = vld [vmem:[%s611 + $0x3b0] sm:$0xff]
      %v787 = vld [vmem:[%s611 + $0x3b8] sm:$0xff]
      %v788 = vld [vmem:[%s611 + $0x3c0] sm:$0xff]
      %v789 = vld [vmem:[%s611 + $0x3c8] sm:$0xff]
      %v790 = vld [vmem:[%s611 + $0x3d0] sm:$0xff]
      %v791 = vld [vmem:[%s611 + $0x3d8] sm:$0xff]
      %v792 = vld [vmem:[%s611 + $0x3e0] sm:$0xff]
      %v793 = vld [vmem:[%s611 + $0x3e8] sm:$0xff]
      %v794 = vld [vmem:[%s611 + $0x3f0] sm:$0xff]
      %v795 = vld [vmem:[%s611 + $0x3f8] sm:$0xff]
      %v796 = vld [vmem:[%s611 + $0x400] sm:$0xff]
      %v797 = vld [vmem:[%s611 + $0x408] sm:$0xff]
      %v798 = vld [vmem:[%s611 + $0x410] sm:$0xff]
      %v799 = vld [vmem:[%s611 + $0x418] sm:$0xff]
      %v800 = vld [vmem:[%s611 + $0x420] sm:$0xff]
      %v801 = vld [vmem:[%s611 + $0x428] sm:$0xff]
      %v802 = vld [vmem:[%s611 + $0x430] sm:$0xff]
      %v803 = vld [vmem:[%s611 + $0x438] sm:$0xff]
      %v804 = vld [vmem:[%s611 + $0x440] sm:$0xff]
      %v805 = vld [vmem:[%s611 + $0x448] sm:$0xff]
      %v806 = vld [vmem:[%s611 + $0x450] sm:$0xff]
      %v807 = vld [vmem:[%s611 + $0x458] sm:$0xff]
      %v808 = vld [vmem:[%s611 + $0x460] sm:$0xff]
      %v809 = vld [vmem:[%s611 + $0x468] sm:$0xff]
      %v810 = vld [vmem:[%s611 + $0x470] sm:$0xff]
      %v811 = vld [vmem:[%s611 + $0x478] sm:$0xff]
      %v812 = vld [vmem:[%s611 + $0x480] sm:$0xff]
      %v813 = vld [vmem:[%s611 + $0x488] sm:$0xff]
      %v814 = vld [vmem:[%s611 + $0x490] sm:$0xff]
      %v815 = vld [vmem:[%s611 + $0x498] sm:$0xff]
      %v816 = vld [vmem:[%s611 + $0x4a0] sm:$0xff]
      %v817 = vld [vmem:[%s611 + $0x4a8] sm:$0xff]
      %v818 = vld [vmem:[%s611 + $0x4b0] sm:$0xff]
      %v819 = vld [vmem:[%s611 + $0x4b8] sm:$0xff]
      %v820 = vld [vmem:[%s611 + $0x4c0] sm:$0xff]
      %v821 = vld [vmem:[%s611 + $0x4c8] sm:$0xff]
      %v822 = vld [vmem:[%s611 + $0x4d0] sm:$0xff]
      %v823 = vld [vmem:[%s611 + $0x4d8] sm:$0xff]
      %v824 = vld [vmem:[%s611 + $0x4e0] sm:$0xff]
      %v825 = vld [vmem:[%s611 + $0x4e8] sm:$0xff]
      %v826 = vld [vmem:[%s611 + $0x4f0] sm:$0xff]
      %v827 = vld [vmem:[%s611 + $0x4f8] sm:$0xff]
      %v828 = vld [vmem:[%s611 + $0x500] sm:$0xff]
      %v829 = vld [vmem:[%s611 + $0x508] sm:$0xff]
      %v830 = vld [vmem:[%s611 + $0x510] sm:$0xff]
      %v831 = vld [vmem:[%s611 + $0x518] sm:$0xff]
      %v832 = vld [vmem:[%s611 + $0x520] sm:$0xff]
      %v833 = vld [vmem:[%s611 + $0x528] sm:$0xff]
      %v834 = vld [vmem:[%s611 + $0x530] sm:$0xff]
      %v835 = vld [vmem:[%s611 + $0x538] sm:$0xff]
      %v836 = vld [vmem:[%s611 + $0x540] sm:$0xff]
      %v837 = vld [vmem:[%s611 + $0x548] sm:$0xff]
      %v838 = vld [vmem:[%s611 + $0x550] sm:$0xff]
      %v839 = vld [vmem:[%s611 + $0x558] sm:$0xff]
      %v840 = vld [vmem:[%s611 + $0x560] sm:$0xff]
      %v841 = vld [vmem:[%s611 + $0x568] sm:$0xff]
      %v842 = vld [vmem:[%s611 + $0x570] sm:$0xff]
      %v843 = vld [vmem:[%s611 + $0x578] sm:$0xff]
      %v844 = vld [vmem:[%s611 + $0x580] sm:$0xff]
      %v845 = vld [vmem:[%s611 + $0x588] sm:$0xff]
      %v846 = vld [vmem:[%s611 + $0x590] sm:$0xff]
      %v847 = vld [vmem:[%s611 + $0x598] sm:$0xff]
      %v848 = vld [vmem:[%s611 + $0x5a0] sm:$0xff]
      %v849 = vld [vmem:[%s611 + $0x5a8] sm:$0xff]
      %v850 = vld [vmem:[%s611 + $0x5b0] sm:$0xff]
      %v851 = vld [vmem:[%s611 + $0x5b8] sm:$0xff]
      %v852 = vld [vmem:[%s611 + $0x5c0] sm:$0xff]
      %v853 = vld [vmem:[%s611 + $0x5c8] sm:$0xff]
      %v854 = vld [vmem:[%s611 + $0x5d0] sm:$0xff]
      %v855 = vld [vmem:[%s611 + $0x5d8] sm:$0xff]
      %v856 = vld [vmem:[%s611 + $0x5e0] sm:$0xff]
      %v857 = vld [vmem:[%s611 + $0x5e8] sm:$0xff]
      %v858 = vld [vmem:[%s611 + $0x5f0] sm:$0xff]
      %v859 = vld [vmem:[%s611 + $0x5f8] sm:$0xff]
      %v860 = vld [vmem:[%s615] sm:$0xff]
      %v861 = vld [vmem:[%s615 + $0x8] sm:$0xf]
      %v862 = vld [vmem:[%s620] sm:$0xff]
      %v863 = vld [vmem:[%s620 + $0x8] sm:$0xff]
      %v864 = vld [vmem:[%s620 + $0x10] sm:$0xff]
      %v865 = vld [vmem:[%s620 + $0x18] sm:$0xff]
      %v866 = vld [vmem:[%s620 + $0x20] sm:$0xff]
      %v867 = vld [vmem:[%s620 + $0x28] sm:$0xff]
      %v868 = vld [vmem:[%s620 + $0x30] sm:$0xff]
      %v869 = vld [vmem:[%s620 + $0x38] sm:$0xff]
      %v870 = vld [vmem:[%s620 + $0x40] sm:$0xff]
      %v871 = vld [vmem:[%s620 + $0x48] sm:$0xff]
      %v872 = vld [vmem:[%s620 + $0x50] sm:$0xff]
      %v873 = vld [vmem:[%s620 + $0x58] sm:$0xff]
      %v874 = vld [vmem:[%s620 + $0x60] sm:$0xff]
      %v875 = vld [vmem:[%s620 + $0x68] sm:$0xff]
      %v876 = vld [vmem:[%s620 + $0x70] sm:$0xff]
      %v877 = vld [vmem:[%s620 + $0x78] sm:$0xff]
      %v878 = vld [vmem:[%s620 + $0x80] sm:$0xff]
      %v879 = vld [vmem:[%s620 + $0x88] sm:$0xff]
      %v880 = vld [vmem:[%s620 + $0x90] sm:$0xff]
      %v881 = vld [vmem:[%s620 + $0x98] sm:$0xff]
      %v882 = vld [vmem:[%s620 + $0xa0] sm:$0xff]
      %v883 = vld [vmem:[%s620 + $0xa8] sm:$0xff]
      %v884 = vld [vmem:[%s620 + $0xb0] sm:$0xff]
      %v885 = vld [vmem:[%s620 + $0xb8] sm:$0xff]
      %v886 = vld [vmem:[%s620 + $0xc0] sm:$0xff]
      %v887 = vld [vmem:[%s620 + $0xc8] sm:$0xff]
      %v888 = vld [vmem:[%s620 + $0xd0] sm:$0xff]
      %v889 = vld [vmem:[%s620 + $0xd8] sm:$0xff]
      %v890 = vld [vmem:[%s620 + $0xe0] sm:$0xff]
      %v891 = vld [vmem:[%s620 + $0xe8] sm:$0xff]
      %v892 = vld [vmem:[%s620 + $0xf0] sm:$0xff]
      %v893 = vld [vmem:[%s620 + $0xf8] sm:$0xff]
      %v894 = vld [vmem:[%s620 + $0x100] sm:$0xff]
      %v895 = vld [vmem:[%s620 + $0x108] sm:$0xff]
      %v896 = vld [vmem:[%s620 + $0x110] sm:$0xff]
      %v897 = vld [vmem:[%s620 + $0x118] sm:$0xff]
      %v898 = vld [vmem:[%s620 + $0x120] sm:$0xff]
      %v899 = vld [vmem:[%s620 + $0x128] sm:$0xff]
      %v900 = vld [vmem:[%s620 + $0x130] sm:$0xff]
      %v901 = vld [vmem:[%s620 + $0x138] sm:$0xff]
      %v902 = vld [vmem:[%s620 + $0x140] sm:$0xff]
      %v903 = vld [vmem:[%s620 + $0x148] sm:$0xff]
      %v904 = vld [vmem:[%s620 + $0x150] sm:$0xff]
      %v905 = vld [vmem:[%s620 + $0x158] sm:$0xff]
      %v906 = vld [vmem:[%s620 + $0x160] sm:$0xff]
      %v907 = vld [vmem:[%s620 + $0x168] sm:$0xff]
      %v908 = vld [vmem:[%s620 + $0x170] sm:$0xff]
      %v909 = vld [vmem:[%s620 + $0x178] sm:$0xff]
      %v910 = vld [vmem:[%s620 + $0x180] sm:$0xff]
      %v911 = vld [vmem:[%s620 + $0x188] sm:$0xff]
      %v912 = vld [vmem:[%s620 + $0x190] sm:$0xff]
      %v913 = vld [vmem:[%s620 + $0x198] sm:$0xff]
      %v914 = vld [vmem:[%s620 + $0x1a0] sm:$0xff]
      %v915 = vld [vmem:[%s620 + $0x1a8] sm:$0xff]
      %v916 = vld [vmem:[%s620 + $0x1b0] sm:$0xff]
      %v917 = vld [vmem:[%s620 + $0x1b8] sm:$0xff]
      %v918 = vld [vmem:[%s620 + $0x1c0] sm:$0xff]
      %v919 = vld [vmem:[%s620 + $0x1c8] sm:$0xff]
      %v920 = vld [vmem:[%s620 + $0x1d0] sm:$0xff]
      %v921 = vld [vmem:[%s620 + $0x1d8] sm:$0xff]
      %v922 = vld [vmem:[%s620 + $0x1e0] sm:$0xff]
      %v923 = vld [vmem:[%s620 + $0x1e8] sm:$0xff]
      %v924 = vld [vmem:[%s620 + $0x1f0] sm:$0xff]
      %v925 = vld [vmem:[%s620 + $0x1f8] sm:$0xff]
      %v926 = vld [vmem:[%s623] sm:$0x1]
      %v927 = vld [vmem:[%s626] sm:$0x1]
      %v928 = vld [vmem:[%s629] sm:$0x1]
      %v929 = vld [vmem:[%s634] sm:$0xff]
      %v930 = vld [vmem:[%s634 + $0x8] sm:$0xff]
      %v931 = vld [vmem:[%s634 + $0x10] sm:$0xff]
      %v932 = vld [vmem:[%s634 + $0x18] sm:$0xff]
      %v933 = vld [vmem:[%s634 + $0x20] sm:$0xff]
      %v934 = vld [vmem:[%s634 + $0x28] sm:$0xff]
      %v935 = vld [vmem:[%s634 + $0x30] sm:$0xff]
      %v936 = vld [vmem:[%s634 + $0x38] sm:$0xff]
      %v937 = vld [vmem:[%s634 + $0x40] sm:$0xff]
      %v938 = vld [vmem:[%s634 + $0x48] sm:$0xff]
      %v939 = vld [vmem:[%s634 + $0x50] sm:$0xff]
      %v940 = vld [vmem:[%s634 + $0x58] sm:$0xff]
      %v941 = vld [vmem:[%s634 + $0x60] sm:$0xff]
      %v942 = vld [vmem:[%s634 + $0x68] sm:$0xff]
      %v943 = vld [vmem:[%s634 + $0x70] sm:$0xff]
      %v944 = vld [vmem:[%s634 + $0x78] sm:$0xff]
      %v945 = vld [vmem:[%s637] sm:$0x1]
      %v946 = vld [vmem:[%s642] sm:$0xff]
      %v947 = vld [vmem:[%s642 + $0x8] sm:$0xff]
      %v948 = vld [vmem:[%s642 + $0x10] sm:$0xff]
      %v949 = vld [vmem:[%s642 + $0x18] sm:$0xff]
      %v950 = vld [vmem:[%s642 + $0x20] sm:$0xff]
      %v951 = vld [vmem:[%s642 + $0x28] sm:$0xff]
      %v952 = vld [vmem:[%s642 + $0x30] sm:$0xff]
      %v953 = vld [vmem:[%s642 + $0x38] sm:$0xff]
      %v954 = vld [vmem:[%s642 + $0x40] sm:$0xff]
      %v955 = vld [vmem:[%s642 + $0x48] sm:$0xff]
      %v956 = vld [vmem:[%s642 + $0x50] sm:$0xff]
      %v957 = vld [vmem:[%s642 + $0x58] sm:$0xff]
      %v958 = vld [vmem:[%s642 + $0x60] sm:$0xff]
      %v959 = vld [vmem:[%s642 + $0x68] sm:$0xff]
      %v960 = vld [vmem:[%s642 + $0x70] sm:$0xff]
      %v961 = vld [vmem:[%s642 + $0x78] sm:$0xff]
      %v962 = vld [vmem:[%s645] sm:$0x1]
      %v963 = vld [vmem:[#allocation2] sm:$0xff]
      %vm964 = vcmp.lt.s32.totalorder %v660, 32
      %v965 = vsel %vm964, 1, 0
      %v966 = vcvt.s32.f32 %v965
      %967 = vadd.xlane.f32.xlu0 %v963
      %v968 = vpop.xlane.xlu0 %967
      %v969 = vmul.f32 %v968, 0.03125
      %v970 = vsub.f32 %v963, %v969
      %v971 = vmul.f32 %v970, %v970
      %v972 = vmul.f32 %v971, %v966
      %973 = vadd.xlane.f32.xlu0 %v972
      %v974 = vpop.xlane.xlu0 %973
      %v975 = vmul.f32 %v974, 0.03125
      %v976 = vadd.f32 %v975, 1e-05
      %v977 = vrsqrt.pop %v976
      %v978 = vmul.f32 %v970, %v977
      %v980 = vlaneseq
      %v981 = vshrl.u32 %v980, 7
      %v982 = vsub.s32 0, %v981
      %v983 = vrot.slane %v666, %v982
      %v985 = vmul.f32 %v978, %v983
      %v987 = vlaneseq
      %v988 = vshrl.u32 %v987, 7
      %v989 = vsub.s32 0, %v988
      %v990 = vrot.slane %v667, %v989
      %v992 = vadd.f32 %v985, %v990
      %v995 = vlaneseq
      %v996 = vshrl.u32 %v995, 7
      %v997 = vsub.s32 0, %v996
      %v998 = vrot.slane %v860, %v997
      %v999 = vlaneseq
      %v1000 = vshrl.u32 %v999, 7
      %v1001 = vsub.s32 1, %v1000
      %v1002 = vrot.slane %v860, %v1001
      %v1003 = vlaneseq
      %v1004 = vshrl.u32 %v1003, 7
      %v1005 = vsub.s32 2, %v1004
      %v1006 = vrot.slane %v860, %v1005
      %v1007 = vlaneseq
      %v1008 = vshrl.u32 %v1007, 7
      %v1009 = vsub.s32 3, %v1008
      %v1010 = vrot.slane %v860, %v1009
      %v1011 = vlaneseq
      %v1012 = vshrl.u32 %v1011, 7
      %v1013 = vsub.s32 4, %v1012
      %v1014 = vrot.slane %v860, %v1013
      %v1015 = vlaneseq
      %v1016 = vshrl.u32 %v1015, 7
      %v1017 = vsub.s32 5, %v1016
      %v1018 = vrot.slane %v860, %v1017
      %v1019 = vlaneseq
      %v1020 = vshrl.u32 %v1019, 7
      %v1021 = vsub.s32 6, %v1020
      %v1022 = vrot.slane %v860, %v1021
      %v1023 = vlaneseq
      %v1024 = vshrl.u32 %v1023, 7
      %v1025 = vsub.s32 7, %v1024
      %v1026 = vrot.slane %v860, %v1025
      %v1027 = vlaneseq
      %v1028 = vshrl.u32 %v1027, 7
      %v1029 = vsub.s32 0, %v1028
      %v1030 = vrot.slane %v861, %v1029
      %v1031 = vlaneseq
      %v1032 = vshrl.u32 %v1031, 7
      %v1033 = vsub.s32 1, %v1032
      %v1034 = vrot.slane %v861, %v1033
      %v1035 = vlaneseq
      %v1036 = vshrl.u32 %v1035, 7
      %v1037 = vsub.s32 2, %v1036
      %v1038 = vrot.slane %v861, %v1037
      %v1039 = vlaneseq
      %v1040 = vshrl.u32 %v1039, 7
      %v1041 = vsub.s32 3, %v1040
      %v1042 = vrot.slane %v861, %v1041
      %1055 = vmatprep.subr.mxu0 %v849
      %1056 = vmatpush1.msra.mxu0 %v848
      %1057 = vmatprep.subr.mxu0 %v837
      %1058 = vmatpush1.msra.mxu0 %v836
      %1059 = vmatprep.subr.mxu0 %v825
      %1060 = vmatpush1.msra.mxu0 %v824
      %1061 = vmatprep.subr.mxu0 %v813
      %1062 = vmatpush1.msra.mxu0 %v812
      %1063 = vmatprep.subr.mxu0 %v801
      %1064 = vmatpush1.msra.mxu0 %v800
      %1065 = vmatprep.subr.mxu0 %v789
      %1066 = vmatpush1.msra.mxu0 %v788
      %1067 = vmatprep.subr.mxu0 %v777
      %1068 = vmatpush1.msra.mxu0 %v776
      %1069 = vmatprep.subr.mxu0 %v765
      %1070 = vmatpush1.msra.mxu0 %v764
      %1071 = vmatprep.subr.mxu0 %v753
      %1072 = vmatpush1.msra.mxu0 %v752
      %1073 = vmatprep.subr.mxu0 %v741
      %1074 = vmatpush1.msra.mxu0 %v740
      %1075 = vmatprep.subr.mxu0 %v729
      %1076 = vmatpush1.msra.mxu0 %v728
      %1077 = vmatprep.subr.mxu0 %v717
      %1078 = vmatpush1.msra.mxu0 %v716
      %1079 = vmatprep.subr.mxu0 %v705
      %1080 = vmatpush1.msra.mxu0 %v704
      %1081 = vmatprep.subr.mxu0 %v693
      %1082 = vmatpush1.msra.mxu0 %v692
      %1083 = vmatprep.subr.mxu0 %v681
      %1084 = vmatpush1.msra.mxu0 %v680
      %1085 = vmatprep.subr.mxu0 %v669
      %1086 = vmatpush1.msra.mxu0 %v668
      %1087 = vmatprep.subr.mxu0 0.0
      %1088 = vmatpush2.msra.mxu0 0.0
      %1089 = vmatprep.subr.mxu0 0.0
      %1090 = vmatpush2.msra.mxu0 0.0
      %1091 = vmatprep.subr.mxu0 0.0
      %1092 = vmatpush2.msra.mxu0 0.0
      %1093 = vmatprep.subr.mxu0 0.0
      %1094 = vmatpush2.msra.mxu0 0.0
      %1095 = vmatprep.subr.mxu0 0.0
      %1096 = vmatpush2.msra.mxu0 0.0
      %1097 = vmatprep.subr.mxu0 0.0
      %1098 = vmatpush2.msra.mxu0 0.0
      %1099 = vmatprep.subr.mxu0 0.0
      %1100 = vmatpush2.msra.mxu0 0.0
      %1101 = vmatprep.subr.mxu0 0.0
      %1102 = vmatpush2.msra.mxu0 0.0
      %1103 = vmatprep.subr.mxu0 0.0
      %1104 = vmatpush2.msra.mxu0 0.0
      %1105 = vmatprep.subr.mxu0 0.0
      %1106 = vmatpush2.msra.mxu0 0.0
      %1107 = vmatprep.subr.mxu0 0.0
      %1108 = vmatpush2.msra.mxu0 0.0
      %1109 = vmatprep.subr.mxu0 0.0
      %1110 = vmatpush2.msra.mxu0 0.0
      %1111 = vmatprep.subr.mxu0 0.0
      %1112 = vmatpush2.msra.mxu0 0.0
      %1113 = vmatprep.subr.mxu0 0.0
      %1114 = vmatpush2.msra.mxu0 0.0
      %1115 = vmatprep.subr.mxu0 0.0
      %1116 = vmatpush2.msra.mxu0 0.0
      %1117 = vmatprep.subr.mxu0 0.0
      %1118 = vmatpush2.msra.mxu0 0.0
      %1119 = vmatprep.mubr.f32.mxu0 0.0
      %1120 = vmatmul.mubr.f32.gmra.mxu0 %v992
      %v1121 = vpop.f32.mrf.mxu0
      %v1122 = vadd.f32 %v998, %v1121
      %v1123 = vpop.f32.mrf.mxu0
      %v1124 = vadd.f32 %v1002, %v1123
      %1125 = vdwg.mxu0
      %1126 = vmatprep.subr.mxu0 %v851
      %1127 = vmatpush1.msra.mxu0 %v850
      %1128 = vmatprep.subr.mxu0 %v839
      %1129 = vmatpush1.msra.mxu0 %v838
      %1130 = vmatprep.subr.mxu0 %v827
      %1131 = vmatpush1.msra.mxu0 %v826
      %1132 = vmatprep.subr.mxu0 %v815
      %1133 = vmatpush1.msra.mxu0 %v814
      %1134 = vmatprep.subr.mxu0 %v803
      %1135 = vmatpush1.msra.mxu0 %v802
      %1136 = vmatprep.subr.mxu0 %v791
      %1137 = vmatpush1.msra.mxu0 %v790
      %1138 = vmatprep.subr.mxu0 %v779
      %1139 = vmatpush1.msra.mxu0 %v778
      %1140 = vmatprep.subr.mxu0 %v767
      %1141 = vmatpush1.msra.mxu0 %v766
      %1142 = vmatprep.subr.mxu0 %v755
      %1143 = vmatpush1.msra.mxu0 %v754
      %1144 = vmatprep.subr.mxu0 %v743
      %1145 = vmatpush1.msra.mxu0 %v742
      %1146 = vmatprep.subr.mxu0 %v731
      %1147 = vmatpush1.msra.mxu0 %v730
      %1148 = vmatprep.subr.mxu0 %v719
      %1149 = vmatpush1.msra.mxu0 %v718
      %1150 = vmatprep.subr.mxu0 %v707
      %1151 = vmatpush1.msra.mxu0 %v706
      %1152 = vmatprep.subr.mxu0 %v695
      %1153 = vmatpush1.msra.mxu0 %v694
      %1154 = vmatprep.subr.mxu0 %v683
      %1155 = vmatpush1.msra.mxu0 %v682
      %1156 = vmatprep.subr.mxu0 %v671
      %1157 = vmatpush1.msra.mxu0 %v670
      %1158 = vmatprep.subr.mxu0 0.0
      %1159 = vmatpush2.msra.mxu0 0.0
      %1160 = vmatprep.subr.mxu0 0.0
      %1161 = vmatpush2.msra.mxu0 0.0
      %1162 = vmatprep.subr.mxu0 0.0
      %1163 = vmatpush2.msra.mxu0 0.0
      %1164 = vmatprep.subr.mxu0 0.0
      %1165 = vmatpush2.msra.mxu0 0.0
      %1166 = vmatprep.subr.mxu0 0.0
      %1167 = vmatpush2.msra.mxu0 0.0
      %1168 = vmatprep.subr.mxu0 0.0
      %1169 = vmatpush2.msra.mxu0 0.0
      %1170 = vmatprep.subr.mxu0 0.0
      %1171 = vmatpush2.msra.mxu0 0.0
      %1172 = vmatprep.subr.mxu0 0.0
      %1173 = vmatpush2.msra.mxu0 0.0
      %1174 = vmatprep.subr.mxu0 0.0
      %1175 = vmatpush2.msra.mxu0 0.0
      %1176 = vmatprep.subr.mxu0 0.0
      %1177 = vmatpush2.msra.mxu0 0.0
      %1178 = vmatprep.subr.mxu0 0.0
      %1179 = vmatpush2.msra.mxu0 0.0
      %1180 = vmatprep.subr.mxu0 0.0
      %1181 = vmatpush2.msra.mxu0 0.0
      %1182 = vmatprep.subr.mxu0 0.0
      %1183 = vmatpush2.msra.mxu0 0.0
      %1184 = vmatprep.subr.mxu0 0.0
      %1185 = vmatpush2.msra.mxu0 0.0
      %1186 = vmatprep.subr.mxu0 0.0
      %1187 = vmatpush2.msra.mxu0 0.0
      %1188 = vmatprep.subr.mxu0 0.0
      %1189 = vmatpush2.msra.mxu0 0.0
      %1190 = vmatprep.mubr.f32.mxu0 0.0
      %1191 = vmatmul.mubr.f32.gmra.mxu0 %v992
      %v1192 = vpop.f32.mrf.mxu0
      %v1193 = vadd.f32 %v1006, %v1192
      %v1194 = vpop.f32.mrf.mxu0
      %v1195 = vadd.f32 %v1010, %v1194
      %1196 = vdwg.mxu0
      %1197 = vmatprep.subr.mxu0 %v853
      %1198 = vmatpush1.msra.mxu0 %v852
      %1199 = vmatprep.subr.mxu0 %v841
      %1200 = vmatpush1.msra.mxu0 %v840
      %1201 = vmatprep.subr.mxu0 %v829
      %1202 = vmatpush1.msra.mxu0 %v828
      %1203 = vmatprep.subr.mxu0 %v817
      %1204 = vmatpush1.msra.mxu0 %v816
      %1205 = vmatprep.subr.mxu0 %v805
      %1206 = vmatpush1.msra.mxu0 %v804
      %1207 = vmatprep.subr.mxu0 %v793
      %1208 = vmatpush1.msra.mxu0 %v792
      %1209 = vmatprep.subr.mxu0 %v781
      %1210 = vmatpush1.msra.mxu0 %v780
      %1211 = vmatprep.subr.mxu0 %v769
      %1212 = vmatpush1.msra.mxu0 %v768
      %1213 = vmatprep.subr.mxu0 %v757
      %1214 = vmatpush1.msra.mxu0 %v756
      %1215 = vmatprep.subr.mxu0 %v745
      %1216 = vmatpush1.msra.mxu0 %v744
      %1217 = vmatprep.subr.mxu0 %v733
      %1218 = vmatpush1.msra.mxu0 %v732
      %1219 = vmatprep.subr.mxu0 %v721
      %1220 = vmatpush1.msra.mxu0 %v720
      %1221 = vmatprep.subr.mxu0 %v709
      %1222 = vmatpush1.msra.mxu0 %v708
      %1223 = vmatprep.subr.mxu0 %v697
      %1224 = vmatpush1.msra.mxu0 %v696
      %1225 = vmatprep.subr.mxu0 %v685
      %1226 = vmatpush1.msra.mxu0 %v684
      %1227 = vmatprep.subr.mxu0 %v673
      %1228 = vmatpush1.msra.mxu0 %v672
      %1229 = vmatprep.subr.mxu0 0.0
      %1230 = vmatpush2.msra.mxu0 0.0
      %1231 = vmatprep.subr.mxu0 0.0
      %1232 = vmatpush2.msra.mxu0 0.0
      %1233 = vmatprep.subr.mxu0 0.0
      %1234 = vmatpush2.msra.mxu0 0.0
      %1235 = vmatprep.subr.mxu0 0.0
      %1236 = vmatpush2.msra.mxu0 0.0
      %1237 = vmatprep.subr.mxu0 0.0
      %1238 = vmatpush2.msra.mxu0 0.0
      %1239 = vmatprep.subr.mxu0 0.0
      %1240 = vmatpush2.msra.mxu0 0.0
      %1241 = vmatprep.subr.mxu0 0.0
      %1242 = vmatpush2.msra.mxu0 0.0
      %1243 = vmatprep.subr.mxu0 0.0
      %1244 = vmatpush2.msra.mxu0 0.0
      %1245 = vmatprep.subr.mxu0 0.0
      %1246 = vmatpush2.msra.mxu0 0.0
      %1247 = vmatprep.subr.mxu0 0.0
      %1248 = vmatpush2.msra.mxu0 0.0
      %1249 = vmatprep.subr.mxu0 0.0
      %1250 = vmatpush2.msra.mxu0 0.0
      %1251 = vmatprep.subr.mxu0 0.0
      %1252 = vmatpush2.msra.mxu0 0.0
      %1253 = vmatprep.subr.mxu0 0.0
      %1254 = vmatpush2.msra.mxu0 0.0
      %1255 = vmatprep.subr.mxu0 0.0
      %1256 = vmatpush2.msra.mxu0 0.0
      %1257 = vmatprep.subr.mxu0 0.0
      %1258 = vmatpush2.msra.mxu0 0.0
      %1259 = vmatprep.subr.mxu0 0.0
      %1260 = vmatpush2.msra.mxu0 0.0
      %1261 = vmatprep.mubr.f32.mxu0 0.0
      %1262 = vmatmul.mubr.f32.gmra.mxu0 %v992
      %v1263 = vpop.f32.mrf.mxu0
      %v1264 = vadd.f32 %v1014, %v1263
      %v1265 = vpop.f32.mrf.mxu0
      %v1266 = vadd.f32 %v1018, %v1265
      %1267 = vdwg.mxu0
      %1268 = vmatprep.subr.mxu0 %v855
      %1269 = vmatpush1.msra.mxu0 %v854
      %1270 = vmatprep.subr.mxu0 %v843
      %1271 = vmatpush1.msra.mxu0 %v842
      %1272 = vmatprep.subr.mxu0 %v831
      %1273 = vmatpush1.msra.mxu0 %v830
      %1274 = vmatprep.subr.mxu0 %v819
      %1275 = vmatpush1.msra.mxu0 %v818
      %1276 = vmatprep.subr.mxu0 %v807
      %1277 = vmatpush1.msra.mxu0 %v806
      %1278 = vmatprep.subr.mxu0 %v795
      %1279 = vmatpush1.msra.mxu0 %v794
      %1280 = vmatprep.subr.mxu0 %v783
      %1281 = vmatpush1.msra.mxu0 %v782
      %1282 = vmatprep.subr.mxu0 %v771
      %1283 = vmatpush1.msra.mxu0 %v770
      %1284 = vmatprep.subr.mxu0 %v759
      %1285 = vmatpush1.msra.mxu0 %v758
      %1286 = vmatprep.subr.mxu0 %v747
      %1287 = vmatpush1.msra.mxu0 %v746
      %1288 = vmatprep.subr.mxu0 %v735
      %1289 = vmatpush1.msra.mxu0 %v734
      %1290 = vmatprep.subr.mxu0 %v723
      %1291 = vmatpush1.msra.mxu0 %v722
      %1292 = vmatprep.subr.mxu0 %v711
      %1293 = vmatpush1.msra.mxu0 %v710
      %1294 = vmatprep.subr.mxu0 %v699
      %1295 = vmatpush1.msra.mxu0 %v698
      %1296 = vmatprep.subr.mxu0 %v687
      %1297 = vmatpush1.msra.mxu0 %v686
      %1298 = vmatprep.subr.mxu0 %v675
      %1299 = vmatpush1.msra.mxu0 %v674
      %1300 = vmatprep.subr.mxu0 0.0
      %1301 = vmatpush2.msra.mxu0 0.0
      %1302 = vmatprep.subr.mxu0 0.0
      %1303 = vmatpush2.msra.mxu0 0.0
      %1304 = vmatprep.subr.mxu0 0.0
      %1305 = vmatpush2.msra.mxu0 0.0
      %1306 = vmatprep.subr.mxu0 0.0
      %1307 = vmatpush2.msra.mxu0 0.0
      %1308 = vmatprep.subr.mxu0 0.0
      %1309 = vmatpush2.msra.mxu0 0.0
      %1310 = vmatprep.subr.mxu0 0.0
      %1311 = vmatpush2.msra.mxu0 0.0
      %1312 = vmatprep.subr.mxu0 0.0
      %1313 = vmatpush2.msra.mxu0 0.0
      %1314 = vmatprep.subr.mxu0 0.0
      %1315 = vmatpush2.msra.mxu0 0.0
      %1316 = vmatprep.subr.mxu0 0.0
      %1317 = vmatpush2.msra.mxu0 0.0
      %1318 = vmatprep.subr.mxu0 0.0
      %1319 = vmatpush2.msra.mxu0 0.0
      %1320 = vmatprep.subr.mxu0 0.0
      %1321 = vmatpush2.msra.mxu0 0.0
      %1322 = vmatprep.subr.mxu0 0.0
      %1323 = vmatpush2.msra.mxu0 0.0
      %1324 = vmatprep.subr.mxu0 0.0
      %1325 = vmatpush2.msra.mxu0 0.0
      %1326 = vmatprep.subr.mxu0 0.0
      %1327 = vmatpush2.msra.mxu0 0.0
      %1328 = vmatprep.subr.mxu0 0.0
      %1329 = vmatpush2.msra.mxu0 0.0
      %1330 = vmatprep.subr.mxu0 0.0
      %1331 = vmatpush2.msra.mxu0 0.0
      %1332 = vmatprep.mubr.f32.mxu0 0.0
      %1333 = vmatmul.mubr.f32.gmra.mxu0 %v992
      %v1334 = vpop.f32.mrf.mxu0
      %v1335 = vadd.f32 %v1022, %v1334
      %v1336 = vpop.f32.mrf.mxu0
      %v1337 = vadd.f32 %v1026, %v1336
      %1338 = vdwg.mxu0
      %1339 = vmatprep.subr.mxu0 %v857
      %1340 = vmatpush1.msra.mxu0 %v856
      %1341 = vmatprep.subr.mxu0 %v845
      %1342 = vmatpush1.msra.mxu0 %v844
      %1343 = vmatprep.subr.mxu0 %v833
      %1344 = vmatpush1.msra.mxu0 %v832
      %1345 = vmatprep.subr.mxu0 %v821
      %1346 = vmatpush1.msra.mxu0 %v820
      %1347 = vmatprep.subr.mxu0 %v809
      %1348 = vmatpush1.msra.mxu0 %v808
      %1349 = vmatprep.subr.mxu0 %v797
      %1350 = vmatpush1.msra.mxu0 %v796
      %1351 = vmatprep.subr.mxu0 %v785
      %1352 = vmatpush1.msra.mxu0 %v784
      %1353 = vmatprep.subr.mxu0 %v773
      %1354 = vmatpush1.msra.mxu0 %v772
      %1355 = vmatprep.subr.mxu0 %v761
      %1356 = vmatpush1.msra.mxu0 %v760
      %1357 = vmatprep.subr.mxu0 %v749
      %1358 = vmatpush1.msra.mxu0 %v748
      %1359 = vmatprep.subr.mxu0 %v737
      %1360 = vmatpush1.msra.mxu0 %v736
      %1361 = vmatprep.subr.mxu0 %v725
      %1362 = vmatpush1.msra.mxu0 %v724
      %1363 = vmatprep.subr.mxu0 %v713
      %1364 = vmatpush1.msra.mxu0 %v712
      %1365 = vmatprep.subr.mxu0 %v701
      %1366 = vmatpush1.msra.mxu0 %v700
      %1367 = vmatprep.subr.mxu0 %v689
      %1368 = vmatpush1.msra.mxu0 %v688
      %1369 = vmatprep.subr.mxu0 %v677
      %1370 = vmatpush1.msra.mxu0 %v676
      %1371 = vmatprep.subr.mxu0 0.0
      %1372 = vmatpush2.msra.mxu0 0.0
      %1373 = vmatprep.subr.mxu0 0.0
      %1374 = vmatpush2.msra.mxu0 0.0
      %1375 = vmatprep.subr.mxu0 0.0
      %1376 = vmatpush2.msra.mxu0 0.0
      %1377 = vmatprep.subr.mxu0 0.0
      %1378 = vmatpush2.msra.mxu0 0.0
      %1379 = vmatprep.subr.mxu0 0.0
      %1380 = vmatpush2.msra.mxu0 0.0
      %1381 = vmatprep.subr.mxu0 0.0
      %1382 = vmatpush2.msra.mxu0 0.0
      %1383 = vmatprep.subr.mxu0 0.0
      %1384 = vmatpush2.msra.mxu0 0.0
      %1385 = vmatprep.subr.mxu0 0.0
      %1386 = vmatpush2.msra.mxu0 0.0
      %1387 = vmatprep.subr.mxu0 0.0
      %1388 = vmatpush2.msra.mxu0 0.0
      %1389 = vmatprep.subr.mxu0 0.0
      %1390 = vmatpush2.msra.mxu0 0.0
      %1391 = vmatprep.subr.mxu0 0.0
      %1392 = vmatpush2.msra.mxu0 0.0
      %1393 = vmatprep.subr.mxu0 0.0
      %1394 = vmatpush2.msra.mxu0 0.0
      %1395 = vmatprep.subr.mxu0 0.0
      %1396 = vmatpush2.msra.mxu0 0.0
      %1397 = vmatprep.subr.mxu0 0.0
      %1398 = vmatpush2.msra.mxu0 0.0
      %1399 = vmatprep.subr.mxu0 0.0
      %1400 = vmatpush2.msra.mxu0 0.0
      %1401 = vmatprep.subr.mxu0 0.0
      %1402 = vmatpush2.msra.mxu0 0.0
      %1403 = vmatprep.mubr.f32.mxu0 0.0
      %1404 = vmatmul.mubr.f32.gmra.mxu0 %v992
      %v1405 = vpop.f32.mrf.mxu0
      %v1406 = vadd.f32 %v1030, %v1405
      %v1407 = vpop.f32.mrf.mxu0
      %v1408 = vadd.f32 %v1034, %v1407
      %1409 = vdwg.mxu0
      %1410 = vmatprep.subr.mxu0 %v859
      %1411 = vmatpush1.msra.mxu0 %v858
      %1412 = vmatprep.subr.mxu0 %v847
      %1413 = vmatpush1.msra.mxu0 %v846
      %1414 = vmatprep.subr.mxu0 %v835
      %1415 = vmatpush1.msra.mxu0 %v834
      %1416 = vmatprep.subr.mxu0 %v823
      %1417 = vmatpush1.msra.mxu0 %v822
      %1418 = vmatprep.subr.mxu0 %v811
      %1419 = vmatpush1.msra.mxu0 %v810
      %1420 = vmatprep.subr.mxu0 %v799
      %1421 = vmatpush1.msra.mxu0 %v798
      %1422 = vmatprep.subr.mxu0 %v787
      %1423 = vmatpush1.msra.mxu0 %v786
      %1424 = vmatprep.subr.mxu0 %v775
      %1425 = vmatpush1.msra.mxu0 %v774
      %1426 = vmatprep.subr.mxu0 %v763
      %1427 = vmatpush1.msra.mxu0 %v762
      %1428 = vmatprep.subr.mxu0 %v751
      %1429 = vmatpush1.msra.mxu0 %v750
      %1430 = vmatprep.subr.mxu0 %v739
      %1431 = vmatpush1.msra.mxu0 %v738
      %1432 = vmatprep.subr.mxu0 %v727
      %1433 = vmatpush1.msra.mxu0 %v726
      %1434 = vmatprep.subr.mxu0 %v715
      %1435 = vmatpush1.msra.mxu0 %v714
      %1436 = vmatprep.subr.mxu0 %v703
      %1437 = vmatpush1.msra.mxu0 %v702
      %1438 = vmatprep.subr.mxu0 %v691
      %1439 = vmatpush1.msra.mxu0 %v690
      %1440 = vmatprep.subr.mxu0 %v679
      %1441 = vmatpush1.msra.mxu0 %v678
      %1442 = vmatprep.subr.mxu0 0.0
      %1443 = vmatpush2.msra.mxu0 0.0
      %1444 = vmatprep.subr.mxu0 0.0
      %1445 = vmatpush2.msra.mxu0 0.0
      %1446 = vmatprep.subr.mxu0 0.0
      %1447 = vmatpush2.msra.mxu0 0.0
      %1448 = vmatprep.subr.mxu0 0.0
      %1449 = vmatpush2.msra.mxu0 0.0
      %1450 = vmatprep.subr.mxu0 0.0
      %1451 = vmatpush2.msra.mxu0 0.0
      %1452 = vmatprep.subr.mxu0 0.0
      %1453 = vmatpush2.msra.mxu0 0.0
      %1454 = vmatprep.subr.mxu0 0.0
      %1455 = vmatpush2.msra.mxu0 0.0
      %1456 = vmatprep.subr.mxu0 0.0
      %1457 = vmatpush2.msra.mxu0 0.0
      %1458 = vmatprep.subr.mxu0 0.0
      %1459 = vmatpush2.msra.mxu0 0.0
      %1460 = vmatprep.subr.mxu0 0.0
      %1461 = vmatpush2.msra.mxu0 0.0
      %1462 = vmatprep.subr.mxu0 0.0
      %1463 = vmatpush2.msra.mxu0 0.0
      %1464 = vmatprep.subr.mxu0 0.0
      %1465 = vmatpush2.msra.mxu0 0.0
      %1466 = vmatprep.subr.mxu0 0.0
      %1467 = vmatpush2.msra.mxu0 0.0
      %1468 = vmatprep.subr.mxu0 0.0
      %1469 = vmatpush2.msra.mxu0 0.0
      %1470 = vmatprep.subr.mxu0 0.0
      %1471 = vmatpush2.msra.mxu0 0.0
      %1472 = vmatprep.subr.mxu0 0.0
      %1473 = vmatpush2.msra.mxu0 0.0
      %1474 = vmatprep.mubr.f32.mxu0 0.0
      %1475 = vmatmul.mubr.f32.gmra.mxu0 %v992
      %v1476 = vpop.f32.mrf.mxu0
      %v1477 = vadd.f32 %v1038, %v1476
      %v1478 = vpop.f32.mrf.mxu0
      %v1479 = vadd.f32 %v1042, %v1478
      %1480 = vdwg.mxu0
      %1481 = vmatprep.subr.mxu0 0.0
      %1482 = vmatpush1.xpose.msra.mxu0 0.0
      %1483 = vmatprep.subr.mxu0 0.0
      %1484 = vmatpush1.xpose.msra.mxu0 0.0
      %1485 = vmatprep.subr.mxu0 0.0
      %1486 = vmatpush1.xpose.msra.mxu0 0.0
      %1487 = vmatprep.subr.mxu0 0.0
      %1488 = vmatpush1.xpose.msra.mxu0 0.0
      %1489 = vmatprep.subr.mxu0 0.0
      %1490 = vmatpush1.xpose.msra.mxu0 0.0
      %1491 = vmatprep.subr.mxu0 0.0
      %1492 = vmatpush1.xpose.msra.mxu0 0.0
      %1493 = vmatprep.subr.mxu0 0.0
      %1494 = vmatpush1.xpose.msra.mxu0 0.0
      %1495 = vmatprep.subr.mxu0 0.0
      %1496 = vmatpush1.xpose.msra.mxu0 0.0
      %1497 = vmatprep.subr.mxu0 0.0
      %1498 = vmatpush1.xpose.msra.mxu0 0.0
      %1499 = vmatprep.subr.mxu0 0.0
      %1500 = vmatpush1.xpose.msra.mxu0 0.0
      %1501 = vmatprep.subr.mxu0 0.0
      %1502 = vmatpush1.xpose.msra.mxu0 0.0
      %1503 = vmatprep.subr.mxu0 0.0
      %1504 = vmatpush1.xpose.msra.mxu0 0.0
      %1505 = vmatprep.subr.mxu0 0.0
      %1506 = vmatpush1.xpose.msra.mxu0 0.0
      %1507 = vmatprep.subr.mxu0 0.0
      %1508 = vmatpush1.xpose.msra.mxu0 0.0
      %1509 = vmatprep.subr.mxu0 0.0
      %1510 = vmatpush1.xpose.msra.mxu0 0.0
      %1511 = vmatprep.subr.mxu0 0.0
      %1512 = vmatpush1.xpose.msra.mxu0 %v1264
      %1513 = vmatprep.subr.mxu0 0.0
      %1514 = vmatpush2.xpose.msra.mxu0 0.0
      %1515 = vmatprep.subr.mxu0 0.0
      %1516 = vmatpush2.xpose.msra.mxu0 0.0
      %1517 = vmatprep.subr.mxu0 0.0
      %1518 = vmatpush2.xpose.msra.mxu0 0.0
      %1519 = vmatprep.subr.mxu0 0.0
      %1520 = vmatpush2.xpose.msra.mxu0 0.0
      %1521 = vmatprep.subr.mxu0 0.0
      %1522 = vmatpush2.xpose.msra.mxu0 0.0
      %1523 = vmatprep.subr.mxu0 0.0
      %1524 = vmatpush2.xpose.msra.mxu0 0.0
      %1525 = vmatprep.subr.mxu0 0.0
      %1526 = vmatpush2.xpose.msra.mxu0 0.0
      %1527 = vmatprep.subr.mxu0 0.0
      %1528 = vmatpush2.xpose.msra.mxu0 0.0
      %1529 = vmatprep.subr.mxu0 0.0
      %1530 = vmatpush2.xpose.msra.mxu0 0.0
      %1531 = vmatprep.subr.mxu0 0.0
      %1532 = vmatpush2.xpose.msra.mxu0 0.0
      %1533 = vmatprep.subr.mxu0 0.0
      %1534 = vmatpush2.xpose.msra.mxu0 0.0
      %1535 = vmatprep.subr.mxu0 0.0
      %1536 = vmatpush2.xpose.msra.mxu0 0.0
      %1537 = vmatprep.subr.mxu0 0.0
      %1538 = vmatpush2.xpose.msra.mxu0 0.0
      %1539 = vmatprep.subr.mxu0 0.0
      %1540 = vmatpush2.xpose.msra.mxu0 0.0
      %1541 = vmatprep.subr.mxu0 0.0
      %1542 = vmatpush2.xpose.msra.mxu0 0.0
      %1543 = vmatprep.subr.mxu0 0.0
      %1544 = vmatpush2.xpose.msra.mxu0 0.0
      %1545 = vmatprep.mubr.f32.mxu0 0.0
      %1546 = vmatmul.mubr.f32.gmra.mxu0 %v1122
      %v1547 = vpop.f32.mrf.mxu0
      %v1548 = vadd.f32 0.0, %v1547
      %v1549 = vpop.f32.mrf.mxu0
      %1550 = vdwg.mxu0
      %v1551 = vmul.f32 %v1548, 0.35355338
      %v1552 = vadd.f32 %v1551, %v665
      %vm1553 = vcmask 64512
      %v1554 = vsel %vm1553, %v1552, -inf
      %1555 = vmax.xlane.f32.xlu0 %v1554
      %v1556 = vpop.xlane.xlu0 %1555
      %v1557 = vsub.f32 %v1552, %v1556
      %v1558 = vmul.f32 %v1557, 1.442695
      %v1559 = vpow.pop %v1558
      %v1560 = vsel %vm1553, %v1559, 0.0
      %1561 = vadd.xlane.f32.xlu0 %v1560
      %v1562 = vpop.xlane.xlu0 %1561
      %v1563 = vrcp.pop %v1562
      %v1564 = vmul.f32 %v1559, %v1563
      %v1566 = vsel %vm1553, %v1564, 0
      %1568 = vmatprep.subr.mxu0 0.0
      %1569 = vmatpush1.msra.mxu0 0.0
      %1570 = vmatprep.subr.mxu0 0.0
      %1571 = vmatpush1.msra.mxu0 0.0
      %1572 = vmatprep.subr.mxu0 0.0
      %1573 = vmatpush1.msra.mxu0 0.0
      %1574 = vmatprep.subr.mxu0 0.0
      %1575 = vmatpush1.msra.mxu0 0.0
      %1576 = vmatprep.subr.mxu0 0.0
      %1577 = vmatpush1.msra.mxu0 0.0
      %1578 = vmatprep.subr.mxu0 0.0
      %1579 = vmatpush1.msra.mxu0 0.0
      %1580 = vmatprep.subr.mxu0 0.0
      %1581 = vmatpush1.msra.mxu0 0.0
      %1582 = vmatprep.subr.mxu0 0.0
      %1583 = vmatpush1.msra.mxu0 0.0
      %1584 = vmatprep.subr.mxu0 0.0
      %1585 = vmatpush1.msra.mxu0 0.0
      %1586 = vmatprep.subr.mxu0 0.0
      %1587 = vmatpush1.msra.mxu0 0.0
      %1588 = vmatprep.subr.mxu0 0.0
      %1589 = vmatpush1.msra.mxu0 0.0
      %1590 = vmatprep.subr.mxu0 0.0
      %1591 = vmatpush1.msra.mxu0 0.0
      %1592 = vmatprep.subr.mxu0 0.0
      %1593 = vmatpush1.msra.mxu0 0.0
      %1594 = vmatprep.subr.mxu0 0.0
      %1595 = vmatpush1.msra.mxu0 0.0
      %1596 = vmatprep.subr.mxu0 0.0
      %1597 = vmatpush1.msra.mxu0 0.0
      %1598 = vmatprep.subr.mxu0 0.0
      %1599 = vmatpush1.msra.mxu0 %v1406
      %1600 = vmatprep.subr.mxu0 0.0
      %1601 = vmatpush2.msra.mxu0 0.0
      %1602 = vmatprep.subr.mxu0 0.0
      %1603 = vmatpush2.msra.mxu0 0.0
      %1604 = vmatprep.subr.mxu0 0.0
      %1605 = vmatpush2.msra.mxu0 0.0
      %1606 = vmatprep.subr.mxu0 0.0
      %1607 = vmatpush2.msra.mxu0 0.0
      %1608 = vmatprep.subr.mxu0 0.0
      %1609 = vmatpush2.msra.mxu0 0.0
      %1610 = vmatprep.subr.mxu0 0.0
      %1611 = vmatpush2.msra.mxu0 0.0
      %1612 = vmatprep.subr.mxu0 0.0
      %1613 = vmatpush2.msra.mxu0 0.0
      %1614 = vmatprep.subr.mxu0 0.0
      %1615 = vmatpush2.msra.mxu0 0.0
      %1616 = vmatprep.subr.mxu0 0.0
      %1617 = vmatpush2.msra.mxu0 0.0
      %1618 = vmatprep.subr.mxu0 0.0
      %1619 = vmatpush2.msra.mxu0 0.0
      %1620 = vmatprep.subr.mxu0 0.0
      %1621 = vmatpush2.msra.mxu0 0.0
      %1622 = vmatprep.subr.mxu0 0.0
      %1623 = vmatpush2.msra.mxu0 0.0
      %1624 = vmatprep.subr.mxu0 0.0
      %1625 = vmatpush2.msra.mxu0 0.0
      %1626 = vmatprep.subr.mxu0 0.0
      %1627 = vmatpush2.msra.mxu0 0.0
      %1628 = vmatprep.subr.mxu0 0.0
      %1629 = vmatpush2.msra.mxu0 0.0
      %1630 = vmatprep.subr.mxu0 0.0
      %1631 = vmatpush2.msra.mxu0 0.0
      %1632 = vmatprep.mubr.f32.mxu0 0.0
      %1633 = vmatmul.mubr.f32.gmra.mxu0 %v1566
      %v1634 = vpop.f32.mrf.mxu0
      %v1635 = vadd.f32 0.0, %v1634
      %v1636 = vpop.f32.mrf.mxu0
      %1637 = vdwg.mxu0
      %1638 = vmatprep.subr.mxu0 0.0
      %1639 = vmatpush1.xpose.msra.mxu0 0.0
      %1640 = vmatprep.subr.mxu0 0.0
      %1641 = vmatpush1.xpose.msra.mxu0 0.0
      %1642 = vmatprep.subr.mxu0 0.0
      %1643 = vmatpush1.xpose.msra.mxu0 0.0
      %1644 = vmatprep.subr.mxu0 0.0
      %1645 = vmatpush1.xpose.msra.mxu0 0.0
      %1646 = vmatprep.subr.mxu0 0.0
      %1647 = vmatpush1.xpose.msra.mxu0 0.0
      %1648 = vmatprep.subr.mxu0 0.0
      %1649 = vmatpush1.xpose.msra.mxu0 0.0
      %1650 = vmatprep.subr.mxu0 0.0
      %1651 = vmatpush1.xpose.msra.mxu0 0.0
      %1652 = vmatprep.subr.mxu0 0.0
      %1653 = vmatpush1.xpose.msra.mxu0 0.0
      %1654 = vmatprep.subr.mxu0 0.0
      %1655 = vmatpush1.xpose.msra.mxu0 0.0
      %1656 = vmatprep.subr.mxu0 0.0
      %1657 = vmatpush1.xpose.msra.mxu0 0.0
      %1658 = vmatprep.subr.mxu0 0.0
      %1659 = vmatpush1.xpose.msra.mxu0 0.0
      %1660 = vmatprep.subr.mxu0 0.0
      %1661 = vmatpush1.xpose.msra.mxu0 0.0
      %1662 = vmatprep.subr.mxu0 0.0
      %1663 = vmatpush1.xpose.msra.mxu0 0.0
      %1664 = vmatprep.subr.mxu0 0.0
      %1665 = vmatpush1.xpose.msra.mxu0 0.0
      %1666 = vmatprep.subr.mxu0 0.0
      %1667 = vmatpush1.xpose.msra.mxu0 0.0
      %1668 = vmatprep.subr.mxu0 0.0
      %1669 = vmatpush1.xpose.msra.mxu0 %v1266
      %1670 = vmatprep.subr.mxu0 0.0
      %1671 = vmatpush2.xpose.msra.mxu0 0.0
      %1672 = vmatprep.subr.mxu0 0.0
      %1673 = vmatpush2.xpose.msra.mxu0 0.0
      %1674 = vmatprep.subr.mxu0 0.0
      %1675 = vmatpush2.xpose.msra.mxu0 0.0
      %1676 = vmatprep.subr.mxu0 0.0
      %1677 = vmatpush2.xpose.msra.mxu0 0.0
      %1678 = vmatprep.subr.mxu0 0.0
      %1679 = vmatpush2.xpose.msra.mxu0 0.0
      %1680 = vmatprep.subr.mxu0 0.0
      %1681 = vmatpush2.xpose.msra.mxu0 0.0
      %1682 = vmatprep.subr.mxu0 0.0
      %1683 = vmatpush2.xpose.msra.mxu0 0.0
      %1684 = vmatprep.subr.mxu0 0.0
      %1685 = vmatpush2.xpose.msra.mxu0 0.0
      %1686 = vmatprep.subr.mxu0 0.0
      %1687 = vmatpush2.xpose.msra.mxu0 0.0
      %1688 = vmatprep.subr.mxu0 0.0
      %1689 = vmatpush2.xpose.msra.mxu0 0.0
      %1690 = vmatprep.subr.mxu0 0.0
      %1691 = vmatpush2.xpose.msra.mxu0 0.0
      %1692 = vmatprep.subr.mxu0 0.0
      %1693 = vmatpush2.xpose.msra.mxu0 0.0
      %1694 = vmatprep.subr.mxu0 0.0
      %1695 = vmatpush2.xpose.msra.mxu0 0.0
      %1696 = vmatprep.subr.mxu0 0.0
      %1697 = vmatpush2.xpose.msra.mxu0 0.0
      %1698 = vmatprep.subr.mxu0 0.0
      %1699 = vmatpush2.xpose.msra.mxu0 0.0
      %1700 = vmatprep.subr.mxu0 0.0
      %1701 = vmatpush2.xpose.msra.mxu0 0.0
      %1702 = vmatprep.mubr.f32.mxu0 0.0
      %1703 = vmatmul.mubr.f32.gmra.mxu0 %v1124
      %v1704 = vpop.f32.mrf.mxu0
      %v1705 = vadd.f32 0.0, %v1704
      %v1706 = vpop.f32.mrf.mxu0
      %1707 = vdwg.mxu0
      %v1708 = vmul.f32 %v1705, 0.35355338
      %v1709 = vadd.f32 %v1708, %v665
      %v1710 = vsel %vm1553, %v1709, -inf
      %1711 = vmax.xlane.f32.xlu0 %v1710
      %v1712 = vpop.xlane.xlu0 %1711
      %v1713 = vsub.f32 %v1709, %v1712
      %v1714 = vmul.f32 %v1713, 1.442695
      %v1715 = vpow.pop %v1714
      %v1716 = vsel %vm1553, %v1715, 0.0
      %1717 = vadd.xlane.f32.xlu0 %v1716
      %v1718 = vpop.xlane.xlu0 %1717
      %v1719 = vrcp.pop %v1718
      %v1720 = vmul.f32 %v1715, %v1719
      %v1722 = vsel %vm1553, %v1720, 0
      %1724 = vmatprep.subr.mxu0 0.0
      %1725 = vmatpush1.msra.mxu0 0.0
      %1726 = vmatprep.subr.mxu0 0.0
      %1727 = vmatpush1.msra.mxu0 0.0
      %1728 = vmatprep.subr.mxu0 0.0
      %1729 = vmatpush1.msra.mxu0 0.0
      %1730 = vmatprep.subr.mxu0 0.0
      %1731 = vmatpush1.msra.mxu0 0.0
      %1732 = vmatprep.subr.mxu0 0.0
      %1733 = vmatpush1.msra.mxu0 0.0
      %1734 = vmatprep.subr.mxu0 0.0
      %1735 = vmatpush1.msra.mxu0 0.0
      %1736 = vmatprep.subr.mxu0 0.0
      %1737 = vmatpush1.msra.mxu0 0.0
      %1738 = vmatprep.subr.mxu0 0.0
      %1739 = vmatpush1.msra.mxu0 0.0
      %1740 = vmatprep.subr.mxu0 0.0
      %1741 = vmatpush1.msra.mxu0 0.0
      %1742 = vmatprep.subr.mxu0 0.0
      %1743 = vmatpush1.msra.mxu0 0.0
      %1744 = vmatprep.subr.mxu0 0.0
      %1745 = vmatpush1.msra.mxu0 0.0
      %1746 = vmatprep.subr.mxu0 0.0
      %1747 = vmatpush1.msra.mxu0 0.0
      %1748 = vmatprep.subr.mxu0 0.0
      %1749 = vmatpush1.msra.mxu0 0.0
      %1750 = vmatprep.subr.mxu0 0.0
      %1751 = vmatpush1.msra.mxu0 0.0
      %1752 = vmatprep.subr.mxu0 0.0
      %1753 = vmatpush1.msra.mxu0 0.0
      %1754 = vmatprep.subr.mxu0 0.0
      %1755 = vmatpush1.msra.mxu0 %v1408
      %1756 = vmatprep.subr.mxu0 0.0
      %1757 = vmatpush2.msra.mxu0 0.0
      %1758 = vmatprep.subr.mxu0 0.0
      %1759 = vmatpush2.msra.mxu0 0.0
      %1760 = vmatprep.subr.mxu0 0.0
      %1761 = vmatpush2.msra.mxu0 0.0
      %1762 = vmatprep.subr.mxu0 0.0
      %1763 = vmatpush2.msra.mxu0 0.0
      %1764 = vmatprep.subr.mxu0 0.0
      %1765 = vmatpush2.msra.mxu0 0.0
      %1766 = vmatprep.subr.mxu0 0.0
      %1767 = vmatpush2.msra.mxu0 0.0
      %1768 = vmatprep.subr.mxu0 0.0
      %1769 = vmatpush2.msra.mxu0 0.0
      %1770 = vmatprep.subr.mxu0 0.0
      %1771 = vmatpush2.msra.mxu0 0.0
      %1772 = vmatprep.subr.mxu0 0.0
      %1773 = vmatpush2.msra.mxu0 0.0
      %1774 = vmatprep.subr.mxu0 0.0
      %1775 = vmatpush2.msra.mxu0 0.0
      %1776 = vmatprep.subr.mxu0 0.0
      %1777 = vmatpush2.msra.mxu0 0.0
      %1778 = vmatprep.subr.mxu0 0.0
      %1779 = vmatpush2.msra.mxu0 0.0
      %1780 = vmatprep.subr.mxu0 0.0
      %1781 = vmatpush2.msra.mxu0 0.0
      %1782 = vmatprep.subr.mxu0 0.0
      %1783 = vmatpush2.msra.mxu0 0.0
      %1784 = vmatprep.subr.mxu0 0.0
      %1785 = vmatpush2.msra.mxu0 0.0
      %1786 = vmatprep.subr.mxu0 0.0
      %1787 = vmatpush2.msra.mxu0 0.0
      %1788 = vmatprep.mubr.f32.mxu0 0.0
      %1789 = vmatmul.mubr.f32.gmra.mxu0 %v1722
      %v1790 = vpop.f32.mrf.mxu0
      %v1791 = vadd.f32 0.0, %v1790
      %v1792 = vpop.f32.mrf.mxu0
      %1793 = vdwg.mxu0
      %1794 = vmatprep.subr.mxu0 0.0
      %1795 = vmatpush1.xpose.msra.mxu0 0.0
      %1796 = vmatprep.subr.mxu0 0.0
      %1797 = vmatpush1.xpose.msra.mxu0 0.0
      %1798 = vmatprep.subr.mxu0 0.0
      %1799 = vmatpush1.xpose.msra.mxu0 0.0
      %1800 = vmatprep.subr.mxu0 0.0
      %1801 = vmatpush1.xpose.msra.mxu0 0.0
      %1802 = vmatprep.subr.mxu0 0.0
      %1803 = vmatpush1.xpose.msra.mxu0 0.0
      %1804 = vmatprep.subr.mxu0 0.0
      %1805 = vmatpush1.xpose.msra.mxu0 0.0
      %1806 = vmatprep.subr.mxu0 0.0
      %1807 = vmatpush1.xpose.msra.mxu0 0.0
      %1808 = vmatprep.subr.mxu0 0.0
      %1809 = vmatpush1.xpose.msra.mxu0 0.0
      %1810 = vmatprep.subr.mxu0 0.0
      %1811 = vmatpush1.xpose.msra.mxu0 0.0
      %1812 = vmatprep.subr.mxu0 0.0
      %1813 = vmatpush1.xpose.msra.mxu0 0.0
      %1814 = vmatprep.subr.mxu0 0.0
      %1815 = vmatpush1.xpose.msra.mxu0 0.0
      %1816 = vmatprep.subr.mxu0 0.0
      %1817 = vmatpush1.xpose.msra.mxu0 0.0
      %1818 = vmatprep.subr.mxu0 0.0
      %1819 = vmatpush1.xpose.msra.mxu0 0.0
      %1820 = vmatprep.subr.mxu0 0.0
      %1821 = vmatpush1.xpose.msra.mxu0 0.0
      %1822 = vmatprep.subr.mxu0 0.0
      %1823 = vmatpush1.xpose.msra.mxu0 0.0
      %1824 = vmatprep.subr.mxu0 0.0
      %1825 = vmatpush1.xpose.msra.mxu0 %v1335
      %1826 = vmatprep.subr.mxu0 0.0
      %1827 = vmatpush2.xpose.msra.mxu0 0.0
      %1828 = vmatprep.subr.mxu0 0.0
      %1829 = vmatpush2.xpose.msra.mxu0 0.0
      %1830 = vmatprep.subr.mxu0 0.0
      %1831 = vmatpush2.xpose.msra.mxu0 0.0
      %1832 = vmatprep.subr.mxu0 0.0
      %1833 = vmatpush2.xpose.msra.mxu0 0.0
      %1834 = vmatprep.subr.mxu0 0.0
      %1835 = vmatpush2.xpose.msra.mxu0 0.0
      %1836 = vmatprep.subr.mxu0 0.0
      %1837 = vmatpush2.xpose.msra.mxu0 0.0
      %1838 = vmatprep.subr.mxu0 0.0
      %1839 = vmatpush2.xpose.msra.mxu0 0.0
      %1840 = vmatprep.subr.mxu0 0.0
      %1841 = vmatpush2.xpose.msra.mxu0 0.0
      %1842 = vmatprep.subr.mxu0 0.0
      %1843 = vmatpush2.xpose.msra.mxu0 0.0
      %1844 = vmatprep.subr.mxu0 0.0
      %1845 = vmatpush2.xpose.msra.mxu0 0.0
      %1846 = vmatprep.subr.mxu0 0.0
      %1847 = vmatpush2.xpose.msra.mxu0 0.0
      %1848 = vmatprep.subr.mxu0 0.0
      %1849 = vmatpush2.xpose.msra.mxu0 0.0
      %1850 = vmatprep.subr.mxu0 0.0
      %1851 = vmatpush2.xpose.msra.mxu0 0.0
      %1852 = vmatprep.subr.mxu0 0.0
      %1853 = vmatpush2.xpose.msra.mxu0 0.0
      %1854 = vmatprep.subr.mxu0 0.0
      %1855 = vmatpush2.xpose.msra.mxu0 0.0
      %1856 = vmatprep.subr.mxu0 0.0
      %1857 = vmatpush2.xpose.msra.mxu0 0.0
      %1858 = vmatprep.mubr.f32.mxu0 0.0
      %1859 = vmatmul.mubr.f32.gmra.mxu0 %v1193
      %v1860 = vpop.f32.mrf.mxu0
      %v1861 = vadd.f32 0.0, %v1860
      %v1862 = vpop.f32.mrf.mxu0
      %1863 = vdwg.mxu0
      %v1864 = vmul.f32 %v1861, 0.35355338
      %v1865 = vadd.f32 %v1864, %v665
      %v1866 = vsel %vm1553, %v1865, -inf
      %1867 = vmax.xlane.f32.xlu0 %v1866
      %v1868 = vpop.xlane.xlu0 %1867
      %v1869 = vsub.f32 %v1865, %v1868
      %v1870 = vmul.f32 %v1869, 1.442695
      %v1871 = vpow.pop %v1870
      %v1872 = vsel %vm1553, %v1871, 0.0
      %1873 = vadd.xlane.f32.xlu0 %v1872
      %v1874 = vpop.xlane.xlu0 %1873
      %v1875 = vrcp.pop %v1874
      %v1876 = vmul.f32 %v1871, %v1875
      %v1878 = vsel %vm1553, %v1876, 0
      %1880 = vmatprep.subr.mxu0 0.0
      %1881 = vmatpush1.msra.mxu0 0.0
      %1882 = vmatprep.subr.mxu0 0.0
      %1883 = vmatpush1.msra.mxu0 0.0
      %1884 = vmatprep.subr.mxu0 0.0
      %1885 = vmatpush1.msra.mxu0 0.0
      %1886 = vmatprep.subr.mxu0 0.0
      %1887 = vmatpush1.msra.mxu0 0.0
      %1888 = vmatprep.subr.mxu0 0.0
      %1889 = vmatpush1.msra.mxu0 0.0
      %1890 = vmatprep.subr.mxu0 0.0
      %1891 = vmatpush1.msra.mxu0 0.0
      %1892 = vmatprep.subr.mxu0 0.0
      %1893 = vmatpush1.msra.mxu0 0.0
      %1894 = vmatprep.subr.mxu0 0.0
      %1895 = vmatpush1.msra.mxu0 0.0
      %1896 = vmatprep.subr.mxu0 0.0
      %1897 = vmatpush1.msra.mxu0 0.0
      %1898 = vmatprep.subr.mxu0 0.0
      %1899 = vmatpush1.msra.mxu0 0.0
      %1900 = vmatprep.subr.mxu0 0.0
      %1901 = vmatpush1.msra.mxu0 0.0
      %1902 = vmatprep.subr.mxu0 0.0
      %1903 = vmatpush1.msra.mxu0 0.0
      %1904 = vmatprep.subr.mxu0 0.0
      %1905 = vmatpush1.msra.mxu0 0.0
      %1906 = vmatprep.subr.mxu0 0.0
      %1907 = vmatpush1.msra.mxu0 0.0
      %1908 = vmatprep.subr.mxu0 0.0
      %1909 = vmatpush1.msra.mxu0 0.0
      %1910 = vmatprep.subr.mxu0 0.0
      %1911 = vmatpush1.msra.mxu0 %v1477
      %1912 = vmatprep.subr.mxu0 0.0
      %1913 = vmatpush2.msra.mxu0 0.0
      %1914 = vmatprep.subr.mxu0 0.0
      %1915 = vmatpush2.msra.mxu0 0.0
      %1916 = vmatprep.subr.mxu0 0.0
      %1917 = vmatpush2.msra.mxu0 0.0
      %1918 = vmatprep.subr.mxu0 0.0
      %1919 = vmatpush2.msra.mxu0 0.0
      %1920 = vmatprep.subr.mxu0 0.0
      %1921 = vmatpush2.msra.mxu0 0.0
      %1922 = vmatprep.subr.mxu0 0.0
      %1923 = vmatpush2.msra.mxu0 0.0
      %1924 = vmatprep.subr.mxu0 0.0
      %1925 = vmatpush2.msra.mxu0 0.0
      %1926 = vmatprep.subr.mxu0 0.0
      %1927 = vmatpush2.msra.mxu0 0.0
      %1928 = vmatprep.subr.mxu0 0.0
      %1929 = vmatpush2.msra.mxu0 0.0
      %1930 = vmatprep.subr.mxu0 0.0
      %1931 = vmatpush2.msra.mxu0 0.0
      %1932 = vmatprep.subr.mxu0 0.0
      %1933 = vmatpush2.msra.mxu0 0.0
      %1934 = vmatprep.subr.mxu0 0.0
      %1935 = vmatpush2.msra.mxu0 0.0
      %1936 = vmatprep.subr.mxu0 0.0
      %1937 = vmatpush2.msra.mxu0 0.0
      %1938 = vmatprep.subr.mxu0 0.0
      %1939 = vmatpush2.msra.mxu0 0.0
      %1940 = vmatprep.subr.mxu0 0.0
      %1941 = vmatpush2.msra.mxu0 0.0
      %1942 = vmatprep.subr.mxu0 0.0
      %1943 = vmatpush2.msra.mxu0 0.0
      %1944 = vmatprep.mubr.f32.mxu0 0.0
      %1945 = vmatmul.mubr.f32.gmra.mxu0 %v1878
      %v1946 = vpop.f32.mrf.mxu0
      %v1947 = vadd.f32 0.0, %v1946
      %v1948 = vpop.f32.mrf.mxu0
      %1949 = vdwg.mxu0
      %1950 = vmatprep.subr.mxu0 0.0
      %1951 = vmatpush1.xpose.msra.mxu0 0.0
      %1952 = vmatprep.subr.mxu0 0.0
      %1953 = vmatpush1.xpose.msra.mxu0 0.0
      %1954 = vmatprep.subr.mxu0 0.0
      %1955 = vmatpush1.xpose.msra.mxu0 0.0
      %1956 = vmatprep.subr.mxu0 0.0
      %1957 = vmatpush1.xpose.msra.mxu0 0.0
      %1958 = vmatprep.subr.mxu0 0.0
      %1959 = vmatpush1.xpose.msra.mxu0 0.0
      %1960 = vmatprep.subr.mxu0 0.0
      %1961 = vmatpush1.xpose.msra.mxu0 0.0
      %1962 = vmatprep.subr.mxu0 0.0
      %1963 = vmatpush1.xpose.msra.mxu0 0.0
      %1964 = vmatprep.subr.mxu0 0.0
      %1965 = vmatpush1.xpose.msra.mxu0 0.0
      %1966 = vmatprep.subr.mxu0 0.0
      %1967 = vmatpush1.xpose.msra.mxu0 0.0
      %1968 = vmatprep.subr.mxu0 0.0
      %1969 = vmatpush1.xpose.msra.mxu0 0.0
      %1970 = vmatprep.subr.mxu0 0.0
      %1971 = vmatpush1.xpose.msra.mxu0 0.0
      %1972 = vmatprep.subr.mxu0 0.0
      %1973 = vmatpush1.xpose.msra.mxu0 0.0
      %1974 = vmatprep.subr.mxu0 0.0
      %1975 = vmatpush1.xpose.msra.mxu0 0.0
      %1976 = vmatprep.subr.mxu0 0.0
      %1977 = vmatpush1.xpose.msra.mxu0 0.0
      %1978 = vmatprep.subr.mxu0 0.0
      %1979 = vmatpush1.xpose.msra.mxu0 0.0
      %1980 = vmatprep.subr.mxu0 0.0
      %1981 = vmatpush1.xpose.msra.mxu0 %v1337
      %1982 = vmatprep.subr.mxu0 0.0
      %1983 = vmatpush2.xpose.msra.mxu0 0.0
      %1984 = vmatprep.subr.mxu0 0.0
      %1985 = vmatpush2.xpose.msra.mxu0 0.0
      %1986 = vmatprep.subr.mxu0 0.0
      %1987 = vmatpush2.xpose.msra.mxu0 0.0
      %1988 = vmatprep.subr.mxu0 0.0
      %1989 = vmatpush2.xpose.msra.mxu0 0.0
      %1990 = vmatprep.subr.mxu0 0.0
      %1991 = vmatpush2.xpose.msra.mxu0 0.0
      %1992 = vmatprep.subr.mxu0 0.0
      %1993 = vmatpush2.xpose.msra.mxu0 0.0
      %1994 = vmatprep.subr.mxu0 0.0
      %1995 = vmatpush2.xpose.msra.mxu0 0.0
      %1996 = vmatprep.subr.mxu0 0.0
      %1997 = vmatpush2.xpose.msra.mxu0 0.0
      %1998 = vmatprep.subr.mxu0 0.0
      %1999 = vmatpush2.xpose.msra.mxu0 0.0
      %2000 = vmatprep.subr.mxu0 0.0
      %2001 = vmatpush2.xpose.msra.mxu0 0.0
      %2002 = vmatprep.subr.mxu0 0.0
      %2003 = vmatpush2.xpose.msra.mxu0 0.0
      %2004 = vmatprep.subr.mxu0 0.0
      %2005 = vmatpush2.xpose.msra.mxu0 0.0
      %2006 = vmatprep.subr.mxu0 0.0
      %2007 = vmatpush2.xpose.msra.mxu0 0.0
      %2008 = vmatprep.subr.mxu0 0.0
      %2009 = vmatpush2.xpose.msra.mxu0 0.0
      %2010 = vmatprep.subr.mxu0 0.0
      %2011 = vmatpush2.xpose.msra.mxu0 0.0
      %2012 = vmatprep.subr.mxu0 0.0
      %2013 = vmatpush2.xpose.msra.mxu0 0.0
      %2014 = vmatprep.mubr.f32.mxu0 0.0
      %2015 = vmatmul.mubr.f32.gmra.mxu0 %v1195
      %v2016 = vpop.f32.mrf.mxu0
      %v2017 = vadd.f32 0.0, %v2016
      %v2018 = vpop.f32.mrf.mxu0
      %2019 = vdwg.mxu0
      %v2020 = vmul.f32 %v2017, 0.35355338
      %v2021 = vadd.f32 %v2020, %v665
      %v2022 = vsel %vm1553, %v2021, -inf
      %2023 = vmax.xlane.f32.xlu0 %v2022
      %v2024 = vpop.xlane.xlu0 %2023
      %v2025 = vsub.f32 %v2021, %v2024
      %v2026 = vmul.f32 %v2025, 1.442695
      %v2027 = vpow.pop %v2026
      %v2028 = vsel %vm1553, %v2027, 0.0
      %2029 = vadd.xlane.f32.xlu0 %v2028
      %v2030 = vpop.xlane.xlu0 %2029
      %v2031 = vrcp.pop %v2030
      %v2032 = vmul.f32 %v2027, %v2031
      %v2034 = vsel %vm1553, %v2032, 0
      %2036 = vmatprep.subr.mxu0 0.0
      %2037 = vmatpush1.msra.mxu0 0.0
      %2038 = vmatprep.subr.mxu0 0.0
      %2039 = vmatpush1.msra.mxu0 0.0
      %2040 = vmatprep.subr.mxu0 0.0
      %2041 = vmatpush1.msra.mxu0 0.0
      %2042 = vmatprep.subr.mxu0 0.0
      %2043 = vmatpush1.msra.mxu0 0.0
      %2044 = vmatprep.subr.mxu0 0.0
      %2045 = vmatpush1.msra.mxu0 0.0
      %2046 = vmatprep.subr.mxu0 0.0
      %2047 = vmatpush1.msra.mxu0 0.0
      %2048 = vmatprep.subr.mxu0 0.0
      %2049 = vmatpush1.msra.mxu0 0.0
      %2050 = vmatprep.subr.mxu0 0.0
      %2051 = vmatpush1.msra.mxu0 0.0
      %2052 = vmatprep.subr.mxu0 0.0
      %2053 = vmatpush1.msra.mxu0 0.0
      %2054 = vmatprep.subr.mxu0 0.0
      %2055 = vmatpush1.msra.mxu0 0.0
      %2056 = vmatprep.subr.mxu0 0.0
      %2057 = vmatpush1.msra.mxu0 0.0
      %2058 = vmatprep.subr.mxu0 0.0
      %2059 = vmatpush1.msra.mxu0 0.0
      %2060 = vmatprep.subr.mxu0 0.0
      %2061 = vmatpush1.msra.mxu0 0.0
      %2062 = vmatprep.subr.mxu0 0.0
      %2063 = vmatpush1.msra.mxu0 0.0
      %2064 = vmatprep.subr.mxu0 0.0
      %2065 = vmatpush1.msra.mxu0 0.0
      %2066 = vmatprep.subr.mxu0 0.0
      %2067 = vmatpush1.msra.mxu0 %v1479
      %2068 = vmatprep.subr.mxu0 0.0
      %2069 = vmatpush2.msra.mxu0 0.0
      %2070 = vmatprep.subr.mxu0 0.0
      %2071 = vmatpush2.msra.mxu0 0.0
      %2072 = vmatprep.subr.mxu0 0.0
      %2073 = vmatpush2.msra.mxu0 0.0
      %2074 = vmatprep.subr.mxu0 0.0
      %2075 = vmatpush2.msra.mxu0 0.0
      %2076 = vmatprep.subr.mxu0 0.0
      %2077 = vmatpush2.msra.mxu0 0.0
      %2078 = vmatprep.subr.mxu0 0.0
      %2079 = vmatpush2.msra.mxu0 0.0
      %2080 = vmatprep.subr.mxu0 0.0
      %2081 = vmatpush2.msra.mxu0 0.0
      %2082 = vmatprep.subr.mxu0 0.0
      %2083 = vmatpush2.msra.mxu0 0.0
      %2084 = vmatprep.subr.mxu0 0.0
      %2085 = vmatpush2.msra.mxu0 0.0
      %2086 = vmatprep.subr.mxu0 0.0
      %2087 = vmatpush2.msra.mxu0 0.0
      %2088 = vmatprep.subr.mxu0 0.0
      %2089 = vmatpush2.msra.mxu0 0.0
      %2090 = vmatprep.subr.mxu0 0.0
      %2091 = vmatpush2.msra.mxu0 0.0
      %2092 = vmatprep.subr.mxu0 0.0
      %2093 = vmatpush2.msra.mxu0 0.0
      %2094 = vmatprep.subr.mxu0 0.0
      %2095 = vmatpush2.msra.mxu0 0.0
      %2096 = vmatprep.subr.mxu0 0.0
      %2097 = vmatpush2.msra.mxu0 0.0
      %2098 = vmatprep.subr.mxu0 0.0
      %2099 = vmatpush2.msra.mxu0 0.0
      %2100 = vmatprep.mubr.f32.mxu0 0.0
      %2101 = vmatmul.mubr.f32.gmra.mxu0 %v2034
      %v2102 = vpop.f32.mrf.mxu0
      %v2103 = vadd.f32 0.0, %v2102
      %v2104 = vpop.f32.mrf.mxu0
      %2105 = vdwg.mxu0
      %v2107 = vlaneseq
      %v2108 = vshrl.u32 %v2107, 7
      %v2109 = vsub.s32 0, %v2108
      %v2110 = vrot.slane %v926, %v2109
      %2112 = vmatprep.subr.mxu0 0.0
      %2113 = vmatpush1.msra.mxu0 %v877
      %2114 = vmatprep.subr.mxu0 0.0
      %2115 = vmatpush1.msra.mxu0 %v876
      %2116 = vmatprep.subr.mxu0 0.0
      %2117 = vmatpush1.msra.mxu0 %v875
      %2118 = vmatprep.subr.mxu0 0.0
      %2119 = vmatpush1.msra.mxu0 %v874
      %2120 = vmatprep.subr.mxu0 0.0
      %2121 = vmatpush1.msra.mxu0 %v873
      %2122 = vmatprep.subr.mxu0 0.0
      %2123 = vmatpush1.msra.mxu0 %v872
      %2124 = vmatprep.subr.mxu0 0.0
      %2125 = vmatpush1.msra.mxu0 %v871
      %2126 = vmatprep.subr.mxu0 0.0
      %2127 = vmatpush1.msra.mxu0 %v870
      %2128 = vmatprep.subr.mxu0 0.0
      %2129 = vmatpush1.msra.mxu0 %v869
      %2130 = vmatprep.subr.mxu0 0.0
      %2131 = vmatpush1.msra.mxu0 %v868
      %2132 = vmatprep.subr.mxu0 0.0
      %2133 = vmatpush1.msra.mxu0 %v867
      %2134 = vmatprep.subr.mxu0 0.0
      %2135 = vmatpush1.msra.mxu0 %v866
      %2136 = vmatprep.subr.mxu0 0.0
      %2137 = vmatpush1.msra.mxu0 %v865
      %2138 = vmatprep.subr.mxu0 0.0
      %2139 = vmatpush1.msra.mxu0 %v864
      %2140 = vmatprep.subr.mxu0 0.0
      %2141 = vmatpush1.msra.mxu0 %v863
      %2142 = vmatprep.subr.mxu0 0.0
      %2143 = vmatpush1.msra.mxu0 %v862
      %2144 = vmatprep.subr.mxu0 0.0
      %2145 = vmatpush2.msra.mxu0 %v893
      %2146 = vmatprep.subr.mxu0 0.0
      %2147 = vmatpush2.msra.mxu0 %v892
      %2148 = vmatprep.subr.mxu0 0.0
      %2149 = vmatpush2.msra.mxu0 %v891
      %2150 = vmatprep.subr.mxu0 0.0
      %2151 = vmatpush2.msra.mxu0 %v890
      %2152 = vmatprep.subr.mxu0 0.0
      %2153 = vmatpush2.msra.mxu0 %v889
      %2154 = vmatprep.subr.mxu0 0.0
      %2155 = vmatpush2.msra.mxu0 %v888
      %2156 = vmatprep.subr.mxu0 0.0
      %2157 = vmatpush2.msra.mxu0 %v887
      %2158 = vmatprep.subr.mxu0 0.0
      %2159 = vmatpush2.msra.mxu0 %v886
      %2160 = vmatprep.subr.mxu0 0.0
      %2161 = vmatpush2.msra.mxu0 %v885
      %2162 = vmatprep.subr.mxu0 0.0
      %2163 = vmatpush2.msra.mxu0 %v884
      %2164 = vmatprep.subr.mxu0 0.0
      %2165 = vmatpush2.msra.mxu0 %v883
      %2166 = vmatprep.subr.mxu0 0.0
      %2167 = vmatpush2.msra.mxu0 %v882
      %2168 = vmatprep.subr.mxu0 0.0
      %2169 = vmatpush2.msra.mxu0 %v881
      %2170 = vmatprep.subr.mxu0 0.0
      %2171 = vmatpush2.msra.mxu0 %v880
      %2172 = vmatprep.subr.mxu0 0.0
      %2173 = vmatpush2.msra.mxu0 %v879
      %2174 = vmatprep.subr.mxu0 0.0
      %2175 = vmatpush2.msra.mxu0 %v878
      %2176 = vmatprep.mubr.f32.mxu0 %v1791
      %2177 = vmatmul.mubr.f32.gmra.mxu0 %v1635
      %v2178 = vpop.f32.mrf.mxu0
      %v2179 = vadd.f32 %v2110, %v2178
      %v2180 = vpop.f32.mrf.mxu0
      %2181 = vdwg.mxu0
      %2182 = vmatprep.subr.mxu0 0.0
      %2183 = vmatpush1.msra.mxu0 %v909
      %2184 = vmatprep.subr.mxu0 0.0
      %2185 = vmatpush1.msra.mxu0 %v908
      %2186 = vmatprep.subr.mxu0 0.0
      %2187 = vmatpush1.msra.mxu0 %v907
      %2188 = vmatprep.subr.mxu0 0.0
      %2189 = vmatpush1.msra.mxu0 %v906
      %2190 = vmatprep.subr.mxu0 0.0
      %2191 = vmatpush1.msra.mxu0 %v905
      %2192 = vmatprep.subr.mxu0 0.0
      %2193 = vmatpush1.msra.mxu0 %v904
      %2194 = vmatprep.subr.mxu0 0.0
      %2195 = vmatpush1.msra.mxu0 %v903
      %2196 = vmatprep.subr.mxu0 0.0
      %2197 = vmatpush1.msra.mxu0 %v902
      %2198 = vmatprep.subr.mxu0 0.0
      %2199 = vmatpush1.msra.mxu0 %v901
      %2200 = vmatprep.subr.mxu0 0.0
      %2201 = vmatpush1.msra.mxu0 %v900
      %2202 = vmatprep.subr.mxu0 0.0
      %2203 = vmatpush1.msra.mxu0 %v899
      %2204 = vmatprep.subr.mxu0 0.0
      %2205 = vmatpush1.msra.mxu0 %v898
      %2206 = vmatprep.subr.mxu0 0.0
      %2207 = vmatpush1.msra.mxu0 %v897
      %2208 = vmatprep.subr.mxu0 0.0
      %2209 = vmatpush1.msra.mxu0 %v896
      %2210 = vmatprep.subr.mxu0 0.0
      %2211 = vmatpush1.msra.mxu0 %v895
      %2212 = vmatprep.subr.mxu0 0.0
      %2213 = vmatpush1.msra.mxu0 %v894
      %2214 = vmatprep.subr.mxu0 0.0
      %2215 = vmatpush2.msra.mxu0 %v925
      %2216 = vmatprep.subr.mxu0 0.0
      %2217 = vmatpush2.msra.mxu0 %v924
      %2218 = vmatprep.subr.mxu0 0.0
      %2219 = vmatpush2.msra.mxu0 %v923
      %2220 = vmatprep.subr.mxu0 0.0
      %2221 = vmatpush2.msra.mxu0 %v922
      %2222 = vmatprep.subr.mxu0 0.0
      %2223 = vmatpush2.msra.mxu0 %v921
      %2224 = vmatprep.subr.mxu0 0.0
      %2225 = vmatpush2.msra.mxu0 %v920
      %2226 = vmatprep.subr.mxu0 0.0
      %2227 = vmatpush2.msra.mxu0 %v919
      %2228 = vmatprep.subr.mxu0 0.0
      %2229 = vmatpush2.msra.mxu0 %v918
      %2230 = vmatprep.subr.mxu0 0.0
      %2231 = vmatpush2.msra.mxu0 %v917
      %2232 = vmatprep.subr.mxu0 0.0
      %2233 = vmatpush2.msra.mxu0 %v916
      %2234 = vmatprep.subr.mxu0 0.0
      %2235 = vmatpush2.msra.mxu0 %v915
      %2236 = vmatprep.subr.mxu0 0.0
      %2237 = vmatpush2.msra.mxu0 %v914
      %2238 = vmatprep.subr.mxu0 0.0
      %2239 = vmatpush2.msra.mxu0 %v913
      %2240 = vmatprep.subr.mxu0 0.0
      %2241 = vmatpush2.msra.mxu0 %v912
      %2242 = vmatprep.subr.mxu0 0.0
      %2243 = vmatpush2.msra.mxu0 %v911
      %2244 = vmatprep.subr.mxu0 0.0
      %2245 = vmatpush2.msra.mxu0 %v910
      %2246 = vmatprep.mubr.f32.mxu0 %v2103
      %2247 = vmatmul.mubr.f32.gmra.mxu0 %v1947
      %v2248 = vpop.f32.mrf.mxu0
      %v2249 = vadd.f32 %v2179, %v2248
      %v2250 = vpop.f32.mrf.mxu0
      %2251 = vdwg.mxu0
      %v2252 = vadd.f32 %v963, %v2249
      %2253 = vadd.xlane.f32.xlu0 %v2252
      %v2254 = vpop.xlane.xlu0 %2253
      %v2255 = vmul.f32 %v2254, 0.03125
      %v2256 = vsub.f32 %v2252, %v2255
      %v2257 = vmul.f32 %v2256, %v2256
      %v2258 = vmul.f32 %v2257, %v966
      %2259 = vadd.xlane.f32.xlu0 %v2258
      %v2260 = vpop.xlane.xlu0 %2259
      %v2261 = vmul.f32 %v2260, 0.03125
      %v2262 = vadd.f32 %v2261, 1e-05
      %v2263 = vrsqrt.pop %v2262
      %v2264 = vmul.f32 %v2256, %v2263
      %v2266 = vlaneseq
      %v2267 = vshrl.u32 %v2266, 7
      %v2268 = vsub.s32 0, %v2267
      %v2269 = vrot.slane %v927, %v2268
      %v2271 = vmul.f32 %v2264, %v2269
      %v2273 = vlaneseq
      %v2274 = vshrl.u32 %v2273, 7
      %v2275 = vsub.s32 0, %v2274
      %v2276 = vrot.slane %v928, %v2275
      %v2278 = vadd.f32 %v2271, %v2276
      %v2280 = vlaneseq
      %v2281 = vshrl.u32 %v2280, 7
      %v2282 = vsub.s32 0, %v2281
      %v2283 = vrot.slane %v945, %v2282
      %2285 = vmatprep.subr.mxu0 0.0
      %2286 = vmatpush1.msra.mxu0 %v944
      %2287 = vmatprep.subr.mxu0 0.0
      %2288 = vmatpush1.msra.mxu0 %v943
      %2289 = vmatprep.subr.mxu0 0.0
      %2290 = vmatpush1.msra.mxu0 %v942
      %2291 = vmatprep.subr.mxu0 0.0
      %2292 = vmatpush1.msra.mxu0 %v941
      %2293 = vmatprep.subr.mxu0 0.0
      %2294 = vmatpush1.msra.mxu0 %v940
      %2295 = vmatprep.subr.mxu0 0.0
      %2296 = vmatpush1.msra.mxu0 %v939
      %2297 = vmatprep.subr.mxu0 0.0
      %2298 = vmatpush1.msra.mxu0 %v938
      %2299 = vmatprep.subr.mxu0 0.0
      %2300 = vmatpush1.msra.mxu0 %v937
      %2301 = vmatprep.subr.mxu0 0.0
      %2302 = vmatpush1.msra.mxu0 %v936
      %2303 = vmatprep.subr.mxu0 0.0
      %2304 = vmatpush1.msra.mxu0 %v935
      %2305 = vmatprep.subr.mxu0 0.0
      %2306 = vmatpush1.msra.mxu0 %v934
      %2307 = vmatprep.subr.mxu0 0.0
      %2308 = vmatpush1.msra.mxu0 %v933
      %2309 = vmatprep.subr.mxu0 0.0
      %2310 = vmatpush1.msra.mxu0 %v932
      %2311 = vmatprep.subr.mxu0 0.0
      %2312 = vmatpush1.msra.mxu0 %v931
      %2313 = vmatprep.subr.mxu0 0.0
      %2314 = vmatpush1.msra.mxu0 %v930
      %2315 = vmatprep.subr.mxu0 0.0
      %2316 = vmatpush1.msra.mxu0 %v929
      %2317 = vmatprep.subr.mxu0 0.0
      %2318 = vmatpush2.msra.mxu0 0.0
      %2319 = vmatprep.subr.mxu0 0.0
      %2320 = vmatpush2.msra.mxu0 0.0
      %2321 = vmatprep.subr.mxu0 0.0
      %2322 = vmatpush2.msra.mxu0 0.0
      %2323 = vmatprep.subr.mxu0 0.0
      %2324 = vmatpush2.msra.mxu0 0.0
      %2325 = vmatprep.subr.mxu0 0.0
      %2326 = vmatpush2.msra.mxu0 0.0
      %2327 = vmatprep.subr.mxu0 0.0
      %2328 = vmatpush2.msra.mxu0 0.0
      %2329 = vmatprep.subr.mxu0 0.0
      %2330 = vmatpush2.msra.mxu0 0.0
      %2331 = vmatprep.subr.mxu0 0.0
      %2332 = vmatpush2.msra.mxu0 0.0
      %2333 = vmatprep.subr.mxu0 0.0
      %2334 = vmatpush2.msra.mxu0 0.0
      %2335 = vmatprep.subr.mxu0 0.0
      %2336 = vmatpush2.msra.mxu0 0.0
      %2337 = vmatprep.subr.mxu0 0.0
      %2338 = vmatpush2.msra.mxu0 0.0
      %2339 = vmatprep.subr.mxu0 0.0
      %2340 = vmatpush2.msra.mxu0 0.0
      %2341 = vmatprep.subr.mxu0 0.0
      %2342 = vmatpush2.msra.mxu0 0.0
      %2343 = vmatprep.subr.mxu0 0.0
      %2344 = vmatpush2.msra.mxu0 0.0
      %2345 = vmatprep.subr.mxu0 0.0
      %2346 = vmatpush2.msra.mxu0 0.0
      %2347 = vmatprep.subr.mxu0 0.0
      %2348 = vmatpush2.msra.mxu0 0.0
      %2349 = vmatprep.mubr.f32.mxu0 0.0
      %2350 = vmatmul.mubr.f32.gmra.mxu0 %v2278
      %v2351 = vpop.f32.mrf.mxu0
      %v2352 = vadd.f32 %v2283, %v2351
      %v2353 = vpop.f32.mrf.mxu0
      %2354 = vdwg.mxu0
      %v2355 = vmul.f32 %v2352, 1.702
      %v2356 = vxor.u32 %v2355, 2147483648
      %v2357 = vmul.f32 %v2356, 1.442695
      %v2358 = vpow.pop %v2357
      %v2359 = vadd.f32 %v2358, 1.0
      %v2360 = vrcp.pop %v2359
      %v2361 = vmul.f32 1.0, %v2360
      %v2362 = vmul.f32 %v2352, %v2361
      %v2364 = vlaneseq
      %v2365 = vshrl.u32 %v2364, 7
      %v2366 = vsub.s32 0, %v2365
      %v2367 = vrot.slane %v962, %v2366
      %2369 = vmatprep.subr.mxu0 0.0
      %2370 = vmatpush1.msra.mxu0 %v961
      %2371 = vmatprep.subr.mxu0 0.0
      %2372 = vmatpush1.msra.mxu0 %v960
      %2373 = vmatprep.subr.mxu0 0.0
      %2374 = vmatpush1.msra.mxu0 %v959
      %2375 = vmatprep.subr.mxu0 0.0
      %2376 = vmatpush1.msra.mxu0 %v958
      %2377 = vmatprep.subr.mxu0 0.0
      %2378 = vmatpush1.msra.mxu0 %v957
      %2379 = vmatprep.subr.mxu0 0.0
      %2380 = vmatpush1.msra.mxu0 %v956
      %2381 = vmatprep.subr.mxu0 0.0
      %2382 = vmatpush1.msra.mxu0 %v955
      %2383 = vmatprep.subr.mxu0 0.0
      %2384 = vmatpush1.msra.mxu0 %v954
      %2385 = vmatprep.subr.mxu0 0.0
      %2386 = vmatpush1.msra.mxu0 %v953
      %2387 = vmatprep.subr.mxu0 0.0
      %2388 = vmatpush1.msra.mxu0 %v952
      %2389 = vmatprep.subr.mxu0 0.0
      %2390 = vmatpush1.msra.mxu0 %v951
      %2391 = vmatprep.subr.mxu0 0.0
      %2392 = vmatpush1.msra.mxu0 %v950
      %2393 = vmatprep.subr.mxu0 0.0
      %2394 = vmatpush1.msra.mxu0 %v949
      %2395 = vmatprep.subr.mxu0 0.0
      %2396 = vmatpush1.msra.mxu0 %v948
      %2397 = vmatprep.subr.mxu0 0.0
      %2398 = vmatpush1.msra.mxu0 %v947
      %2399 = vmatprep.subr.mxu0 0.0
      %2400 = vmatpush1.msra.mxu0 %v946
      %2401 = vmatprep.subr.mxu0 0.0
      %2402 = vmatpush2.msra.mxu0 0.0
      %2403 = vmatprep.subr.mxu0 0.0
      %2404 = vmatpush2.msra.mxu0 0.0
      %2405 = vmatprep.subr.mxu0 0.0
      %2406 = vmatpush2.msra.mxu0 0.0
      %2407 = vmatprep.subr.mxu0 0.0
      %2408 = vmatpush2.msra.mxu0 0.0
      %2409 = vmatprep.subr.mxu0 0.0
      %2410 = vmatpush2.msra.mxu0 0.0
      %2411 = vmatprep.subr.mxu0 0.0
      %2412 = vmatpush2.msra.mxu0 0.0
      %2413 = vmatprep.subr.mxu0 0.0
      %2414 = vmatpush2.msra.mxu0 0.0
      %2415 = vmatprep.subr.mxu0 0.0
      %2416 = vmatpush2.msra.mxu0 0.0
      %2417 = vmatprep.subr.mxu0 0.0
      %2418 = vmatpush2.msra.mxu0 0.0
      %2419 = vmatprep.subr.mxu0 0.0
      %2420 = vmatpush2.msra.mxu0 0.0
      %2421 = vmatprep.subr.mxu0 0.0
      %2422 = vmatpush2.msra.mxu0 0.0
      %2423 = vmatprep.subr.mxu0 0.0
      %2424 = vmatpush2.msra.mxu0 0.0
      %2425 = vmatprep.subr.mxu0 0.0
      %2426 = vmatpush2.msra.mxu0 0.0
      %2427 = vmatprep.subr.mxu0 0.0
      %2428 = vmatpush2.msra.mxu0 0.0
      %2429 = vmatprep.subr.mxu0 0.0
      %2430 = vmatpush2.msra.mxu0 0.0
      %2431 = vmatprep.subr.mxu0 0.0
      %2432 = vmatpush2.msra.mxu0 0.0
      %2433 = vmatprep.mubr.f32.mxu0 0.0
      %2434 = vmatmul.mubr.f32.gmra.mxu0 %v2362
      %v2435 = vpop.f32.mrf.mxu0
      %v2436 = vadd.f32 %v2367, %v2435
      %v2437 = vpop.f32.mrf.mxu0
      %2438 = vdwg.mxu0
      %v2439 = vadd.f32 %v2252, %v2436
      %2440 = vst [vmem:[#allocation2] sm:$0xff] %v2439
      %p2441 = scmp.eq.s32.totalorder %s36, 1
      // Predicated region
      $region77: #{clip_forward.4} parent=71 // pred_check
        %p2442 = pneg %p2441
      $region78: #{clip_forward.4} parent=71 // pred_check_branch
        %2444 = sbr.rel (%p2442) target = $region80
      $region79: #{clip_forward.4} parent=71 // pred_region
        %2445 = vst [vmem:[%s649] sm:$0xff] %v2439
      $region80: #{clip_forward.4} parent=71 // pred_fallthru
        _
      %p2446 = scmp.lt.s32.totalorder %s35, 1
      %s2447 = scalar_select %p2446, %s35, 1
      %s2448 = smul.addr %s2447, 8
      %s2449 = scalar_lea.vmem %s14, %s2448
      // Predicated region
      $region81: #{clip_forward.4} parent=71 // pred_check
        %p2450 = pneg %p399
      $region82: #{clip_forward.4} parent=71 // pred_check_branch
        %2452 = sbr.rel (%p2450) target = $region84
      $region83: #{clip_forward.4} parent=71 // pred_region
        _
      $region84: #{clip_forward.4} parent=71 // pred_fallthru
        _
    $region72: #{clip_forward.4} parent=5 // pred_fallthru
      _
    %p2453 = scmp.le.s32.totalorder 2, %s26
    // Predicated region
    $region85: #{clip_forward.4} parent=5 // pred_check
      %p2454 = pneg %p2453
    $region86: #{clip_forward.4} parent=5 // pred_check_branch
      %2456 = sbr.rel (%p2454) target = $region88
    $region87: #{clip_forward.4} parent=5 // pred_region
      %s2457 = ssub.s32 %s26, 2
      // Predicated region
      $region89: #{clip_forward.4} parent=87 // pred_check
        %p2458 = pneg %p405
      $region90: #{clip_forward.4} parent=87 // pred_check_branch
        %2460 = sbr.rel (%p2458) target = $region92
      $region91: #{clip_forward.4} parent=87 // pred_region
        %p2461 = scmp.lt.s32.totalorder %s37, 1
        %s2462 = scalar_select %p2461, %s37, 1
        %s2463 = smul.addr %s2462, 8
        %s2464 = scalar_lea.vmem %s14, %s2463
      $region92: #{clip_forward.4} parent=87 // pred_fallthru
        _
    $region88: #{clip_forward.4} parent=5 // pred_fallthru
      _
  $region6: #{clip_forward.4} parent=0 // loop_footer
    %s30 = sadd.s32 1, %s26
  $region7: #{clip_forward.4} parent=0 // loop_footer_branch
    %25 = sbr.rel target = $region3
  $region8: #{clip_forward.4} parent=0 // loop_exit
    _

// kernel: clip_forward.3
$region0: #{clip_forward.3}
  #allocation0 [shape = 'u32[]', space=smem, size = 0x4, offset = 0x4, fixed_abs, tag = 'smem constant byte address 0x4 - core index']
  #allocation1 [shape = 'u32[144,128]{1,0:T(1,128)}', space=vmem, size = 0x12000, scoped, tag = 'internal scratch']
  #allocation2 [shape = 'f32[8,128]{1,0:T(8,128)}', space=vmem, size = 0x1000, scoped, tag = 'scratch operand']
  %s0 = inlined_call_operand.vmem [shape: f32[16,256], index: 0, kind: input, shape index: {}]
  %s1 = inlined_call_operand.hbm [shape: f32[256,128], index: 1, kind: input, shape index: {}]
  %s2 = inlined_call_operand.hbm [shape: f32[8,128], index: 2, kind: input, shape index: {}]
  %s3 = inlined_call_operand.hbm [shape: f32[1,128], index: 3, kind: input, shape index: {}]
  %s4 = inlined_call_operand.hbm [shape: f32[1,128], index: 4, kind: input, shape index: {}]
  %s5 = inlined_call_operand.hbm [shape: f32[2,1,128], index: 5, kind: input, shape index: {}]
  %s6 = inlined_call_operand.hbm [shape: f32[2,1,128], index: 6, kind: input, shape index: {}]
  %s7 = inlined_call_operand.hbm [shape: f32[2,128,1536], index: 7, kind: input, shape index: {}]
  %s8 = inlined_call_operand.hbm [shape: f32[2,1,1536], index: 8, kind: input, shape index: {}]
  %s9 = inlined_call_operand.hbm [shape: f32[2,512,128], index: 9, kind: input, shape index: {}]
  %s10 = inlined_call_operand.hbm [shape: f32[2,1,128], index: 10, kind: input, shape index: {}]
  %s11 = inlined_call_operand.hbm [shape: f32[2,1,128], index: 11, kind: input, shape index: {}]
  %s12 = inlined_call_operand.hbm [shape: f32[2,1,128], index: 12, kind: input, shape index: {}]
  %s13 = inlined_call_operand.hbm [shape: f32[2,128,128], index: 13, kind: input, shape index: {}]
  %s14 = inlined_call_operand.hbm [shape: f32[2,1,128], index: 14, kind: input, shape index: {}]
  %s15 = inlined_call_operand.hbm [shape: f32[2,128,128], index: 15, kind: input, shape index: {}]
  %s16 = inlined_call_operand.hbm [shape: f32[2,1,128], index: 16, kind: input, shape index: {}]
  %s17 = inlined_call_operand.vmem [shape: f32[16,128], index: 17, kind: output, shape index: {}]
  %s18 = sld [smem:[#allocation0]]
  $region173: #{clip_forward.3} parent=0
    _
  %s20 = ssub.s32 1, %s18
  %s21 = scalar_select 0, %s20, %s18
  $region1: #{clip_forward.3} parent=0
    #allocation3 [shape = 'u8[131072]{0}', space=vmem, size = 0x20000, scoped, tag = 'input window, operand 1, single buffered']
    #allocation4 [shape = 's32[2]{0}', space=sflag, size = 0x8, scoped, tag = 'scoped memory for clip_forward.3']
    #allocation5 [shape = 'u8[4096]{0}', space=vmem, size = 0x1000, scoped, tag = 'input window, operand 2, single buffered']
    #allocation6 [shape = 's32[1]{0}', space=sflag, size = 0x4, scoped, tag = 'scoped memory for clip_forward.3']
    #allocation7 [shape = 'u8[512]{0}', space=vmem, size = 0x400, scoped, tag = 'input window, operand 3, single buffered']
    #allocation8 [shape = 'u8[512]{0}', space=vmem, size = 0x400, scoped, tag = 'input window, operand 4, single buffered']
    #allocation9 [shape = 's32[1]{0}', space=sflag, size = 0x4, scoped, tag = 'scoped memory for clip_forward.3']
    #allocation10 [shape = 'u8[1024]{0}', space=vmem, size = 0x400, scoped, tag = 'input window, operand 5']
    #allocation11 [shape = 'u8[1024]{0}', space=vmem, size = 0x400, scoped, tag = 'input window, operand 6']
    #allocation12 [shape = 'u8[1572864]{0}', space=vmem, size = 0x180000, scoped, tag = 'input window, operand 7']
    #allocation13 [shape = 'u8[12288]{0}', space=vmem, size = 0x3000, scoped, tag = 'input window, operand 8']
    #allocation14 [shape = 'u8[524288]{0}', space=vmem, size = 0x80000, scoped, tag = 'input window, operand 9']
    #allocation15 [shape = 'u8[1024]{0}', space=vmem, size = 0x400, scoped, tag = 'input window, operand 10']
    #allocation16 [shape = 'u8[1024]{0}', space=vmem, size = 0x400, scoped, tag = 'input window, operand 11']
    #allocation17 [shape = 'u8[1024]{0}', space=vmem, size = 0x400, scoped, tag = 'input window, operand 12']
    #allocation18 [shape = 'u8[131072]{0}', space=vmem, size = 0x20000, scoped, tag = 'input window, operand 13']
    #allocation19 [shape = 'u8[1024]{0}', space=vmem, size = 0x400, scoped, tag = 'input window, operand 14']
    #allocation20 [shape = 'u8[131072]{0}', space=vmem, size = 0x20000, scoped, tag = 'input window, operand 15']
    #allocation21 [shape = 'u8[1024]{0}', space=vmem, size = 0x400, scoped, tag = 'input window, operand 16']
    %22 = vsyncpa [#allocation4], 0
    %23 = vsyncpa [#allocation6], 0
    %24 = vsyncpa [#allocation9], 0
    loop: start=0, step=1, limit=6
    $region2: #{clip_forward.3} parent=1 // loop_pre_header
      _
    $region3: #{clip_forward.3} parent=1 // loop_header
      %s26 = sphi 0, %s30
      %p27 = scmp.ge.s32.totalorder %s26, 6
      %s33 = sphi 0, %s45
      %s34 = sphi 0, %s41
      %s35 = sphi 0, %s33
      %s36 = sphi 0, %s34
      %s37 = sphi 0, %s35
      %s38 = sphi 0, %s36
      %s48 = sphi 0, %s50
      %s51 = sphi 0, %s48
      %s52 = sphi 0, %s51
      %s68 = sphi 0, %s52
      %s72 = sphi 0, %s72
      %s74 = sphi 0, %s72
      %s75 = sphi 0, %s74
      %s89 = sphi 0, %s75
      %s93 = sphi 0, %s93
      %s95 = sphi 0, %s93
      %s96 = sphi 0, %s95
      %s110 = sphi 0, %s96
      %s114 = sphi 0, %s114
      %s116 = sphi 0, %s114
      %s117 = sphi 0, %s116
      %s131 = sphi 0, %s117
      %s135 = sphi 0, %s135
      %s137 = sphi 0, %s135
      %s138 = sphi 0, %s137
      %s152 = sphi 0, %s138
      %s158 = sphi 0, %s160
      %s161 = sphi 0, %s158
      %s162 = sphi 0, %s161
      %s178 = sphi 0, %s162
      %s184 = sphi 0, %s186
      %s187 = sphi 0, %s184
      %s188 = sphi 0, %s187
      %s204 = sphi 0, %s188
      %s210 = sphi 0, %s212
      %s213 = sphi 0, %s210
      %s214 = sphi 0, %s213
      %s230 = sphi 0, %s214
      %s236 = sphi 0, %s238
      %s239 = sphi 0, %s236
      %s240 = sphi 0, %s239
      %s256 = sphi 0, %s240
      %s262 = sphi 0, %s264
      %s265 = sphi 0, %s262
      %s266 = sphi 0, %s265
      %s282 = sphi 0, %s266
      %s288 = sphi 0, %s290
      %s291 = sphi 0, %s288
      %s292 = sphi 0, %s291
      %s308 = sphi 0, %s292
      %s314 = sphi 0, %s316
      %s317 = sphi 0, %s314
      %s318 = sphi 0, %s317
      %s334 = sphi 0, %s318
      %s340 = sphi 0, %s342
      %s343 = sphi 0, %s340
      %s344 = sphi 0, %s343
      %s360 = sphi 0, %s344
      %s366 = sphi 0, %s368
      %s369 = sphi 0, %s366
      %s370 = sphi 0, %s369
      %s386 = sphi 0, %s370
      %s392 = sphi 0, %s394
      %s395 = sphi 0, %s392
      %s396 = sphi 0, %s395
      %s412 = sphi 0, %s396
      %s418 = sphi 0, %s420
      %s421 = sphi 0, %s418
      %s422 = sphi 0, %s421
      %s438 = sphi 0, %s422
      %s444 = sphi 0, %s446
      %s447 = sphi 0, %s444
      %s448 = sphi 0, %s447
      %s464 = sphi 0, %s448
      %s470 = sphi 0, %s472
      %s473 = sphi 0, %s470
      %s474 = sphi 0, %s473
      %s490 = sphi 0, %s474
    $region4: #{clip_forward.3} parent=1 // loop_header_branch
      %29 = sbr.rel (%p27) target = $region8
    $region5: #{clip_forward.3} parent=1 // loop_body
      %s31 = ssub.s32 %s26, 1
      %s32 = ssub.s32 %s26, 2
      %s39 = sadd.s32 1, %s34
      %p40 = scmp.ge.s32.totalorder %s39, 2
      %s41 = scalar_select %p40, 0, %s39
      %s42 = sadd.s32 1, %s33
      %s43 = scalar_select %p40, %s42, %s33
      %p44 = scmp.ge.s32.totalorder %s43, 2
      %s45 = scalar_select %p44, 0, %s43
      %s46 = ssub.s32 %s33, %s45
      %p47 = scmp.eq.s32.totalorder %s46, 0
      %s49 = sadd.s32 %s48, 1
      %s50 = scalar_select %p47, %s48, %s49
      %p53 = pneg %p47
      %p54 = scmp.eq.s32.totalorder %s26, 3
      %p55 = por %p53, %p54
      %p56 = scmp.ne.s32.totalorder %s48, %s51
      %p57 = scmp.eq.s32.totalorder %s26, 0
      %p58 = por %p56, %p57
      %p59 = scmp.ne.s32.totalorder %s48, %s51
      %p60 = scmp.eq.s32.totalorder %s31, 3
      %p61 = por %p59, %p60
      %p62 = scmp.ne.s32.totalorder %s51, %s52
      %p63 = scmp.eq.s32.totalorder %s31, 0
      %p64 = por %p62, %p63
      %p65 = scmp.ne.s32.totalorder %s51, %s52
      %p66 = scmp.eq.s32.totalorder %s32, 3
      %p67 = por %p65, %p66
      %p69 = scmp.ne.s32.totalorder %s52, %s68
      %p70 = scmp.eq.s32.totalorder %s32, 0
      %p71 = por %p69, %p70
      %s73 = sadd.s32 %s72, 1
      %p76 = scmp.eq.s32.totalorder %s26, 3
      %p77 = scmp.ne.s32.totalorder %s72, %s74
      %p78 = scmp.eq.s32.totalorder %s26, 0
      %p79 = por %p77, %p78
      %p80 = scmp.ne.s32.totalorder %s72, %s74
      %p81 = scmp.eq.s32.totalorder %s31, 3
      %p82 = por %p80, %p81
      %p83 = scmp.ne.s32.totalorder %s74, %s75
      %p84 = scmp.eq.s32.totalorder %s31, 0
      %p85 = por %p83, %p84
      %p86 = scmp.ne.s32.totalorder %s74, %s75
      %p87 = scmp.eq.s32.totalorder %s32, 3
      %p88 = por %p86, %p87
      %p90 = scmp.ne.s32.totalorder %s75, %s89
      %p91 = scmp.eq.s32.totalorder %s32, 0
      %p92 = por %p90, %p91
      %s94 = sadd.s32 %s93, 1
      %p97 = scmp.eq.s32.totalorder %s26, 3
      %p98 = scmp.ne.s32.totalorder %s93, %s95
      %p99 = scmp.eq.s32.totalorder %s26, 0
      %p100 = por %p98, %p99
      %p101 = scmp.ne.s32.totalorder %s93, %s95
      %p102 = scmp.eq.s32.totalorder %s31, 3
      %p103 = por %p101, %p102
      %p104 = scmp.ne.s32.totalorder %s95, %s96
      %p105 = scmp.eq.s32.totalorder %s31, 0
      %p106 = por %p104, %p105
      %p107 = scmp.ne.s32.totalorder %s95, %s96
      %p108 = scmp.eq.s32.totalorder %s32, 3
      %p109 = por %p107, %p108
      %p111 = scmp.ne.s32.totalorder %s96, %s110
      %p112 = scmp.eq.s32.totalorder %s32, 0
      %p113 = por %p111, %p112
      %s115 = sadd.s32 %s114, 1
      %p118 = scmp.eq.s32.totalorder %s26, 3
      %p119 = scmp.ne.s32.totalorder %s114, %s116
      %p120 = scmp.eq.s32.totalorder %s26, 0
      %p121 = por %p119, %p120
      %p122 = scmp.ne.s32.totalorder %s114, %s116
      %p123 = scmp.eq.s32.totalorder %s31, 3
      %p124 = por %p122, %p123
      %p125 = scmp.ne.s32.totalorder %s116, %s117
      %p126 = scmp.eq.s32.totalorder %s31, 0
      %p127 = por %p125, %p126
      %p128 = scmp.ne.s32.totalorder %s116, %s117
      %p129 = scmp.eq.s32.totalorder %s32, 3
      %p130 = por %p128, %p129
      %p132 = scmp.ne.s32.totalorder %s117, %s131
      %p133 = scmp.eq.s32.totalorder %s32, 0
      %p134 = por %p132, %p133
      %s136 = sadd.s32 %s135, 1
      %p139 = scmp.eq.s32.totalorder %s26, 3
      %p140 = scmp.ne.s32.totalorder %s135, %s137
      %p141 = scmp.eq.s32.totalorder %s26, 0
      %p142 = por %p140, %p141
      %p143 = scmp.ne.s32.totalorder %s135, %s137
      %p144 = scmp.eq.s32.totalorder %s31, 3
      %p145 = por %p143, %p144
      %p146 = scmp.ne.s32.totalorder %s137, %s138
      %p147 = scmp.eq.s32.totalorder %s31, 0
      %p148 = por %p146, %p147
      %p149 = scmp.ne.s32.totalorder %s137, %s138
      %p150 = scmp.eq.s32.totalorder %s32, 3
      %p151 = por %p149, %p150
      %p153 = scmp.ne.s32.totalorder %s138, %s152
      %p154 = scmp.eq.s32.totalorder %s32, 0
      %p155 = por %p153, %p154
      %s156 = ssub.s32 %s34, %s41
      %p157 = scmp.eq.s32.totalorder %s156, 0
      %s159 = sadd.s32 %s158, 1
      %s160 = scalar_select %p157, %s158, %s159
      %p163 = pneg %p157
      %p164 = scmp.eq.s32.totalorder %s26, 3
      %p165 = por %p163, %p164
      %p166 = scmp.ne.s32.totalorder %s158, %s161
      %p167 = scmp.eq.s32.totalorder %s26, 0
      %p168 = por %p166, %p167
      %p169 = scmp.ne.s32.totalorder %s158, %s161
      %p170 = scmp.eq.s32.totalorder %s31, 3
      %p171 = por %p169, %p170
      %p172 = scmp.ne.s32.totalorder %s161, %s162
      %p173 = scmp.eq.s32.totalorder %s31, 0
      %p174 = por %p172, %p173
      %p175 = scmp.ne.s32.totalorder %s161, %s162
      %p176 = scmp.eq.s32.totalorder %s32, 3
      %p177 = por %p175, %p176
      %p179 = scmp.ne.s32.totalorder %s162, %s178
      %p180 = scmp.eq.s32.totalorder %s32, 0
      %p181 = por %p179, %p180
      %s182 = ssub.s32 %s34, %s41
      %p183 = scmp.eq.s32.totalorder %s182, 0
      %s185 = sadd.s32 %s184, 1
      %s186 = scalar_select %p183, %s184, %s185
      %p189 = pneg %p183
      %p190 = scmp.eq.s32.totalorder %s26, 3
      %p191 = por %p189, %p190
      %p192 = scmp.ne.s32.totalorder %s184, %s187
      %p193 = scmp.eq.s32.totalorder %s26, 0
      %p194 = por %p192, %p193
      %p195 = scmp.ne.s32.totalorder %s184, %s187
      %p196 = scmp.eq.s32.totalorder %s31, 3
      %p197 = por %p195, %p196
      %p198 = scmp.ne.s32.totalorder %s187, %s188
      %p199 = scmp.eq.s32.totalorder %s31, 0
      %p200 = por %p198, %p199
      %p201 = scmp.ne.s32.totalorder %s187, %s188
      %p202 = scmp.eq.s32.totalorder %s32, 3
      %p203 = por %p201, %p202
      %p205 = scmp.ne.s32.totalorder %s188, %s204
      %p206 = scmp.eq.s32.totalorder %s32, 0
      %p207 = por %p205, %p206
      %s208 = ssub.s32 %s34, %s41
      %p209 = scmp.eq.s32.totalorder %s208, 0
      %s211 = sadd.s32 %s210, 1
      %s212 = scalar_select %p209, %s210, %s211
      %p215 = pneg %p209
      %p216 = scmp.eq.s32.totalorder %s26, 3
      %p217 = por %p215, %p216
      %p218 = scmp.ne.s32.totalorder %s210, %s213
      %p219 = scmp.eq.s32.totalorder %s26, 0
      %p220 = por %p218, %p219
      %p221 = scmp.ne.s32.totalorder %s210, %s213
      %p222 = scmp.eq.s32.totalorder %s31, 3
      %p223 = por %p221, %p222
      %p224 = scmp.ne.s32.totalorder %s213, %s214
      %p225 = scmp.eq.s32.totalorder %s31, 0
      %p226 = por %p224, %p225
      %p227 = scmp.ne.s32.totalorder %s213, %s214
      %p228 = scmp.eq.s32.totalorder %s32, 3
      %p229 = por %p227, %p228
      %p231 = scmp.ne.s32.totalorder %s214, %s230
      %p232 = scmp.eq.s32.totalorder %s32, 0
      %p233 = por %p231, %p232
      %s234 = ssub.s32 %s34, %s41
      %p235 = scmp.eq.s32.totalorder %s234, 0
      %s237 = sadd.s32 %s236, 1
      %s238 = scalar_select %p235, %s236, %s237
      %p241 = pneg %p235
      %p242 = scmp.eq.s32.totalorder %s26, 3
      %p243 = por %p241, %p242
      %p244 = scmp.ne.s32.totalorder %s236, %s239
      %p245 = scmp.eq.s32.totalorder %s26, 0
      %p246 = por %p244, %p245
      %p247 = scmp.ne.s32.totalorder %s236, %s239
      %p248 = scmp.eq.s32.totalorder %s31, 3
      %p249 = por %p247, %p248
      %p250 = scmp.ne.s32.totalorder %s239, %s240
      %p251 = scmp.eq.s32.totalorder %s31, 0
      %p252 = por %p250, %p251
      %p253 = scmp.ne.s32.totalorder %s239, %s240
      %p254 = scmp.eq.s32.totalorder %s32, 3
      %p255 = por %p253, %p254
      %p257 = scmp.ne.s32.totalorder %s240, %s256
      %p258 = scmp.eq.s32.totalorder %s32, 0
      %p259 = por %p257, %p258
      %s260 = ssub.s32 %s34, %s41
      %p261 = scmp.eq.s32.totalorder %s260, 0
      %s263 = sadd.s32 %s262, 1
      %s264 = scalar_select %p261, %s262, %s263
      %p267 = pneg %p261
      %p268 = scmp.eq.s32.totalorder %s26, 3
      %p269 = por %p267, %p268
      %p270 = scmp.ne.s32.totalorder %s262, %s265
      %p271 = scmp.eq.s32.totalorder %s26, 0
      %p272 = por %p270, %p271
      %p273 = scmp.ne.s32.totalorder %s262, %s265
      %p274 = scmp.eq.s32.totalorder %s31, 3
      %p275 = por %p273, %p274
      %p276 = scmp.ne.s32.totalorder %s265, %s266
      %p277 = scmp.eq.s32.totalorder %s31, 0
      %p278 = por %p276, %p277
      %p279 = scmp.ne.s32.totalorder %s265, %s266
      %p280 = scmp.eq.s32.totalorder %s32, 3
      %p281 = por %p279, %p280
      %p283 = scmp.ne.s32.totalorder %s266, %s282
      %p284 = scmp.eq.s32.totalorder %s32, 0
      %p285 = por %p283, %p284
      %s286 = ssub.s32 %s34, %s41
      %p287 = scmp.eq.s32.totalorder %s286, 0
      %s289 = sadd.s32 %s288, 1
      %s290 = scalar_select %p287, %s288, %s289
      %p293 = pneg %p287
      %p294 = scmp.eq.s32.totalorder %s26, 3
      %p295 = por %p293, %p294
      %p296 = scmp.ne.s32.totalorder %s288, %s291
      %p297 = scmp.eq.s32.totalorder %s26, 0
      %p298 = por %p296, %p297
      %p299 = scmp.ne.s32.totalorder %s288, %s291
      %p300 = scmp.eq.s32.totalorder %s31, 3
      %p301 = por %p299, %p300
      %p302 = scmp.ne.s32.totalorder %s291, %s292
      %p303 = scmp.eq.s32.totalorder %s31, 0
      %p304 = por %p302, %p303
      %p305 = scmp.ne.s32.totalorder %s291, %s292
      %p306 = scmp.eq.s32.totalorder %s32, 3
      %p307 = por %p305, %p306
      %p309 = scmp.ne.s32.totalorder %s292, %s308
      %p310 = scmp.eq.s32.totalorder %s32, 0
      %p311 = por %p309, %p310
      %s312 = ssub.s32 %s34, %s41
      %p313 = scmp.eq.s32.totalorder %s312, 0
      %s315 = sadd.s32 %s314, 1
      %s316 = scalar_select %p313, %s314, %s315
      %p319 = pneg %p313
      %p320 = scmp.eq.s32.totalorder %s26, 3
      %p321 = por %p319, %p320
      %p322 = scmp.ne.s32.totalorder %s314, %s317
      %p323 = scmp.eq.s32.totalorder %s26, 0
      %p324 = por %p322, %p323
      %p325 = scmp.ne.s32.totalorder %s314, %s317
      %p326 = scmp.eq.s32.totalorder %s31, 3
      %p327 = por %p325, %p326
      %p328 = scmp.ne.s32.totalorder %s317, %s318
      %p329 = scmp.eq.s32.totalorder %s31, 0
      %p330 = por %p328, %p329
      %p331 = scmp.ne.s32.totalorder %s317, %s318
      %p332 = scmp.eq.s32.totalorder %s32, 3
      %p333 = por %p331, %p332
      %p335 = scmp.ne.s32.totalorder %s318, %s334
      %p336 = scmp.eq.s32.totalorder %s32, 0
      %p337 = por %p335, %p336
      %s338 = ssub.s32 %s34, %s41
      %p339 = scmp.eq.s32.totalorder %s338, 0
      %s341 = sadd.s32 %s340, 1
      %s342 = scalar_select %p339, %s340, %s341
      %p345 = pneg %p339
      %p346 = scmp.eq.s32.totalorder %s26, 3
      %p347 = por %p345, %p346
      %p348 = scmp.ne.s32.totalorder %s340, %s343
      %p349 = scmp.eq.s32.totalorder %s26, 0
      %p350 = por %p348, %p349
      %p351 = scmp.ne.s32.totalorder %s340, %s343
      %p352 = scmp.eq.s32.totalorder %s31, 3
      %p353 = por %p351, %p352
      %p354 = scmp.ne.s32.totalorder %s343, %s344
      %p355 = scmp.eq.s32.totalorder %s31, 0
      %p356 = por %p354, %p355
      %p357 = scmp.ne.s32.totalorder %s343, %s344
      %p358 = scmp.eq.s32.totalorder %s32, 3
      %p359 = por %p357, %p358
      %p361 = scmp.ne.s32.totalorder %s344, %s360
      %p362 = scmp.eq.s32.totalorder %s32, 0
      %p363 = por %p361, %p362
      %s364 = ssub.s32 %s34, %s41
      %p365 = scmp.eq.s32.totalorder %s364, 0
      %s367 = sadd.s32 %s366, 1
      %s368 = scalar_select %p365, %s366, %s367
      %p371 = pneg %p365
      %p372 = scmp.eq.s32.totalorder %s26, 3
      %p373 = por %p371, %p372
      %p374 = scmp.ne.s32.totalorder %s366, %s369
      %p375 = scmp.eq.s32.totalorder %s26, 0
      %p376 = por %p374, %p375
      %p377 = scmp.ne.s32.totalorder %s366, %s369
      %p378 = scmp.eq.s32.totalorder %s31, 3
      %p379 = por %p377, %p378
      %p380 = scmp.ne.s32.totalorder %s369, %s370
      %p381 = scmp.eq.s32.totalorder %s31, 0
      %p382 = por %p380, %p381
      %p383 = scmp.ne.s32.totalorder %s369, %s370
      %p384 = scmp.eq.s32.totalorder %s32, 3
      %p385 = por %p383, %p384
      %p387 = scmp.ne.s32.totalorder %s370, %s386
      %p388 = scmp.eq.s32.totalorder %s32, 0
      %p389 = por %p387, %p388
      %s390 = ssub.s32 %s34, %s41
      %p391 = scmp.eq.s32.totalorder %s390, 0
      %s393 = sadd.s32 %s392, 1
      %s394 = scalar_select %p391, %s392, %s393
      %p397 = pneg %p391
      %p398 = scmp.eq.s32.totalorder %s26, 3
      %p399 = por %p397, %p398
      %p400 = scmp.ne.s32.totalorder %s392, %s395
      %p401 = scmp.eq.s32.totalorder %s26, 0
      %p402 = por %p400, %p401
      %p403 = scmp.ne.s32.totalorder %s392, %s395
      %p404 = scmp.eq.s32.totalorder %s31, 3
      %p405 = por %p403, %p404
      %p406 = scmp.ne.s32.totalorder %s395, %s396
      %p407 = scmp.eq.s32.totalorder %s31, 0
      %p408 = por %p406, %p407
      %p409 = scmp.ne.s32.totalorder %s395, %s396
      %p410 = scmp.eq.s32.totalorder %s32, 3
      %p411 = por %p409, %p410
      %p413 = scmp.ne.s32.totalorder %s396, %s412
      %p414 = scmp.eq.s32.totalorder %s32, 0
      %p415 = por %p413, %p414
      %s416 = ssub.s32 %s34, %s41
      %p417 = scmp.eq.s32.totalorder %s416, 0
      %s419 = sadd.s32 %s418, 1
      %s420 = scalar_select %p417, %s418, %s419
      %p423 = pneg %p417
      %p424 = scmp.eq.s32.totalorder %s26, 3
      %p425 = por %p423, %p424
      %p426 = scmp.ne.s32.totalorder %s418, %s421
      %p427 = scmp.eq.s32.totalorder %s26, 0
      %p428 = por %p426, %p427
      %p429 = scmp.ne.s32.totalorder %s418, %s421
      %p430 = scmp.eq.s32.totalorder %s31, 3
      %p431 = por %p429, %p430
      %p432 = scmp.ne.s32.totalorder %s421, %s422
      %p433 = scmp.eq.s32.totalorder %s31, 0
      %p434 = por %p432, %p433
      %p435 = scmp.ne.s32.totalorder %s421, %s422
      %p436 = scmp.eq.s32.totalorder %s32, 3
      %p437 = por %p435, %p436
      %p439 = scmp.ne.s32.totalorder %s422, %s438
      %p440 = scmp.eq.s32.totalorder %s32, 0
      %p441 = por %p439, %p440
      %s442 = ssub.s32 %s34, %s41
      %p443 = scmp.eq.s32.totalorder %s442, 0
      %s445 = sadd.s32 %s444, 1
      %s446 = scalar_select %p443, %s444, %s445
      %p449 = pneg %p443
      %p450 = scmp.eq.s32.totalorder %s26, 3
      %p451 = por %p449, %p450
      %p452 = scmp.ne.s32.totalorder %s444, %s447
      %p453 = scmp.eq.s32.totalorder %s26, 0
      %p454 = por %p452, %p453
      %p455 = scmp.ne.s32.totalorder %s444, %s447
      %p456 = scmp.eq.s32.totalorder %s31, 3
      %p457 = por %p455, %p456
      %p458 = scmp.ne.s32.totalorder %s447, %s448
      %p459 = scmp.eq.s32.totalorder %s31, 0
      %p460 = por %p458, %p459
      %p461 = scmp.ne.s32.totalorder %s447, %s448
      %p462 = scmp.eq.s32.totalorder %s32, 3
      %p463 = por %p461, %p462
      %p465 = scmp.ne.s32.totalorder %s448, %s464
      %p466 = scmp.eq.s32.totalorder %s32, 0
      %p467 = por %p465, %p466
      %s468 = ssub.s32 %s33, %s45
      %p469 = scmp.eq.s32.totalorder %s468, 0
      %s471 = sadd.s32 %s470, 1
      %s472 = scalar_select %p469, %s470, %s471
      %p475 = pneg %p469
      %p476 = scmp.eq.s32.totalorder %s26, 3
      %p477 = por %p475, %p476
      %p478 = scmp.ne.s32.totalorder %s470, %s473
      %p479 = scmp.eq.s32.totalorder %s26, 0
      %p480 = por %p478, %p479
      %p481 = scmp.ne.s32.totalorder %s470, %s473
      %p482 = scmp.eq.s32.totalorder %s31, 3
      %p483 = por %p481, %p482
      %p484 = scmp.ne.s32.totalorder %s473, %s474
      %p485 = scmp.eq.s32.totalorder %s31, 0
      %p486 = por %p484, %p485
      %p487 = scmp.ne.s32.totalorder %s473, %s474
      %p488 = scmp.eq.s32.totalorder %s32, 3
      %p489 = por %p487, %p488
      %p491 = scmp.ne.s32.totalorder %s474, %s490
      %p492 = scmp.eq.s32.totalorder %s32, 0
      %p493 = por %p491, %p492
      %p494 = scmp.le.s32.totalorder 1, %s26
      %p495 = scmp.lt.s32.totalorder %s26, 5
      %p496 = pnand %p494, %p495
      %p497 = pneg %p496
      // Predicated region
      $region9: #{clip_forward.3} parent=5 // pred_check
        _
      $region10: #{clip_forward.3} parent=5 // pred_check_branch
        %499 = sbr.rel (%p496) target = $region12
      $region11: #{clip_forward.3} parent=5 // pred_region
        %s500 = ssub.s32 %s26, 1
        // Predicated region
        $region13: #{clip_forward.3} parent=11 // pred_check
          %p501 = pneg %p85
        $region14: #{clip_forward.3} parent=11 // pred_check_branch
          %503 = sbr.rel (%p501) target = $region16
        $region15: #{clip_forward.3} parent=11 // pred_region
          %s505 = ssub.s32 4096, 4096
          %506 = vsyncadd [#allocation4], %s505
          %s507 = sshll.u32 [#allocation3], 4
          %s508 = int_to_ptr.vmem [resolvable:$true] %s507
          %513 = dma.hbm_to_vmem [thread:$0]  %s1, 4096, %s508, [#allocation4], 128, 128, 8
        $region16: #{clip_forward.3} parent=11 // pred_fallthru
          _
        // Predicated region
        $region17: #{clip_forward.3} parent=11 // pred_check
          %p514 = pneg %p106
        $region18: #{clip_forward.3} parent=11 // pred_check_branch
          %516 = sbr.rel (%p514) target = $region20
        $region19: #{clip_forward.3} parent=11 // pred_region
          %s518 = ssub.s32 128, 128
          %519 = vsyncadd [#allocation6], %s518
          %s521 = sshll.u32 [#allocation5], 4
          %s522 = int_to_ptr.vmem [resolvable:$true] %s521
          %524 = dma.hbm_to_vmem [thread:$0]  %s2, 128, %s522, [#allocation6]
        $region20: #{clip_forward.3} parent=11 // pred_fallthru
          _
        // Predicated region
        $region21: #{clip_forward.3} parent=11 // pred_check
          %p525 = pneg %p127
        $region22: #{clip_forward.3} parent=11 // pred_check_branch
          %527 = sbr.rel (%p525) target = $region24
        $region23: #{clip_forward.3} parent=11 // pred_region
          %s529 = ssub.s32 16, 16
          %530 = vsyncadd [#allocation6], %s529
          %s532 = sshll.u32 [#allocation7], 4
          %s533 = int_to_ptr.vmem [resolvable:$true] %s532
          %535 = dma.hbm_to_vmem [thread:$0]  %s3, 16, %s533, [#allocation6]
        $region24: #{clip_forward.3} parent=11 // pred_fallthru
          _
        // Predicated region
        $region25: #{clip_forward.3} parent=11 // pred_check
          %p536 = pneg %p148
        $region26: #{clip_forward.3} parent=11 // pred_check_branch
          %538 = sbr.rel (%p536) target = $region28
        $region27: #{clip_forward.3} parent=11 // pred_region
          %s540 = ssub.s32 16, 16
          %541 = vsyncadd [#allocation9], %s540
          %s543 = sshll.u32 [#allocation8], 4
          %s544 = int_to_ptr.vmem [resolvable:$true] %s543
          %546 = dma.hbm_to_vmem [thread:$0]  %s4, 16, %s544, [#allocation9]
        $region28: #{clip_forward.3} parent=11 // pred_fallthru
          _
      $region12: #{clip_forward.3} parent=5 // pred_fallthru
        _
      %p547 = scmp.lt.s32.totalorder %s26, 4
      // Predicated region
      $region29: #{clip_forward.3} parent=5 // pred_check
        %p548 = pneg %p547
      $region30: #{clip_forward.3} parent=5 // pred_check_branch
        %550 = sbr.rel (%p548) target = $region32
      $region31: #{clip_forward.3} parent=5 // pred_region
        // Predicated region
        $region33: #{clip_forward.3} parent=31 // pred_check
          %p551 = pneg %p58
        $region34: #{clip_forward.3} parent=31 // pred_check_branch
          %553 = sbr.rel (%p551) target = $region36
        $region35: #{clip_forward.3} parent=31 // pred_region
          %p554 = scmp.lt.s32.totalorder %s33, 1
          %s555 = scalar_select %p554, %s33, 1
          %s556 = smul.addr %s555, 2
          %s557 = smul.addr %s556, 8
          %s558 = scalar_lea.vmem %s0, %s557
        $region36: #{clip_forward.3} parent=31 // pred_fallthru
          _
        // Predicated region
        $region37: #{clip_forward.3} parent=31 // pred_check
          %p559 = pneg %p168
        $region38: #{clip_forward.3} parent=31 // pred_check_branch
          %561 = sbr.rel (%p559) target = $region40
        $region39: #{clip_forward.3} parent=31 // pred_region
          %s562 = sand.u32 %s26, 1
          %s563 = scalar_lea.sflag [#allocation4], %s562
          %s564 = sand.u32 %s158, 1
          %s565 = scalar_lea.vmem [#allocation10], %s564
          %s567 = ssub.s32 16, 16
          %568 = vsyncadd %s563, %s567
          %s569 = smul.addr %s34, 16
          %s570 = scalar_lea.hbm %s5, %s569
          %s572 = sshll.u32 %s565, 4
          %s573 = int_to_ptr.vmem [resolvable:$true] %s572
          %575 = dma.hbm_to_vmem [thread:$0]  %s570, 16, %s573, %s563
        $region40: #{clip_forward.3} parent=31 // pred_fallthru
          _
        // Predicated region
        $region41: #{clip_forward.3} parent=31 // pred_check
          %p576 = pneg %p194
        $region42: #{clip_forward.3} parent=31 // pred_check_branch
          %578 = sbr.rel (%p576) target = $region44
        $region43: #{clip_forward.3} parent=31 // pred_region
          %s579 = sand.u32 %s26, 1
          %s580 = scalar_lea.sflag [#allocation4], %s579
          %s581 = sand.u32 %s184, 1
          %s582 = scalar_lea.vmem [#allocation11], %s581
          %s584 = ssub.s32 16, 16
          %585 = vsyncadd %s580, %s584
          %s586 = smul.addr %s34, 16
          %s587 = scalar_lea.hbm %s6, %s586
          %s589 = sshll.u32 %s582, 4
          %s590 = int_to_ptr.vmem [resolvable:$true] %s589
          %592 = dma.hbm_to_vmem [thread:$0]  %s587, 16, %s590, %s580
        $region44: #{clip_forward.3} parent=31 // pred_fallthru
          _
        // Predicated region
        $region45: #{clip_forward.3} parent=31 // pred_check
          %p593 = pneg %p220
        $region46: #{clip_forward.3} parent=31 // pred_check_branch
          %595 = sbr.rel (%p593) target = $region48
        $region47: #{clip_forward.3} parent=31 // pred_region
          %s596 = sand.u32 %s26, 1
          %s597 = scalar_lea.sflag [#allocation4], %s596
          %s598 = sand.u32 %s210, 1
          %s599 = smul.addr %s598, 1536
          %s600 = scalar_lea.vmem [#allocation12], %s599
          %s602 = ssub.s32 24576, 24576
          %603 = vsyncadd %s597, %s602
          %s604 = smul.addr %s34, 192
          %s605 = smul.addr %s604, 128
          %s606 = scalar_lea.hbm %s7, %s605
          %s607 = sshll.u32 %s600, 4
          %s608 = int_to_ptr.vmem [resolvable:$true] %s607
          %613 = dma.hbm_to_vmem [thread:$0]  %s606, 24576, %s608, %s597, 1536, 1536, 96
        $region48: #{clip_forward.3} parent=31 // pred_fallthru
          _
        // Predicated region
        $region49: #{clip_forward.3} parent=31 // pred_check
          %p614 = pneg %p246
        $region50: #{clip_forward.3} parent=31 // pred_check_branch
          %616 = sbr.rel (%p614) target = $region52
        $region51: #{clip_forward.3} parent=31 // pred_region
          %s617 = sand.u32 %s26, 1
          %s618 = scalar_lea.sflag [#allocation4], %s617
          %s619 = sand.u32 %s236, 1
          %s620 = smul.addr %s619, 12
          %s621 = scalar_lea.vmem [#allocation13], %s620
          %s623 = ssub.s32 192, 192
          %624 = vsyncadd %s618, %s623
          %s625 = smul.addr %s34, 12
          %s626 = smul.addr %s625, 16
          %s627 = scalar_lea.hbm %s8, %s626
          %s629 = sshll.u32 %s621, 4
          %s630 = int_to_ptr.vmem [resolvable:$true] %s629
          %632 = dma.hbm_to_vmem [thread:$0]  %s627, 192, %s630, %s618
        $region52: #{clip_forward.3} parent=31 // pred_fallthru
          _
        // Predicated region
        $region53: #{clip_forward.3} parent=31 // pred_check
          %p633 = pneg %p272
        $region54: #{clip_forward.3} parent=31 // pred_check_branch
          %635 = sbr.rel (%p633) target = $region56
        $region55: #{clip_forward.3} parent=31 // pred_region
          %s636 = sand.u32 %s26, 1
          %s637 = scalar_lea.sflag [#allocation4], %s636
          %s638 = sand.u32 %s262, 1
          %s639 = smul.addr %s638, 512
          %s640 = scalar_lea.vmem [#allocation14], %s639
          %s642 = ssub.s32 8192, 8192
          %643 = vsyncadd %s637, %s642
          %s644 = smul.addr %s34, 64
          %s645 = smul.addr %s644, 128
          %s646 = scalar_lea.hbm %s9, %s645
          %s647 = sshll.u32 %s640, 4
          %s648 = int_to_ptr.vmem [resolvable:$true] %s647
          %653 = dma.hbm_to_vmem [thread:$0]  %s646, 8192, %s648, %s637, 128, 128, 8
        $region56: #{clip_forward.3} parent=31 // pred_fallthru
          _
        // Predicated region
        $region57: #{clip_forward.3} parent=31 // pred_check
          %p654 = pneg %p298
        $region58: #{clip_forward.3} parent=31 // pred_check_branch
          %656 = sbr.rel (%p654) target = $region60
        $region59: #{clip_forward.3} parent=31 // pred_region
          %s657 = sand.u32 %s26, 1
          %s658 = scalar_lea.sflag [#allocation4], %s657
          %s659 = sand.u32 %s288, 1
          %s660 = scalar_lea.vmem [#allocation15], %s659
          %s662 = ssub.s32 16, 16
          %663 = vsyncadd %s658, %s662
          %s664 = smul.addr %s34, 16
          %s665 = scalar_lea.hbm %s10, %s664
          %s667 = sshll.u32 %s660, 4
          %s668 = int_to_ptr.vmem [resolvable:$true] %s667
          %670 = dma.hbm_to_vmem [thread:$0]  %s665, 16, %s668, %s658
        $region60: #{clip_forward.3} parent=31 // pred_fallthru
          _
        // Predicated region
        $region61: #{clip_forward.3} parent=31 // pred_check
          %p671 = pneg %p324
        $region62: #{clip_forward.3} parent=31 // pred_check_branch
          %673 = sbr.rel (%p671) target = $region64
        $region63: #{clip_forward.3} parent=31 // pred_region
          %s674 = sand.u32 %s26, 1
          %s675 = scalar_lea.sflag [#allocation4], %s674
          %s676 = sand.u32 %s314, 1
          %s677 = scalar_lea.vmem [#allocation16], %s676
          %s679 = ssub.s32 16, 16
          %680 = vsyncadd %s675, %s679
          %s681 = smul.addr %s34, 16
          %s682 = scalar_lea.hbm %s11, %s681
          %s684 = sshll.u32 %s677, 4
          %s685 = int_to_ptr.vmem [resolvable:$true] %s684
          %687 = dma.hbm_to_vmem [thread:$0]  %s682, 16, %s685, %s675
        $region64: #{clip_forward.3} parent=31 // pred_fallthru
          _
        // Predicated region
        $region65: #{clip_forward.3} parent=31 // pred_check
          %p688 = pneg %p350
        $region66: #{clip_forward.3} parent=31 // pred_check_branch
          %690 = sbr.rel (%p688) target = $region68
        $region67: #{clip_forward.3} parent=31 // pred_region
          %s691 = sand.u32 %s26, 1
          %s692 = scalar_lea.sflag [#allocation4], %s691
          %s693 = sand.u32 %s340, 1
          %s694 = scalar_lea.vmem [#allocation17], %s693
          %s696 = ssub.s32 16, 16
          %697 = vsyncadd %s692, %s696
          %s698 = smul.addr %s34, 16
          %s699 = scalar_lea.hbm %s12, %s698
          %s701 = sshll.u32 %s694, 4
          %s702 = int_to_ptr.vmem [resolvable:$true] %s701
          %704 = dma.hbm_to_vmem [thread:$0]  %s699, 16, %s702, %s692
        $region68: #{clip_forward.3} parent=31 // pred_fallthru
          _
        // Predicated region
        $region69: #{clip_forward.3} parent=31 // pred_check
          %p705 = pneg %p376
        $region70: #{clip_forward.3} parent=31 // pred_check_branch
          %707 = sbr.rel (%p705) target = $region72
        $region71: #{clip_forward.3} parent=31 // pred_region
          %s708 = sand.u32 %s26, 1
          %s709 = scalar_lea.sflag [#allocation4], %s708
          %s710 = sand.u32 %s366, 1
          %s711 = smul.addr %s710, 128
          %s712 = scalar_lea.vmem [#allocation18], %s711
          %s714 = ssub.s32 2048, 2048
          %715 = vsyncadd %s709, %s714
          %s716 = smul.addr %s34, 16
          %s717 = smul.addr %s716, 128
          %s718 = scalar_lea.hbm %s13, %s717
          %s719 = sshll.u32 %s712, 4
          %s720 = int_to_ptr.vmem [resolvable:$true] %s719
          %725 = dma.hbm_to_vmem [thread:$0]  %s718, 2048, %s720, %s709, 128, 128, 8
        $region72: #{clip_forward.3} parent=31 // pred_fallthru
          _
        // Predicated region
        $region73: #{clip_forward.3} parent=31 // pred_check
          %p726 = pneg %p402
        $region74: #{clip_forward.3} parent=31 // pred_check_branch
          %728 = sbr.rel (%p726) target = $region76
        $region75: #{clip_forward.3} parent=31 // pred_region
          %s729 = sand.u32 %s26, 1
          %s730 = scalar_lea.sflag [#allocation4], %s729
          %s731 = sand.u32 %s392, 1
          %s732 = scalar_lea.vmem [#allocation19], %s731
          %s734 = ssub.s32 16, 16
          %735 = vsyncadd %s730, %s734
          %s736 = smul.addr %s34, 16
          %s737 = scalar_lea.hbm %s14, %s736
          %s739 = sshll.u32 %s732, 4
          %s740 = int_to_ptr.vmem [resolvable:$true] %s739
          %742 = dma.hbm_to_vmem [thread:$0]  %s737, 16, %s740, %s730
        $region76: #{clip_forward.3} parent=31 // pred_fallthru
          _
        // Predicated region
        $region77: #{clip_forward.3} parent=31 // pred_check
          %p743 = pneg %p428
        $region78: #{clip_forward.3} parent=31 // pred_check_branch
          %745 = sbr.rel (%p743) target = $region80
        $region79: #{clip_forward.3} parent=31 // pred_region
          %s746 = sand.u32 %s26, 1
          %s747 = scalar_lea.sflag [#allocation4], %s746
          %s748 = sand.u32 %s418, 1
          %s749 = smul.addr %s748, 128
          %s750 = scalar_lea.vmem [#allocation20], %s749
          %s752 = ssub.s32 2048, 2048
          %753 = vsyncadd %s747, %s752
          %s754 = smul.addr %s34, 16
          %s755 = smul.addr %s754, 128
          %s756 = scalar_lea.hbm %s15, %s755
          %s757 = sshll.u32 %s750, 4
          %s758 = int_to_ptr.vmem [resolvable:$true] %s757
          %763 = dma.hbm_to_vmem [thread:$0]  %s756, 2048, %s758, %s747, 128, 128, 8
        $region80: #{clip_forward.3} parent=31 // pred_fallthru
          _
        // Predicated region
        $region81: #{clip_forward.3} parent=31 // pred_check
          %p764 = pneg %p454
        $region82: #{clip_forward.3} parent=31 // pred_check_branch
          %766 = sbr.rel (%p764) target = $region84
        $region83: #{clip_forward.3} parent=31 // pred_region
          %s767 = sand.u32 %s26, 1
          %s768 = scalar_lea.sflag [#allocation4], %s767
          %s769 = sand.u32 %s444, 1
          %s770 = scalar_lea.vmem [#allocation21], %s769
          %s772 = ssub.s32 16, 16
          %773 = vsyncadd %s768, %s772
          %s774 = smul.addr %s34, 16
          %s775 = scalar_lea.hbm %s16, %s774
          %s777 = sshll.u32 %s770, 4
          %s778 = int_to_ptr.vmem [resolvable:$true] %s777
          %780 = dma.hbm_to_vmem [thread:$0]  %s775, 16, %s778, %s768
        $region84: #{clip_forward.3} parent=31 // pred_fallthru
          _
      $region32: #{clip_forward.3} parent=5 // pred_fallthru
        _
      %p781 = scmp.le.s32.totalorder 1, %s26
      %p782 = scmp.lt.s32.totalorder %s26, 5
      %p783 = pnand %p781, %p782
      %p784 = pneg %p783
      // Predicated region
      $region85: #{clip_forward.3} parent=5 // pred_check
        _
      $region86: #{clip_forward.3} parent=5 // pred_check_branch
        %786 = sbr.rel (%p783) target = $region88
      $region87: #{clip_forward.3} parent=5 // pred_region
        %s787 = ssub.s32 %s26, 1
        // Predicated region
        $region89: #{clip_forward.3} parent=87 // pred_check
          %p788 = pneg %p85
        $region90: #{clip_forward.3} parent=87 // pred_check_branch
          %790 = sbr.rel (%p788) target = $region92
        $region91: #{clip_forward.3} parent=87 // pred_region
          %791 = dma.done [#allocation4], 4096
        $region92: #{clip_forward.3} parent=87 // pred_fallthru
          _
        // Predicated region
        $region93: #{clip_forward.3} parent=87 // pred_check
          %p792 = pneg %p106
        $region94: #{clip_forward.3} parent=87 // pred_check_branch
          %794 = sbr.rel (%p792) target = $region96
        $region95: #{clip_forward.3} parent=87 // pred_region
          %795 = dma.done [#allocation6], 128
        $region96: #{clip_forward.3} parent=87 // pred_fallthru
          _
        // Predicated region
        $region97: #{clip_forward.3} parent=87 // pred_check
          %p796 = pneg %p127
        $region98: #{clip_forward.3} parent=87 // pred_check_branch
          %798 = sbr.rel (%p796) target = $region100
        $region99: #{clip_forward.3} parent=87 // pred_region
          %799 = dma.done [#allocation6], 16
        $region100: #{clip_forward.3} parent=87 // pred_fallthru
          _
        // Predicated region
        $region101: #{clip_forward.3} parent=87 // pred_check
          %p800 = pneg %p148
        $region102: #{clip_forward.3} parent=87 // pred_check_branch
          %802 = sbr.rel (%p800) target = $region104
        $region103: #{clip_forward.3} parent=87 // pred_region
          %803 = dma.done [#allocation9], 16
        $region104: #{clip_forward.3} parent=87 // pred_fallthru
          _
        %s804 = sand.u32 %s31, 1
        %s805 = scalar_lea.sflag [#allocation4], %s804
        %s806 = sand.u32 %s161, 1
        %s807 = scalar_lea.vmem [#allocation10], %s806
        // Predicated region
        $region105: #{clip_forward.3} parent=87 // pred_check
          %p808 = pneg %p174
        $region106: #{clip_forward.3} parent=87 // pred_check_branch
          %810 = sbr.rel (%p808) target = $region108
        $region107: #{clip_forward.3} parent=87 // pred_region
          %811 = dma.done %s805, 16
        $region108: #{clip_forward.3} parent=87 // pred_fallthru
          _
        %s812 = sand.u32 %s31, 1
        %s813 = scalar_lea.sflag [#allocation4], %s812
        %s814 = sand.u32 %s187, 1
        %s815 = scalar_lea.vmem [#allocation11], %s814
        // Predicated region
        $region109: #{clip_forward.3} parent=87 // pred_check
          %p816 = pneg %p200
        $region110: #{clip_forward.3} parent=87 // pred_check_branch
          %818 = sbr.rel (%p816) target = $region112
        $region111: #{clip_forward.3} parent=87 // pred_region
          %819 = dma.done %s813, 16
        $region112: #{clip_forward.3} parent=87 // pred_fallthru
          _
        %s820 = sand.u32 %s31, 1
        %s821 = scalar_lea.sflag [#allocation4], %s820
        %s822 = sand.u32 %s213, 1
        %s823 = smul.addr %s822, 1536
        %s824 = scalar_lea.vmem [#allocation12], %s823
        // Predicated region
        $region113: #{clip_forward.3} parent=87 // pred_check
          %p825 = pneg %p226
        $region114: #{clip_forward.3} parent=87 // pred_check_branch
          %827 = sbr.rel (%p825) target = $region116
        $region115: #{clip_forward.3} parent=87 // pred_region
          %828 = dma.done %s821, 24576
        $region116: #{clip_forward.3} parent=87 // pred_fallthru
          _
        %s829 = sand.u32 %s31, 1
        %s830 = scalar_lea.sflag [#allocation4], %s829
        %s831 = sand.u32 %s239, 1
        %s832 = smul.addr %s831, 12
        %s833 = scalar_lea.vmem [#allocation13], %s832
        // Predicated region
        $region117: #{clip_forward.3} parent=87 // pred_check
          %p834 = pneg %p252
        $region118: #{clip_forward.3} parent=87 // pred_check_branch
          %836 = sbr.rel (%p834) target = $region120
        $region119: #{clip_forward.3} parent=87 // pred_region
          %837 = dma.done %s830, 192
        $region120: #{clip_forward.3} parent=87 // pred_fallthru
          _
        %s838 = sand.u32 %s31, 1
        %s839 = scalar_lea.sflag [#allocation4], %s838
        %s840 = sand.u32 %s265, 1
        %s841 = smul.addr %s840, 512
        %s842 = scalar_lea.vmem [#allocation14], %s841
        // Predicated region
        $region121: #{clip_forward.3} parent=87 // pred_check
          %p843 = pneg %p278
        $region122: #{clip_forward.3} parent=87 // pred_check_branch
          %845 = sbr.rel (%p843) target = $region124
        $region123: #{clip_forward.3} parent=87 // pred_region
          %846 = dma.done %s839, 8192
        $region124: #{clip_forward.3} parent=87 // pred_fallthru
          _
        %s847 = sand.u32 %s31, 1
        %s848 = scalar_lea.sflag [#allocation4], %s847
        %s849 = sand.u32 %s291, 1
        %s850 = scalar_lea.vmem [#allocation15], %s849
        // Predicated region
        $region125: #{clip_forward.3} parent=87 // pred_check
          %p851 = pneg %p304
        $region126: #{clip_forward.3} parent=87 // pred_check_branch
          %853 = sbr.rel (%p851) target = $region128
        $region127: #{clip_forward.3} parent=87 // pred_region
          %854 = dma.done %s848, 16
        $region128: #{clip_forward.3} parent=87 // pred_fallthru
          _
        %s855 = sand.u32 %s31, 1
        %s856 = scalar_lea.sflag [#allocation4], %s855
        %s857 = sand.u32 %s317, 1
        %s858 = scalar_lea.vmem [#allocation16], %s857
        // Predicated region
        $region129: #{clip_forward.3} parent=87 // pred_check
          %p859 = pneg %p330
        $region130: #{clip_forward.3} parent=87 // pred_check_branch
          %861 = sbr.rel (%p859) target = $region132
        $region131: #{clip_forward.3} parent=87 // pred_region
          %862 = dma.done %s856, 16
        $region132: #{clip_forward.3} parent=87 // pred_fallthru
          _
        %s863 = sand.u32 %s31, 1
        %s864 = scalar_lea.sflag [#allocation4], %s863
        %s865 = sand.u32 %s343, 1
        %s866 = scalar_lea.vmem [#allocation17], %s865
        // Predicated region
        $region133: #{clip_forward.3} parent=87 // pred_check
          %p867 = pneg %p356
        $region134: #{clip_forward.3} parent=87 // pred_check_branch
          %869 = sbr.rel (%p867) target = $region136
        $region135: #{clip_forward.3} parent=87 // pred_region
          %870 = dma.done %s864, 16
        $region136: #{clip_forward.3} parent=87 // pred_fallthru
          _
        %s871 = sand.u32 %s31, 1
        %s872 = scalar_lea.sflag [#allocation4], %s871
        %s873 = sand.u32 %s369, 1
        %s874 = smul.addr %s873, 128
        %s875 = scalar_lea.vmem [#allocation18], %s874
        // Predicated region
        $region137: #{clip_forward.3} parent=87 // pred_check
          %p876 = pneg %p382
        $region138: #{clip_forward.3} parent=87 // pred_check_branch
          %878 = sbr.rel (%p876) target = $region140
        $region139: #{clip_forward.3} parent=87 // pred_region
          %879 = dma.done %s872, 2048
        $region140: #{clip_forward.3} parent=87 // pred_fallthru
          _
        %s880 = sand.u32 %s31, 1
        %s881 = scalar_lea.sflag [#allocation4], %s880
        %s882 = sand.u32 %s395, 1
        %s883 = scalar_lea.vmem [#allocation19], %s882
        // Predicated region
        $region141: #{clip_forward.3} parent=87 // pred_check
          %p884 = pneg %p408
        $region142: #{clip_forward.3} parent=87 // pred_check_branch
          %886 = sbr.rel (%p884) target = $region144
        $region143: #{clip_forward.3} parent=87 // pred_region
          %887 = dma.done %s881, 16
        $region144: #{clip_forward.3} parent=87 // pred_fallthru
          _
        %s888 = sand.u32 %s31, 1
        %s889 = scalar_lea.sflag [#allocation4], %s888
        %s890 = sand.u32 %s421, 1
        %s891 = smul.addr %s890, 128
        %s892 = scalar_lea.vmem [#allocation20], %s891
        // Predicated region
        $region145: #{clip_forward.3} parent=87 // pred_check
          %p893 = pneg %p434
        $region146: #{clip_forward.3} parent=87 // pred_check_branch
          %895 = sbr.rel (%p893) target = $region148
        $region147: #{clip_forward.3} parent=87 // pred_region
          %896 = dma.done %s889, 2048
        $region148: #{clip_forward.3} parent=87 // pred_fallthru
          _
        %s897 = sand.u32 %s31, 1
        %s898 = scalar_lea.sflag [#allocation4], %s897
        %s899 = sand.u32 %s447, 1
        %s900 = scalar_lea.vmem [#allocation21], %s899
        // Predicated region
        $region149: #{clip_forward.3} parent=87 // pred_check
          %p901 = pneg %p460
        $region150: #{clip_forward.3} parent=87 // pred_check_branch
          %903 = sbr.rel (%p901) target = $region152
        $region151: #{clip_forward.3} parent=87 // pred_region
          %904 = dma.done %s898, 16
        $region152: #{clip_forward.3} parent=87 // pred_fallthru
          _
        %p905 = scmp.lt.s32.totalorder %s35, 1
        %s906 = scalar_select %p905, %s35, 1
        %s907 = smul.addr %s906, 2
        %s908 = smul.addr %s907, 8
        %s909 = scalar_lea.vmem %s0, %s908
        %p910 = pneg %p64
        %p911 = pneg %p61
        %p912 = pneg %p85
        %p913 = pneg %p82
        %p914 = pneg %p106
        %p915 = pneg %p103
        %p916 = pneg %p127
        %p917 = pneg %p124
        %p918 = pneg %p148
        %p919 = pneg %p145
        %s920 = sand.u32 %s31, 1
        %s921 = scalar_lea.sflag [#allocation4], %s920
        %s922 = sand.u32 %s161, 1
        %s923 = scalar_lea.vmem [#allocation10], %s922
        %p924 = pneg %p174
        %p925 = pneg %p171
        %s926 = sand.u32 %s31, 1
        %s927 = scalar_lea.sflag [#allocation4], %s926
        %s928 = sand.u32 %s187, 1
        %s929 = scalar_lea.vmem [#allocation11], %s928
        %p930 = pneg %p200
        %p931 = pneg %p197
        %s932 = sand.u32 %s31, 1
        %s933 = scalar_lea.sflag [#allocation4], %s932
        %s934 = sand.u32 %s213, 1
        %s935 = smul.addr %s934, 1536
        %s936 = scalar_lea.vmem [#allocation12], %s935
        %p937 = pneg %p226
        %p938 = pneg %p223
        %s939 = sand.u32 %s31, 1
        %s940 = scalar_lea.sflag [#allocation4], %s939
        %s941 = sand.u32 %s239, 1
        %s942 = smul.addr %s941, 12
        %s943 = scalar_lea.vmem [#allocation13], %s942
        %p944 = pneg %p252
        %p945 = pneg %p249
        %s946 = sand.u32 %s31, 1
        %s947 = scalar_lea.sflag [#allocation4], %s946
        %s948 = sand.u32 %s265, 1
        %s949 = smul.addr %s948, 512
        %s950 = scalar_lea.vmem [#allocation14], %s949
        %p951 = pneg %p278
        %p952 = pneg %p275
        %s953 = sand.u32 %s31, 1
        %s954 = scalar_lea.sflag [#allocation4], %s953
        %s955 = sand.u32 %s291, 1
        %s956 = scalar_lea.vmem [#allocation15], %s955
        %p957 = pneg %p304
        %p958 = pneg %p301
        %s959 = sand.u32 %s31, 1
        %s960 = scalar_lea.sflag [#allocation4], %s959
        %s961 = sand.u32 %s317, 1
        %s962 = scalar_lea.vmem [#allocation16], %s961
        %p963 = pneg %p330
        %p964 = pneg %p327
        %s965 = sand.u32 %s31, 1
        %s966 = scalar_lea.sflag [#allocation4], %s965
        %s967 = sand.u32 %s343, 1
        %s968 = scalar_lea.vmem [#allocation17], %s967
        %p969 = pneg %p356
        %p970 = pneg %p353
        %s971 = sand.u32 %s31, 1
        %s972 = scalar_lea.sflag [#allocation4], %s971
        %s973 = sand.u32 %s369, 1
        %s974 = smul.addr %s973, 128
        %s975 = scalar_lea.vmem [#allocation18], %s974
        %p976 = pneg %p382
        %p977 = pneg %p379
        %s978 = sand.u32 %s31, 1
        %s979 = scalar_lea.sflag [#allocation4], %s978
        %s980 = sand.u32 %s395, 1
        %s981 = scalar_lea.vmem [#allocation19], %s980
        %p982 = pneg %p408
        %p983 = pneg %p405
        %s984 = sand.u32 %s31, 1
        %s985 = scalar_lea.sflag [#allocation4], %s984
        %s986 = sand.u32 %s421, 1
        %s987 = smul.addr %s986, 128
        %s988 = scalar_lea.vmem [#allocation20], %s987
        %p989 = pneg %p434
        %p990 = pneg %p431
        %s991 = sand.u32 %s31, 1
        %s992 = scalar_lea.sflag [#allocation4], %s991
        %s993 = sand.u32 %s447, 1
        %s994 = scalar_lea.vmem [#allocation21], %s993
        %p995 = pneg %p460
        %p996 = pneg %p457
        %p997 = pneg %p486
        %p998 = pneg %p483
        %p999 = scmp.lt.s32.totalorder %s35, 1
        %s1000 = scalar_select %p999, %s35, 1
        %s1001 = smul.addr %s1000, 8
        %s1002 = scalar_lea.vmem %s17, %s1001
        %p1003 = scmp.lt.s32.totalorder %s35, 1
        %s1004 = scalar_select %p1003, %s35, 1
        %s1005 = smul.addr %s1004, 2
        %s1006 = smul.addr %s1005, 8
        %s1007 = scalar_lea.vmem %s0, %s1006
        %p1008 = scmp.lt.s32.totalorder %s35, 1
        %s1009 = scalar_select %p1008, %s35, 1
        %s1010 = smul.addr %s1009, 8
        %s1011 = scalar_lea.vmem %s17, %s1010
        %p1012 = scmp.eq.s32.totalorder %s36, 0
        // Predicated region
        $region153: #{clip_forward.3} parent=87 // pred_check
          %p1013 = pneg %p1012
        $region154: #{clip_forward.3} parent=87 // pred_check_branch
          %1015 = sbr.rel (%p1013) target = $region156
        $region155: #{clip_forward.3} parent=87 // pred_region
          %v1016 = vld [vmem:[%s1007] sm:$0xff]
          %v1017 = vld [vmem:[%s1007 + $0x8] sm:$0xff]
          %v1018 = vld [vmem:[#allocation3] sm:$0xff]
          %v1019 = vld [vmem:[#allocation3 + $0x8] sm:$0xff]
          %v1020 = vld [vmem:[#allocation3 + $0x10] sm:$0xff]
          %v1021 = vld [vmem:[#allocation3 + $0x18] sm:$0xff]
          %v1022 = vld [vmem:[#allocation3 + $0x20] sm:$0xff]
          %v1023 = vld [vmem:[#allocation3 + $0x28] sm:$0xff]
          %v1024 = vld [vmem:[#allocation3 + $0x30] sm:$0xff]
          %v1025 = vld [vmem:[#allocation3 + $0x38] sm:$0xff]
          %v1026 = vld [vmem:[#allocation3 + $0x40] sm:$0xff]
          %v1027 = vld [vmem:[#allocation3 + $0x48] sm:$0xff]
          %v1028 = vld [vmem:[#allocation3 + $0x50] sm:$0xff]
          %v1029 = vld [vmem:[#allocation3 + $0x58] sm:$0xff]
          %v1030 = vld [vmem:[#allocation3 + $0x60] sm:$0xff]
          %v1031 = vld [vmem:[#allocation3 + $0x68] sm:$0xff]
          %v1032 = vld [vmem:[#allocation3 + $0x70] sm:$0xff]
          %v1033 = vld [vmem:[#allocation3 + $0x78] sm:$0xff]
          %v1034 = vld [vmem:[#allocation3 + $0x80] sm:$0xff]
          %v1035 = vld [vmem:[#allocation3 + $0x88] sm:$0xff]
          %v1036 = vld [vmem:[#allocation3 + $0x90] sm:$0xff]
          %v1037 = vld [vmem:[#allocation3 + $0x98] sm:$0xff]
          %v1038 = vld [vmem:[#allocation3 + $0xa0] sm:$0xff]
          %v1039 = vld [vmem:[#allocation3 + $0xa8] sm:$0xff]
          %v1040 = vld [vmem:[#allocation3 + $0xb0] sm:$0xff]
          %v1041 = vld [vmem:[#allocation3 + $0xb8] sm:$0xff]
          %v1042 = vld [vmem:[#allocation3 + $0xc0] sm:$0xff]
          %v1043 = vld [vmem:[#allocation3 + $0xc8] sm:$0xff]
          %v1044 = vld [vmem:[#allocation3 + $0xd0] sm:$0xff]
          %v1045 = vld [vmem:[#allocation3 + $0xd8] sm:$0xff]
          %v1046 = vld [vmem:[#allocation3 + $0xe0] sm:$0xff]
          %v1047 = vld [vmem:[#allocation3 + $0xe8] sm:$0xff]
          %v1048 = vld [vmem:[#allocation3 + $0xf0] sm:$0xff]
          %v1049 = vld [vmem:[#allocation3 + $0xf8] sm:$0xff]
          %v1050 = vld [vmem:[#allocation5] sm:$0xff]
          %1051 = vmatprep.subr.mxu0 0.0
          %1052 = vmatpush1.msra.mxu0 %v1033
          %1053 = vmatprep.subr.mxu0 0.0
          %1054 = vmatpush1.msra.mxu0 %v1032
          %1055 = vmatprep.subr.mxu0 0.0
          %1056 = vmatpush1.msra.mxu0 %v1031
          %1057 = vmatprep.subr.mxu0 0.0
          %1058 = vmatpush1.msra.mxu0 %v1030
          %1059 = vmatprep.subr.mxu0 0.0
          %1060 = vmatpush1.msra.mxu0 %v1029
          %1061 = vmatprep.subr.mxu0 0.0
          %1062 = vmatpush1.msra.mxu0 %v1028
          %1063 = vmatprep.subr.mxu0 0.0
          %1064 = vmatpush1.msra.mxu0 %v1027
          %1065 = vmatprep.subr.mxu0 0.0
          %1066 = vmatpush1.msra.mxu0 %v1026
          %1067 = vmatprep.subr.mxu0 0.0
          %1068 = vmatpush1.msra.mxu0 %v1025
          %1069 = vmatprep.subr.mxu0 0.0
          %1070 = vmatpush1.msra.mxu0 %v1024
          %1071 = vmatprep.subr.mxu0 0.0
          %1072 = vmatpush1.msra.mxu0 %v1023
          %1073 = vmatprep.subr.mxu0 0.0
          %1074 = vmatpush1.msra.mxu0 %v1022
          %1075 = vmatprep.subr.mxu0 0.0
          %1076 = vmatpush1.msra.mxu0 %v1021
          %1077 = vmatprep.subr.mxu0 0.0
          %1078 = vmatpush1.msra.mxu0 %v1020
          %1079 = vmatprep.subr.mxu0 0.0
          %1080 = vmatpush1.msra.mxu0 %v1019
          %1081 = vmatprep.subr.mxu0 0.0
          %1082 = vmatpush1.msra.mxu0 %v1018
          %1083 = vmatprep.subr.mxu0 0.0
          %1084 = vmatpush2.msra.mxu0 %v1049
          %1085 = vmatprep.subr.mxu0 0.0
          %1086 = vmatpush2.msra.mxu0 %v1048
          %1087 = vmatprep.subr.mxu0 0.0
          %1088 = vmatpush2.msra.mxu0 %v1047
          %1089 = vmatprep.subr.mxu0 0.0
          %1090 = vmatpush2.msra.mxu0 %v1046
          %1091 = vmatprep.subr.mxu0 0.0
          %1092 = vmatpush2.msra.mxu0 %v1045
          %1093 = vmatprep.subr.mxu0 0.0
          %1094 = vmatpush2.msra.mxu0 %v1044
          %1095 = vmatprep.subr.mxu0 0.0
          %1096 = vmatpush2.msra.mxu0 %v1043
          %1097 = vmatprep.subr.mxu0 0.0
          %1098 = vmatpush2.msra.mxu0 %v1042
          %1099 = vmatprep.subr.mxu0 0.0
          %1100 = vmatpush2.msra.mxu0 %v1041
          %1101 = vmatprep.subr.mxu0 0.0
          %1102 = vmatpush2.msra.mxu0 %v1040
          %1103 = vmatprep.subr.mxu0 0.0
          %1104 = vmatpush2.msra.mxu0 %v1039
          %1105 = vmatprep.subr.mxu0 0.0
          %1106 = vmatpush2.msra.mxu0 %v1038
          %1107 = vmatprep.subr.mxu0 0.0
          %1108 = vmatpush2.msra.mxu0 %v1037
          %1109 = vmatprep.subr.mxu0 0.0
          %1110 = vmatpush2.msra.mxu0 %v1036
          %1111 = vmatprep.subr.mxu0 0.0
          %1112 = vmatpush2.msra.mxu0 %v1035
          %1113 = vmatprep.subr.mxu0 0.0
          %1114 = vmatpush2.msra.mxu0 %v1034
          %1115 = vmatprep.mubr.f32.mxu0 %v1017
          %1116 = vmatmul.mubr.f32.gmra.mxu0 %v1016
          %v1117 = vpop.f32.mrf.mxu0
          %v1118 = vadd.f32 %v1050, %v1117
          %v1119 = vpop.f32.mrf.mxu0
          %1120 = vdwg.mxu0
          %v1121 = vld [vmem:[#allocation7] sm:$0x1]
          %v1122 = vld [vmem:[#allocation8] sm:$0x1]
          %v1123 = vlaneseq
          %v1124 = vand.u32 %v1123, 127
          %vm1125 = vcmp.lt.s32.totalorder %v1124, 32
          %v1126 = vsel %vm1125, 1, 0
          %v1127 = vcvt.s32.f32 %v1126
          %1128 = vadd.xlane.f32.xlu0 %v1118
          %v1129 = vpop.xlane.xlu0 %1128
          %v1130 = vmul.f32 %v1129, 0.03125
          %v1131 = vsub.f32 %v1118, %v1130
          %v1132 = vmul.f32 %v1131, %v1131
          %v1133 = vmul.f32 %v1132, %v1127
          %1134 = vadd.xlane.f32.xlu0 %v1133
          %v1135 = vpop.xlane.xlu0 %1134
          %v1136 = vmul.f32 %v1135, 0.03125
          %v1137 = vadd.f32 %v1136, 1e-05
          %v1138 = vrsqrt.pop %v1137
          %v1139 = vmul.f32 %v1131, %v1138
          %v1141 = vlaneseq
          %v1142 = vshrl.u32 %v1141, 7
          %v1143 = vsub.s32 0, %v1142
          %v1144 = vrot.slane %v1121, %v1143
          %v1146 = vmul.f32 %v1139, %v1144
          %v1148 = vlaneseq
          %v1149 = vshrl.u32 %v1148, 7
          %v1150 = vsub.s32 0, %v1149
          %v1151 = vrot.slane %v1122, %v1150
          %v1153 = vadd.f32 %v1146, %v1151
          %1154 = vst [vmem:[#allocation2] sm:$0xff] %v1153
        $region156: #{clip_forward.3} parent=87 // pred_fallthru
          _
        %v1155 = vlaneseq
        %v1156 = vand.u32 %v1155, 127
        %vm1157 = vcmp.ge.s32.totalorder %v1156, 5
        %v1158 = vsel %vm1157, -1e+09, 0.0
        %v1159 = vld [vmem:[%s807] sm:$0x1]
        %v1160 = vld [vmem:[%s815] sm:$0x1]
        %v1161 = vld [vmem:[%s824] sm:$0xff]
        %v1162 = vld [vmem:[%s824 + $0x8] sm:$0xff]
        %v1163 = vld [vmem:[%s824 + $0x10] sm:$0xff]
        %v1164 = vld [vmem:[%s824 + $0x18] sm:$0xff]
        %v1165 = vld [vmem:[%s824 + $0x20] sm:$0xff]
        %v1166 = vld [vmem:[%s824 + $0x28] sm:$0xff]
        %v1167 = vld [vmem:[%s824 + $0x30] sm:$0xff]
        %v1168 = vld [vmem:[%s824 + $0x38] sm:$0xff]
        %v1169 = vld [vmem:[%s824 + $0x40] sm:$0xff]
        %v1170 = vld [vmem:[%s824 + $0x48] sm:$0xff]
        %v1171 = vld [vmem:[%s824 + $0x50] sm:$0xff]
        %v1172 = vld [vmem:[%s824 + $0x58] sm:$0xff]
        %v1173 = vld [vmem:[%s824 + $0x60] sm:$0xff]
        %v1174 = vld [vmem:[%s824 + $0x68] sm:$0xff]
        %v1175 = vld [vmem:[%s824 + $0x70] sm:$0xff]
        %v1176 = vld [vmem:[%s824 + $0x78] sm:$0xff]
        %v1177 = vld [vmem:[%s824 + $0x80] sm:$0xff]
        %v1178 = vld [vmem:[%s824 + $0x88] sm:$0xff]
        %v1179 = vld [vmem:[%s824 + $0x90] sm:$0xff]
        %v1180 = vld [vmem:[%s824 + $0x98] sm:$0xff]
        %v1181 = vld [vmem:[%s824 + $0xa0] sm:$0xff]
        %v1182 = vld [vmem:[%s824 + $0xa8] sm:$0xff]
        %v1183 = vld [vmem:[%s824 + $0xb0] sm:$0xff]
        %v1184 = vld [vmem:[%s824 + $0xb8] sm:$0xff]
        %v1185 = vld [vmem:[%s824 + $0xc0] sm:$0xff]
        %v1186 = vld [vmem:[%s824 + $0xc8] sm:$0xff]
        %v1187 = vld [vmem:[%s824 + $0xd0] sm:$0xff]
        %v1188 = vld [vmem:[%s824 + $0xd8] sm:$0xff]
        %v1189 = vld [vmem:[%s824 + $0xe0] sm:$0xff]
        %v1190 = vld [vmem:[%s824 + $0xe8] sm:$0xff]
        %v1191 = vld [vmem:[%s824 + $0xf0] sm:$0xff]
        %v1192 = vld [vmem:[%s824 + $0xf8] sm:$0xff]
        %v1193 = vld [vmem:[%s824 + $0x100] sm:$0xff]
        %v1194 = vld [vmem:[%s824 + $0x108] sm:$0xff]
        %v1195 = vld [vmem:[%s824 + $0x110] sm:$0xff]
        %v1196 = vld [vmem:[%s824 + $0x118] sm:$0xff]
        %v1197 = vld [vmem:[%s824 + $0x120] sm:$0xff]
        %v1198 = vld [vmem:[%s824 + $0x128] sm:$0xff]
        %v1199 = vld [vmem:[%s824 + $0x130] sm:$0xff]
        %v1200 = vld [vmem:[%s824 + $0x138] sm:$0xff]
        %v1201 = vld [vmem:[%s824 + $0x140] sm:$0xff]
        %v1202 = vld [vmem:[%s824 + $0x148] sm:$0xff]
        %v1203 = vld [vmem:[%s824 + $0x150] sm:$0xff]
        %v1204 = vld [vmem:[%s824 + $0x158] sm:$0xff]
        %v1205 = vld [vmem:[%s824 + $0x160] sm:$0xff]
        %v1206 = vld [vmem:[%s824 + $0x168] sm:$0xff]
        %v1207 = vld [vmem:[%s824 + $0x170] sm:$0xff]
        %v1208 = vld [vmem:[%s824 + $0x178] sm:$0xff]
        %v1209 = vld [vmem:[%s824 + $0x180] sm:$0xff]
        %v1210 = vld [vmem:[%s824 + $0x188] sm:$0xff]
        %v1211 = vld [vmem:[%s824 + $0x190] sm:$0xff]
        %v1212 = vld [vmem:[%s824 + $0x198] sm:$0xff]
        %v1213 = vld [vmem:[%s824 + $0x1a0] sm:$0xff]
        %v1214 = vld [vmem:[%s824 + $0x1a8] sm:$0xff]
        %v1215 = vld [vmem:[%s824 + $0x1b0] sm:$0xff]
        %v1216 = vld [vmem:[%s824 + $0x1b8] sm:$0xff]
        %v1217 = vld [vmem:[%s824 + $0x1c0] sm:$0xff]
        %v1218 = vld [vmem:[%s824 + $0x1c8] sm:$0xff]
        %v1219 = vld [vmem:[%s824 + $0x1d0] sm:$0xff]
        %v1220 = vld [vmem:[%s824 + $0x1d8] sm:$0xff]
        %v1221 = vld [vmem:[%s824 + $0x1e0] sm:$0xff]
        %v1222 = vld [vmem:[%s824 + $0x1e8] sm:$0xff]
        %v1223 = vld [vmem:[%s824 + $0x1f0] sm:$0xff]
        %v1224 = vld [vmem:[%s824 + $0x1f8] sm:$0xff]
        %v1225 = vld [vmem:[%s824 + $0x200] sm:$0xff]
        %v1226 = vld [vmem:[%s824 + $0x208] sm:$0xff]
        %v1227 = vld [vmem:[%s824 + $0x210] sm:$0xff]
        %v1228 = vld [vmem:[%s824 + $0x218] sm:$0xff]
        %v1229 = vld [vmem:[%s824 + $0x220] sm:$0xff]
        %v1230 = vld [vmem:[%s824 + $0x228] sm:$0xff]
        %v1231 = vld [vmem:[%s824 + $0x230] sm:$0xff]
        %v1232 = vld [vmem:[%s824 + $0x238] sm:$0xff]
        %v1233 = vld [vmem:[%s824 + $0x240] sm:$0xff]
        %v1234 = vld [vmem:[%s824 + $0x248] sm:$0xff]
        %v1235 = vld [vmem:[%s824 + $0x250] sm:$0xff]
        %v1236 = vld [vmem:[%s824 + $0x258] sm:$0xff]
        %v1237 = vld [vmem:[%s824 + $0x260] sm:$0xff]
        %v1238 = vld [vmem:[%s824 + $0x268] sm:$0xff]
        %v1239 = vld [vmem:[%s824 + $0x270] sm:$0xff]
        %v1240 = vld [vmem:[%s824 + $0x278] sm:$0xff]
        %v1241 = vld [vmem:[%s824 + $0x280] sm:$0xff]
        %v1242 = vld [vmem:[%s824 + $0x288] sm:$0xff]
        %v1243 = vld [vmem:[%s824 + $0x290] sm:$0xff]
        %v1244 = vld [vmem:[%s824 + $0x298] sm:$0xff]
        %v1245 = vld [vmem:[%s824 + $0x2a0] sm:$0xff]
        %v1246 = vld [vmem:[%s824 + $0x2a8] sm:$0xff]
        %v1247 = vld [vmem:[%s824 + $0x2b0] sm:$0xff]
        %v1248 = vld [vmem:[%s824 + $0x2b8] sm:$0xff]
        %v1249 = vld [vmem:[%s824 + $0x2c0] sm:$0xff]
        %v1250 = vld [vmem:[%s824 + $0x2c8] sm:$0xff]
        %v1251 = vld [vmem:[%s824 + $0x2d0] sm:$0xff]
        %v1252 = vld [vmem:[%s824 + $0x2d8] sm:$0xff]
        %v1253 = vld [vmem:[%s824 + $0x2e0] sm:$0xff]
        %v1254 = vld [vmem:[%s824 + $0x2e8] sm:$0xff]
        %v1255 = vld [vmem:[%s824 + $0x2f0] sm:$0xff]
        %v1256 = vld [vmem:[%s824 + $0x2f8] sm:$0xff]
        %v1257 = vld [vmem:[%s824 + $0x300] sm:$0xff]
        %v1258 = vld [vmem:[%s824 + $0x308] sm:$0xff]
        %v1259 = vld [vmem:[%s824 + $0x310] sm:$0xff]
        %v1260 = vld [vmem:[%s824 + $0x318] sm:$0xff]
        %v1261 = vld [vmem:[%s824 + $0x320] sm:$0xff]
        %v1262 = vld [vmem:[%s824 + $0x328] sm:$0xff]
        %v1263 = vld [vmem:[%s824 + $0x330] sm:$0xff]
        %v1264 = vld [vmem:[%s824 + $0x338] sm:$0xff]
        %v1265 = vld [vmem:[%s824 + $0x340] sm:$0xff]
        %v1266 = vld [vmem:[%s824 + $0x348] sm:$0xff]
        %v1267 = vld [vmem:[%s824 + $0x350] sm:$0xff]
        %v1268 = vld [vmem:[%s824 + $0x358] sm:$0xff]
        %v1269 = vld [vmem:[%s824 + $0x360] sm:$0xff]
        %v1270 = vld [vmem:[%s824 + $0x368] sm:$0xff]
        %v1271 = vld [vmem:[%s824 + $0x370] sm:$0xff]
        %v1272 = vld [vmem:[%s824 + $0x378] sm:$0xff]
        %v1273 = vld [vmem:[%s824 + $0x380] sm:$0xff]
        %v1274 = vld [vmem:[%s824 + $0x388] sm:$0xff]
        %v1275 = vld [vmem:[%s824 + $0x390] sm:$0xff]
        %v1276 = vld [vmem:[%s824 + $0x398] sm:$0xff]
        %v1277 = vld [vmem:[%s824 + $0x3a0] sm:$0xff]
        %v1278 = vld [vmem:[%s824 + $0x3a8] sm:$0xff]
        %v1279 = vld [vmem:[%s824 + $0x3b0] sm:$0xff]
        %v1280 = vld [vmem:[%s824 + $0x3b8] sm:$0xff]
        %v1281 = vld [vmem:[%s824 + $0x3c0] sm:$0xff]
        %v1282 = vld [vmem:[%s824 + $0x3c8] sm:$0xff]
        %v1283 = vld [vmem:[%s824 + $0x3d0] sm:$0xff]
        %v1284 = vld [vmem:[%s824 + $0x3d8] sm:$0xff]
        %v1285 = vld [vmem:[%s824 + $0x3e0] sm:$0xff]
        %v1286 = vld [vmem:[%s824 + $0x3e8] sm:$0xff]
        %v1287 = vld [vmem:[%s824 + $0x3f0] sm:$0xff]
        %v1288 = vld [vmem:[%s824 + $0x3f8] sm:$0xff]
        %v1289 = vld [vmem:[%s824 + $0x400] sm:$0xff]
        %v1290 = vld [vmem:[%s824 + $0x408] sm:$0xff]
        %v1291 = vld [vmem:[%s824 + $0x410] sm:$0xff]
        %v1292 = vld [vmem:[%s824 + $0x418] sm:$0xff]
        %v1293 = vld [vmem:[%s824 + $0x420] sm:$0xff]
        %v1294 = vld [vmem:[%s824 + $0x428] sm:$0xff]
        %v1295 = vld [vmem:[%s824 + $0x430] sm:$0xff]
        %v1296 = vld [vmem:[%s824 + $0x438] sm:$0xff]
        %v1297 = vld [vmem:[%s824 + $0x440] sm:$0xff]
        %v1298 = vld [vmem:[%s824 + $0x448] sm:$0xff]
        %v1299 = vld [vmem:[%s824 + $0x450] sm:$0xff]
        %v1300 = vld [vmem:[%s824 + $0x458] sm:$0xff]
        %v1301 = vld [vmem:[%s824 + $0x460] sm:$0xff]
        %v1302 = vld [vmem:[%s824 + $0x468] sm:$0xff]
        %v1303 = vld [vmem:[%s824 + $0x470] sm:$0xff]
        %v1304 = vld [vmem:[%s824 + $0x478] sm:$0xff]
        %v1305 = vld [vmem:[%s824 + $0x480] sm:$0xff]
        %v1306 = vld [vmem:[%s824 + $0x488] sm:$0xff]
        %v1307 = vld [vmem:[%s824 + $0x490] sm:$0xff]
        %v1308 = vld [vmem:[%s824 + $0x498] sm:$0xff]
        %v1309 = vld [vmem:[%s824 + $0x4a0] sm:$0xff]
        %v1310 = vld [vmem:[%s824 + $0x4a8] sm:$0xff]
        %v1311 = vld [vmem:[%s824 + $0x4b0] sm:$0xff]
        %v1312 = vld [vmem:[%s824 + $0x4b8] sm:$0xff]
        %v1313 = vld [vmem:[%s824 + $0x4c0] sm:$0xff]
        %v1314 = vld [vmem:[%s824 + $0x4c8] sm:$0xff]
        %v1315 = vld [vmem:[%s824 + $0x4d0] sm:$0xff]
        %v1316 = vld [vmem:[%s824 + $0x4d8] sm:$0xff]
        %v1317 = vld [vmem:[%s824 + $0x4e0] sm:$0xff]
        %v1318 = vld [vmem:[%s824 + $0x4e8] sm:$0xff]
        %v1319 = vld [vmem:[%s824 + $0x4f0] sm:$0xff]
        %v1320 = vld [vmem:[%s824 + $0x4f8] sm:$0xff]
        %v1321 = vld [vmem:[%s824 + $0x500] sm:$0xff]
        %v1322 = vld [vmem:[%s824 + $0x508] sm:$0xff]
        %v1323 = vld [vmem:[%s824 + $0x510] sm:$0xff]
        %v1324 = vld [vmem:[%s824 + $0x518] sm:$0xff]
        %v1325 = vld [vmem:[%s824 + $0x520] sm:$0xff]
        %v1326 = vld [vmem:[%s824 + $0x528] sm:$0xff]
        %v1327 = vld [vmem:[%s824 + $0x530] sm:$0xff]
        %v1328 = vld [vmem:[%s824 + $0x538] sm:$0xff]
        %v1329 = vld [vmem:[%s824 + $0x540] sm:$0xff]
        %v1330 = vld [vmem:[%s824 + $0x548] sm:$0xff]
        %v1331 = vld [vmem:[%s824 + $0x550] sm:$0xff]
        %v1332 = vld [vmem:[%s824 + $0x558] sm:$0xff]
        %v1333 = vld [vmem:[%s824 + $0x560] sm:$0xff]
        %v1334 = vld [vmem:[%s824 + $0x568] sm:$0xff]
        %v1335 = vld [vmem:[%s824 + $0x570] sm:$0xff]
        %v1336 = vld [vmem:[%s824 + $0x578] sm:$0xff]
        %v1337 = vld [vmem:[%s824 + $0x580] sm:$0xff]
        %v1338 = vld [vmem:[%s824 + $0x588] sm:$0xff]
        %v1339 = vld [vmem:[%s824 + $0x590] sm:$0xff]
        %v1340 = vld [vmem:[%s824 + $0x598] sm:$0xff]
        %v1341 = vld [vmem:[%s824 + $0x5a0] sm:$0xff]
        %v1342 = vld [vmem:[%s824 + $0x5a8] sm:$0xff]
        %v1343 = vld [vmem:[%s824 + $0x5b0] sm:$0xff]
        %v1344 = vld [vmem:[%s824 + $0x5b8] sm:$0xff]
        %v1345 = vld [vmem:[%s824 + $0x5c0] sm:$0xff]
        %v1346 = vld [vmem:[%s824 + $0x5c8] sm:$0xff]
        %v1347 = vld [vmem:[%s824 + $0x5d0] sm:$0xff]
        %v1348 = vld [vmem:[%s824 + $0x5d8] sm:$0xff]
        %v1349 = vld [vmem:[%s824 + $0x5e0] sm:$0xff]
        %v1350 = vld [vmem:[%s824 + $0x5e8] sm:$0xff]
        %v1351 = vld [vmem:[%s824 + $0x5f0] sm:$0xff]
        %v1352 = vld [vmem:[%s824 + $0x5f8] sm:$0xff]
        %v1353 = vld [vmem:[%s833] sm:$0xff]
        %v1354 = vld [vmem:[%s833 + $0x8] sm:$0xf]
        %v1355 = vld [vmem:[%s842] sm:$0xff]
        %v1356 = vld [vmem:[%s842 + $0x8] sm:$0xff]
        %v1357 = vld [vmem:[%s842 + $0x10] sm:$0xff]
        %v1358 = vld [vmem:[%s842 + $0x18] sm:$0xff]
        %v1359 = vld [vmem:[%s842 + $0x20] sm:$0xff]
        %v1360 = vld [vmem:[%s842 + $0x28] sm:$0xff]
        %v1361 = vld [vmem:[%s842 + $0x30] sm:$0xff]
        %v1362 = vld [vmem:[%s842 + $0x38] sm:$0xff]
        %v1363 = vld [vmem:[%s842 + $0x40] sm:$0xff]
        %v1364 = vld [vmem:[%s842 + $0x48] sm:$0xff]
        %v1365 = vld [vmem:[%s842 + $0x50] sm:$0xff]
        %v1366 = vld [vmem:[%s842 + $0x58] sm:$0xff]
        %v1367 = vld [vmem:[%s842 + $0x60] sm:$0xff]
        %v1368 = vld [vmem:[%s842 + $0x68] sm:$0xff]
        %v1369 = vld [vmem:[%s842 + $0x70] sm:$0xff]
        %v1370 = vld [vmem:[%s842 + $0x78] sm:$0xff]
        %v1371 = vld [vmem:[%s842 + $0x80] sm:$0xff]
        %v1372 = vld [vmem:[%s842 + $0x88] sm:$0xff]
        %v1373 = vld [vmem:[%s842 + $0x90] sm:$0xff]
        %v1374 = vld [vmem:[%s842 + $0x98] sm:$0xff]
        %v1375 = vld [vmem:[%s842 + $0xa0] sm:$0xff]
        %v1376 = vld [vmem:[%s842 + $0xa8] sm:$0xff]
        %v1377 = vld [vmem:[%s842 + $0xb0] sm:$0xff]
        %v1378 = vld [vmem:[%s842 + $0xb8] sm:$0xff]
        %v1379 = vld [vmem:[%s842 + $0xc0] sm:$0xff]
        %v1380 = vld [vmem:[%s842 + $0xc8] sm:$0xff]
        %v1381 = vld [vmem:[%s842 + $0xd0] sm:$0xff]
        %v1382 = vld [vmem:[%s842 + $0xd8] sm:$0xff]
        %v1383 = vld [vmem:[%s842 + $0xe0] sm:$0xff]
        %v1384 = vld [vmem:[%s842 + $0xe8] sm:$0xff]
        %v1385 = vld [vmem:[%s842 + $0xf0] sm:$0xff]
        %v1386 = vld [vmem:[%s842 + $0xf8] sm:$0xff]
        %v1387 = vld [vmem:[%s842 + $0x100] sm:$0xff]
        %v1388 = vld [vmem:[%s842 + $0x108] sm:$0xff]
        %v1389 = vld [vmem:[%s842 + $0x110] sm:$0xff]
        %v1390 = vld [vmem:[%s842 + $0x118] sm:$0xff]
        %v1391 = vld [vmem:[%s842 + $0x120] sm:$0xff]
        %v1392 = vld [vmem:[%s842 + $0x128] sm:$0xff]
        %v1393 = vld [vmem:[%s842 + $0x130] sm:$0xff]
        %v1394 = vld [vmem:[%s842 + $0x138] sm:$0xff]
        %v1395 = vld [vmem:[%s842 + $0x140] sm:$0xff]
        %v1396 = vld [vmem:[%s842 + $0x148] sm:$0xff]
        %v1397 = vld [vmem:[%s842 + $0x150] sm:$0xff]
        %v1398 = vld [vmem:[%s842 + $0x158] sm:$0xff]
        %v1399 = vld [vmem:[%s842 + $0x160] sm:$0xff]
        %v1400 = vld [vmem:[%s842 + $0x168] sm:$0xff]
        %v1401 = vld [vmem:[%s842 + $0x170] sm:$0xff]
        %v1402 = vld [vmem:[%s842 + $0x178] sm:$0xff]
        %v1403 = vld [vmem:[%s842 + $0x180] sm:$0xff]
        %v1404 = vld [vmem:[%s842 + $0x188] sm:$0xff]
        %v1405 = vld [vmem:[%s842 + $0x190] sm:$0xff]
        %v1406 = vld [vmem:[%s842 + $0x198] sm:$0xff]
        %v1407 = vld [vmem:[%s842 + $0x1a0] sm:$0xff]
        %v1408 = vld [vmem:[%s842 + $0x1a8] sm:$0xff]
        %v1409 = vld [vmem:[%s842 + $0x1b0] sm:$0xff]
        %v1410 = vld [vmem:[%s842 + $0x1b8] sm:$0xff]
        %v1411 = vld [vmem:[%s842 + $0x1c0] sm:$0xff]
        %v1412 = vld [vmem:[%s842 + $0x1c8] sm:$0xff]
        %v1413 = vld [vmem:[%s842 + $0x1d0] sm:$0xff]
        %v1414 = vld [vmem:[%s842 + $0x1d8] sm:$0xff]
        %v1415 = vld [vmem:[%s842 + $0x1e0] sm:$0xff]
        %v1416 = vld [vmem:[%s842 + $0x1e8] sm:$0xff]
        %v1417 = vld [vmem:[%s842 + $0x1f0] sm:$0xff]
        %v1418 = vld [vmem:[%s842 + $0x1f8] sm:$0xff]
        %v1419 = vld [vmem:[%s850] sm:$0x1]
        %v1420 = vld [vmem:[%s858] sm:$0x1]
        %v1421 = vld [vmem:[%s866] sm:$0x1]
        %v1422 = vld [vmem:[%s875] sm:$0xff]
        %v1423 = vld [vmem:[%s875 + $0x8] sm:$0xff]
        %v1424 = vld [vmem:[%s875 + $0x10] sm:$0xff]
        %v1425 = vld [vmem:[%s875 + $0x18] sm:$0xff]
        %v1426 = vld [vmem:[%s875 + $0x20] sm:$0xff]
        %v1427 = vld [vmem:[%s875 + $0x28] sm:$0xff]
        %v1428 = vld [vmem:[%s875 + $0x30] sm:$0xff]
        %v1429 = vld [vmem:[%s875 + $0x38] sm:$0xff]
        %v1430 = vld [vmem:[%s875 + $0x40] sm:$0xff]
        %v1431 = vld [vmem:[%s875 + $0x48] sm:$0xff]
        %v1432 = vld [vmem:[%s875 + $0x50] sm:$0xff]
        %v1433 = vld [vmem:[%s875 + $0x58] sm:$0xff]
        %v1434 = vld [vmem:[%s875 + $0x60] sm:$0xff]
        %v1435 = vld [vmem:[%s875 + $0x68] sm:$0xff]
        %v1436 = vld [vmem:[%s875 + $0x70] sm:$0xff]
        %v1437 = vld [vmem:[%s875 + $0x78] sm:$0xff]
        %v1438 = vld [vmem:[%s883] sm:$0x1]
        %v1439 = vld [vmem:[%s892] sm:$0xff]
        %v1440 = vld [vmem:[%s892 + $0x8] sm:$0xff]
        %v1441 = vld [vmem:[%s892 + $0x10] sm:$0xff]
        %v1442 = vld [vmem:[%s892 + $0x18] sm:$0xff]
        %v1443 = vld [vmem:[%s892 + $0x20] sm:$0xff]
        %v1444 = vld [vmem:[%s892 + $0x28] sm:$0xff]
        %v1445 = vld [vmem:[%s892 + $0x30] sm:$0xff]
        %v1446 = vld [vmem:[%s892 + $0x38] sm:$0xff]
        %v1447 = vld [vmem:[%s892 + $0x40] sm:$0xff]
        %v1448 = vld [vmem:[%s892 + $0x48] sm:$0xff]
        %v1449 = vld [vmem:[%s892 + $0x50] sm:$0xff]
        %v1450 = vld [vmem:[%s892 + $0x58] sm:$0xff]
        %v1451 = vld [vmem:[%s892 + $0x60] sm:$0xff]
        %v1452 = vld [vmem:[%s892 + $0x68] sm:$0xff]
        %v1453 = vld [vmem:[%s892 + $0x70] sm:$0xff]
        %v1454 = vld [vmem:[%s892 + $0x78] sm:$0xff]
        %v1455 = vld [vmem:[%s900] sm:$0x1]
        %v1456 = vld [vmem:[#allocation2] sm:$0xff]
        %vm1457 = vcmp.lt.s32.totalorder %v1156, 32
        %v1458 = vsel %vm1457, 1, 0
        %v1459 = vcvt.s32.f32 %v1458
        %1460 = vadd.xlane.f32.xlu0 %v1456
        %v1461 = vpop.xlane.xlu0 %1460
        %v1462 = vmul.f32 %v1461, 0.03125
        %v1463 = vsub.f32 %v1456, %v1462
        %v1464 = vmul.f32 %v1463, %v1463
        %v1465 = vmul.f32 %v1464, %v1459
        %1466 = vadd.xlane.f32.xlu0 %v1465
        %v1467 = vpop.xlane.xlu0 %1466
        %v1468 = vmul.f32 %v1467, 0.03125
        %v1469 = vadd.f32 %v1468, 1e-05
        %v1470 = vrsqrt.pop %v1469
        %v1471 = vmul.f32 %v1463, %v1470
        %v1473 = vlaneseq
        %v1474 = vshrl.u32 %v1473, 7
        %v1475 = vsub.s32 0, %v1474
        %v1476 = vrot.slane %v1159, %v1475
        %v1478 = vmul.f32 %v1471, %v1476
        %v1480 = vlaneseq
        %v1481 = vshrl.u32 %v1480, 7
        %v1482 = vsub.s32 0, %v1481
        %v1483 = vrot.slane %v1160, %v1482
        %v1485 = vadd.f32 %v1478, %v1483
        %v1488 = vlaneseq
        %v1489 = vshrl.u32 %v1488, 7
        %v1490 = vsub.s32 0, %v1489
        %v1491 = vrot.slane %v1353, %v1490
        %v1492 = vlaneseq
        %v1493 = vshrl.u32 %v1492, 7
        %v1494 = vsub.s32 1, %v1493
        %v1495 = vrot.slane %v1353, %v1494
        %v1496 = vlaneseq
        %v1497 = vshrl.u32 %v1496, 7
        %v1498 = vsub.s32 2, %v1497
        %v1499 = vrot.slane %v1353, %v1498
        %v1500 = vlaneseq
        %v1501 = vshrl.u32 %v1500, 7
        %v1502 = vsub.s32 3, %v1501
        %v1503 = vrot.slane %v1353, %v1502
        %v1504 = vlaneseq
        %v1505 = vshrl.u32 %v1504, 7
        %v1506 = vsub.s32 4, %v1505
        %v1507 = vrot.slane %v1353, %v1506
        %v1508 = vlaneseq
        %v1509 = vshrl.u32 %v1508, 7
        %v1510 = vsub.s32 5, %v1509
        %v1511 = vrot.slane %v1353, %v1510
        %v1512 = vlaneseq
        %v1513 = vshrl.u32 %v1512, 7
        %v1514 = vsub.s32 6, %v1513
        %v1515 = vrot.slane %v1353, %v1514
        %v1516 = vlaneseq
        %v1517 = vshrl.u32 %v1516, 7
        %v1518 = vsub.s32 7, %v1517
        %v1519 = vrot.slane %v1353, %v1518
        %v1520 = vlaneseq
        %v1521 = vshrl.u32 %v1520, 7
        %v1522 = vsub.s32 0, %v1521
        %v1523 = vrot.slane %v1354, %v1522
        %v1524 = vlaneseq
        %v1525 = vshrl.u32 %v1524, 7
        %v1526 = vsub.s32 1, %v1525
        %v1527 = vrot.slane %v1354, %v1526
        %v1528 = vlaneseq
        %v1529 = vshrl.u32 %v1528, 7
        %v1530 = vsub.s32 2, %v1529
        %v1531 = vrot.slane %v1354, %v1530
        %v1532 = vlaneseq
        %v1533 = vshrl.u32 %v1532, 7
        %v1534 = vsub.s32 3, %v1533
        %v1535 = vrot.slane %v1354, %v1534
        %1548 = vmatprep.subr.mxu0 %v1342
        %1549 = vmatpush1.msra.mxu0 %v1341
        %1550 = vmatprep.subr.mxu0 %v1330
        %1551 = vmatpush1.msra.mxu0 %v1329
        %1552 = vmatprep.subr.mxu0 %v1318
        %1553 = vmatpush1.msra.mxu0 %v1317
        %1554 = vmatprep.subr.mxu0 %v1306
        %1555 = vmatpush1.msra.mxu0 %v1305
        %1556 = vmatprep.subr.mxu0 %v1294
        %1557 = vmatpush1.msra.mxu0 %v1293
        %1558 = vmatprep.subr.mxu0 %v1282
        %1559 = vmatpush1.msra.mxu0 %v1281
        %1560 = vmatprep.subr.mxu0 %v1270
        %1561 = vmatpush1.msra.mxu0 %v1269
        %1562 = vmatprep.subr.mxu0 %v1258
        %1563 = vmatpush1.msra.mxu0 %v1257
        %1564 = vmatprep.subr.mxu0 %v1246
        %1565 = vmatpush1.msra.mxu0 %v1245
        %1566 = vmatprep.subr.mxu0 %v1234
        %1567 = vmatpush1.msra.mxu0 %v1233
        %1568 = vmatprep.subr.mxu0 %v1222
        %1569 = vmatpush1.msra.mxu0 %v1221
        %1570 = vmatprep.subr.mxu0 %v1210
        %1571 = vmatpush1.msra.mxu0 %v1209
        %1572 = vmatprep.subr.mxu0 %v1198
        %1573 = vmatpush1.msra.mxu0 %v1197
        %1574 = vmatprep.subr.mxu0 %v1186
        %1575 = vmatpush1.msra.mxu0 %v1185
        %1576 = vmatprep.subr.mxu0 %v1174
        %1577 = vmatpush1.msra.mxu0 %v1173
        %1578 = vmatprep.subr.mxu0 %v1162
        %1579 = vmatpush1.msra.mxu0 %v1161
        %1580 = vmatprep.subr.mxu0 0.0
        %1581 = vmatpush2.msra.mxu0 0.0
        %1582 = vmatprep.subr.mxu0 0.0
        %1583 = vmatpush2.msra.mxu0 0.0
        %1584 = vmatprep.subr.mxu0 0.0
        %1585 = vmatpush2.msra.mxu0 0.0
        %1586 = vmatprep.subr.mxu0 0.0
        %1587 = vmatpush2.msra.mxu0 0.0
        %1588 = vmatprep.subr.mxu0 0.0
        %1589 = vmatpush2.msra.mxu0 0.0
        %1590 = vmatprep.subr.mxu0 0.0
        %1591 = vmatpush2.msra.mxu0 0.0
        %1592 = vmatprep.subr.mxu0 0.0
        %1593 = vmatpush2.msra.mxu0 0.0
        %1594 = vmatprep.subr.mxu0 0.0
        %1595 = vmatpush2.msra.mxu0 0.0
        %1596 = vmatprep.subr.mxu0 0.0
        %1597 = vmatpush2.msra.mxu0 0.0
        %1598 = vmatprep.subr.mxu0 0.0
        %1599 = vmatpush2.msra.mxu0 0.0
        %1600 = vmatprep.subr.mxu0 0.0
        %1601 = vmatpush2.msra.mxu0 0.0
        %1602 = vmatprep.subr.mxu0 0.0
        %1603 = vmatpush2.msra.mxu0 0.0
        %1604 = vmatprep.subr.mxu0 0.0
        %1605 = vmatpush2.msra.mxu0 0.0
        %1606 = vmatprep.subr.mxu0 0.0
        %1607 = vmatpush2.msra.mxu0 0.0
        %1608 = vmatprep.subr.mxu0 0.0
        %1609 = vmatpush2.msra.mxu0 0.0
        %1610 = vmatprep.subr.mxu0 0.0
        %1611 = vmatpush2.msra.mxu0 0.0
        %1612 = vmatprep.mubr.f32.mxu0 0.0
        %1613 = vmatmul.mubr.f32.gmra.mxu0 %v1485
        %v1614 = vpop.f32.mrf.mxu0
        %v1615 = vadd.f32 %v1491, %v1614
        %v1616 = vpop.f32.mrf.mxu0
        %v1617 = vadd.f32 %v1495, %v1616
        %1618 = vdwg.mxu0
        %1619 = vmatprep.subr.mxu0 %v1344
        %1620 = vmatpush1.msra.mxu0 %v1343
        %1621 = vmatprep.subr.mxu0 %v1332
        %1622 = vmatpush1.msra.mxu0 %v1331
        %1623 = vmatprep.subr.mxu0 %v1320
        %1624 = vmatpush1.msra.mxu0 %v1319
        %1625 = vmatprep.subr.mxu0 %v1308
        %1626 = vmatpush1.msra.mxu0 %v1307
        %1627 = vmatprep.subr.mxu0 %v1296
        %1628 = vmatpush1.msra.mxu0 %v1295
        %1629 = vmatprep.subr.mxu0 %v1284
        %1630 = vmatpush1.msra.mxu0 %v1283
        %1631 = vmatprep.subr.mxu0 %v1272
        %1632 = vmatpush1.msra.mxu0 %v1271
        %1633 = vmatprep.subr.mxu0 %v1260
        %1634 = vmatpush1.msra.mxu0 %v1259
        %1635 = vmatprep.subr.mxu0 %v1248
        %1636 = vmatpush1.msra.mxu0 %v1247
        %1637 = vmatprep.subr.mxu0 %v1236
        %1638 = vmatpush1.msra.mxu0 %v1235
        %1639 = vmatprep.subr.mxu0 %v1224
        %1640 = vmatpush1.msra.mxu0 %v1223
        %1641 = vmatprep.subr.mxu0 %v1212
        %1642 = vmatpush1.msra.mxu0 %v1211
        %1643 = vmatprep.subr.mxu0 %v1200
        %1644 = vmatpush1.msra.mxu0 %v1199
        %1645 = vmatprep.subr.mxu0 %v1188
        %1646 = vmatpush1.msra.mxu0 %v1187
        %1647 = vmatprep.subr.mxu0 %v1176
        %1648 = vmatpush1.msra.mxu0 %v1175
        %1649 = vmatprep.subr.mxu0 %v1164
        %1650 = vmatpush1.msra.mxu0 %v1163
        %1651 = vmatprep.subr.mxu0 0.0
        %1652 = vmatpush2.msra.mxu0 0.0
        %1653 = vmatprep.subr.mxu0 0.0
        %1654 = vmatpush2.msra.mxu0 0.0
        %1655 = vmatprep.subr.mxu0 0.0
        %1656 = vmatpush2.msra.mxu0 0.0
        %1657 = vmatprep.subr.mxu0 0.0
        %1658 = vmatpush2.msra.mxu0 0.0
        %1659 = vmatprep.subr.mxu0 0.0
        %1660 = vmatpush2.msra.mxu0 0.0
        %1661 = vmatprep.subr.mxu0 0.0
        %1662 = vmatpush2.msra.mxu0 0.0
        %1663 = vmatprep.subr.mxu0 0.0
        %1664 = vmatpush2.msra.mxu0 0.0
        %1665 = vmatprep.subr.mxu0 0.0
        %1666 = vmatpush2.msra.mxu0 0.0
        %1667 = vmatprep.subr.mxu0 0.0
        %1668 = vmatpush2.msra.mxu0 0.0
        %1669 = vmatprep.subr.mxu0 0.0
        %1670 = vmatpush2.msra.mxu0 0.0
        %1671 = vmatprep.subr.mxu0 0.0
        %1672 = vmatpush2.msra.mxu0 0.0
        %1673 = vmatprep.subr.mxu0 0.0
        %1674 = vmatpush2.msra.mxu0 0.0
        %1675 = vmatprep.subr.mxu0 0.0
        %1676 = vmatpush2.msra.mxu0 0.0
        %1677 = vmatprep.subr.mxu0 0.0
        %1678 = vmatpush2.msra.mxu0 0.0
        %1679 = vmatprep.subr.mxu0 0.0
        %1680 = vmatpush2.msra.mxu0 0.0
        %1681 = vmatprep.subr.mxu0 0.0
        %1682 = vmatpush2.msra.mxu0 0.0
        %1683 = vmatprep.mubr.f32.mxu0 0.0
        %1684 = vmatmul.mubr.f32.gmra.mxu0 %v1485
        %v1685 = vpop.f32.mrf.mxu0
        %v1686 = vadd.f32 %v1499, %v1685
        %v1687 = vpop.f32.mrf.mxu0
        %v1688 = vadd.f32 %v1503, %v1687
        %1689 = vdwg.mxu0
        %1690 = vmatprep.subr.mxu0 %v1346
        %1691 = vmatpush1.msra.mxu0 %v1345
        %1692 = vmatprep.subr.mxu0 %v1334
        %1693 = vmatpush1.msra.mxu0 %v1333
        %1694 = vmatprep.subr.mxu0 %v1322
        %1695 = vmatpush1.msra.mxu0 %v1321
        %1696 = vmatprep.subr.mxu0 %v1310
        %1697 = vmatpush1.msra.mxu0 %v1309
        %1698 = vmatprep.subr.mxu0 %v1298
        %1699 = vmatpush1.msra.mxu0 %v1297
        %1700 = vmatprep.subr.mxu0 %v1286
        %1701 = vmatpush1.msra.mxu0 %v1285
        %1702 = vmatprep.subr.mxu0 %v1274
        %1703 = vmatpush1.msra.mxu0 %v1273
        %1704 = vmatprep.subr.mxu0 %v1262
        %1705 = vmatpush1.msra.mxu0 %v1261
        %1706 = vmatprep.subr.mxu0 %v1250
        %1707 = vmatpush1.msra.mxu0 %v1249
        %1708 = vmatprep.subr.mxu0 %v1238
        %1709 = vmatpush1.msra.mxu0 %v1237
        %1710 = vmatprep.subr.mxu0 %v1226
        %1711 = vmatpush1.msra.mxu0 %v1225
        %1712 = vmatprep.subr.mxu0 %v1214
        %1713 = vmatpush1.msra.mxu0 %v1213
        %1714 = vmatprep.subr.mxu0 %v1202
        %1715 = vmatpush1.msra.mxu0 %v1201
        %1716 = vmatprep.subr.mxu0 %v1190
        %1717 = vmatpush1.msra.mxu0 %v1189
        %1718 = vmatprep.subr.mxu0 %v1178
        %1719 = vmatpush1.msra.mxu0 %v1177
        %1720 = vmatprep.subr.mxu0 %v1166
        %1721 = vmatpush1.msra.mxu0 %v1165
        %1722 = vmatprep.subr.mxu0 0.0
        %1723 = vmatpush2.msra.mxu0 0.0
        %1724 = vmatprep.subr.mxu0 0.0
        %1725 = vmatpush2.msra.mxu0 0.0
        %1726 = vmatprep.subr.mxu0 0.0
        %1727 = vmatpush2.msra.mxu0 0.0
        %1728 = vmatprep.subr.mxu0 0.0
        %1729 = vmatpush2.msra.mxu0 0.0
        %1730 = vmatprep.subr.mxu0 0.0
        %1731 = vmatpush2.msra.mxu0 0.0
        %1732 = vmatprep.subr.mxu0 0.0
        %1733 = vmatpush2.msra.mxu0 0.0
        %1734 = vmatprep.subr.mxu0 0.0
        %1735 = vmatpush2.msra.mxu0 0.0
        %1736 = vmatprep.subr.mxu0 0.0
        %1737 = vmatpush2.msra.mxu0 0.0
        %1738 = vmatprep.subr.mxu0 0.0
        %1739 = vmatpush2.msra.mxu0 0.0
        %1740 = vmatprep.subr.mxu0 0.0
        %1741 = vmatpush2.msra.mxu0 0.0
        %1742 = vmatprep.subr.mxu0 0.0
        %1743 = vmatpush2.msra.mxu0 0.0
        %1744 = vmatprep.subr.mxu0 0.0
        %1745 = vmatpush2.msra.mxu0 0.0
        %1746 = vmatprep.subr.mxu0 0.0
        %1747 = vmatpush2.msra.mxu0 0.0
        %1748 = vmatprep.subr.mxu0 0.0
        %1749 = vmatpush2.msra.mxu0 0.0
        %1750 = vmatprep.subr.mxu0 0.0
        %1751 = vmatpush2.msra.mxu0 0.0
        %1752 = vmatprep.subr.mxu0 0.0
        %1753 = vmatpush2.msra.mxu0 0.0
        %1754 = vmatprep.mubr.f32.mxu0 0.0
        %1755 = vmatmul.mubr.f32.gmra.mxu0 %v1485
        %v1756 = vpop.f32.mrf.mxu0
        %v1757 = vadd.f32 %v1507, %v1756
        %v1758 = vpop.f32.mrf.mxu0
        %v1759 = vadd.f32 %v1511, %v1758
        %1760 = vdwg.mxu0
        %1761 = vmatprep.subr.mxu0 %v1348
        %1762 = vmatpush1.msra.mxu0 %v1347
        %1763 = vmatprep.subr.mxu0 %v1336
        %1764 = vmatpush1.msra.mxu0 %v1335
        %1765 = vmatprep.subr.mxu0 %v1324
        %1766 = vmatpush1.msra.mxu0 %v1323
        %1767 = vmatprep.subr.mxu0 %v1312
        %1768 = vmatpush1.msra.mxu0 %v1311
        %1769 = vmatprep.subr.mxu0 %v1300
        %1770 = vmatpush1.msra.mxu0 %v1299
        %1771 = vmatprep.subr.mxu0 %v1288
        %1772 = vmatpush1.msra.mxu0 %v1287
        %1773 = vmatprep.subr.mxu0 %v1276
        %1774 = vmatpush1.msra.mxu0 %v1275
        %1775 = vmatprep.subr.mxu0 %v1264
        %1776 = vmatpush1.msra.mxu0 %v1263
        %1777 = vmatprep.subr.mxu0 %v1252
        %1778 = vmatpush1.msra.mxu0 %v1251
        %1779 = vmatprep.subr.mxu0 %v1240
        %1780 = vmatpush1.msra.mxu0 %v1239
        %1781 = vmatprep.subr.mxu0 %v1228
        %1782 = vmatpush1.msra.mxu0 %v1227
        %1783 = vmatprep.subr.mxu0 %v1216
        %1784 = vmatpush1.msra.mxu0 %v1215
        %1785 = vmatprep.subr.mxu0 %v1204
        %1786 = vmatpush1.msra.mxu0 %v1203
        %1787 = vmatprep.subr.mxu0 %v1192
        %1788 = vmatpush1.msra.mxu0 %v1191
        %1789 = vmatprep.subr.mxu0 %v1180
        %1790 = vmatpush1.msra.mxu0 %v1179
        %1791 = vmatprep.subr.mxu0 %v1168
        %1792 = vmatpush1.msra.mxu0 %v1167
        %1793 = vmatprep.subr.mxu0 0.0
        %1794 = vmatpush2.msra.mxu0 0.0
        %1795 = vmatprep.subr.mxu0 0.0
        %1796 = vmatpush2.msra.mxu0 0.0
        %1797 = vmatprep.subr.mxu0 0.0
        %1798 = vmatpush2.msra.mxu0 0.0
        %1799 = vmatprep.subr.mxu0 0.0
        %1800 = vmatpush2.msra.mxu0 0.0
        %1801 = vmatprep.subr.mxu0 0.0
        %1802 = vmatpush2.msra.mxu0 0.0
        %1803 = vmatprep.subr.mxu0 0.0
        %1804 = vmatpush2.msra.mxu0 0.0
        %1805 = vmatprep.subr.mxu0 0.0
        %1806 = vmatpush2.msra.mxu0 0.0
        %1807 = vmatprep.subr.mxu0 0.0
        %1808 = vmatpush2.msra.mxu0 0.0
        %1809 = vmatprep.subr.mxu0 0.0
        %1810 = vmatpush2.msra.mxu0 0.0
        %1811 = vmatprep.subr.mxu0 0.0
        %1812 = vmatpush2.msra.mxu0 0.0
        %1813 = vmatprep.subr.mxu0 0.0
        %1814 = vmatpush2.msra.mxu0 0.0
        %1815 = vmatprep.subr.mxu0 0.0
        %1816 = vmatpush2.msra.mxu0 0.0
        %1817 = vmatprep.subr.mxu0 0.0
        %1818 = vmatpush2.msra.mxu0 0.0
        %1819 = vmatprep.subr.mxu0 0.0
        %1820 = vmatpush2.msra.mxu0 0.0
        %1821 = vmatprep.subr.mxu0 0.0
        %1822 = vmatpush2.msra.mxu0 0.0
        %1823 = vmatprep.subr.mxu0 0.0
        %1824 = vmatpush2.msra.mxu0 0.0
        %1825 = vmatprep.mubr.f32.mxu0 0.0
        %1826 = vmatmul.mubr.f32.gmra.mxu0 %v1485
        %v1827 = vpop.f32.mrf.mxu0
        %v1828 = vadd.f32 %v1515, %v1827
        %v1829 = vpop.f32.mrf.mxu0
        %v1830 = vadd.f32 %v1519, %v1829
        %1831 = vdwg.mxu0
        %1832 = vmatprep.subr.mxu0 %v1350
        %1833 = vmatpush1.msra.mxu0 %v1349
        %1834 = vmatprep.subr.mxu0 %v1338
        %1835 = vmatpush1.msra.mxu0 %v1337
        %1836 = vmatprep.subr.mxu0 %v1326
        %1837 = vmatpush1.msra.mxu0 %v1325
        %1838 = vmatprep.subr.mxu0 %v1314
        %1839 = vmatpush1.msra.mxu0 %v1313
        %1840 = vmatprep.subr.mxu0 %v1302
        %1841 = vmatpush1.msra.mxu0 %v1301
        %1842 = vmatprep.subr.mxu0 %v1290
        %1843 = vmatpush1.msra.mxu0 %v1289
        %1844 = vmatprep.subr.mxu0 %v1278
        %1845 = vmatpush1.msra.mxu0 %v1277
        %1846 = vmatprep.subr.mxu0 %v1266
        %1847 = vmatpush1.msra.mxu0 %v1265
        %1848 = vmatprep.subr.mxu0 %v1254
        %1849 = vmatpush1.msra.mxu0 %v1253
        %1850 = vmatprep.subr.mxu0 %v1242
        %1851 = vmatpush1.msra.mxu0 %v1241
        %1852 = vmatprep.subr.mxu0 %v1230
        %1853 = vmatpush1.msra.mxu0 %v1229
        %1854 = vmatprep.subr.mxu0 %v1218
        %1855 = vmatpush1.msra.mxu0 %v1217
        %1856 = vmatprep.subr.mxu0 %v1206
        %1857 = vmatpush1.msra.mxu0 %v1205
        %1858 = vmatprep.subr.mxu0 %v1194
        %1859 = vmatpush1.msra.mxu0 %v1193
        %1860 = vmatprep.subr.mxu0 %v1182
        %1861 = vmatpush1.msra.mxu0 %v1181
        %1862 = vmatprep.subr.mxu0 %v1170
        %1863 = vmatpush1.msra.mxu0 %v1169
        %1864 = vmatprep.subr.mxu0 0.0
        %1865 = vmatpush2.msra.mxu0 0.0
        %1866 = vmatprep.subr.mxu0 0.0
        %1867 = vmatpush2.msra.mxu0 0.0
        %1868 = vmatprep.subr.mxu0 0.0
        %1869 = vmatpush2.msra.mxu0 0.0
        %1870 = vmatprep.subr.mxu0 0.0
        %1871 = vmatpush2.msra.mxu0 0.0
        %1872 = vmatprep.subr.mxu0 0.0
        %1873 = vmatpush2.msra.mxu0 0.0
        %1874 = vmatprep.subr.mxu0 0.0
        %1875 = vmatpush2.msra.mxu0 0.0
        %1876 = vmatprep.subr.mxu0 0.0
        %1877 = vmatpush2.msra.mxu0 0.0
        %1878 = vmatprep.subr.mxu0 0.0
        %1879 = vmatpush2.msra.mxu0 0.0
        %1880 = vmatprep.subr.mxu0 0.0
        %1881 = vmatpush2.msra.mxu0 0.0
        %1882 = vmatprep.subr.mxu0 0.0
        %1883 = vmatpush2.msra.mxu0 0.0
        %1884 = vmatprep.subr.mxu0 0.0
        %1885 = vmatpush2.msra.mxu0 0.0
        %1886 = vmatprep.subr.mxu0 0.0
        %1887 = vmatpush2.msra.mxu0 0.0
        %1888 = vmatprep.subr.mxu0 0.0
        %1889 = vmatpush2.msra.mxu0 0.0
        %1890 = vmatprep.subr.mxu0 0.0
        %1891 = vmatpush2.msra.mxu0 0.0
        %1892 = vmatprep.subr.mxu0 0.0
        %1893 = vmatpush2.msra.mxu0 0.0
        %1894 = vmatprep.subr.mxu0 0.0
        %1895 = vmatpush2.msra.mxu0 0.0
        %1896 = vmatprep.mubr.f32.mxu0 0.0
        %1897 = vmatmul.mubr.f32.gmra.mxu0 %v1485
        %v1898 = vpop.f32.mrf.mxu0
        %v1899 = vadd.f32 %v1523, %v1898
        %v1900 = vpop.f32.mrf.mxu0
        %v1901 = vadd.f32 %v1527, %v1900
        %1902 = vdwg.mxu0
        %1903 = vmatprep.subr.mxu0 %v1352
        %1904 = vmatpush1.msra.mxu0 %v1351
        %1905 = vmatprep.subr.mxu0 %v1340
        %1906 = vmatpush1.msra.mxu0 %v1339
        %1907 = vmatprep.subr.mxu0 %v1328
        %1908 = vmatpush1.msra.mxu0 %v1327
        %1909 = vmatprep.subr.mxu0 %v1316
        %1910 = vmatpush1.msra.mxu0 %v1315
        %1911 = vmatprep.subr.mxu0 %v1304
        %1912 = vmatpush1.msra.mxu0 %v1303
        %1913 = vmatprep.subr.mxu0 %v1292
        %1914 = vmatpush1.msra.mxu0 %v1291
        %1915 = vmatprep.subr.mxu0 %v1280
        %1916 = vmatpush1.msra.mxu0 %v1279
        %1917 = vmatprep.subr.mxu0 %v1268
        %1918 = vmatpush1.msra.mxu0 %v1267
        %1919 = vmatprep.subr.mxu0 %v1256
        %1920 = vmatpush1.msra.mxu0 %v1255
        %1921 = vmatprep.subr.mxu0 %v1244
        %1922 = vmatpush1.msra.mxu0 %v1243
        %1923 = vmatprep.subr.mxu0 %v1232
        %1924 = vmatpush1.msra.mxu0 %v1231
        %1925 = vmatprep.subr.mxu0 %v1220
        %1926 = vmatpush1.msra.mxu0 %v1219
        %1927 = vmatprep.subr.mxu0 %v1208
        %1928 = vmatpush1.msra.mxu0 %v1207
        %1929 = vmatprep.subr.mxu0 %v1196
        %1930 = vmatpush1.msra.mxu0 %v1195
        %1931 = vmatprep.subr.mxu0 %v1184
        %1932 = vmatpush1.msra.mxu0 %v1183
        %1933 = vmatprep.subr.mxu0 %v1172
        %1934 = vmatpush1.msra.mxu0 %v1171
        %1935 = vmatprep.subr.mxu0 0.0
        %1936 = vmatpush2.msra.mxu0 0.0
        %1937 = vmatprep.subr.mxu0 0.0
        %1938 = vmatpush2.msra.mxu0 0.0
        %1939 = vmatprep.subr.mxu0 0.0
        %1940 = vmatpush2.msra.mxu0 0.0
        %1941 = vmatprep.subr.mxu0 0.0
        %1942 = vmatpush2.msra.mxu0 0.0
        %1943 = vmatprep.subr.mxu0 0.0
        %1944 = vmatpush2.msra.mxu0 0.0
        %1945 = vmatprep.subr.mxu0 0.0
        %1946 = vmatpush2.msra.mxu0 0.0
        %1947 = vmatprep.subr.mxu0 0.0
        %1948 = vmatpush2.msra.mxu0 0.0
        %1949 = vmatprep.subr.mxu0 0.0
        %1950 = vmatpush2.msra.mxu0 0.0
        %1951 = vmatprep.subr.mxu0 0.0
        %1952 = vmatpush2.msra.mxu0 0.0
        %1953 = vmatprep.subr.mxu0 0.0
        %1954 = vmatpush2.msra.mxu0 0.0
        %1955 = vmatprep.subr.mxu0 0.0
        %1956 = vmatpush2.msra.mxu0 0.0
        %1957 = vmatprep.subr.mxu0 0.0
        %1958 = vmatpush2.msra.mxu0 0.0
        %1959 = vmatprep.subr.mxu0 0.0
        %1960 = vmatpush2.msra.mxu0 0.0
        %1961 = vmatprep.subr.mxu0 0.0
        %1962 = vmatpush2.msra.mxu0 0.0
        %1963 = vmatprep.subr.mxu0 0.0
        %1964 = vmatpush2.msra.mxu0 0.0
        %1965 = vmatprep.subr.mxu0 0.0
        %1966 = vmatpush2.msra.mxu0 0.0
        %1967 = vmatprep.mubr.f32.mxu0 0.0
        %1968 = vmatmul.mubr.f32.gmra.mxu0 %v1485
        %v1969 = vpop.f32.mrf.mxu0
        %v1970 = vadd.f32 %v1531, %v1969
        %v1971 = vpop.f32.mrf.mxu0
        %v1972 = vadd.f32 %v1535, %v1971
        %1973 = vdwg.mxu0
        %1974 = vmatprep.subr.mxu0 0.0
        %1975 = vmatpush1.xpose.msra.mxu0 0.0
        %1976 = vmatprep.subr.mxu0 0.0
        %1977 = vmatpush1.xpose.msra.mxu0 0.0
        %1978 = vmatprep.subr.mxu0 0.0
        %1979 = vmatpush1.xpose.msra.mxu0 0.0
        %1980 = vmatprep.subr.mxu0 0.0
        %1981 = vmatpush1.xpose.msra.mxu0 0.0
        %1982 = vmatprep.subr.mxu0 0.0
        %1983 = vmatpush1.xpose.msra.mxu0 0.0
        %1984 = vmatprep.subr.mxu0 0.0
        %1985 = vmatpush1.xpose.msra.mxu0 0.0
        %1986 = vmatprep.subr.mxu0 0.0
        %1987 = vmatpush1.xpose.msra.mxu0 0.0
        %1988 = vmatprep.subr.mxu0 0.0
        %1989 = vmatpush1.xpose.msra.mxu0 0.0
        %1990 = vmatprep.subr.mxu0 0.0
        %1991 = vmatpush1.xpose.msra.mxu0 0.0
        %1992 = vmatprep.subr.mxu0 0.0
        %1993 = vmatpush1.xpose.msra.mxu0 0.0
        %1994 = vmatprep.subr.mxu0 0.0
        %1995 = vmatpush1.xpose.msra.mxu0 0.0
        %1996 = vmatprep.subr.mxu0 0.0
        %1997 = vmatpush1.xpose.msra.mxu0 0.0
        %1998 = vmatprep.subr.mxu0 0.0
        %1999 = vmatpush1.xpose.msra.mxu0 0.0
        %2000 = vmatprep.subr.mxu0 0.0
        %2001 = vmatpush1.xpose.msra.mxu0 0.0
        %2002 = vmatprep.subr.mxu0 0.0
        %2003 = vmatpush1.xpose.msra.mxu0 0.0
        %2004 = vmatprep.subr.mxu0 0.0
        %2005 = vmatpush1.xpose.msra.mxu0 %v1757
        %2006 = vmatprep.subr.mxu0 0.0
        %2007 = vmatpush2.xpose.msra.mxu0 0.0
        %2008 = vmatprep.subr.mxu0 0.0
        %2009 = vmatpush2.xpose.msra.mxu0 0.0
        %2010 = vmatprep.subr.mxu0 0.0
        %2011 = vmatpush2.xpose.msra.mxu0 0.0
        %2012 = vmatprep.subr.mxu0 0.0
        %2013 = vmatpush2.xpose.msra.mxu0 0.0
        %2014 = vmatprep.subr.mxu0 0.0
        %2015 = vmatpush2.xpose.msra.mxu0 0.0
        %2016 = vmatprep.subr.mxu0 0.0
        %2017 = vmatpush2.xpose.msra.mxu0 0.0
        %2018 = vmatprep.subr.mxu0 0.0
        %2019 = vmatpush2.xpose.msra.mxu0 0.0
        %2020 = vmatprep.subr.mxu0 0.0
        %2021 = vmatpush2.xpose.msra.mxu0 0.0
        %2022 = vmatprep.subr.mxu0 0.0
        %2023 = vmatpush2.xpose.msra.mxu0 0.0
        %2024 = vmatprep.subr.mxu0 0.0
        %2025 = vmatpush2.xpose.msra.mxu0 0.0
        %2026 = vmatprep.subr.mxu0 0.0
        %2027 = vmatpush2.xpose.msra.mxu0 0.0
        %2028 = vmatprep.subr.mxu0 0.0
        %2029 = vmatpush2.xpose.msra.mxu0 0.0
        %2030 = vmatprep.subr.mxu0 0.0
        %2031 = vmatpush2.xpose.msra.mxu0 0.0
        %2032 = vmatprep.subr.mxu0 0.0
        %2033 = vmatpush2.xpose.msra.mxu0 0.0
        %2034 = vmatprep.subr.mxu0 0.0
        %2035 = vmatpush2.xpose.msra.mxu0 0.0
        %2036 = vmatprep.subr.mxu0 0.0
        %2037 = vmatpush2.xpose.msra.mxu0 0.0
        %2038 = vmatprep.mubr.f32.mxu0 0.0
        %2039 = vmatmul.mubr.f32.gmra.mxu0 %v1615
        %v2040 = vpop.f32.mrf.mxu0
        %v2041 = vadd.f32 0.0, %v2040
        %v2042 = vpop.f32.mrf.mxu0
        %2043 = vdwg.mxu0
        %v2044 = vmul.f32 %v2041, 0.35355338
        %v2045 = vadd.f32 %v2044, %v1158
        %vm2046 = vcmask 64512
        %v2047 = vsel %vm2046, %v2045, -inf
        %2048 = vmax.xlane.f32.xlu0 %v2047
        %v2049 = vpop.xlane.xlu0 %2048
        %v2050 = vsub.f32 %v2045, %v2049
        %v2051 = vmul.f32 %v2050, 1.442695
        %v2052 = vpow.pop %v2051
        %v2053 = vsel %vm2046, %v2052, 0.0
        %2054 = vadd.xlane.f32.xlu0 %v2053
        %v2055 = vpop.xlane.xlu0 %2054
        %v2056 = vrcp.pop %v2055
        %v2057 = vmul.f32 %v2052, %v2056
        %v2059 = vsel %vm2046, %v2057, 0
        %2061 = vmatprep.subr.mxu0 0.0
        %2062 = vmatpush1.msra.mxu0 0.0
        %2063 = vmatprep.subr.mxu0 0.0
        %2064 = vmatpush1.msra.mxu0 0.0
        %2065 = vmatprep.subr.mxu0 0.0
        %2066 = vmatpush1.msra.mxu0 0.0
        %2067 = vmatprep.subr.mxu0 0.0
        %2068 = vmatpush1.msra.mxu0 0.0
        %2069 = vmatprep.subr.mxu0 0.0
        %2070 = vmatpush1.msra.mxu0 0.0
        %2071 = vmatprep.subr.mxu0 0.0
        %2072 = vmatpush1.msra.mxu0 0.0
        %2073 = vmatprep.subr.mxu0 0.0
        %2074 = vmatpush1.msra.mxu0 0.0
        %2075 = vmatprep.subr.mxu0 0.0
        %2076 = vmatpush1.msra.mxu0 0.0
        %2077 = vmatprep.subr.mxu0 0.0
        %2078 = vmatpush1.msra.mxu0 0.0
        %2079 = vmatprep.subr.mxu0 0.0
        %2080 = vmatpush1.msra.mxu0 0.0
        %2081 = vmatprep.subr.mxu0 0.0
        %2082 = vmatpush1.msra.mxu0 0.0
        %2083 = vmatprep.subr.mxu0 0.0
        %2084 = vmatpush1.msra.mxu0 0.0
        %2085 = vmatprep.subr.mxu0 0.0
        %2086 = vmatpush1.msra.mxu0 0.0
        %2087 = vmatprep.subr.mxu0 0.0
        %2088 = vmatpush1.msra.mxu0 0.0
        %2089 = vmatprep.subr.mxu0 0.0
        %2090 = vmatpush1.msra.mxu0 0.0
        %2091 = vmatprep.subr.mxu0 0.0
        %2092 = vmatpush1.msra.mxu0 %v1899
        %2093 = vmatprep.subr.mxu0 0.0
        %2094 = vmatpush2.msra.mxu0 0.0
        %2095 = vmatprep.subr.mxu0 0.0
        %2096 = vmatpush2.msra.mxu0 0.0
        %2097 = vmatprep.subr.mxu0 0.0
        %2098 = vmatpush2.msra.mxu0 0.0
        %2099 = vmatprep.subr.mxu0 0.0
        %2100 = vmatpush2.msra.mxu0 0.0
        %2101 = vmatprep.subr.mxu0 0.0
        %2102 = vmatpush2.msra.mxu0 0.0
        %2103 = vmatprep.subr.mxu0 0.0
        %2104 = vmatpush2.msra.mxu0 0.0
        %2105 = vmatprep.subr.mxu0 0.0
        %2106 = vmatpush2.msra.mxu0 0.0
        %2107 = vmatprep.subr.mxu0 0.0
        %2108 = vmatpush2.msra.mxu0 0.0
        %2109 = vmatprep.subr.mxu0 0.0
        %2110 = vmatpush2.msra.mxu0 0.0
        %2111 = vmatprep.subr.mxu0 0.0
        %2112 = vmatpush2.msra.mxu0 0.0
        %2113 = vmatprep.subr.mxu0 0.0
        %2114 = vmatpush2.msra.mxu0 0.0
        %2115 = vmatprep.subr.mxu0 0.0
        %2116 = vmatpush2.msra.mxu0 0.0
        %2117 = vmatprep.subr.mxu0 0.0
        %2118 = vmatpush2.msra.mxu0 0.0
        %2119 = vmatprep.subr.mxu0 0.0
        %2120 = vmatpush2.msra.mxu0 0.0
        %2121 = vmatprep.subr.mxu0 0.0
        %2122 = vmatpush2.msra.mxu0 0.0
        %2123 = vmatprep.subr.mxu0 0.0
        %2124 = vmatpush2.msra.mxu0 0.0
        %2125 = vmatprep.mubr.f32.mxu0 0.0
        %2126 = vmatmul.mubr.f32.gmra.mxu0 %v2059
        %v2127 = vpop.f32.mrf.mxu0
        %v2128 = vadd.f32 0.0, %v2127
        %v2129 = vpop.f32.mrf.mxu0
        %2130 = vdwg.mxu0
        %2131 = vmatprep.subr.mxu0 0.0
        %2132 = vmatpush1.xpose.msra.mxu0 0.0
        %2133 = vmatprep.subr.mxu0 0.0
        %2134 = vmatpush1.xpose.msra.mxu0 0.0
        %2135 = vmatprep.subr.mxu0 0.0
        %2136 = vmatpush1.xpose.msra.mxu0 0.0
        %2137 = vmatprep.subr.mxu0 0.0
        %2138 = vmatpush1.xpose.msra.mxu0 0.0
        %2139 = vmatprep.subr.mxu0 0.0
        %2140 = vmatpush1.xpose.msra.mxu0 0.0
        %2141 = vmatprep.subr.mxu0 0.0
        %2142 = vmatpush1.xpose.msra.mxu0 0.0
        %2143 = vmatprep.subr.mxu0 0.0
        %2144 = vmatpush1.xpose.msra.mxu0 0.0
        %2145 = vmatprep.subr.mxu0 0.0
        %2146 = vmatpush1.xpose.msra.mxu0 0.0
        %2147 = vmatprep.subr.mxu0 0.0
        %2148 = vmatpush1.xpose.msra.mxu0 0.0
        %2149 = vmatprep.subr.mxu0 0.0
        %2150 = vmatpush1.xpose.msra.mxu0 0.0
        %2151 = vmatprep.subr.mxu0 0.0
        %2152 = vmatpush1.xpose.msra.mxu0 0.0
        %2153 = vmatprep.subr.mxu0 0.0
        %2154 = vmatpush1.xpose.msra.mxu0 0.0
        %2155 = vmatprep.subr.mxu0 0.0
        %2156 = vmatpush1.xpose.msra.mxu0 0.0
        %2157 = vmatprep.subr.mxu0 0.0
        %2158 = vmatpush1.xpose.msra.mxu0 0.0
        %2159 = vmatprep.subr.mxu0 0.0
        %2160 = vmatpush1.xpose.msra.mxu0 0.0
        %2161 = vmatprep.subr.mxu0 0.0
        %2162 = vmatpush1.xpose.msra.mxu0 %v1759
        %2163 = vmatprep.subr.mxu0 0.0
        %2164 = vmatpush2.xpose.msra.mxu0 0.0
        %2165 = vmatprep.subr.mxu0 0.0
        %2166 = vmatpush2.xpose.msra.mxu0 0.0
        %2167 = vmatprep.subr.mxu0 0.0
        %2168 = vmatpush2.xpose.msra.mxu0 0.0
        %2169 = vmatprep.subr.mxu0 0.0
        %2170 = vmatpush2.xpose.msra.mxu0 0.0
        %2171 = vmatprep.subr.mxu0 0.0
        %2172 = vmatpush2.xpose.msra.mxu0 0.0
        %2173 = vmatprep.subr.mxu0 0.0
        %2174 = vmatpush2.xpose.msra.mxu0 0.0
        %2175 = vmatprep.subr.mxu0 0.0
        %2176 = vmatpush2.xpose.msra.mxu0 0.0
        %2177 = vmatprep.subr.mxu0 0.0
        %2178 = vmatpush2.xpose.msra.mxu0 0.0
        %2179 = vmatprep.subr.mxu0 0.0
        %2180 = vmatpush2.xpose.msra.mxu0 0.0
        %2181 = vmatprep.subr.mxu0 0.0
        %2182 = vmatpush2.xpose.msra.mxu0 0.0
        %2183 = vmatprep.subr.mxu0 0.0
        %2184 = vmatpush2.xpose.msra.mxu0 0.0
        %2185 = vmatprep.subr.mxu0 0.0
        %2186 = vmatpush2.xpose.msra.mxu0 0.0
        %2187 = vmatprep.subr.mxu0 0.0
        %2188 = vmatpush2.xpose.msra.mxu0 0.0
        %2189 = vmatprep.subr.mxu0 0.0
        %2190 = vmatpush2.xpose.msra.mxu0 0.0
        %2191 = vmatprep.subr.mxu0 0.0
        %2192 = vmatpush2.xpose.msra.mxu0 0.0
        %2193 = vmatprep.subr.mxu0 0.0
        %2194 = vmatpush2.xpose.msra.mxu0 0.0
        %2195 = vmatprep.mubr.f32.mxu0 0.0
        %2196 = vmatmul.mubr.f32.gmra.mxu0 %v1617
        %v2197 = vpop.f32.mrf.mxu0
        %v2198 = vadd.f32 0.0, %v2197
        %v2199 = vpop.f32.mrf.mxu0
        %2200 = vdwg.mxu0
        %v2201 = vmul.f32 %v2198, 0.35355338
        %v2202 = vadd.f32 %v2201, %v1158
        %v2203 = vsel %vm2046, %v2202, -inf
        %2204 = vmax.xlane.f32.xlu0 %v2203
        %v2205 = vpop.xlane.xlu0 %2204
        %v2206 = vsub.f32 %v2202, %v2205
        %v2207 = vmul.f32 %v2206, 1.442695
        %v2208 = vpow.pop %v2207
        %v2209 = vsel %vm2046, %v2208, 0.0
        %2210 = vadd.xlane.f32.xlu0 %v2209
        %v2211 = vpop.xlane.xlu0 %2210
        %v2212 = vrcp.pop %v2211
        %v2213 = vmul.f32 %v2208, %v2212
        %v2215 = vsel %vm2046, %v2213, 0
        %2217 = vmatprep.subr.mxu0 0.0
        %2218 = vmatpush1.msra.mxu0 0.0
        %2219 = vmatprep.subr.mxu0 0.0
        %2220 = vmatpush1.msra.mxu0 0.0
        %2221 = vmatprep.subr.mxu0 0.0
        %2222 = vmatpush1.msra.mxu0 0.0
        %2223 = vmatprep.subr.mxu0 0.0
        %2224 = vmatpush1.msra.mxu0 0.0
        %2225 = vmatprep.subr.mxu0 0.0
        %2226 = vmatpush1.msra.mxu0 0.0
        %2227 = vmatprep.subr.mxu0 0.0
        %2228 = vmatpush1.msra.mxu0 0.0
        %2229 = vmatprep.subr.mxu0 0.0
        %2230 = vmatpush1.msra.mxu0 0.0
        %2231 = vmatprep.subr.mxu0 0.0
        %2232 = vmatpush1.msra.mxu0 0.0
        %2233 = vmatprep.subr.mxu0 0.0
        %2234 = vmatpush1.msra.mxu0 0.0
        %2235 = vmatprep.subr.mxu0 0.0
        %2236 = vmatpush1.msra.mxu0 0.0
        %2237 = vmatprep.subr.mxu0 0.0
        %2238 = vmatpush1.msra.mxu0 0.0
        %2239 = vmatprep.subr.mxu0 0.0
        %2240 = vmatpush1.msra.mxu0 0.0
        %2241 = vmatprep.subr.mxu0 0.0
        %2242 = vmatpush1.msra.mxu0 0.0
        %2243 = vmatprep.subr.mxu0 0.0
        %2244 = vmatpush1.msra.mxu0 0.0
        %2245 = vmatprep.subr.mxu0 0.0
        %2246 = vmatpush1.msra.mxu0 0.0
        %2247 = vmatprep.subr.mxu0 0.0
        %2248 = vmatpush1.msra.mxu0 %v1901
        %2249 = vmatprep.subr.mxu0 0.0
        %2250 = vmatpush2.msra.mxu0 0.0
        %2251 = vmatprep.subr.mxu0 0.0
        %2252 = vmatpush2.msra.mxu0 0.0
        %2253 = vmatprep.subr.mxu0 0.0
        %2254 = vmatpush2.msra.mxu0 0.0
        %2255 = vmatprep.subr.mxu0 0.0
        %2256 = vmatpush2.msra.mxu0 0.0
        %2257 = vmatprep.subr.mxu0 0.0
        %2258 = vmatpush2.msra.mxu0 0.0
        %2259 = vmatprep.subr.mxu0 0.0
        %2260 = vmatpush2.msra.mxu0 0.0
        %2261 = vmatprep.subr.mxu0 0.0
        %2262 = vmatpush2.msra.mxu0 0.0
        %2263 = vmatprep.subr.mxu0 0.0
        %2264 = vmatpush2.msra.mxu0 0.0
        %2265 = vmatprep.subr.mxu0 0.0
        %2266 = vmatpush2.msra.mxu0 0.0
        %2267 = vmatprep.subr.mxu0 0.0
        %2268 = vmatpush2.msra.mxu0 0.0
        %2269 = vmatprep.subr.mxu0 0.0
        %2270 = vmatpush2.msra.mxu0 0.0
        %2271 = vmatprep.subr.mxu0 0.0
        %2272 = vmatpush2.msra.mxu0 0.0
        %2273 = vmatprep.subr.mxu0 0.0
        %2274 = vmatpush2.msra.mxu0 0.0
        %2275 = vmatprep.subr.mxu0 0.0
        %2276 = vmatpush2.msra.mxu0 0.0
        %2277 = vmatprep.subr.mxu0 0.0
        %2278 = vmatpush2.msra.mxu0 0.0
        %2279 = vmatprep.subr.mxu0 0.0
        %2280 = vmatpush2.msra.mxu0 0.0
        %2281 = vmatprep.mubr.f32.mxu0 0.0
        %2282 = vmatmul.mubr.f32.gmra.mxu0 %v2215
        %v2283 = vpop.f32.mrf.mxu0
        %v2284 = vadd.f32 0.0, %v2283
        %v2285 = vpop.f32.mrf.mxu0
        %2286 = vdwg.mxu0
        %2287 = vmatprep.subr.mxu0 0.0
        %2288 = vmatpush1.xpose.msra.mxu0 0.0
        %2289 = vmatprep.subr.mxu0 0.0
        %2290 = vmatpush1.xpose.msra.mxu0 0.0
        %2291 = vmatprep.subr.mxu0 0.0
        %2292 = vmatpush1.xpose.msra.mxu0 0.0
        %2293 = vmatprep.subr.mxu0 0.0
        %2294 = vmatpush1.xpose.msra.mxu0 0.0
        %2295 = vmatprep.subr.mxu0 0.0
        %2296 = vmatpush1.xpose.msra.mxu0 0.0
        %2297 = vmatprep.subr.mxu0 0.0
        %2298 = vmatpush1.xpose.msra.mxu0 0.0
        %2299 = vmatprep.subr.mxu0 0.0
        %2300 = vmatpush1.xpose.msra.mxu0 0.0
        %2301 = vmatprep.subr.mxu0 0.0
        %2302 = vmatpush1.xpose.msra.mxu0 0.0
        %2303 = vmatprep.subr.mxu0 0.0
        %2304 = vmatpush1.xpose.msra.mxu0 0.0
        %2305 = vmatprep.subr.mxu0 0.0
        %2306 = vmatpush1.xpose.msra.mxu0 0.0
        %2307 = vmatprep.subr.mxu0 0.0
        %2308 = vmatpush1.xpose.msra.mxu0 0.0
        %2309 = vmatprep.subr.mxu0 0.0
        %2310 = vmatpush1.xpose.msra.mxu0 0.0
        %2311 = vmatprep.subr.mxu0 0.0
        %2312 = vmatpush1.xpose.msra.mxu0 0.0
        %2313 = vmatprep.subr.mxu0 0.0
        %2314 = vmatpush1.xpose.msra.mxu0 0.0
        %2315 = vmatprep.subr.mxu0 0.0
        %2316 = vmatpush1.xpose.msra.mxu0 0.0
        %2317 = vmatprep.subr.mxu0 0.0
        %2318 = vmatpush1.xpose.msra.mxu0 %v1828
        %2319 = vmatprep.subr.mxu0 0.0
        %2320 = vmatpush2.xpose.msra.mxu0 0.0
        %2321 = vmatprep.subr.mxu0 0.0
        %2322 = vmatpush2.xpose.msra.mxu0 0.0
        %2323 = vmatprep.subr.mxu0 0.0
        %2324 = vmatpush2.xpose.msra.mxu0 0.0
        %2325 = vmatprep.subr.mxu0 0.0
        %2326 = vmatpush2.xpose.msra.mxu0 0.0
        %2327 = vmatprep.subr.mxu0 0.0
        %2328 = vmatpush2.xpose.msra.mxu0 0.0
        %2329 = vmatprep.subr.mxu0 0.0
        %2330 = vmatpush2.xpose.msra.mxu0 0.0
        %2331 = vmatprep.subr.mxu0 0.0
        %2332 = vmatpush2.xpose.msra.mxu0 0.0
        %2333 = vmatprep.subr.mxu0 0.0
        %2334 = vmatpush2.xpose.msra.mxu0 0.0
        %2335 = vmatprep.subr.mxu0 0.0
        %2336 = vmatpush2.xpose.msra.mxu0 0.0
        %2337 = vmatprep.subr.mxu0 0.0
        %2338 = vmatpush2.xpose.msra.mxu0 0.0
        %2339 = vmatprep.subr.mxu0 0.0
        %2340 = vmatpush2.xpose.msra.mxu0 0.0
        %2341 = vmatprep.subr.mxu0 0.0
        %2342 = vmatpush2.xpose.msra.mxu0 0.0
        %2343 = vmatprep.subr.mxu0 0.0
        %2344 = vmatpush2.xpose.msra.mxu0 0.0
        %2345 = vmatprep.subr.mxu0 0.0
        %2346 = vmatpush2.xpose.msra.mxu0 0.0
        %2347 = vmatprep.subr.mxu0 0.0
        %2348 = vmatpush2.xpose.msra.mxu0 0.0
        %2349 = vmatprep.subr.mxu0 0.0
        %2350 = vmatpush2.xpose.msra.mxu0 0.0
        %2351 = vmatprep.mubr.f32.mxu0 0.0
        %2352 = vmatmul.mubr.f32.gmra.mxu0 %v1686
        %v2353 = vpop.f32.mrf.mxu0
        %v2354 = vadd.f32 0.0, %v2353
        %v2355 = vpop.f32.mrf.mxu0
        %2356 = vdwg.mxu0
        %v2357 = vmul.f32 %v2354, 0.35355338
        %v2358 = vadd.f32 %v2357, %v1158
        %v2359 = vsel %vm2046, %v2358, -inf
        %2360 = vmax.xlane.f32.xlu0 %v2359
        %v2361 = vpop.xlane.xlu0 %2360
        %v2362 = vsub.f32 %v2358, %v2361
        %v2363 = vmul.f32 %v2362, 1.442695
        %v2364 = vpow.pop %v2363
        %v2365 = vsel %vm2046, %v2364, 0.0
        %2366 = vadd.xlane.f32.xlu0 %v2365
        %v2367 = vpop.xlane.xlu0 %2366
        %v2368 = vrcp.pop %v2367
        %v2369 = vmul.f32 %v2364, %v2368
        %v2371 = vsel %vm2046, %v2369, 0
        %2373 = vmatprep.subr.mxu0 0.0
        %2374 = vmatpush1.msra.mxu0 0.0
        %2375 = vmatprep.subr.mxu0 0.0
        %2376 = vmatpush1.msra.mxu0 0.0
        %2377 = vmatprep.subr.mxu0 0.0
        %2378 = vmatpush1.msra.mxu0 0.0
        %2379 = vmatprep.subr.mxu0 0.0
        %2380 = vmatpush1.msra.mxu0 0.0
        %2381 = vmatprep.subr.mxu0 0.0
        %2382 = vmatpush1.msra.mxu0 0.0
        %2383 = vmatprep.subr.mxu0 0.0
        %2384 = vmatpush1.msra.mxu0 0.0
        %2385 = vmatprep.subr.mxu0 0.0
        %2386 = vmatpush1.msra.mxu0 0.0
        %2387 = vmatprep.subr.mxu0 0.0
        %2388 = vmatpush1.msra.mxu0 0.0
        %2389 = vmatprep.subr.mxu0 0.0
        %2390 = vmatpush1.msra.mxu0 0.0
        %2391 = vmatprep.subr.mxu0 0.0
        %2392 = vmatpush1.msra.mxu0 0.0
        %2393 = vmatprep.subr.mxu0 0.0
        %2394 = vmatpush1.msra.mxu0 0.0
        %2395 = vmatprep.subr.mxu0 0.0
        %2396 = vmatpush1.msra.mxu0 0.0
        %2397 = vmatprep.subr.mxu0 0.0
        %2398 = vmatpush1.msra.mxu0 0.0
        %2399 = vmatprep.subr.mxu0 0.0
        %2400 = vmatpush1.msra.mxu0 0.0
        %2401 = vmatprep.subr.mxu0 0.0
        %2402 = vmatpush1.msra.mxu0 0.0
        %2403 = vmatprep.subr.mxu0 0.0
        %2404 = vmatpush1.msra.mxu0 %v1970
        %2405 = vmatprep.subr.mxu0 0.0
        %2406 = vmatpush2.msra.mxu0 0.0
        %2407 = vmatprep.subr.mxu0 0.0
        %2408 = vmatpush2.msra.mxu0 0.0
        %2409 = vmatprep.subr.mxu0 0.0
        %2410 = vmatpush2.msra.mxu0 0.0
        %2411 = vmatprep.subr.mxu0 0.0
        %2412 = vmatpush2.msra.mxu0 0.0
        %2413 = vmatprep.subr.mxu0 0.0
        %2414 = vmatpush2.msra.mxu0 0.0
        %2415 = vmatprep.subr.mxu0 0.0
        %2416 = vmatpush2.msra.mxu0 0.0
        %2417 = vmatprep.subr.mxu0 0.0
        %2418 = vmatpush2.msra.mxu0 0.0
        %2419 = vmatprep.subr.mxu0 0.0
        %2420 = vmatpush2.msra.mxu0 0.0
        %2421 = vmatprep.subr.mxu0 0.0
        %2422 = vmatpush2.msra.mxu0 0.0
        %2423 = vmatprep.subr.mxu0 0.0
        %2424 = vmatpush2.msra.mxu0 0.0
        %2425 = vmatprep.subr.mxu0 0.0
        %2426 = vmatpush2.msra.mxu0 0.0
        %2427 = vmatprep.subr.mxu0 0.0
        %2428 = vmatpush2.msra.mxu0 0.0
        %2429 = vmatprep.subr.mxu0 0.0
        %2430 = vmatpush2.msra.mxu0 0.0
        %2431 = vmatprep.subr.mxu0 0.0
        %2432 = vmatpush2.msra.mxu0 0.0
        %2433 = vmatprep.subr.mxu0 0.0
        %2434 = vmatpush2.msra.mxu0 0.0
        %2435 = vmatprep.subr.mxu0 0.0
        %2436 = vmatpush2.msra.mxu0 0.0
        %2437 = vmatprep.mubr.f32.mxu0 0.0
        %2438 = vmatmul.mubr.f32.gmra.mxu0 %v2371
        %v2439 = vpop.f32.mrf.mxu0
        %v2440 = vadd.f32 0.0, %v2439
        %v2441 = vpop.f32.mrf.mxu0
        %2442 = vdwg.mxu0
        %2443 = vmatprep.subr.mxu0 0.0
        %2444 = vmatpush1.xpose.msra.mxu0 0.0
        %2445 = vmatprep.subr.mxu0 0.0
        %2446 = vmatpush1.xpose.msra.mxu0 0.0
        %2447 = vmatprep.subr.mxu0 0.0
        %2448 = vmatpush1.xpose.msra.mxu0 0.0
        %2449 = vmatprep.subr.mxu0 0.0
        %2450 = vmatpush1.xpose.msra.mxu0 0.0
        %2451 = vmatprep.subr.mxu0 0.0
        %2452 = vmatpush1.xpose.msra.mxu0 0.0
        %2453 = vmatprep.subr.mxu0 0.0
        %2454 = vmatpush1.xpose.msra.mxu0 0.0
        %2455 = vmatprep.subr.mxu0 0.0
        %2456 = vmatpush1.xpose.msra.mxu0 0.0
        %2457 = vmatprep.subr.mxu0 0.0
        %2458 = vmatpush1.xpose.msra.mxu0 0.0
        %2459 = vmatprep.subr.mxu0 0.0
        %2460 = vmatpush1.xpose.msra.mxu0 0.0
        %2461 = vmatprep.subr.mxu0 0.0
        %2462 = vmatpush1.xpose.msra.mxu0 0.0
        %2463 = vmatprep.subr.mxu0 0.0
        %2464 = vmatpush1.xpose.msra.mxu0 0.0
        %2465 = vmatprep.subr.mxu0 0.0
        %2466 = vmatpush1.xpose.msra.mxu0 0.0
        %2467 = vmatprep.subr.mxu0 0.0
        %2468 = vmatpush1.xpose.msra.mxu0 0.0
        %2469 = vmatprep.subr.mxu0 0.0
        %2470 = vmatpush1.xpose.msra.mxu0 0.0
        %2471 = vmatprep.subr.mxu0 0.0
        %2472 = vmatpush1.xpose.msra.mxu0 0.0
        %2473 = vmatprep.subr.mxu0 0.0
        %2474 = vmatpush1.xpose.msra.mxu0 %v1830
        %2475 = vmatprep.subr.mxu0 0.0
        %2476 = vmatpush2.xpose.msra.mxu0 0.0
        %2477 = vmatprep.subr.mxu0 0.0
        %2478 = vmatpush2.xpose.msra.mxu0 0.0
        %2479 = vmatprep.subr.mxu0 0.0
        %2480 = vmatpush2.xpose.msra.mxu0 0.0
        %2481 = vmatprep.subr.mxu0 0.0
        %2482 = vmatpush2.xpose.msra.mxu0 0.0
        %2483 = vmatprep.subr.mxu0 0.0
        %2484 = vmatpush2.xpose.msra.mxu0 0.0
        %2485 = vmatprep.subr.mxu0 0.0
        %2486 = vmatpush2.xpose.msra.mxu0 0.0
        %2487 = vmatprep.subr.mxu0 0.0
        %2488 = vmatpush2.xpose.msra.mxu0 0.0
        %2489 = vmatprep.subr.mxu0 0.0
        %2490 = vmatpush2.xpose.msra.mxu0 0.0
        %2491 = vmatprep.subr.mxu0 0.0
        %2492 = vmatpush2.xpose.msra.mxu0 0.0
        %2493 = vmatprep.subr.mxu0 0.0
        %2494 = vmatpush2.xpose.msra.mxu0 0.0
        %2495 = vmatprep.subr.mxu0 0.0
        %2496 = vmatpush2.xpose.msra.mxu0 0.0
        %2497 = vmatprep.subr.mxu0 0.0
        %2498 = vmatpush2.xpose.msra.mxu0 0.0
        %2499 = vmatprep.subr.mxu0 0.0
        %2500 = vmatpush2.xpose.msra.mxu0 0.0
        %2501 = vmatprep.subr.mxu0 0.0
        %2502 = vmatpush2.xpose.msra.mxu0 0.0
        %2503 = vmatprep.subr.mxu0 0.0
        %2504 = vmatpush2.xpose.msra.mxu0 0.0
        %2505 = vmatprep.subr.mxu0 0.0
        %2506 = vmatpush2.xpose.msra.mxu0 0.0
        %2507 = vmatprep.mubr.f32.mxu0 0.0
        %2508 = vmatmul.mubr.f32.gmra.mxu0 %v1688
        %v2509 = vpop.f32.mrf.mxu0
        %v2510 = vadd.f32 0.0, %v2509
        %v2511 = vpop.f32.mrf.mxu0
        %2512 = vdwg.mxu0
        %v2513 = vmul.f32 %v2510, 0.35355338
        %v2514 = vadd.f32 %v2513, %v1158
        %v2515 = vsel %vm2046, %v2514, -inf
        %2516 = vmax.xlane.f32.xlu0 %v2515
        %v2517 = vpop.xlane.xlu0 %2516
        %v2518 = vsub.f32 %v2514, %v2517
        %v2519 = vmul.f32 %v2518, 1.442695
        %v2520 = vpow.pop %v2519
        %v2521 = vsel %vm2046, %v2520, 0.0
        %2522 = vadd.xlane.f32.xlu0 %v2521
        %v2523 = vpop.xlane.xlu0 %2522
        %v2524 = vrcp.pop %v2523
        %v2525 = vmul.f32 %v2520, %v2524
        %v2527 = vsel %vm2046, %v2525, 0
        %2529 = vmatprep.subr.mxu0 0.0
        %2530 = vmatpush1.msra.mxu0 0.0
        %2531 = vmatprep.subr.mxu0 0.0
        %2532 = vmatpush1.msra.mxu0 0.0
        %2533 = vmatprep.subr.mxu0 0.0
        %2534 = vmatpush1.msra.mxu0 0.0
        %2535 = vmatprep.subr.mxu0 0.0
        %2536 = vmatpush1.msra.mxu0 0.0
        %2537 = vmatprep.subr.mxu0 0.0
        %2538 = vmatpush1.msra.mxu0 0.0
        %2539 = vmatprep.subr.mxu0 0.0
        %2540 = vmatpush1.msra.mxu0 0.0
        %2541 = vmatprep.subr.mxu0 0.0
        %2542 = vmatpush1.msra.mxu0 0.0
        %2543 = vmatprep.subr.mxu0 0.0
        %2544 = vmatpush1.msra.mxu0 0.0
        %2545 = vmatprep.subr.mxu0 0.0
        %2546 = vmatpush1.msra.mxu0 0.0
        %2547 = vmatprep.subr.mxu0 0.0
        %2548 = vmatpush1.msra.mxu0 0.0
        %2549 = vmatprep.subr.mxu0 0.0
        %2550 = vmatpush1.msra.mxu0 0.0
        %2551 = vmatprep.subr.mxu0 0.0
        %2552 = vmatpush1.msra.mxu0 0.0
        %2553 = vmatprep.subr.mxu0 0.0
        %2554 = vmatpush1.msra.mxu0 0.0
        %2555 = vmatprep.subr.mxu0 0.0
        %2556 = vmatpush1.msra.mxu0 0.0
        %2557 = vmatprep.subr.mxu0 0.0
        %2558 = vmatpush1.msra.mxu0 0.0
        %2559 = vmatprep.subr.mxu0 0.0
        %2560 = vmatpush1.msra.mxu0 %v1972
        %2561 = vmatprep.subr.mxu0 0.0
        %2562 = vmatpush2.msra.mxu0 0.0
        %2563 = vmatprep.subr.mxu0 0.0
        %2564 = vmatpush2.msra.mxu0 0.0
        %2565 = vmatprep.subr.mxu0 0.0
        %2566 = vmatpush2.msra.mxu0 0.0
        %2567 = vmatprep.subr.mxu0 0.0
        %2568 = vmatpush2.msra.mxu0 0.0
        %2569 = vmatprep.subr.mxu0 0.0
        %2570 = vmatpush2.msra.mxu0 0.0
        %2571 = vmatprep.subr.mxu0 0.0
        %2572 = vmatpush2.msra.mxu0 0.0
        %2573 = vmatprep.subr.mxu0 0.0
        %2574 = vmatpush2.msra.mxu0 0.0
        %2575 = vmatprep.subr.mxu0 0.0
        %2576 = vmatpush2.msra.mxu0 0.0
        %2577 = vmatprep.subr.mxu0 0.0
        %2578 = vmatpush2.msra.mxu0 0.0
        %2579 = vmatprep.subr.mxu0 0.0
        %2580 = vmatpush2.msra.mxu0 0.0
        %2581 = vmatprep.subr.mxu0 0.0
        %2582 = vmatpush2.msra.mxu0 0.0
        %2583 = vmatprep.subr.mxu0 0.0
        %2584 = vmatpush2.msra.mxu0 0.0
        %2585 = vmatprep.subr.mxu0 0.0
        %2586 = vmatpush2.msra.mxu0 0.0
        %2587 = vmatprep.subr.mxu0 0.0
        %2588 = vmatpush2.msra.mxu0 0.0
        %2589 = vmatprep.subr.mxu0 0.0
        %2590 = vmatpush2.msra.mxu0 0.0
        %2591 = vmatprep.subr.mxu0 0.0
        %2592 = vmatpush2.msra.mxu0 0.0
        %2593 = vmatprep.mubr.f32.mxu0 0.0
        %2594 = vmatmul.mubr.f32.gmra.mxu0 %v2527
        %v2595 = vpop.f32.mrf.mxu0
        %v2596 = vadd.f32 0.0, %v2595
        %v2597 = vpop.f32.mrf.mxu0
        %2598 = vdwg.mxu0
        %v2600 = vlaneseq
        %v2601 = vshrl.u32 %v2600, 7
        %v2602 = vsub.s32 0, %v2601
        %v2603 = vrot.slane %v1419, %v2602
        %2605 = vmatprep.subr.mxu0 0.0
        %2606 = vmatpush1.msra.mxu0 %v1370
        %2607 = vmatprep.subr.mxu0 0.0
        %2608 = vmatpush1.msra.mxu0 %v1369
        %2609 = vmatprep.subr.mxu0 0.0
        %2610 = vmatpush1.msra.mxu0 %v1368
        %2611 = vmatprep.subr.mxu0 0.0
        %2612 = vmatpush1.msra.mxu0 %v1367
        %2613 = vmatprep.subr.mxu0 0.0
        %2614 = vmatpush1.msra.mxu0 %v1366
        %2615 = vmatprep.subr.mxu0 0.0
        %2616 = vmatpush1.msra.mxu0 %v1365
        %2617 = vmatprep.subr.mxu0 0.0
        %2618 = vmatpush1.msra.mxu0 %v1364
        %2619 = vmatprep.subr.mxu0 0.0
        %2620 = vmatpush1.msra.mxu0 %v1363
        %2621 = vmatprep.subr.mxu0 0.0
        %2622 = vmatpush1.msra.mxu0 %v1362
        %2623 = vmatprep.subr.mxu0 0.0
        %2624 = vmatpush1.msra.mxu0 %v1361
        %2625 = vmatprep.subr.mxu0 0.0
        %2626 = vmatpush1.msra.mxu0 %v1360
        %2627 = vmatprep.subr.mxu0 0.0
        %2628 = vmatpush1.msra.mxu0 %v1359
        %2629 = vmatprep.subr.mxu0 0.0
        %2630 = vmatpush1.msra.mxu0 %v1358
        %2631 = vmatprep.subr.mxu0 0.0
        %2632 = vmatpush1.msra.mxu0 %v1357
        %2633 = vmatprep.subr.mxu0 0.0
        %2634 = vmatpush1.msra.mxu0 %v1356
        %2635 = vmatprep.subr.mxu0 0.0
        %2636 = vmatpush1.msra.mxu0 %v1355
        %2637 = vmatprep.subr.mxu0 0.0
        %2638 = vmatpush2.msra.mxu0 %v1386
        %2639 = vmatprep.subr.mxu0 0.0
        %2640 = vmatpush2.msra.mxu0 %v1385
        %2641 = vmatprep.subr.mxu0 0.0
        %2642 = vmatpush2.msra.mxu0 %v1384
        %2643 = vmatprep.subr.mxu0 0.0
        %2644 = vmatpush2.msra.mxu0 %v1383
        %2645 = vmatprep.subr.mxu0 0.0
        %2646 = vmatpush2.msra.mxu0 %v1382
        %2647 = vmatprep.subr.mxu0 0.0
        %2648 = vmatpush2.msra.mxu0 %v1381
        %2649 = vmatprep.subr.mxu0 0.0
        %2650 = vmatpush2.msra.mxu0 %v1380
        %2651 = vmatprep.subr.mxu0 0.0
        %2652 = vmatpush2.msra.mxu0 %v1379
        %2653 = vmatprep.subr.mxu0 0.0
        %2654 = vmatpush2.msra.mxu0 %v1378
        %2655 = vmatprep.subr.mxu0 0.0
        %2656 = vmatpush2.msra.mxu0 %v1377
        %2657 = vmatprep.subr.mxu0 0.0
        %2658 = vmatpush2.msra.mxu0 %v1376
        %2659 = vmatprep.subr.mxu0 0.0
        %2660 = vmatpush2.msra.mxu0 %v1375
        %2661 = vmatprep.subr.mxu0 0.0
        %2662 = vmatpush2.msra.mxu0 %v1374
        %2663 = vmatprep.subr.mxu0 0.0
        %2664 = vmatpush2.msra.mxu0 %v1373
        %2665 = vmatprep.subr.mxu0 0.0
        %2666 = vmatpush2.msra.mxu0 %v1372
        %2667 = vmatprep.subr.mxu0 0.0
        %2668 = vmatpush2.msra.mxu0 %v1371
        %2669 = vmatprep.mubr.f32.mxu0 %v2284
        %2670 = vmatmul.mubr.f32.gmra.mxu0 %v2128
        %v2671 = vpop.f32.mrf.mxu0
        %v2672 = vadd.f32 %v2603, %v2671
        %v2673 = vpop.f32.mrf.mxu0
        %2674 = vdwg.mxu0
        %2675 = vmatprep.subr.mxu0 0.0
        %2676 = vmatpush1.msra.mxu0 %v1402
        %2677 = vmatprep.subr.mxu0 0.0
        %2678 = vmatpush1.msra.mxu0 %v1401
        %2679 = vmatprep.subr.mxu0 0.0
        %2680 = vmatpush1.msra.mxu0 %v1400
        %2681 = vmatprep.subr.mxu0 0.0
        %2682 = vmatpush1.msra.mxu0 %v1399
        %2683 = vmatprep.subr.mxu0 0.0
        %2684 = vmatpush1.msra.mxu0 %v1398
        %2685 = vmatprep.subr.mxu0 0.0
        %2686 = vmatpush1.msra.mxu0 %v1397
        %2687 = vmatprep.subr.mxu0 0.0
        %2688 = vmatpush1.msra.mxu0 %v1396
        %2689 = vmatprep.subr.mxu0 0.0
        %2690 = vmatpush1.msra.mxu0 %v1395
        %2691 = vmatprep.subr.mxu0 0.0
        %2692 = vmatpush1.msra.mxu0 %v1394
        %2693 = vmatprep.subr.mxu0 0.0
        %2694 = vmatpush1.msra.mxu0 %v1393
        %2695 = vmatprep.subr.mxu0 0.0
        %2696 = vmatpush1.msra.mxu0 %v1392
        %2697 = vmatprep.subr.mxu0 0.0
        %2698 = vmatpush1.msra.mxu0 %v1391
        %2699 = vmatprep.subr.mxu0 0.0
        %2700 = vmatpush1.msra.mxu0 %v1390
        %2701 = vmatprep.subr.mxu0 0.0
        %2702 = vmatpush1.msra.mxu0 %v1389
        %2703 = vmatprep.subr.mxu0 0.0
        %2704 = vmatpush1.msra.mxu0 %v1388
        %2705 = vmatprep.subr.mxu0 0.0
        %2706 = vmatpush1.msra.mxu0 %v1387
        %2707 = vmatprep.subr.mxu0 0.0
        %2708 = vmatpush2.msra.mxu0 %v1418
        %2709 = vmatprep.subr.mxu0 0.0
        %2710 = vmatpush2.msra.mxu0 %v1417
        %2711 = vmatprep.subr.mxu0 0.0
        %2712 = vmatpush2.msra.mxu0 %v1416
        %2713 = vmatprep.subr.mxu0 0.0
        %2714 = vmatpush2.msra.mxu0 %v1415
        %2715 = vmatprep.subr.mxu0 0.0
        %2716 = vmatpush2.msra.mxu0 %v1414
        %2717 = vmatprep.subr.mxu0 0.0
        %2718 = vmatpush2.msra.mxu0 %v1413
        %2719 = vmatprep.subr.mxu0 0.0
        %2720 = vmatpush2.msra.mxu0 %v1412
        %2721 = vmatprep.subr.mxu0 0.0
        %2722 = vmatpush2.msra.mxu0 %v1411
        %2723 = vmatprep.subr.mxu0 0.0
        %2724 = vmatpush2.msra.mxu0 %v1410
        %2725 = vmatprep.subr.mxu0 0.0
        %2726 = vmatpush2.msra.mxu0 %v1409
        %2727 = vmatprep.subr.mxu0 0.0
        %2728 = vmatpush2.msra.mxu0 %v1408
        %2729 = vmatprep.subr.mxu0 0.0
        %2730 = vmatpush2.msra.mxu0 %v1407
        %2731 = vmatprep.subr.mxu0 0.0
        %2732 = vmatpush2.msra.mxu0 %v1406
        %2733 = vmatprep.subr.mxu0 0.0
        %2734 = vmatpush2.msra.mxu0 %v1405
        %2735 = vmatprep.subr.mxu0 0.0
        %2736 = vmatpush2.msra.mxu0 %v1404
        %2737 = vmatprep.subr.mxu0 0.0
        %2738 = vmatpush2.msra.mxu0 %v1403
        %2739 = vmatprep.mubr.f32.mxu0 %v2596
        %2740 = vmatmul.mubr.f32.gmra.mxu0 %v2440
        %v2741 = vpop.f32.mrf.mxu0
        %v2742 = vadd.f32 %v2672, %v2741
        %v2743 = vpop.f32.mrf.mxu0
        %2744 = vdwg.mxu0
        %v2745 = vadd.f32 %v1456, %v2742
        %2746 = vadd.xlane.f32.xlu0 %v2745
        %v2747 = vpop.xlane.xlu0 %2746
        %v2748 = vmul.f32 %v2747, 0.03125
        %v2749 = vsub.f32 %v2745, %v2748
        %v2750 = vmul.f32 %v2749, %v2749
        %v2751 = vmul.f32 %v2750, %v1459
        %2752 = vadd.xlane.f32.xlu0 %v2751
        %v2753 = vpop.xlane.xlu0 %2752
        %v2754 = vmul.f32 %v2753, 0.03125
        %v2755 = vadd.f32 %v2754, 1e-05
        %v2756 = vrsqrt.pop %v2755
        %v2757 = vmul.f32 %v2749, %v2756
        %v2759 = vlaneseq
        %v2760 = vshrl.u32 %v2759, 7
        %v2761 = vsub.s32 0, %v2760
        %v2762 = vrot.slane %v1420, %v2761
        %v2764 = vmul.f32 %v2757, %v2762
        %v2766 = vlaneseq
        %v2767 = vshrl.u32 %v2766, 7
        %v2768 = vsub.s32 0, %v2767
        %v2769 = vrot.slane %v1421, %v2768
        %v2771 = vadd.f32 %v2764, %v2769
        %v2773 = vlaneseq
        %v2774 = vshrl.u32 %v2773, 7
        %v2775 = vsub.s32 0, %v2774
        %v2776 = vrot.slane %v1438, %v2775
        %2778 = vmatprep.subr.mxu0 0.0
        %2779 = vmatpush1.msra.mxu0 %v1437
        %2780 = vmatprep.subr.mxu0 0.0
        %2781 = vmatpush1.msra.mxu0 %v1436
        %2782 = vmatprep.subr.mxu0 0.0
        %2783 = vmatpush1.msra.mxu0 %v1435
        %2784 = vmatprep.subr.mxu0 0.0
        %2785 = vmatpush1.msra.mxu0 %v1434
        %2786 = vmatprep.subr.mxu0 0.0
        %2787 = vmatpush1.msra.mxu0 %v1433
        %2788 = vmatprep.subr.mxu0 0.0
        %2789 = vmatpush1.msra.mxu0 %v1432
        %2790 = vmatprep.subr.mxu0 0.0
        %2791 = vmatpush1.msra.mxu0 %v1431
        %2792 = vmatprep.subr.mxu0 0.0
        %2793 = vmatpush1.msra.mxu0 %v1430
        %2794 = vmatprep.subr.mxu0 0.0
        %2795 = vmatpush1.msra.mxu0 %v1429
        %2796 = vmatprep.subr.mxu0 0.0
        %2797 = vmatpush1.msra.mxu0 %v1428
        %2798 = vmatprep.subr.mxu0 0.0
        %2799 = vmatpush1.msra.mxu0 %v1427
        %2800 = vmatprep.subr.mxu0 0.0
        %2801 = vmatpush1.msra.mxu0 %v1426
        %2802 = vmatprep.subr.mxu0 0.0
        %2803 = vmatpush1.msra.mxu0 %v1425
        %2804 = vmatprep.subr.mxu0 0.0
        %2805 = vmatpush1.msra.mxu0 %v1424
        %2806 = vmatprep.subr.mxu0 0.0
        %2807 = vmatpush1.msra.mxu0 %v1423
        %2808 = vmatprep.subr.mxu0 0.0
        %2809 = vmatpush1.msra.mxu0 %v1422
        %2810 = vmatprep.subr.mxu0 0.0
        %2811 = vmatpush2.msra.mxu0 0.0
        %2812 = vmatprep.subr.mxu0 0.0
        %2813 = vmatpush2.msra.mxu0 0.0
        %2814 = vmatprep.subr.mxu0 0.0
        %2815 = vmatpush2.msra.mxu0 0.0
        %2816 = vmatprep.subr.mxu0 0.0
        %2817 = vmatpush2.msra.mxu0 0.0
        %2818 = vmatprep.subr.mxu0 0.0
        %2819 = vmatpush2.msra.mxu0 0.0
        %2820 = vmatprep.subr.mxu0 0.0
        %2821 = vmatpush2.msra.mxu0 0.0
        %2822 = vmatprep.subr.mxu0 0.0
        %2823 = vmatpush2.msra.mxu0 0.0
        %2824 = vmatprep.subr.mxu0 0.0
        %2825 = vmatpush2.msra.mxu0 0.0
        %2826 = vmatprep.subr.mxu0 0.0
        %2827 = vmatpush2.msra.mxu0 0.0
        %2828 = vmatprep.subr.mxu0 0.0
        %2829 = vmatpush2.msra.mxu0 0.0
        %2830 = vmatprep.subr.mxu0 0.0
        %2831 = vmatpush2.msra.mxu0 0.0
        %2832 = vmatprep.subr.mxu0 0.0
        %2833 = vmatpush2.msra.mxu0 0.0
        %2834 = vmatprep.subr.mxu0 0.0
        %2835 = vmatpush2.msra.mxu0 0.0
        %2836 = vmatprep.subr.mxu0 0.0
        %2837 = vmatpush2.msra.mxu0 0.0
        %2838 = vmatprep.subr.mxu0 0.0
        %2839 = vmatpush2.msra.mxu0 0.0
        %2840 = vmatprep.subr.mxu0 0.0
        %2841 = vmatpush2.msra.mxu0 0.0
        %2842 = vmatprep.mubr.f32.mxu0 0.0
        %2843 = vmatmul.mubr.f32.gmra.mxu0 %v2771
        %v2844 = vpop.f32.mrf.mxu0
        %v2845 = vadd.f32 %v2776, %v2844
        %v2846 = vpop.f32.mrf.mxu0
        %2847 = vdwg.mxu0
        %v2848 = vmul.f32 %v2845, 1.702
        %v2849 = vxor.u32 %v2848, 2147483648
        %v2850 = vmul.f32 %v2849, 1.442695
        %v2851 = vpow.pop %v2850
        %v2852 = vadd.f32 %v2851, 1.0
        %v2853 = vrcp.pop %v2852
        %v2854 = vmul.f32 1.0, %v2853
        %v2855 = vmul.f32 %v2845, %v2854
        %v2857 = vlaneseq
        %v2858 = vshrl.u32 %v2857, 7
        %v2859 = vsub.s32 0, %v2858
        %v2860 = vrot.slane %v1455, %v2859
        %2862 = vmatprep.subr.mxu0 0.0
        %2863 = vmatpush1.msra.mxu0 %v1454
        %2864 = vmatprep.subr.mxu0 0.0
        %2865 = vmatpush1.msra.mxu0 %v1453
        %2866 = vmatprep.subr.mxu0 0.0
        %2867 = vmatpush1.msra.mxu0 %v1452
        %2868 = vmatprep.subr.mxu0 0.0
        %2869 = vmatpush1.msra.mxu0 %v1451
        %2870 = vmatprep.subr.mxu0 0.0
        %2871 = vmatpush1.msra.mxu0 %v1450
        %2872 = vmatprep.subr.mxu0 0.0
        %2873 = vmatpush1.msra.mxu0 %v1449
        %2874 = vmatprep.subr.mxu0 0.0
        %2875 = vmatpush1.msra.mxu0 %v1448
        %2876 = vmatprep.subr.mxu0 0.0
        %2877 = vmatpush1.msra.mxu0 %v1447
        %2878 = vmatprep.subr.mxu0 0.0
        %2879 = vmatpush1.msra.mxu0 %v1446
        %2880 = vmatprep.subr.mxu0 0.0
        %2881 = vmatpush1.msra.mxu0 %v1445
        %2882 = vmatprep.subr.mxu0 0.0
        %2883 = vmatpush1.msra.mxu0 %v1444
        %2884 = vmatprep.subr.mxu0 0.0
        %2885 = vmatpush1.msra.mxu0 %v1443
        %2886 = vmatprep.subr.mxu0 0.0
        %2887 = vmatpush1.msra.mxu0 %v1442
        %2888 = vmatprep.subr.mxu0 0.0
        %2889 = vmatpush1.msra.mxu0 %v1441
        %2890 = vmatprep.subr.mxu0 0.0
        %2891 = vmatpush1.msra.mxu0 %v1440
        %2892 = vmatprep.subr.mxu0 0.0
        %2893 = vmatpush1.msra.mxu0 %v1439
        %2894 = vmatprep.subr.mxu0 0.0
        %2895 = vmatpush2.msra.mxu0 0.0
        %2896 = vmatprep.subr.mxu0 0.0
        %2897 = vmatpush2.msra.mxu0 0.0
        %2898 = vmatprep.subr.mxu0 0.0
        %2899 = vmatpush2.msra.mxu0 0.0
        %2900 = vmatprep.subr.mxu0 0.0
        %2901 = vmatpush2.msra.mxu0 0.0
        %2902 = vmatprep.subr.mxu0 0.0
        %2903 = vmatpush2.msra.mxu0 0.0
        %2904 = vmatprep.subr.mxu0 0.0
        %2905 = vmatpush2.msra.mxu0 0.0
        %2906 = vmatprep.subr.mxu0 0.0
        %2907 = vmatpush2.msra.mxu0 0.0
        %2908 = vmatprep.subr.mxu0 0.0
        %2909 = vmatpush2.msra.mxu0 0.0
        %2910 = vmatprep.subr.mxu0 0.0
        %2911 = vmatpush2.msra.mxu0 0.0
        %2912 = vmatprep.subr.mxu0 0.0
        %2913 = vmatpush2.msra.mxu0 0.0
        %2914 = vmatprep.subr.mxu0 0.0
        %2915 = vmatpush2.msra.mxu0 0.0
        %2916 = vmatprep.subr.mxu0 0.0
        %2917 = vmatpush2.msra.mxu0 0.0
        %2918 = vmatprep.subr.mxu0 0.0
        %2919 = vmatpush2.msra.mxu0 0.0
        %2920 = vmatprep.subr.mxu0 0.0
        %2921 = vmatpush2.msra.mxu0 0.0
        %2922 = vmatprep.subr.mxu0 0.0
        %2923 = vmatpush2.msra.mxu0 0.0
        %2924 = vmatprep.subr.mxu0 0.0
        %2925 = vmatpush2.msra.mxu0 0.0
        %2926 = vmatprep.mubr.f32.mxu0 0.0
        %2927 = vmatmul.mubr.f32.gmra.mxu0 %v2855
        %v2928 = vpop.f32.mrf.mxu0
        %v2929 = vadd.f32 %v2860, %v2928
        %v2930 = vpop.f32.mrf.mxu0
        %2931 = vdwg.mxu0
        %v2932 = vadd.f32 %v2745, %v2929
        %2933 = vst [vmem:[#allocation2] sm:$0xff] %v2932
        %p2934 = scmp.eq.s32.totalorder %s36, 1
        // Predicated region
        $region157: #{clip_forward.3} parent=87 // pred_check
          %p2935 = pneg %p2934
        $region158: #{clip_forward.3} parent=87 // pred_check_branch
          %2937 = sbr.rel (%p2935) target = $region160
        $region159: #{clip_forward.3} parent=87 // pred_region
          %2938 = vst [vmem:[%s1011] sm:$0xff] %v2932
        $region160: #{clip_forward.3} parent=87 // pred_fallthru
          _
        %p2939 = scmp.lt.s32.totalorder %s35, 1
        %s2940 = scalar_select %p2939, %s35, 1
        %s2941 = smul.addr %s2940, 8
        %s2942 = scalar_lea.vmem %s17, %s2941
        // Predicated region
        $region161: #{clip_forward.3} parent=87 // pred_check
          %p2943 = pneg %p483
        $region162: #{clip_forward.3} parent=87 // pred_check_branch
          %2945 = sbr.rel (%p2943) target = $region164
        $region163: #{clip_forward.3} parent=87 // pred_region
          _
        $region164: #{clip_forward.3} parent=87 // pred_fallthru
          _
      $region88: #{clip_forward.3} parent=5 // pred_fallthru
        _
      %p2946 = scmp.le.s32.totalorder 2, %s26
      // Predicated region
      $region165: #{clip_forward.3} parent=5 // pred_check
        %p2947 = pneg %p2946
      $region166: #{clip_forward.3} parent=5 // pred_check_branch
        %2949 = sbr.rel (%p2947) target = $region168
      $region167: #{clip_forward.3} parent=5 // pred_region
        %s2950 = ssub.s32 %s26, 2
        // Predicated region
        $region169: #{clip_forward.3} parent=167 // pred_check
          %p2951 = pneg %p489
        $region170: #{clip_forward.3} parent=167 // pred_check_branch
          %2953 = sbr.rel (%p2951) target = $region172
        $region171: #{clip_forward.3} parent=167 // pred_region
          %p2954 = scmp.lt.s32.totalorder %s37, 1
          %s2955 = scalar_select %p2954, %s37, 1
          %s2956 = smul.addr %s2955, 8
          %s2957 = scalar_lea.vmem %s17, %s2956
        $region172: #{clip_forward.3} parent=167 // pred_fallthru
          _
      $region168: #{clip_forward.3} parent=5 // pred_fallthru
        _
    $region6: #{clip_forward.3} parent=1 // loop_footer
      %s30 = sadd.s32 1, %s26
    $region7: #{clip_forward.3} parent=1 // loop_footer_branch
      %25 = sbr.rel target = $region3
    $region8: #{clip_forward.3} parent=1 // loop_exit
      _
    %2958 = vsyncpa [#allocation4], 1
    %s2959 = scalar_lea.sflag [#allocation4], 1
    %2960 = vsyncpa %s2959, 1
    %2961 = vsyncpa [#allocation6], 1
    %2962 = vsyncpa [#allocation9], 1

</llo_original>
